<compile_context>
chip_gen: v7x
topology: tpu7x:2x2x1
jax: 0.10.0
libtpu: 0.0.40
codegen_flags: <defaults>
</compile_context>

<pallas_src>
import functools
import numpy as np
import jax
import jax.numpy as jnp
from jax import lax
from jax.experimental import pallas as pl
from jax.experimental.pallas import tpu as pltpu


# ----------------------------------------------------------------------------
# Pallas kernel: fused im2col-matmul + BN scale/shift + (ReLU) + (residual
# add) + (ReLU) for one M-tile of output rows.
# ----------------------------------------------------------------------------
def _conv_mm_kernel(*refs, relu, relu_before_add, use_add):
    if use_add:
        taps_ref, w_ref, scale_ref, shift_ref, add_ref, out_ref = refs
    else:
        taps_ref, w_ref, scale_ref, shift_ref, out_ref = refs
        add_ref = None

    # bf16 x bf16 -> f32 on the MXU; K = KH*KW*Cin (27..432) fills the
    # contraction depth far better than per-tap K = Cin.
    acc = jnp.dot(taps_ref[...], w_ref[...], preferred_element_type=jnp.float32)
    y = acc * scale_ref[...] + shift_ref[...]
    if relu_before_add:              # residual: ReLU(conv+BN) before the add
        y = jnp.maximum(y, 0.0)
    if use_add:
        y = y + add_ref[...].astype(jnp.float32)
    if relu:                         # final activation (after the add)
        y = jnp.maximum(y, 0.0)
    out_ref[...] = y.astype(out_ref.dtype)


# ----------------------------------------------------------------------------
# Conv wrapper
# ----------------------------------------------------------------------------
_DEF_TILE_M = 1024   # rows per grid step; multiple of 16 (bf16 sublane pack).
                     # Sized well under v7x's 64 MiB VMEM even at K=432.


def conv2d_pallas(x, w, scale, shift, *, stride=1, padding=0, relu=False,
                  relu_before_add=False, addend=None,
                  out_dtype=jnp.bfloat16, tile_m=_DEF_TILE_M):
    """2-D conv (+ folded BN scale/shift, optional ReLU / fused residual add).

    x: (N, H, W, Cin) NHWC.   w: (KH, KW, Cin, Cout).
    addend: optional (N, Ho, Wo, Cout) tensor added in the epilogue.
    """
    N, H, W, Cin = x.shape
    KH, KW, _, Cout = w.shape
    Ho = (H + 2 * padding - KH) // stride + 1
    Wo = (W + 2 * padding - KW) // stride + 1
    M = N * Ho * Wo
    K = KH * KW * Cin

    xb = x.astype(jnp.bfloat16)
    if padding:
        xb = jnp.pad(xb, ((0, 0), (padding, padding), (padding, padding), (0, 0)))

    if KH == 1 and KW == 1:
        # 1x1 conv: no patch duplication at all (just a strided view/reshape).
        taps = xb[:, 0:stride * Ho:stride, 0:stride * Wo:stride, :]
    else:
        # TODO(synk): replace the materialized bf16 im2col with in-kernel
        # halo-tile tap formation to cut input HBM traffic another ~KH*KW x.
        pieces = []
        for kh in range(KH):
            for kw in range(KW):
                pieces.append(xb[:, kh:kh + stride * Ho:stride,
                                 kw:kw + stride * Wo:stride, :])
        taps = jnp.concatenate(pieces, axis=-1)          # (N, Ho, Wo, K)
    taps = taps.reshape(M, K)

    wmat = w.reshape(K, Cout).astype(jnp.bfloat16)
    scale2 = scale.reshape(1, Cout).astype(jnp.float32)
    shift2 = shift.reshape(1, Cout).astype(jnp.float32)

    tm = min(tile_m, M)
    grid = (pl.cdiv(M, tm),)

    use_add = addend is not None
    kernel = functools.partial(_conv_mm_kernel, relu=relu,
                               relu_before_add=relu_before_add,
                               use_add=use_add)

    in_specs = [
        pl.BlockSpec((tm, K), lambda i: (i, 0)),          # taps: per-M tile
        pl.BlockSpec((K, Cout), lambda i: (0, 0)),        # weights: resident
        pl.BlockSpec((1, Cout), lambda i: (0, 0)),        # BN scale
        pl.BlockSpec((1, Cout), lambda i: (0, 0)),        # BN shift
    ]
    args = [taps, wmat, scale2, shift2]
    if use_add:
        # Addend streams through the pipeline one M-tile at a time.
        in_specs.append(pl.BlockSpec((tm, Cout), lambda i: (i, 0)))
        args.append(addend.reshape(M, Cout))

    out = pl.pallas_call(
        kernel,
        out_shape=jax.ShapeDtypeStruct((M, Cout), out_dtype),
        grid=grid,
        in_specs=in_specs,
        out_specs=pl.BlockSpec((tm, Cout), lambda i: (i, 0)),
        compiler_params=pltpu.CompilerParams(
            dimension_semantics=("parallel",),            # megacore-shardable
            vmem_limit_bytes=48 * 1024 * 1024),
    )(*args)
    return out.reshape(N, Ho, Wo, Cout)


# ----------------------------------------------------------------------------
# 2x bilinear upsample (align_corners=False), JAX glue.
# ----------------------------------------------------------------------------
def upsample2x_bilinear(x):
    """F.interpolate(x, scale_factor=2, mode='bilinear', align_corners=False).

    Separable 2x lerp with edge clamping.  The subsequent "+ inner(x)" add is
    fused into the Pallas 1x1-conv kernel (addend input), so this only costs
    one gather/interleave pass.
    """
    # TODO(synk): could be fused into the consuming conv kernel's epilogue to
    # save one full feature-map round trip per FPN level.
    def up_axis(x, axis):
        n = x.shape[axis]
        x_prev = jnp.concatenate(
            [lax.slice_in_dim(x, 0, 1, axis=axis),
             lax.slice_in_dim(x, 0, n - 1, axis=axis)], axis=axis)
        x_next = jnp.concatenate(
            [lax.slice_in_dim(x, 1, n, axis=axis),
             lax.slice_in_dim(x, n - 1, n, axis=axis)], axis=axis)
        even = 0.25 * x_prev + 0.75 * x
        odd = 0.75 * x + 0.25 * x_next
        stacked = jnp.stack([even, odd], axis=axis + 1)
        new_shape = list(x.shape)
        new_shape[axis] = 2 * n
        return stacked.reshape(new_shape)

    x = up_axis(x, 1)
    x = up_axis(x, 2)
    return x


# ----------------------------------------------------------------------------
# Parameter construction (deterministic, synthetic)
# ----------------------------------------------------------------------------
def _conv_params(key, kh, kw, cin, cout, *, bias=True, bn=True):
    k1, k2, k3, k4 = jax.random.split(key, 4)
    w = jax.random.normal(k1, (kh, kw, cin, cout), jnp.float32) \
        * (1.0 / np.sqrt(kh * kw * cin))
    b = (jax.random.normal(k2, (cout,), jnp.float32) * 0.1
         if bias else jnp.zeros((cout,), jnp.float32))
    if bn:  # eval-mode BN folded: running_mean=0, running_var=1, eps=1e-5
        gamma = 0.5 + jax.random.uniform(k3, (cout,), jnp.float32)
        beta = jax.random.normal(k4, (cout,), jnp.float32) * 0.1
        eps = 1e-5
        scale = gamma / jnp.sqrt(1.0 + eps)
        shift = beta + b * scale
    else:
        scale = jnp.ones((cout,), jnp.float32)
        shift = b
    return {'w': w, 'scale': scale, 'shift': shift}


def init_featurenet_params(key):
    keys = iter(jax.random.split(key, 32))
    p = {}
    p['conv1'] = _conv_params(next(keys), 3, 3, 3, 8, bias=False, bn=True)

    def res_block(cin, cout, stride):
        bp = {'stride': stride,
              'conv1': _conv_params(next(keys), 3, 3, cin, cout, bias=True, bn=True),
              'conv2': _conv_params(next(keys), 3, 3, cout, cout, bias=True, bn=True)}
        if stride != 1:
            bp['down'] = _conv_params(next(keys), 1, 1, cin, cout, bias=True, bn=True)
        return bp

    p['layer1'] = [res_block(8, 16, 2), res_block(16, 16, 1)]
    p['layer2'] = [res_block(16, 32, 2), res_block(32, 32, 1)]
    p['layer3'] = [res_block(32, 48, 2), res_block(48, 48, 1)]
    p['output3'] = _conv_params(next(keys), 3, 3, 48, 48, bias=True, bn=False)
    p['output2'] = _conv_params(next(keys), 3, 3, 48, 32, bias=True, bn=False)
    p['output1'] = _conv_params(next(keys), 3, 3, 48, 16, bias=True, bn=False)
    p['inner1'] = _conv_params(next(keys), 1, 1, 16, 48, bias=True, bn=False)
    p['inner2'] = _conv_params(next(keys), 1, 1, 32, 48, bias=True, bn=False)
    p['inner3'] = _conv_params(next(keys), 1, 1, 48, 48, bias=True, bn=False)  # unused (as in reference)
    return p


# ----------------------------------------------------------------------------
# Forward (test=False branch of FeatureNet.forward)
# ----------------------------------------------------------------------------
def _conv_op(x, cp, *, stride=1, padding=0, relu=False, relu_before_add=False,
             addend=None, out_dtype=jnp.bfloat16):
    return conv2d_pallas(x, cp['w'], cp['scale'], cp['shift'],
                         stride=stride, padding=padding, relu=relu,
                         relu_before_add=relu_before_add, addend=addend,
                         out_dtype=out_dtype)


def _residual_block(x, bp):
    stride = bp['stride']
    if stride != 1:
        shortcut = _conv_op(x, bp['down'], stride=stride, padding=0, relu=False)
    else:
        shortcut = x
    y = _conv_op(x, bp['conv1'], stride=stride, padding=1, relu=True)
    # conv2 + BN + ReLU, then residual add, then final ReLU — all fused into a
    # single Pallas epilogue (no separate add+ReLU HBM pass).
    return _conv_op(y, bp['conv2'], stride=1, padding=1,
                    relu=True, relu_before_add=True, addend=shortcut)


def featurenet_forward(params, x):
    """x: (B, V, 3, H, W) float32 (PyTorch NCHW-per-view convention)."""
    B, V, C, H, W = x.shape
    xf = x.reshape(B * V, C, H, W).transpose(0, 2, 3, 1)  # -> NHWC

    fea0 = _conv_op(xf, params['conv1'], stride=1, padding=1, relu=True)

    fea1 = fea0
    for bp in params['layer1']:
        fea1 = _residual_block(fea1, bp)
    fea2 = fea1
    for bp in params['layer2']:
        fea2 = _residual_block(fea2, bp)
    fea3 = fea2
    for bp in params['layer3']:
        fea3 = _residual_block(fea3, bp)

    out3 = _conv_op(fea3, params['output3'], stride=1, padding=1, relu=False,
                    out_dtype=jnp.float32)

    # intra_feat = upsample(fea3) + inner2(fea2)   (add fused into conv kernel)
    intra = _conv_op(fea2, params['inner2'], stride=1, padding=0, relu=False,
                     addend=upsample2x_bilinear(fea3))
    out2 = _conv_op(intra, params['output2'], stride=1, padding=1, relu=False,
                    out_dtype=jnp.float32)

    # intra_feat = upsample(intra_feat) + inner1(fea1)
    intra = _conv_op(fea1, params['inner1'], stride=1, padding=0, relu=False,
                     addend=upsample2x_bilinear(intra))
    out1 = _conv_op(intra, params['output1'], stride=1, padding=1, relu=False,
                    out_dtype=jnp.float32)

    def to_levels(o):
        # NHWC -> NCHW -> (B, V, C, h, w) -> unbind over V
        o = o.transpose(0, 3, 1, 2)
        o = o.reshape(B, V, o.shape[1], o.shape[2], o.shape[3])
        return tuple(o[:, v] for v in range(V))

    return {'level3': to_levels(out3),
            'level2': to_levels(out2),
            'level1': to_levels(out1)}


# ----------------------------------------------------------------------------
if __name__ == "__main__":
    key = jax.random.PRNGKey(0)
    k_param, k_in = jax.random.split(key)

    params = init_featurenet_params(k_param)

    B, V, C, H, W = 2, 2, 3, 16, 16
    x = jax.random.normal(k_in, (B, V, C, H, W), jnp.float32)

    fwd = jax.jit(lambda inp: featurenet_forward(params, inp))
    feas = fwd(x)
    jax.block_until_ready(feas)

    # sanity: expected pyramid shapes
    assert feas['level3'][0].shape == (B, 48, H // 8, W // 8)
    assert feas['level2'][0].shape == (B, 32, H // 4, W // 4)
    assert feas['level1'][0].shape == (B, 16, H // 2, W // 2)
    assert len(feas['level1']) == V
    assert feas['level1'][0].dtype == jnp.float32

    print("KERNEL_OK")
</pallas_src>

<mosaic_0001>
module attributes {stable_mosaic.version = 11 : i64} {
  func.func @_conv_mm_kernel(%arg0: i32, %arg1: memref<1024x27xbf16, #tpu.memory_space<vmem>>, %arg2: memref<27x8xbf16, #tpu.memory_space<vmem>>, %arg3: memref<1x8xf32, #tpu.memory_space<vmem>>, %arg4: memref<1x8xf32, #tpu.memory_space<vmem>>, %arg5: memref<1024x8xbf16, #tpu.memory_space<vmem>>) attributes {dimension_semantics = [#tpu.dimension_semantics<parallel>], iteration_bounds = array<i64: 1>, scalar_prefetch = 0 : i64, scratch_operands = 0 : i64, tpu.core_type = #tpu.core_type<tc>, window_params = [{transform_indices = @transform_0, window_bounds = array<i64: 1024, 27>}, {pipeline_mode = #tpu.pipeline_mode<synchronous>, transform_indices = @transform_1, window_bounds = array<i64: 27, 8>}, {pipeline_mode = #tpu.pipeline_mode<synchronous>, transform_indices = @transform_2, window_bounds = array<i64: 1, 8>}, {pipeline_mode = #tpu.pipeline_mode<synchronous>, transform_indices = @transform_3, window_bounds = array<i64: 1, 8>}, {transform_indices = @transform_4, window_bounds = array<i64: 1024, 8>}]} {
    %c0 = arith.constant 0 : index
    %c0_0 = arith.constant 0 : index
    %0 = vector.load %arg1[%c0, %c0_0] : memref<1024x27xbf16, #tpu.memory_space<vmem>>, vector<1024x27xbf16>
    %c0_1 = arith.constant 0 : index
    %c0_2 = arith.constant 0 : index
    %1 = vector.load %arg2[%c0_1, %c0_2] : memref<27x8xbf16, #tpu.memory_space<vmem>>, vector<27x8xbf16>
    %cst = arith.constant dense<0.000000e+00> : vector<1024x8xf32>
    %2 = tpu.matmul %0, %1, %cst {dimension_numbers = #tpu.dot_dimension_numbers<[1], [0], [0], [1], [0, 0, 1, 1], [], []>} : vector<1024x27xbf16>, vector<27x8xbf16>, vector<1024x8xf32> -> vector<1024x8xf32>
    %c0_3 = arith.constant 0 : index
    %c0_4 = arith.constant 0 : index
    %3 = vector.load %arg3[%c0_3, %c0_4] : memref<1x8xf32, #tpu.memory_space<vmem>>, vector<1x8xf32>
    %4 = vector.broadcast %3 : vector<1x8xf32> to vector<1024x8xf32>
    %5 = arith.mulf %2, %4 : vector<1024x8xf32>
    %c0_5 = arith.constant 0 : index
    %c0_6 = arith.constant 0 : index
    %6 = vector.load %arg4[%c0_5, %c0_6] : memref<1x8xf32, #tpu.memory_space<vmem>>, vector<1x8xf32>
    %7 = vector.broadcast %6 : vector<1x8xf32> to vector<1024x8xf32>
    %8 = arith.addf %5, %7 : vector<1024x8xf32>
    %cst_7 = arith.constant 0.000000e+00 : f32
    %9 = vector.broadcast %cst_7 : f32 to vector<1024x8xf32>
    %10 = arith.maximumf %8, %9 : vector<1024x8xf32>
    %11 = arith.truncf %10 : vector<1024x8xf32> to vector<1024x8xbf16>
    %c0_8 = arith.constant 0 : index
    %c0_9 = arith.constant 0 : index
    %12 = vector.load %arg5[%c0_8, %c0_9] : memref<1024x8xbf16, #tpu.memory_space<vmem>>, vector<1024x8xbf16>
    tpu.vector_store %arg5[%c0_8, %c0_9], %11 {strides = array<i32>} : memref<1024x8xbf16, #tpu.memory_space<vmem>>, vector<1024x8xbf16>,
    return
  }
  func.func @transform_0(%arg0: i32) -> (i32, i32) {
    %c0_i32 = arith.constant 0 : i32
    %c0_i32_0 = arith.constant 0 : i32
    return %arg0, %c0_i32 : i32, i32
  }
  func.func @transform_1(%arg0: i32) -> (i32, i32) {
    %c0_i32 = arith.constant 0 : i32
    %c0_i32_0 = arith.constant 0 : i32
    %c0_i32_1 = arith.constant 0 : i32
    return %c0_i32, %c0_i32_0 : i32, i32
  }
  func.func @transform_2(%arg0: i32) -> (i32, i32) {
    %c0_i32 = arith.constant 0 : i32
    %c0_i32_0 = arith.constant 0 : i32
    %c0_i32_1 = arith.constant 0 : i32
    return %c0_i32, %c0_i32_0 : i32, i32
  }
  func.func @transform_3(%arg0: i32) -> (i32, i32) {
    %c0_i32 = arith.constant 0 : i32
    %c0_i32_0 = arith.constant 0 : i32
    %c0_i32_1 = arith.constant 0 : i32
    return %c0_i32, %c0_i32_0 : i32, i32
  }
  func.func @transform_4(%arg0: i32) -> (i32, i32) {
    %c0_i32 = arith.constant 0 : i32
    %c0_i32_0 = arith.constant 0 : i32
    return %arg0, %c0_i32 : i32, i32
  }
}

module attributes {stable_mosaic.version = 11 : i64} {
  func.func @_conv_mm_kernel(%arg0: i32, %arg1: memref<256x72xbf16, #tpu.memory_space<vmem>>, %arg2: memref<72x16xbf16, #tpu.memory_space<vmem>>, %arg3: memref<1x16xf32, #tpu.memory_space<vmem>>, %arg4: memref<1x16xf32, #tpu.memory_space<vmem>>, %arg5: memref<256x16xbf16, #tpu.memory_space<vmem>>) attributes {dimension_semantics = [#tpu.dimension_semantics<parallel>], iteration_bounds = array<i64: 1>, scalar_prefetch = 0 : i64, scratch_operands = 0 : i64, tpu.core_type = #tpu.core_type<tc>, window_params = [{transform_indices = @transform_0, window_bounds = array<i64: 256, 72>}, {pipeline_mode = #tpu.pipeline_mode<synchronous>, transform_indices = @transform_1, window_bounds = array<i64: 72, 16>}, {pipeline_mode = #tpu.pipeline_mode<synchronous>, transform_indices = @transform_2, window_bounds = array<i64: 1, 16>}, {pipeline_mode = #tpu.pipeline_mode<synchronous>, transform_indices = @transform_3, window_bounds = array<i64: 1, 16>}, {transform_indices = @transform_4, window_bounds = array<i64: 256, 16>}]} {
    %c0 = arith.constant 0 : index
    %c0_0 = arith.constant 0 : index
    %0 = vector.load %arg1[%c0, %c0_0] : memref<256x72xbf16, #tpu.memory_space<vmem>>, vector<256x72xbf16>
    %c0_1 = arith.constant 0 : index
    %c0_2 = arith.constant 0 : index
    %1 = vector.load %arg2[%c0_1, %c0_2] : memref<72x16xbf16, #tpu.memory_space<vmem>>, vector<72x16xbf16>
    %cst = arith.constant dense<0.000000e+00> : vector<256x16xf32>
    %2 = tpu.matmul %0, %1, %cst {dimension_numbers = #tpu.dot_dimension_numbers<[1], [0], [0], [1], [0, 0, 1, 1], [], []>} : vector<256x72xbf16>, vector<72x16xbf16>, vector<256x16xf32> -> vector<256x16xf32>
    %c0_3 = arith.constant 0 : index
    %c0_4 = arith.constant 0 : index
    %3 = vector.load %arg3[%c0_3, %c0_4] : memref<1x16xf32, #tpu.memory_space<vmem>>, vector<1x16xf32>
    %4 = vector.broadcast %3 : vector<1x16xf32> to vector<256x16xf32>
    %5 = arith.mulf %2, %4 : vector<256x16xf32>
    %c0_5 = arith.constant 0 : index
    %c0_6 = arith.constant 0 : index
    %6 = vector.load %arg4[%c0_5, %c0_6] : memref<1x16xf32, #tpu.memory_space<vmem>>, vector<1x16xf32>
    %7 = vector.broadcast %6 : vector<1x16xf32> to vector<256x16xf32>
    %8 = arith.addf %5, %7 : vector<256x16xf32>
    %cst_7 = arith.constant 0.000000e+00 : f32
    %9 = vector.broadcast %cst_7 : f32 to vector<256x16xf32>
    %10 = arith.maximumf %8, %9 : vector<256x16xf32>
    %11 = arith.truncf %10 : vector<256x16xf32> to vector<256x16xbf16>
    %c0_8 = arith.constant 0 : index
    %c0_9 = arith.constant 0 : index
    %12 = vector.load %arg5[%c0_8, %c0_9] : memref<256x16xbf16, #tpu.memory_space<vmem>>, vector<256x16xbf16>
    tpu.vector_store %arg5[%c0_8, %c0_9], %11 {strides = array<i32>} : memref<256x16xbf16, #tpu.memory_space<vmem>>, vector<256x16xbf16>,
    return
  }
  func.func @transform_0(%arg0: i32) -> (i32, i32) {
    %c0_i32 = arith.constant 0 : i32
    %c0_i32_0 = arith.constant 0 : i32
    return %arg0, %c0_i32 : i32, i32
  }
  func.func @transform_1(%arg0: i32) -> (i32, i32) {
    %c0_i32 = arith.constant 0 : i32
    %c0_i32_0 = arith.constant 0 : i32
    %c0_i32_1 = arith.constant 0 : i32
    return %c0_i32, %c0_i32_0 : i32, i32
  }
  func.func @transform_2(%arg0: i32) -> (i32, i32) {
    %c0_i32 = arith.constant 0 : i32
    %c0_i32_0 = arith.constant 0 : i32
    %c0_i32_1 = arith.constant 0 : i32
    return %c0_i32, %c0_i32_0 : i32, i32
  }
  func.func @transform_3(%arg0: i32) -> (i32, i32) {
    %c0_i32 = arith.constant 0 : i32
    %c0_i32_0 = arith.constant 0 : i32
    %c0_i32_1 = arith.constant 0 : i32
    return %c0_i32, %c0_i32_0 : i32, i32
  }
  func.func @transform_4(%arg0: i32) -> (i32, i32) {
    %c0_i32 = arith.constant 0 : i32
    %c0_i32_0 = arith.constant 0 : i32
    return %arg0, %c0_i32 : i32, i32
  }
}

module attributes {stable_mosaic.version = 11 : i64} {
  func.func @_conv_mm_kernel(%arg0: i32, %arg1: memref<256x8xbf16, #tpu.memory_space<vmem>>, %arg2: memref<8x16xbf16, #tpu.memory_space<vmem>>, %arg3: memref<1x16xf32, #tpu.memory_space<vmem>>, %arg4: memref<1x16xf32, #tpu.memory_space<vmem>>, %arg5: memref<256x16xbf16, #tpu.memory_space<vmem>>) attributes {dimension_semantics = [#tpu.dimension_semantics<parallel>], iteration_bounds = array<i64: 1>, scalar_prefetch = 0 : i64, scratch_operands = 0 : i64, tpu.core_type = #tpu.core_type<tc>, window_params = [{transform_indices = @transform_0, window_bounds = array<i64: 256, 8>}, {pipeline_mode = #tpu.pipeline_mode<synchronous>, transform_indices = @transform_1, window_bounds = array<i64: 8, 16>}, {pipeline_mode = #tpu.pipeline_mode<synchronous>, transform_indices = @transform_2, window_bounds = array<i64: 1, 16>}, {pipeline_mode = #tpu.pipeline_mode<synchronous>, transform_indices = @transform_3, window_bounds = array<i64: 1, 16>}, {transform_indices = @transform_4, window_bounds = array<i64: 256, 16>}]} {
    %c0 = arith.constant 0 : index
    %c0_0 = arith.constant 0 : index
    %0 = vector.load %arg1[%c0, %c0_0] : memref<256x8xbf16, #tpu.memory_space<vmem>>, vector<256x8xbf16>
    %c0_1 = arith.constant 0 : index
    %c0_2 = arith.constant 0 : index
    %1 = vector.load %arg2[%c0_1, %c0_2] : memref<8x16xbf16, #tpu.memory_space<vmem>>, vector<8x16xbf16>
    %cst = arith.constant dense<0.000000e+00> : vector<256x16xf32>
    %2 = tpu.matmul %0, %1, %cst {dimension_numbers = #tpu.dot_dimension_numbers<[1], [0], [0], [1], [0, 0, 1, 1], [], []>} : vector<256x8xbf16>, vector<8x16xbf16>, vector<256x16xf32> -> vector<256x16xf32>
    %c0_3 = arith.constant 0 : index
    %c0_4 = arith.constant 0 : index
    %3 = vector.load %arg3[%c0_3, %c0_4] : memref<1x16xf32, #tpu.memory_space<vmem>>, vector<1x16xf32>
    %4 = vector.broadcast %3 : vector<1x16xf32> to vector<256x16xf32>
    %5 = arith.mulf %2, %4 : vector<256x16xf32>
    %c0_5 = arith.constant 0 : index
    %c0_6 = arith.constant 0 : index
    %6 = vector.load %arg4[%c0_5, %c0_6] : memref<1x16xf32, #tpu.memory_space<vmem>>, vector<1x16xf32>
    %7 = vector.broadcast %6 : vector<1x16xf32> to vector<256x16xf32>
    %8 = arith.addf %5, %7 : vector<256x16xf32>
    %9 = arith.truncf %8 : vector<256x16xf32> to vector<256x16xbf16>
    %c0_7 = arith.constant 0 : index
    %c0_8 = arith.constant 0 : index
    %10 = vector.load %arg5[%c0_7, %c0_8] : memref<256x16xbf16, #tpu.memory_space<vmem>>, vector<256x16xbf16>
    tpu.vector_store %arg5[%c0_7, %c0_8], %9 {strides = array<i32>} : memref<256x16xbf16, #tpu.memory_space<vmem>>, vector<256x16xbf16>,
    return
  }
  func.func @transform_0(%arg0: i32) -> (i32, i32) {
    %c0_i32 = arith.constant 0 : i32
    %c0_i32_0 = arith.constant 0 : i32
    return %arg0, %c0_i32 : i32, i32
  }
  func.func @transform_1(%arg0: i32) -> (i32, i32) {
    %c0_i32 = arith.constant 0 : i32
    %c0_i32_0 = arith.constant 0 : i32
    %c0_i32_1 = arith.constant 0 : i32
    return %c0_i32, %c0_i32_0 : i32, i32
  }
  func.func @transform_2(%arg0: i32) -> (i32, i32) {
    %c0_i32 = arith.constant 0 : i32
    %c0_i32_0 = arith.constant 0 : i32
    %c0_i32_1 = arith.constant 0 : i32
    return %c0_i32, %c0_i32_0 : i32, i32
  }
  func.func @transform_3(%arg0: i32) -> (i32, i32) {
    %c0_i32 = arith.constant 0 : i32
    %c0_i32_0 = arith.constant 0 : i32
    %c0_i32_1 = arith.constant 0 : i32
    return %c0_i32, %c0_i32_0 : i32, i32
  }
  func.func @transform_4(%arg0: i32) -> (i32, i32) {
    %c0_i32 = arith.constant 0 : i32
    %c0_i32_0 = arith.constant 0 : i32
    return %arg0, %c0_i32 : i32, i32
  }
}

module attributes {stable_mosaic.version = 11 : i64} {
  func.func @_conv_mm_kernel(%arg0: i32, %arg1: memref<256x144xbf16, #tpu.memory_space<vmem>>, %arg2: memref<144x16xbf16, #tpu.memory_space<vmem>>, %arg3: memref<1x16xf32, #tpu.memory_space<vmem>>, %arg4: memref<1x16xf32, #tpu.memory_space<vmem>>, %arg5: memref<256x16xbf16, #tpu.memory_space<vmem>>, %arg6: memref<256x16xbf16, #tpu.memory_space<vmem>>) attributes {dimension_semantics = [#tpu.dimension_semantics<parallel>], iteration_bounds = array<i64: 1>, scalar_prefetch = 0 : i64, scratch_operands = 0 : i64, tpu.core_type = #tpu.core_type<tc>, window_params = [{transform_indices = @transform_0, window_bounds = array<i64: 256, 144>}, {pipeline_mode = #tpu.pipeline_mode<synchronous>, transform_indices = @transform_1, window_bounds = array<i64: 144, 16>}, {pipeline_mode = #tpu.pipeline_mode<synchronous>, transform_indices = @transform_2, window_bounds = array<i64: 1, 16>}, {pipeline_mode = #tpu.pipeline_mode<synchronous>, transform_indices = @transform_3, window_bounds = array<i64: 1, 16>}, {transform_indices = @transform_4, window_bounds = array<i64: 256, 16>}, {transform_indices = @transform_5, window_bounds = array<i64: 256, 16>}]} {
    %c0 = arith.constant 0 : index
    %c0_0 = arith.constant 0 : index
    %0 = vector.load %arg1[%c0, %c0_0] : memref<256x144xbf16, #tpu.memory_space<vmem>>, vector<256x144xbf16>
    %c0_1 = arith.constant 0 : index
    %c0_2 = arith.constant 0 : index
    %1 = vector.load %arg2[%c0_1, %c0_2] : memref<144x16xbf16, #tpu.memory_space<vmem>>, vector<144x16xbf16>
    %cst = arith.constant dense<0.000000e+00> : vector<256x16xf32>
    %2 = tpu.matmul %0, %1, %cst {dimension_numbers = #tpu.dot_dimension_numbers<[1], [0], [0], [1], [0, 0, 1, 1], [], []>} : vector<256x144xbf16>, vector<144x16xbf16>, vector<256x16xf32> -> vector<256x16xf32>
    %c0_3 = arith.constant 0 : index
    %c0_4 = arith.constant 0 : index
    %3 = vector.load %arg3[%c0_3, %c0_4] : memref<1x16xf32, #tpu.memory_space<vmem>>, vector<1x16xf32>
    %4 = vector.broadcast %3 : vector<1x16xf32> to vector<256x16xf32>
    %5 = arith.mulf %2, %4 : vector<256x16xf32>
    %c0_5 = arith.constant 0 : index
    %c0_6 = arith.constant 0 : index
    %6 = vector.load %arg4[%c0_5, %c0_6] : memref<1x16xf32, #tpu.memory_space<vmem>>, vector<1x16xf32>
    %7 = vector.broadcast %6 : vector<1x16xf32> to vector<256x16xf32>
    %8 = arith.addf %5, %7 : vector<256x16xf32>
    %cst_7 = arith.constant 0.000000e+00 : f32
    %9 = vector.broadcast %cst_7 : f32 to vector<256x16xf32>
    %10 = arith.maximumf %8, %9 : vector<256x16xf32>
    %c0_8 = arith.constant 0 : index
    %c0_9 = arith.constant 0 : index
    %11 = vector.load %arg5[%c0_8, %c0_9] : memref<256x16xbf16, #tpu.memory_space<vmem>>, vector<256x16xbf16>
    %12 = arith.extf %11 : vector<256x16xbf16> to vector<256x16xf32>
    %13 = arith.addf %10, %12 : vector<256x16xf32>
    %cst_10 = arith.constant 0.000000e+00 : f32
    %14 = vector.broadcast %cst_10 : f32 to vector<256x16xf32>
    %15 = arith.maximumf %13, %14 : vector<256x16xf32>
    %16 = arith.truncf %15 : vector<256x16xf32> to vector<256x16xbf16>
    %c0_11 = arith.constant 0 : index
    %c0_12 = arith.constant 0 : index
    %17 = vector.load %arg6[%c0_11, %c0_12] : memref<256x16xbf16, #tpu.memory_space<vmem>>, vector<256x16xbf16>
    tpu.vector_store %arg6[%c0_11, %c0_12], %16 {strides = array<i32>} : memref<256x16xbf16, #tpu.memory_space<vmem>>, vector<256x16xbf16>,
    return
  }
  func.func @transform_0(%arg0: i32) -> (i32, i32) {
    %c0_i32 = arith.constant 0 : i32
    %c0_i32_0 = arith.constant 0 : i32
    return %arg0, %c0_i32 : i32, i32
  }
  func.func @transform_1(%arg0: i32) -> (i32, i32) {
    %c0_i32 = arith.constant 0 : i32
    %c0_i32_0 = arith.constant 0 : i32
    %c0_i32_1 = arith.constant 0 : i32
    return %c0_i32, %c0_i32_0 : i32, i32
  }
  func.func @transform_2(%arg0: i32) -> (i32, i32) {
    %c0_i32 = arith.constant 0 : i32
    %c0_i32_0 = arith.constant 0 : i32
    %c0_i32_1 = arith.constant 0 : i32
    return %c0_i32, %c0_i32_0 : i32, i32
  }
  func.func @transform_3(%arg0: i32) -> (i32, i32) {
    %c0_i32 = arith.constant 0 : i32
    %c0_i32_0 = arith.constant 0 : i32
    %c0_i32_1 = arith.constant 0 : i32
    return %c0_i32, %c0_i32_0 : i32, i32
  }
  func.func @transform_4(%arg0: i32) -> (i32, i32) {
    %c0_i32 = arith.constant 0 : i32
    %c0_i32_0 = arith.constant 0 : i32
    return %arg0, %c0_i32 : i32, i32
  }
  func.func @transform_5(%arg0: i32) -> (i32, i32) {
    %c0_i32 = arith.constant 0 : i32
    %c0_i32_0 = arith.constant 0 : i32
    return %arg0, %c0_i32 : i32, i32
  }
}

module attributes {stable_mosaic.version = 11 : i64} {
  func.func @_conv_mm_kernel(%arg0: i32, %arg1: memref<256x144xbf16, #tpu.memory_space<vmem>>, %arg2: memref<144x16xbf16, #tpu.memory_space<vmem>>, %arg3: memref<1x16xf32, #tpu.memory_space<vmem>>, %arg4: memref<1x16xf32, #tpu.memory_space<vmem>>, %arg5: memref<256x16xbf16, #tpu.memory_space<vmem>>) attributes {dimension_semantics = [#tpu.dimension_semantics<parallel>], iteration_bounds = array<i64: 1>, scalar_prefetch = 0 : i64, scratch_operands = 0 : i64, tpu.core_type = #tpu.core_type<tc>, window_params = [{transform_indices = @transform_0, window_bounds = array<i64: 256, 144>}, {pipeline_mode = #tpu.pipeline_mode<synchronous>, transform_indices = @transform_1, window_bounds = array<i64: 144, 16>}, {pipeline_mode = #tpu.pipeline_mode<synchronous>, transform_indices = @transform_2, window_bounds = array<i64: 1, 16>}, {pipeline_mode = #tpu.pipeline_mode<synchronous>, transform_indices = @transform_3, window_bounds = array<i64: 1, 16>}, {transform_indices = @transform_4, window_bounds = array<i64: 256, 16>}]} {
    %c0 = arith.constant 0 : index
    %c0_0 = arith.constant 0 : index
    %0 = vector.load %arg1[%c0, %c0_0] : memref<256x144xbf16, #tpu.memory_space<vmem>>, vector<256x144xbf16>
    %c0_1 = arith.constant 0 : index
    %c0_2 = arith.constant 0 : index
    %1 = vector.load %arg2[%c0_1, %c0_2] : memref<144x16xbf16, #tpu.memory_space<vmem>>, vector<144x16xbf16>
    %cst = arith.constant dense<0.000000e+00> : vector<256x16xf32>
    %2 = tpu.matmul %0, %1, %cst {dimension_numbers = #tpu.dot_dimension_numbers<[1], [0], [0], [1], [0, 0, 1, 1], [], []>} : vector<256x144xbf16>, vector<144x16xbf16>, vector<256x16xf32> -> vector<256x16xf32>
    %c0_3 = arith.constant 0 : index
    %c0_4 = arith.constant 0 : index
    %3 = vector.load %arg3[%c0_3, %c0_4] : memref<1x16xf32, #tpu.memory_space<vmem>>, vector<1x16xf32>
    %4 = vector.broadcast %3 : vector<1x16xf32> to vector<256x16xf32>
    %5 = arith.mulf %2, %4 : vector<256x16xf32>
    %c0_5 = arith.constant 0 : index
    %c0_6 = arith.constant 0 : index
    %6 = vector.load %arg4[%c0_5, %c0_6] : memref<1x16xf32, #tpu.memory_space<vmem>>, vector<1x16xf32>
    %7 = vector.broadcast %6 : vector<1x16xf32> to vector<256x16xf32>
    %8 = arith.addf %5, %7 : vector<256x16xf32>
    %cst_7 = arith.constant 0.000000e+00 : f32
    %9 = vector.broadcast %cst_7 : f32 to vector<256x16xf32>
    %10 = arith.maximumf %8, %9 : vector<256x16xf32>
    %11 = arith.truncf %10 : vector<256x16xf32> to vector<256x16xbf16>
    %c0_8 = arith.constant 0 : index
    %c0_9 = arith.constant 0 : index
    %12 = vector.load %arg5[%c0_8, %c0_9] : memref<256x16xbf16, #tpu.memory_space<vmem>>, vector<256x16xbf16>
    tpu.vector_store %arg5[%c0_8, %c0_9], %11 {strides = array<i32>} : memref<256x16xbf16, #tpu.memory_space<vmem>>, vector<256x16xbf16>,
    return
  }
  func.func @transform_0(%arg0: i32) -> (i32, i32) {
    %c0_i32 = arith.constant 0 : i32
    %c0_i32_0 = arith.constant 0 : i32
    return %arg0, %c0_i32 : i32, i32
  }
  func.func @transform_1(%arg0: i32) -> (i32, i32) {
    %c0_i32 = arith.constant 0 : i32
    %c0_i32_0 = arith.constant 0 : i32
    %c0_i32_1 = arith.constant 0 : i32
    return %c0_i32, %c0_i32_0 : i32, i32
  }
  func.func @transform_2(%arg0: i32) -> (i32, i32) {
    %c0_i32 = arith.constant 0 : i32
    %c0_i32_0 = arith.constant 0 : i32
    %c0_i32_1 = arith.constant 0 : i32
    return %c0_i32, %c0_i32_0 : i32, i32
  }
  func.func @transform_3(%arg0: i32) -> (i32, i32) {
    %c0_i32 = arith.constant 0 : i32
    %c0_i32_0 = arith.constant 0 : i32
    %c0_i32_1 = arith.constant 0 : i32
    return %c0_i32, %c0_i32_0 : i32, i32
  }
  func.func @transform_4(%arg0: i32) -> (i32, i32) {
    %c0_i32 = arith.constant 0 : i32
    %c0_i32_0 = arith.constant 0 : i32
    return %arg0, %c0_i32 : i32, i32
  }
}

module attributes {stable_mosaic.version = 11 : i64} {
  func.func @_conv_mm_kernel(%arg0: i32, %arg1: memref<64x144xbf16, #tpu.memory_space<vmem>>, %arg2: memref<144x32xbf16, #tpu.memory_space<vmem>>, %arg3: memref<1x32xf32, #tpu.memory_space<vmem>>, %arg4: memref<1x32xf32, #tpu.memory_space<vmem>>, %arg5: memref<64x32xbf16, #tpu.memory_space<vmem>>) attributes {dimension_semantics = [#tpu.dimension_semantics<parallel>], iteration_bounds = array<i64: 1>, scalar_prefetch = 0 : i64, scratch_operands = 0 : i64, tpu.core_type = #tpu.core_type<tc>, window_params = [{transform_indices = @transform_0, window_bounds = array<i64: 64, 144>}, {pipeline_mode = #tpu.pipeline_mode<synchronous>, transform_indices = @transform_1, window_bounds = array<i64: 144, 32>}, {pipeline_mode = #tpu.pipeline_mode<synchronous>, transform_indices = @transform_2, window_bounds = array<i64: 1, 32>}, {pipeline_mode = #tpu.pipeline_mode<synchronous>, transform_indices = @transform_3, window_bounds = array<i64: 1, 32>}, {transform_indices = @transform_4, window_bounds = array<i64: 64, 32>}]} {
    %c0 = arith.constant 0 : index
    %c0_0 = arith.constant 0 : index
    %0 = vector.load %arg1[%c0, %c0_0] : memref<64x144xbf16, #tpu.memory_space<vmem>>, vector<64x144xbf16>
    %c0_1 = arith.constant 0 : index
    %c0_2 = arith.constant 0 : index
    %1 = vector.load %arg2[%c0_1, %c0_2] : memref<144x32xbf16, #tpu.memory_space<vmem>>, vector<144x32xbf16>
    %cst = arith.constant dense<0.000000e+00> : vector<64x32xf32>
    %2 = tpu.matmul %0, %1, %cst {dimension_numbers = #tpu.dot_dimension_numbers<[1], [0], [0], [1], [0, 0, 1, 1], [], []>} : vector<64x144xbf16>, vector<144x32xbf16>, vector<64x32xf32> -> vector<64x32xf32>
    %c0_3 = arith.constant 0 : index
    %c0_4 = arith.constant 0 : index
    %3 = vector.load %arg3[%c0_3, %c0_4] : memref<1x32xf32, #tpu.memory_space<vmem>>, vector<1x32xf32>
    %4 = vector.broadcast %3 : vector<1x32xf32> to vector<64x32xf32>
    %5 = arith.mulf %2, %4 : vector<64x32xf32>
    %c0_5 = arith.constant 0 : index
    %c0_6 = arith.constant 0 : index
    %6 = vector.load %arg4[%c0_5, %c0_6] : memref<1x32xf32, #tpu.memory_space<vmem>>, vector<1x32xf32>
    %7 = vector.broadcast %6 : vector<1x32xf32> to vector<64x32xf32>
    %8 = arith.addf %5, %7 : vector<64x32xf32>
    %cst_7 = arith.constant 0.000000e+00 : f32
    %9 = vector.broadcast %cst_7 : f32 to vector<64x32xf32>
    %10 = arith.maximumf %8, %9 : vector<64x32xf32>
    %11 = arith.truncf %10 : vector<64x32xf32> to vector<64x32xbf16>
    %c0_8 = arith.constant 0 : index
    %c0_9 = arith.constant 0 : index
    %12 = vector.load %arg5[%c0_8, %c0_9] : memref<64x32xbf16, #tpu.memory_space<vmem>>, vector<64x32xbf16>
    tpu.vector_store %arg5[%c0_8, %c0_9], %11 {strides = array<i32>} : memref<64x32xbf16, #tpu.memory_space<vmem>>, vector<64x32xbf16>,
    return
  }
  func.func @transform_0(%arg0: i32) -> (i32, i32) {
    %c0_i32 = arith.constant 0 : i32
    %c0_i32_0 = arith.constant 0 : i32
    return %arg0, %c0_i32 : i32, i32
  }
  func.func @transform_1(%arg0: i32) -> (i32, i32) {
    %c0_i32 = arith.constant 0 : i32
    %c0_i32_0 = arith.constant 0 : i32
    %c0_i32_1 = arith.constant 0 : i32
    return %c0_i32, %c0_i32_0 : i32, i32
  }
  func.func @transform_2(%arg0: i32) -> (i32, i32) {
    %c0_i32 = arith.constant 0 : i32
    %c0_i32_0 = arith.constant 0 : i32
    %c0_i32_1 = arith.constant 0 : i32
    return %c0_i32, %c0_i32_0 : i32, i32
  }
  func.func @transform_3(%arg0: i32) -> (i32, i32) {
    %c0_i32 = arith.constant 0 : i32
    %c0_i32_0 = arith.constant 0 : i32
    %c0_i32_1 = arith.constant 0 : i32
    return %c0_i32, %c0_i32_0 : i32, i32
  }
  func.func @transform_4(%arg0: i32) -> (i32, i32) {
    %c0_i32 = arith.constant 0 : i32
    %c0_i32_0 = arith.constant 0 : i32
    return %arg0, %c0_i32 : i32, i32
  }
}

module attributes {stable_mosaic.version = 11 : i64} {
  func.func @_conv_mm_kernel(%arg0: i32, %arg1: memref<64x288xbf16, #tpu.memory_space<vmem>>, %arg2: memref<288x32xbf16, #tpu.memory_space<vmem>>, %arg3: memref<1x32xf32, #tpu.memory_space<vmem>>, %arg4: memref<1x32xf32, #tpu.memory_space<vmem>>, %arg5: memref<64x32xbf16, #tpu.memory_space<vmem>>, %arg6: memref<64x32xbf16, #tpu.memory_space<vmem>>) attributes {dimension_semantics = [#tpu.dimension_semantics<parallel>], iteration_bounds = array<i64: 1>, scalar_prefetch = 0 : i64, scratch_operands = 0 : i64, tpu.core_type = #tpu.core_type<tc>, window_params = [{transform_indices = @transform_0, window_bounds = array<i64: 64, 288>}, {pipeline_mode = #tpu.pipeline_mode<synchronous>, transform_indices = @transform_1, window_bounds = array<i64: 288, 32>}, {pipeline_mode = #tpu.pipeline_mode<synchronous>, transform_indices = @transform_2, window_bounds = array<i64: 1, 32>}, {pipeline_mode = #tpu.pipeline_mode<synchronous>, transform_indices = @transform_3, window_bounds = array<i64: 1, 32>}, {transform_indices = @transform_4, window_bounds = array<i64: 64, 32>}, {transform_indices = @transform_5, window_bounds = array<i64: 64, 32>}]} {
    %c0 = arith.constant 0 : index
    %c0_0 = arith.constant 0 : index
    %0 = vector.load %arg1[%c0, %c0_0] : memref<64x288xbf16, #tpu.memory_space<vmem>>, vector<64x288xbf16>
    %c0_1 = arith.constant 0 : index
    %c0_2 = arith.constant 0 : index
    %1 = vector.load %arg2[%c0_1, %c0_2] : memref<288x32xbf16, #tpu.memory_space<vmem>>, vector<288x32xbf16>
    %cst = arith.constant dense<0.000000e+00> : vector<64x32xf32>
    %2 = tpu.matmul %0, %1, %cst {dimension_numbers = #tpu.dot_dimension_numbers<[1], [0], [0], [1], [0, 0, 1, 1], [], []>} : vector<64x288xbf16>, vector<288x32xbf16>, vector<64x32xf32> -> vector<64x32xf32>
    %c0_3 = arith.constant 0 : index
    %c0_4 = arith.constant 0 : index
    %3 = vector.load %arg3[%c0_3, %c0_4] : memref<1x32xf32, #tpu.memory_space<vmem>>, vector<1x32xf32>
    %4 = vector.broadcast %3 : vector<1x32xf32> to vector<64x32xf32>
    %5 = arith.mulf %2, %4 : vector<64x32xf32>
    %c0_5 = arith.constant 0 : index
    %c0_6 = arith.constant 0 : index
    %6 = vector.load %arg4[%c0_5, %c0_6] : memref<1x32xf32, #tpu.memory_space<vmem>>, vector<1x32xf32>
    %7 = vector.broadcast %6 : vector<1x32xf32> to vector<64x32xf32>
    %8 = arith.addf %5, %7 : vector<64x32xf32>
    %cst_7 = arith.constant 0.000000e+00 : f32
    %9 = vector.broadcast %cst_7 : f32 to vector<64x32xf32>
    %10 = arith.maximumf %8, %9 : vector<64x32xf32>
    %c0_8 = arith.constant 0 : index
    %c0_9 = arith.constant 0 : index
    %11 = vector.load %arg5[%c0_8, %c0_9] : memref<64x32xbf16, #tpu.memory_space<vmem>>, vector<64x32xbf16>
    %12 = arith.extf %11 : vector<64x32xbf16> to vector<64x32xf32>
    %13 = arith.addf %10, %12 : vector<64x32xf32>
    %cst_10 = arith.constant 0.000000e+00 : f32
    %14 = vector.broadcast %cst_10 : f32 to vector<64x32xf32>
    %15 = arith.maximumf %13, %14 : vector<64x32xf32>
    %16 = arith.truncf %15 : vector<64x32xf32> to vector<64x32xbf16>
    %c0_11 = arith.constant 0 : index
    %c0_12 = arith.constant 0 : index
    %17 = vector.load %arg6[%c0_11, %c0_12] : memref<64x32xbf16, #tpu.memory_space<vmem>>, vector<64x32xbf16>
    tpu.vector_store %arg6[%c0_11, %c0_12], %16 {strides = array<i32>} : memref<64x32xbf16, #tpu.memory_space<vmem>>, vector<64x32xbf16>,
    return
  }
  func.func @transform_0(%arg0: i32) -> (i32, i32) {
    %c0_i32 = arith.constant 0 : i32
    %c0_i32_0 = arith.constant 0 : i32
    return %arg0, %c0_i32 : i32, i32
  }
  func.func @transform_1(%arg0: i32) -> (i32, i32) {
    %c0_i32 = arith.constant 0 : i32
    %c0_i32_0 = arith.constant 0 : i32
    %c0_i32_1 = arith.constant 0 : i32
    return %c0_i32, %c0_i32_0 : i32, i32
  }
  func.func @transform_2(%arg0: i32) -> (i32, i32) {
    %c0_i32 = arith.constant 0 : i32
    %c0_i32_0 = arith.constant 0 : i32
    %c0_i32_1 = arith.constant 0 : i32
    return %c0_i32, %c0_i32_0 : i32, i32
  }
  func.func @transform_3(%arg0: i32) -> (i32, i32) {
    %c0_i32 = arith.constant 0 : i32
    %c0_i32_0 = arith.constant 0 : i32
    %c0_i32_1 = arith.constant 0 : i32
    return %c0_i32, %c0_i32_0 : i32, i32
  }
  func.func @transform_4(%arg0: i32) -> (i32, i32) {
    %c0_i32 = arith.constant 0 : i32
    %c0_i32_0 = arith.constant 0 : i32
    return %arg0, %c0_i32 : i32, i32
  }
  func.func @transform_5(%arg0: i32) -> (i32, i32) {
    %c0_i32 = arith.constant 0 : i32
    %c0_i32_0 = arith.constant 0 : i32
    return %arg0, %c0_i32 : i32, i32
  }
}

module attributes {stable_mosaic.version = 11 : i64} {
  func.func @_conv_mm_kernel(%arg0: i32, %arg1: memref<64x16xbf16, #tpu.memory_space<vmem>>, %arg2: memref<16x32xbf16, #tpu.memory_space<vmem>>, %arg3: memref<1x32xf32, #tpu.memory_space<vmem>>, %arg4: memref<1x32xf32, #tpu.memory_space<vmem>>, %arg5: memref<64x32xbf16, #tpu.memory_space<vmem>>) attributes {dimension_semantics = [#tpu.dimension_semantics<parallel>], iteration_bounds = array<i64: 1>, scalar_prefetch = 0 : i64, scratch_operands = 0 : i64, tpu.core_type = #tpu.core_type<tc>, window_params = [{transform_indices = @transform_0, window_bounds = array<i64: 64, 16>}, {pipeline_mode = #tpu.pipeline_mode<synchronous>, transform_indices = @transform_1, window_bounds = array<i64: 16, 32>}, {pipeline_mode = #tpu.pipeline_mode<synchronous>, transform_indices = @transform_2, window_bounds = array<i64: 1, 32>}, {pipeline_mode = #tpu.pipeline_mode<synchronous>, transform_indices = @transform_3, window_bounds = array<i64: 1, 32>}, {transform_indices = @transform_4, window_bounds = array<i64: 64, 32>}]} {
    %c0 = arith.constant 0 : index
    %c0_0 = arith.constant 0 : index
    %0 = vector.load %arg1[%c0, %c0_0] : memref<64x16xbf16, #tpu.memory_space<vmem>>, vector<64x16xbf16>
    %c0_1 = arith.constant 0 : index
    %c0_2 = arith.constant 0 : index
    %1 = vector.load %arg2[%c0_1, %c0_2] : memref<16x32xbf16, #tpu.memory_space<vmem>>, vector<16x32xbf16>
    %cst = arith.constant dense<0.000000e+00> : vector<64x32xf32>
    %2 = tpu.matmul %0, %1, %cst {dimension_numbers = #tpu.dot_dimension_numbers<[1], [0], [0], [1], [0, 0, 1, 1], [], []>} : vector<64x16xbf16>, vector<16x32xbf16>, vector<64x32xf32> -> vector<64x32xf32>
    %c0_3 = arith.constant 0 : index
    %c0_4 = arith.constant 0 : index
    %3 = vector.load %arg3[%c0_3, %c0_4] : memref<1x32xf32, #tpu.memory_space<vmem>>, vector<1x32xf32>
    %4 = vector.broadcast %3 : vector<1x32xf32> to vector<64x32xf32>
    %5 = arith.mulf %2, %4 : vector<64x32xf32>
    %c0_5 = arith.constant 0 : index
    %c0_6 = arith.constant 0 : index
    %6 = vector.load %arg4[%c0_5, %c0_6] : memref<1x32xf32, #tpu.memory_space<vmem>>, vector<1x32xf32>
    %7 = vector.broadcast %6 : vector<1x32xf32> to vector<64x32xf32>
    %8 = arith.addf %5, %7 : vector<64x32xf32>
    %9 = arith.truncf %8 : vector<64x32xf32> to vector<64x32xbf16>
    %c0_7 = arith.constant 0 : index
    %c0_8 = arith.constant 0 : index
    %10 = vector.load %arg5[%c0_7, %c0_8] : memref<64x32xbf16, #tpu.memory_space<vmem>>, vector<64x32xbf16>
    tpu.vector_store %arg5[%c0_7, %c0_8], %9 {strides = array<i32>} : memref<64x32xbf16, #tpu.memory_space<vmem>>, vector<64x32xbf16>,
    return
  }
  func.func @transform_0(%arg0: i32) -> (i32, i32) {
    %c0_i32 = arith.constant 0 : i32
    %c0_i32_0 = arith.constant 0 : i32
    return %arg0, %c0_i32 : i32, i32
  }
  func.func @transform_1(%arg0: i32) -> (i32, i32) {
    %c0_i32 = arith.constant 0 : i32
    %c0_i32_0 = arith.constant 0 : i32
    %c0_i32_1 = arith.constant 0 : i32
    return %c0_i32, %c0_i32_0 : i32, i32
  }
  func.func @transform_2(%arg0: i32) -> (i32, i32) {
    %c0_i32 = arith.constant 0 : i32
    %c0_i32_0 = arith.constant 0 : i32
    %c0_i32_1 = arith.constant 0 : i32
    return %c0_i32, %c0_i32_0 : i32, i32
  }
  func.func @transform_3(%arg0: i32) -> (i32, i32) {
    %c0_i32 = arith.constant 0 : i32
    %c0_i32_0 = arith.constant 0 : i32
    %c0_i32_1 = arith.constant 0 : i32
    return %c0_i32, %c0_i32_0 : i32, i32
  }
  func.func @transform_4(%arg0: i32) -> (i32, i32) {
    %c0_i32 = arith.constant 0 : i32
    %c0_i32_0 = arith.constant 0 : i32
    return %arg0, %c0_i32 : i32, i32
  }
}

module attributes {stable_mosaic.version = 11 : i64} {
  func.func @_conv_mm_kernel(%arg0: i32, %arg1: memref<64x288xbf16, #tpu.memory_space<vmem>>, %arg2: memref<288x32xbf16, #tpu.memory_space<vmem>>, %arg3: memref<1x32xf32, #tpu.memory_space<vmem>>, %arg4: memref<1x32xf32, #tpu.memory_space<vmem>>, %arg5: memref<64x32xbf16, #tpu.memory_space<vmem>>) attributes {dimension_semantics = [#tpu.dimension_semantics<parallel>], iteration_bounds = array<i64: 1>, scalar_prefetch = 0 : i64, scratch_operands = 0 : i64, tpu.core_type = #tpu.core_type<tc>, window_params = [{transform_indices = @transform_0, window_bounds = array<i64: 64, 288>}, {pipeline_mode = #tpu.pipeline_mode<synchronous>, transform_indices = @transform_1, window_bounds = array<i64: 288, 32>}, {pipeline_mode = #tpu.pipeline_mode<synchronous>, transform_indices = @transform_2, window_bounds = array<i64: 1, 32>}, {pipeline_mode = #tpu.pipeline_mode<synchronous>, transform_indices = @transform_3, window_bounds = array<i64: 1, 32>}, {transform_indices = @transform_4, window_bounds = array<i64: 64, 32>}]} {
    %c0 = arith.constant 0 : index
    %c0_0 = arith.constant 0 : index
    %0 = vector.load %arg1[%c0, %c0_0] : memref<64x288xbf16, #tpu.memory_space<vmem>>, vector<64x288xbf16>
    %c0_1 = arith.constant 0 : index
    %c0_2 = arith.constant 0 : index
    %1 = vector.load %arg2[%c0_1, %c0_2] : memref<288x32xbf16, #tpu.memory_space<vmem>>, vector<288x32xbf16>
    %cst = arith.constant dense<0.000000e+00> : vector<64x32xf32>
    %2 = tpu.matmul %0, %1, %cst {dimension_numbers = #tpu.dot_dimension_numbers<[1], [0], [0], [1], [0, 0, 1, 1], [], []>} : vector<64x288xbf16>, vector<288x32xbf16>, vector<64x32xf32> -> vector<64x32xf32>
    %c0_3 = arith.constant 0 : index
    %c0_4 = arith.constant 0 : index
    %3 = vector.load %arg3[%c0_3, %c0_4] : memref<1x32xf32, #tpu.memory_space<vmem>>, vector<1x32xf32>
    %4 = vector.broadcast %3 : vector<1x32xf32> to vector<64x32xf32>
    %5 = arith.mulf %2, %4 : vector<64x32xf32>
    %c0_5 = arith.constant 0 : index
    %c0_6 = arith.constant 0 : index
    %6 = vector.load %arg4[%c0_5, %c0_6] : memref<1x32xf32, #tpu.memory_space<vmem>>, vector<1x32xf32>
    %7 = vector.broadcast %6 : vector<1x32xf32> to vector<64x32xf32>
    %8 = arith.addf %5, %7 : vector<64x32xf32>
    %cst_7 = arith.constant 0.000000e+00 : f32
    %9 = vector.broadcast %cst_7 : f32 to vector<64x32xf32>
    %10 = arith.maximumf %8, %9 : vector<64x32xf32>
    %11 = arith.truncf %10 : vector<64x32xf32> to vector<64x32xbf16>
    %c0_8 = arith.constant 0 : index
    %c0_9 = arith.constant 0 : index
    %12 = vector.load %arg5[%c0_8, %c0_9] : memref<64x32xbf16, #tpu.memory_space<vmem>>, vector<64x32xbf16>
    tpu.vector_store %arg5[%c0_8, %c0_9], %11 {strides = array<i32>} : memref<64x32xbf16, #tpu.memory_space<vmem>>, vector<64x32xbf16>,
    return
  }
  func.func @transform_0(%arg0: i32) -> (i32, i32) {
    %c0_i32 = arith.constant 0 : i32
    %c0_i32_0 = arith.constant 0 : i32
    return %arg0, %c0_i32 : i32, i32
  }
  func.func @transform_1(%arg0: i32) -> (i32, i32) {
    %c0_i32 = arith.constant 0 : i32
    %c0_i32_0 = arith.constant 0 : i32
    %c0_i32_1 = arith.constant 0 : i32
    return %c0_i32, %c0_i32_0 : i32, i32
  }
  func.func @transform_2(%arg0: i32) -> (i32, i32) {
    %c0_i32 = arith.constant 0 : i32
    %c0_i32_0 = arith.constant 0 : i32
    %c0_i32_1 = arith.constant 0 : i32
    return %c0_i32, %c0_i32_0 : i32, i32
  }
  func.func @transform_3(%arg0: i32) -> (i32, i32) {
    %c0_i32 = arith.constant 0 : i32
    %c0_i32_0 = arith.constant 0 : i32
    %c0_i32_1 = arith.constant 0 : i32
    return %c0_i32, %c0_i32_0 : i32, i32
  }
  func.func @transform_4(%arg0: i32) -> (i32, i32) {
    %c0_i32 = arith.constant 0 : i32
    %c0_i32_0 = arith.constant 0 : i32
    return %arg0, %c0_i32 : i32, i32
  }
}

module attributes {stable_mosaic.version = 11 : i64} {
  func.func @_conv_mm_kernel(%arg0: i32, %arg1: memref<16x288xbf16, #tpu.memory_space<vmem>>, %arg2: memref<288x48xbf16, #tpu.memory_space<vmem>>, %arg3: memref<1x48xf32, #tpu.memory_space<vmem>>, %arg4: memref<1x48xf32, #tpu.memory_space<vmem>>, %arg5: memref<16x48xbf16, #tpu.memory_space<vmem>>) attributes {dimension_semantics = [#tpu.dimension_semantics<parallel>], iteration_bounds = array<i64: 1>, scalar_prefetch = 0 : i64, scratch_operands = 0 : i64, tpu.core_type = #tpu.core_type<tc>, window_params = [{transform_indices = @transform_0, window_bounds = array<i64: 16, 288>}, {pipeline_mode = #tpu.pipeline_mode<synchronous>, transform_indices = @transform_1, window_bounds = array<i64: 288, 48>}, {pipeline_mode = #tpu.pipeline_mode<synchronous>, transform_indices = @transform_2, window_bounds = array<i64: 1, 48>}, {pipeline_mode = #tpu.pipeline_mode<synchronous>, transform_indices = @transform_3, window_bounds = array<i64: 1, 48>}, {transform_indices = @transform_4, window_bounds = array<i64: 16, 48>}]} {
    %c0 = arith.constant 0 : index
    %c0_0 = arith.constant 0 : index
    %0 = vector.load %arg1[%c0, %c0_0] : memref<16x288xbf16, #tpu.memory_space<vmem>>, vector<16x288xbf16>
    %c0_1 = arith.constant 0 : index
    %c0_2 = arith.constant 0 : index
    %1 = vector.load %arg2[%c0_1, %c0_2] : memref<288x48xbf16, #tpu.memory_space<vmem>>, vector<288x48xbf16>
    %cst = arith.constant dense<0.000000e+00> : vector<16x48xf32>
    %2 = tpu.matmul %0, %1, %cst {dimension_numbers = #tpu.dot_dimension_numbers<[1], [0], [0], [1], [0, 0, 1, 1], [], []>} : vector<16x288xbf16>, vector<288x48xbf16>, vector<16x48xf32> -> vector<16x48xf32>
    %c0_3 = arith.constant 0 : index
    %c0_4 = arith.constant 0 : index
    %3 = vector.load %arg3[%c0_3, %c0_4] : memref<1x48xf32, #tpu.memory_space<vmem>>, vector<1x48xf32>
    %4 = vector.broadcast %3 : vector<1x48xf32> to vector<16x48xf32>
    %5 = arith.mulf %2, %4 : vector<16x48xf32>
    %c0_5 = arith.constant 0 : index
    %c0_6 = arith.constant 0 : index
    %6 = vector.load %arg4[%c0_5, %c0_6] : memref<1x48xf32, #tpu.memory_space<vmem>>, vector<1x48xf32>
    %7 = vector.broadcast %6 : vector<1x48xf32> to vector<16x48xf32>
    %8 = arith.addf %5, %7 : vector<16x48xf32>
    %cst_7 = arith.constant 0.000000e+00 : f32
    %9 = vector.broadcast %cst_7 : f32 to vector<16x48xf32>
    %10 = arith.maximumf %8, %9 : vector<16x48xf32>
    %11 = arith.truncf %10 : vector<16x48xf32> to vector<16x48xbf16>
    %c0_8 = arith.constant 0 : index
    %c0_9 = arith.constant 0 : index
    %12 = vector.load %arg5[%c0_8, %c0_9] : memref<16x48xbf16, #tpu.memory_space<vmem>>, vector<16x48xbf16>
    tpu.vector_store %arg5[%c0_8, %c0_9], %11 {strides = array<i32>} : memref<16x48xbf16, #tpu.memory_space<vmem>>, vector<16x48xbf16>,
    return
  }
  func.func @transform_0(%arg0: i32) -> (i32, i32) {
    %c0_i32 = arith.constant 0 : i32
    %c0_i32_0 = arith.constant 0 : i32
    return %arg0, %c0_i32 : i32, i32
  }
  func.func @transform_1(%arg0: i32) -> (i32, i32) {
    %c0_i32 = arith.constant 0 : i32
    %c0_i32_0 = arith.constant 0 : i32
    %c0_i32_1 = arith.constant 0 : i32
    return %c0_i32, %c0_i32_0 : i32, i32
  }
  func.func @transform_2(%arg0: i32) -> (i32, i32) {
    %c0_i32 = arith.constant 0 : i32
    %c0_i32_0 = arith.constant 0 : i32
    %c0_i32_1 = arith.constant 0 : i32
    return %c0_i32, %c0_i32_0 : i32, i32
  }
  func.func @transform_3(%arg0: i32) -> (i32, i32) {
    %c0_i32 = arith.constant 0 : i32
    %c0_i32_0 = arith.constant 0 : i32
    %c0_i32_1 = arith.constant 0 : i32
    return %c0_i32, %c0_i32_0 : i32, i32
  }
  func.func @transform_4(%arg0: i32) -> (i32, i32) {
    %c0_i32 = arith.constant 0 : i32
    %c0_i32_0 = arith.constant 0 : i32
    return %arg0, %c0_i32 : i32, i32
  }
}

module attributes {stable_mosaic.version = 11 : i64} {
  func.func @_conv_mm_kernel(%arg0: i32, %arg1: memref<16x32xbf16, #tpu.memory_space<vmem>>, %arg2: memref<32x48xbf16, #tpu.memory_space<vmem>>, %arg3: memref<1x48xf32, #tpu.memory_space<vmem>>, %arg4: memref<1x48xf32, #tpu.memory_space<vmem>>, %arg5: memref<16x48xbf16, #tpu.memory_space<vmem>>) attributes {dimension_semantics = [#tpu.dimension_semantics<parallel>], iteration_bounds = array<i64: 1>, scalar_prefetch = 0 : i64, scratch_operands = 0 : i64, tpu.core_type = #tpu.core_type<tc>, window_params = [{transform_indices = @transform_0, window_bounds = array<i64: 16, 32>}, {pipeline_mode = #tpu.pipeline_mode<synchronous>, transform_indices = @transform_1, window_bounds = array<i64: 32, 48>}, {pipeline_mode = #tpu.pipeline_mode<synchronous>, transform_indices = @transform_2, window_bounds = array<i64: 1, 48>}, {pipeline_mode = #tpu.pipeline_mode<synchronous>, transform_indices = @transform_3, window_bounds = array<i64: 1, 48>}, {transform_indices = @transform_4, window_bounds = array<i64: 16, 48>}]} {
    %c0 = arith.constant 0 : index
    %c0_0 = arith.constant 0 : index
    %0 = vector.load %arg1[%c0, %c0_0] : memref<16x32xbf16, #tpu.memory_space<vmem>>, vector<16x32xbf16>
    %c0_1 = arith.constant 0 : index
    %c0_2 = arith.constant 0 : index
    %1 = vector.load %arg2[%c0_1, %c0_2] : memref<32x48xbf16, #tpu.memory_space<vmem>>, vector<32x48xbf16>
    %cst = arith.constant dense<0.000000e+00> : vector<16x48xf32>
    %2 = tpu.matmul %0, %1, %cst {dimension_numbers = #tpu.dot_dimension_numbers<[1], [0], [0], [1], [0, 0, 1, 1], [], []>} : vector<16x32xbf16>, vector<32x48xbf16>, vector<16x48xf32> -> vector<16x48xf32>
    %c0_3 = arith.constant 0 : index
    %c0_4 = arith.constant 0 : index
    %3 = vector.load %arg3[%c0_3, %c0_4] : memref<1x48xf32, #tpu.memory_space<vmem>>, vector<1x48xf32>
    %4 = vector.broadcast %3 : vector<1x48xf32> to vector<16x48xf32>
    %5 = arith.mulf %2, %4 : vector<16x48xf32>
    %c0_5 = arith.constant 0 : index
    %c0_6 = arith.constant 0 : index
    %6 = vector.load %arg4[%c0_5, %c0_6] : memref<1x48xf32, #tpu.memory_space<vmem>>, vector<1x48xf32>
    %7 = vector.broadcast %6 : vector<1x48xf32> to vector<16x48xf32>
    %8 = arith.addf %5, %7 : vector<16x48xf32>
    %9 = arith.truncf %8 : vector<16x48xf32> to vector<16x48xbf16>
    %c0_7 = arith.constant 0 : index
    %c0_8 = arith.constant 0 : index
    %10 = vector.load %arg5[%c0_7, %c0_8] : memref<16x48xbf16, #tpu.memory_space<vmem>>, vector<16x48xbf16>
    tpu.vector_store %arg5[%c0_7, %c0_8], %9 {strides = array<i32>} : memref<16x48xbf16, #tpu.memory_space<vmem>>, vector<16x48xbf16>,
    return
  }
  func.func @transform_0(%arg0: i32) -> (i32, i32) {
    %c0_i32 = arith.constant 0 : i32
    %c0_i32_0 = arith.constant 0 : i32
    return %arg0, %c0_i32 : i32, i32
  }
  func.func @transform_1(%arg0: i32) -> (i32, i32) {
    %c0_i32 = arith.constant 0 : i32
    %c0_i32_0 = arith.constant 0 : i32
    %c0_i32_1 = arith.constant 0 : i32
    return %c0_i32, %c0_i32_0 : i32, i32
  }
  func.func @transform_2(%arg0: i32) -> (i32, i32) {
    %c0_i32 = arith.constant 0 : i32
    %c0_i32_0 = arith.constant 0 : i32
    %c0_i32_1 = arith.constant 0 : i32
    return %c0_i32, %c0_i32_0 : i32, i32
  }
  func.func @transform_3(%arg0: i32) -> (i32, i32) {
    %c0_i32 = arith.constant 0 : i32
    %c0_i32_0 = arith.constant 0 : i32
    %c0_i32_1 = arith.constant 0 : i32
    return %c0_i32, %c0_i32_0 : i32, i32
  }
  func.func @transform_4(%arg0: i32) -> (i32, i32) {
    %c0_i32 = arith.constant 0 : i32
    %c0_i32_0 = arith.constant 0 : i32
    return %arg0, %c0_i32 : i32, i32
  }
}

module attributes {stable_mosaic.version = 11 : i64} {
  func.func @_conv_mm_kernel(%arg0: i32, %arg1: memref<16x432xbf16, #tpu.memory_space<vmem>>, %arg2: memref<432x48xbf16, #tpu.memory_space<vmem>>, %arg3: memref<1x48xf32, #tpu.memory_space<vmem>>, %arg4: memref<1x48xf32, #tpu.memory_space<vmem>>, %arg5: memref<16x48xbf16, #tpu.memory_space<vmem>>) attributes {dimension_semantics = [#tpu.dimension_semantics<parallel>], iteration_bounds = array<i64: 1>, scalar_prefetch = 0 : i64, scratch_operands = 0 : i64, tpu.core_type = #tpu.core_type<tc>, window_params = [{transform_indices = @transform_0, window_bounds = array<i64: 16, 432>}, {pipeline_mode = #tpu.pipeline_mode<synchronous>, transform_indices = @transform_1, window_bounds = array<i64: 432, 48>}, {pipeline_mode = #tpu.pipeline_mode<synchronous>, transform_indices = @transform_2, window_bounds = array<i64: 1, 48>}, {pipeline_mode = #tpu.pipeline_mode<synchronous>, transform_indices = @transform_3, window_bounds = array<i64: 1, 48>}, {transform_indices = @transform_4, window_bounds = array<i64: 16, 48>}]} {
    %c0 = arith.constant 0 : index
    %c0_0 = arith.constant 0 : index
    %0 = vector.load %arg1[%c0, %c0_0] : memref<16x432xbf16, #tpu.memory_space<vmem>>, vector<16x432xbf16>
    %c0_1 = arith.constant 0 : index
    %c0_2 = arith.constant 0 : index
    %1 = vector.load %arg2[%c0_1, %c0_2] : memref<432x48xbf16, #tpu.memory_space<vmem>>, vector<432x48xbf16>
    %cst = arith.constant dense<0.000000e+00> : vector<16x48xf32>
    %2 = tpu.matmul %0, %1, %cst {dimension_numbers = #tpu.dot_dimension_numbers<[1], [0], [0], [1], [0, 0, 1, 1], [], []>} : vector<16x432xbf16>, vector<432x48xbf16>, vector<16x48xf32> -> vector<16x48xf32>
    %c0_3 = arith.constant 0 : index
    %c0_4 = arith.constant 0 : index
    %3 = vector.load %arg3[%c0_3, %c0_4] : memref<1x48xf32, #tpu.memory_space<vmem>>, vector<1x48xf32>
    %4 = vector.broadcast %3 : vector<1x48xf32> to vector<16x48xf32>
    %5 = arith.mulf %2, %4 : vector<16x48xf32>
    %c0_5 = arith.constant 0 : index
    %c0_6 = arith.constant 0 : index
    %6 = vector.load %arg4[%c0_5, %c0_6] : memref<1x48xf32, #tpu.memory_space<vmem>>, vector<1x48xf32>
    %7 = vector.broadcast %6 : vector<1x48xf32> to vector<16x48xf32>
    %8 = arith.addf %5, %7 : vector<16x48xf32>
    %cst_7 = arith.constant 0.000000e+00 : f32
    %9 = vector.broadcast %cst_7 : f32 to vector<16x48xf32>
    %10 = arith.maximumf %8, %9 : vector<16x48xf32>
    %11 = arith.truncf %10 : vector<16x48xf32> to vector<16x48xbf16>
    %c0_8 = arith.constant 0 : index
    %c0_9 = arith.constant 0 : index
    %12 = vector.load %arg5[%c0_8, %c0_9] : memref<16x48xbf16, #tpu.memory_space<vmem>>, vector<16x48xbf16>
    tpu.vector_store %arg5[%c0_8, %c0_9], %11 {strides = array<i32>} : memref<16x48xbf16, #tpu.memory_space<vmem>>, vector<16x48xbf16>,
    return
  }
  func.func @transform_0(%arg0: i32) -> (i32, i32) {
    %c0_i32 = arith.constant 0 : i32
    %c0_i32_0 = arith.constant 0 : i32
    return %arg0, %c0_i32 : i32, i32
  }
  func.func @transform_1(%arg0: i32) -> (i32, i32) {
    %c0_i32 = arith.constant 0 : i32
    %c0_i32_0 = arith.constant 0 : i32
    %c0_i32_1 = arith.constant 0 : i32
    return %c0_i32, %c0_i32_0 : i32, i32
  }
  func.func @transform_2(%arg0: i32) -> (i32, i32) {
    %c0_i32 = arith.constant 0 : i32
    %c0_i32_0 = arith.constant 0 : i32
    %c0_i32_1 = arith.constant 0 : i32
    return %c0_i32, %c0_i32_0 : i32, i32
  }
  func.func @transform_3(%arg0: i32) -> (i32, i32) {
    %c0_i32 = arith.constant 0 : i32
    %c0_i32_0 = arith.constant 0 : i32
    %c0_i32_1 = arith.constant 0 : i32
    return %c0_i32, %c0_i32_0 : i32, i32
  }
  func.func @transform_4(%arg0: i32) -> (i32, i32) {
    %c0_i32 = arith.constant 0 : i32
    %c0_i32_0 = arith.constant 0 : i32
    return %arg0, %c0_i32 : i32, i32
  }
}

module attributes {stable_mosaic.version = 11 : i64} {
  func.func @_conv_mm_kernel(%arg0: i32, %arg1: memref<16x432xbf16, #tpu.memory_space<vmem>>, %arg2: memref<432x48xbf16, #tpu.memory_space<vmem>>, %arg3: memref<1x48xf32, #tpu.memory_space<vmem>>, %arg4: memref<1x48xf32, #tpu.memory_space<vmem>>, %arg5: memref<16x48xbf16, #tpu.memory_space<vmem>>, %arg6: memref<16x48xbf16, #tpu.memory_space<vmem>>) attributes {dimension_semantics = [#tpu.dimension_semantics<parallel>], iteration_bounds = array<i64: 1>, scalar_prefetch = 0 : i64, scratch_operands = 0 : i64, tpu.core_type = #tpu.core_type<tc>, window_params = [{transform_indices = @transform_0, window_bounds = array<i64: 16, 432>}, {pipeline_mode = #tpu.pipeline_mode<synchronous>, transform_indices = @transform_1, window_bounds = array<i64: 432, 48>}, {pipeline_mode = #tpu.pipeline_mode<synchronous>, transform_indices = @transform_2, window_bounds = array<i64: 1, 48>}, {pipeline_mode = #tpu.pipeline_mode<synchronous>, transform_indices = @transform_3, window_bounds = array<i64: 1, 48>}, {transform_indices = @transform_4, window_bounds = array<i64: 16, 48>}, {transform_indices = @transform_5, window_bounds = array<i64: 16, 48>}]} {
    %c0 = arith.constant 0 : index
    %c0_0 = arith.constant 0 : index
    %0 = vector.load %arg1[%c0, %c0_0] : memref<16x432xbf16, #tpu.memory_space<vmem>>, vector<16x432xbf16>
    %c0_1 = arith.constant 0 : index
    %c0_2 = arith.constant 0 : index
    %1 = vector.load %arg2[%c0_1, %c0_2] : memref<432x48xbf16, #tpu.memory_space<vmem>>, vector<432x48xbf16>
    %cst = arith.constant dense<0.000000e+00> : vector<16x48xf32>
    %2 = tpu.matmul %0, %1, %cst {dimension_numbers = #tpu.dot_dimension_numbers<[1], [0], [0], [1], [0, 0, 1, 1], [], []>} : vector<16x432xbf16>, vector<432x48xbf16>, vector<16x48xf32> -> vector<16x48xf32>
    %c0_3 = arith.constant 0 : index
    %c0_4 = arith.constant 0 : index
    %3 = vector.load %arg3[%c0_3, %c0_4] : memref<1x48xf32, #tpu.memory_space<vmem>>, vector<1x48xf32>
    %4 = vector.broadcast %3 : vector<1x48xf32> to vector<16x48xf32>
    %5 = arith.mulf %2, %4 : vector<16x48xf32>
    %c0_5 = arith.constant 0 : index
    %c0_6 = arith.constant 0 : index
    %6 = vector.load %arg4[%c0_5, %c0_6] : memref<1x48xf32, #tpu.memory_space<vmem>>, vector<1x48xf32>
    %7 = vector.broadcast %6 : vector<1x48xf32> to vector<16x48xf32>
    %8 = arith.addf %5, %7 : vector<16x48xf32>
    %cst_7 = arith.constant 0.000000e+00 : f32
    %9 = vector.broadcast %cst_7 : f32 to vector<16x48xf32>
    %10 = arith.maximumf %8, %9 : vector<16x48xf32>
    %c0_8 = arith.constant 0 : index
    %c0_9 = arith.constant 0 : index
    %11 = vector.load %arg5[%c0_8, %c0_9] : memref<16x48xbf16, #tpu.memory_space<vmem>>, vector<16x48xbf16>
    %12 = arith.extf %11 : vector<16x48xbf16> to vector<16x48xf32>
    %13 = arith.addf %10, %12 : vector<16x48xf32>
    %cst_10 = arith.constant 0.000000e+00 : f32
    %14 = vector.broadcast %cst_10 : f32 to vector<16x48xf32>
    %15 = arith.maximumf %13, %14 : vector<16x48xf32>
    %16 = arith.truncf %15 : vector<16x48xf32> to vector<16x48xbf16>
    %c0_11 = arith.constant 0 : index
    %c0_12 = arith.constant 0 : index
    %17 = vector.load %arg6[%c0_11, %c0_12] : memref<16x48xbf16, #tpu.memory_space<vmem>>, vector<16x48xbf16>
    tpu.vector_store %arg6[%c0_11, %c0_12], %16 {strides = array<i32>} : memref<16x48xbf16, #tpu.memory_space<vmem>>, vector<16x48xbf16>,
    return
  }
  func.func @transform_0(%arg0: i32) -> (i32, i32) {
    %c0_i32 = arith.constant 0 : i32
    %c0_i32_0 = arith.constant 0 : i32
    return %arg0, %c0_i32 : i32, i32
  }
  func.func @transform_1(%arg0: i32) -> (i32, i32) {
    %c0_i32 = arith.constant 0 : i32
    %c0_i32_0 = arith.constant 0 : i32
    %c0_i32_1 = arith.constant 0 : i32
    return %c0_i32, %c0_i32_0 : i32, i32
  }
  func.func @transform_2(%arg0: i32) -> (i32, i32) {
    %c0_i32 = arith.constant 0 : i32
    %c0_i32_0 = arith.constant 0 : i32
    %c0_i32_1 = arith.constant 0 : i32
    return %c0_i32, %c0_i32_0 : i32, i32
  }
  func.func @transform_3(%arg0: i32) -> (i32, i32) {
    %c0_i32 = arith.constant 0 : i32
    %c0_i32_0 = arith.constant 0 : i32
    %c0_i32_1 = arith.constant 0 : i32
    return %c0_i32, %c0_i32_0 : i32, i32
  }
  func.func @transform_4(%arg0: i32) -> (i32, i32) {
    %c0_i32 = arith.constant 0 : i32
    %c0_i32_0 = arith.constant 0 : i32
    return %arg0, %c0_i32 : i32, i32
  }
  func.func @transform_5(%arg0: i32) -> (i32, i32) {
    %c0_i32 = arith.constant 0 : i32
    %c0_i32_0 = arith.constant 0 : i32
    return %arg0, %c0_i32 : i32, i32
  }
}

module attributes {stable_mosaic.version = 11 : i64} {
  func.func @_conv_mm_kernel(%arg0: i32, %arg1: memref<16x432xbf16, #tpu.memory_space<vmem>>, %arg2: memref<432x48xbf16, #tpu.memory_space<vmem>>, %arg3: memref<1x48xf32, #tpu.memory_space<vmem>>, %arg4: memref<1x48xf32, #tpu.memory_space<vmem>>, %arg5: memref<16x48xf32, #tpu.memory_space<vmem>>) attributes {dimension_semantics = [#tpu.dimension_semantics<parallel>], iteration_bounds = array<i64: 1>, scalar_prefetch = 0 : i64, scratch_operands = 0 : i64, tpu.core_type = #tpu.core_type<tc>, window_params = [{transform_indices = @transform_0, window_bounds = array<i64: 16, 432>}, {pipeline_mode = #tpu.pipeline_mode<synchronous>, transform_indices = @transform_1, window_bounds = array<i64: 432, 48>}, {pipeline_mode = #tpu.pipeline_mode<synchronous>, transform_indices = @transform_2, window_bounds = array<i64: 1, 48>}, {pipeline_mode = #tpu.pipeline_mode<synchronous>, transform_indices = @transform_3, window_bounds = array<i64: 1, 48>}, {transform_indices = @transform_4, window_bounds = array<i64: 16, 48>}]} {
    %c0 = arith.constant 0 : index
    %c0_0 = arith.constant 0 : index
    %0 = vector.load %arg1[%c0, %c0_0] : memref<16x432xbf16, #tpu.memory_space<vmem>>, vector<16x432xbf16>
    %c0_1 = arith.constant 0 : index
    %c0_2 = arith.constant 0 : index
    %1 = vector.load %arg2[%c0_1, %c0_2] : memref<432x48xbf16, #tpu.memory_space<vmem>>, vector<432x48xbf16>
    %cst = arith.constant dense<0.000000e+00> : vector<16x48xf32>
    %2 = tpu.matmul %0, %1, %cst {dimension_numbers = #tpu.dot_dimension_numbers<[1], [0], [0], [1], [0, 0, 1, 1], [], []>} : vector<16x432xbf16>, vector<432x48xbf16>, vector<16x48xf32> -> vector<16x48xf32>
    %c0_3 = arith.constant 0 : index
    %c0_4 = arith.constant 0 : index
    %3 = vector.load %arg3[%c0_3, %c0_4] : memref<1x48xf32, #tpu.memory_space<vmem>>, vector<1x48xf32>
    %4 = vector.broadcast %3 : vector<1x48xf32> to vector<16x48xf32>
    %5 = arith.mulf %2, %4 : vector<16x48xf32>
    %c0_5 = arith.constant 0 : index
    %c0_6 = arith.constant 0 : index
    %6 = vector.load %arg4[%c0_5, %c0_6] : memref<1x48xf32, #tpu.memory_space<vmem>>, vector<1x48xf32>
    %7 = vector.broadcast %6 : vector<1x48xf32> to vector<16x48xf32>
    %8 = arith.addf %5, %7 : vector<16x48xf32>
    %c0_7 = arith.constant 0 : index
    %c0_8 = arith.constant 0 : index
    %9 = vector.load %arg5[%c0_7, %c0_8] : memref<16x48xf32, #tpu.memory_space<vmem>>, vector<16x48xf32>
    tpu.vector_store %arg5[%c0_7, %c0_8], %8 {strides = array<i32>} : memref<16x48xf32, #tpu.memory_space<vmem>>, vector<16x48xf32>,
    return
  }
  func.func @transform_0(%arg0: i32) -> (i32, i32) {
    %c0_i32 = arith.constant 0 : i32
    %c0_i32_0 = arith.constant 0 : i32
    return %arg0, %c0_i32 : i32, i32
  }
  func.func @transform_1(%arg0: i32) -> (i32, i32) {
    %c0_i32 = arith.constant 0 : i32
    %c0_i32_0 = arith.constant 0 : i32
    %c0_i32_1 = arith.constant 0 : i32
    return %c0_i32, %c0_i32_0 : i32, i32
  }
  func.func @transform_2(%arg0: i32) -> (i32, i32) {
    %c0_i32 = arith.constant 0 : i32
    %c0_i32_0 = arith.constant 0 : i32
    %c0_i32_1 = arith.constant 0 : i32
    return %c0_i32, %c0_i32_0 : i32, i32
  }
  func.func @transform_3(%arg0: i32) -> (i32, i32) {
    %c0_i32 = arith.constant 0 : i32
    %c0_i32_0 = arith.constant 0 : i32
    %c0_i32_1 = arith.constant 0 : i32
    return %c0_i32, %c0_i32_0 : i32, i32
  }
  func.func @transform_4(%arg0: i32) -> (i32, i32) {
    %c0_i32 = arith.constant 0 : i32
    %c0_i32_0 = arith.constant 0 : i32
    return %arg0, %c0_i32 : i32, i32
  }
}

module attributes {stable_mosaic.version = 11 : i64} {
  func.func @_conv_mm_kernel(%arg0: i32, %arg1: memref<64x32xbf16, #tpu.memory_space<vmem>>, %arg2: memref<32x48xbf16, #tpu.memory_space<vmem>>, %arg3: memref<1x48xf32, #tpu.memory_space<vmem>>, %arg4: memref<1x48xf32, #tpu.memory_space<vmem>>, %arg5: memref<64x48xbf16, #tpu.memory_space<vmem>>, %arg6: memref<64x48xbf16, #tpu.memory_space<vmem>>) attributes {dimension_semantics = [#tpu.dimension_semantics<parallel>], iteration_bounds = array<i64: 1>, scalar_prefetch = 0 : i64, scratch_operands = 0 : i64, tpu.core_type = #tpu.core_type<tc>, window_params = [{transform_indices = @transform_0, window_bounds = array<i64: 64, 32>}, {pipeline_mode = #tpu.pipeline_mode<synchronous>, transform_indices = @transform_1, window_bounds = array<i64: 32, 48>}, {pipeline_mode = #tpu.pipeline_mode<synchronous>, transform_indices = @transform_2, window_bounds = array<i64: 1, 48>}, {pipeline_mode = #tpu.pipeline_mode<synchronous>, transform_indices = @transform_3, window_bounds = array<i64: 1, 48>}, {transform_indices = @transform_4, window_bounds = array<i64: 64, 48>}, {transform_indices = @transform_5, window_bounds = array<i64: 64, 48>}]} {
    %c0 = arith.constant 0 : index
    %c0_0 = arith.constant 0 : index
    %0 = vector.load %arg1[%c0, %c0_0] : memref<64x32xbf16, #tpu.memory_space<vmem>>, vector<64x32xbf16>
    %c0_1 = arith.constant 0 : index
    %c0_2 = arith.constant 0 : index
    %1 = vector.load %arg2[%c0_1, %c0_2] : memref<32x48xbf16, #tpu.memory_space<vmem>>, vector<32x48xbf16>
    %cst = arith.constant dense<0.000000e+00> : vector<64x48xf32>
    %2 = tpu.matmul %0, %1, %cst {dimension_numbers = #tpu.dot_dimension_numbers<[1], [0], [0], [1], [0, 0, 1, 1], [], []>} : vector<64x32xbf16>, vector<32x48xbf16>, vector<64x48xf32> -> vector<64x48xf32>
    %c0_3 = arith.constant 0 : index
    %c0_4 = arith.constant 0 : index
    %3 = vector.load %arg3[%c0_3, %c0_4] : memref<1x48xf32, #tpu.memory_space<vmem>>, vector<1x48xf32>
    %4 = vector.broadcast %3 : vector<1x48xf32> to vector<64x48xf32>
    %5 = arith.mulf %2, %4 : vector<64x48xf32>
    %c0_5 = arith.constant 0 : index
    %c0_6 = arith.constant 0 : index
    %6 = vector.load %arg4[%c0_5, %c0_6] : memref<1x48xf32, #tpu.memory_space<vmem>>, vector<1x48xf32>
    %7 = vector.broadcast %6 : vector<1x48xf32> to vector<64x48xf32>
    %8 = arith.addf %5, %7 : vector<64x48xf32>
    %c0_7 = arith.constant 0 : index
    %c0_8 = arith.constant 0 : index
    %9 = vector.load %arg5[%c0_7, %c0_8] : memref<64x48xbf16, #tpu.memory_space<vmem>>, vector<64x48xbf16>
    %10 = arith.extf %9 : vector<64x48xbf16> to vector<64x48xf32>
    %11 = arith.addf %8, %10 : vector<64x48xf32>
    %12 = arith.truncf %11 : vector<64x48xf32> to vector<64x48xbf16>
    %c0_9 = arith.constant 0 : index
    %c0_10 = arith.constant 0 : index
    %13 = vector.load %arg6[%c0_9, %c0_10] : memref<64x48xbf16, #tpu.memory_space<vmem>>, vector<64x48xbf16>
    tpu.vector_store %arg6[%c0_9, %c0_10], %12 {strides = array<i32>} : memref<64x48xbf16, #tpu.memory_space<vmem>>, vector<64x48xbf16>,
    return
  }
  func.func @transform_0(%arg0: i32) -> (i32, i32) {
    %c0_i32 = arith.constant 0 : i32
    %c0_i32_0 = arith.constant 0 : i32
    return %arg0, %c0_i32 : i32, i32
  }
  func.func @transform_1(%arg0: i32) -> (i32, i32) {
    %c0_i32 = arith.constant 0 : i32
    %c0_i32_0 = arith.constant 0 : i32
    %c0_i32_1 = arith.constant 0 : i32
    return %c0_i32, %c0_i32_0 : i32, i32
  }
  func.func @transform_2(%arg0: i32) -> (i32, i32) {
    %c0_i32 = arith.constant 0 : i32
    %c0_i32_0 = arith.constant 0 : i32
    %c0_i32_1 = arith.constant 0 : i32
    return %c0_i32, %c0_i32_0 : i32, i32
  }
  func.func @transform_3(%arg0: i32) -> (i32, i32) {
    %c0_i32 = arith.constant 0 : i32
    %c0_i32_0 = arith.constant 0 : i32
    %c0_i32_1 = arith.constant 0 : i32
    return %c0_i32, %c0_i32_0 : i32, i32
  }
  func.func @transform_4(%arg0: i32) -> (i32, i32) {
    %c0_i32 = arith.constant 0 : i32
    %c0_i32_0 = arith.constant 0 : i32
    return %arg0, %c0_i32 : i32, i32
  }
  func.func @transform_5(%arg0: i32) -> (i32, i32) {
    %c0_i32 = arith.constant 0 : i32
    %c0_i32_0 = arith.constant 0 : i32
    return %arg0, %c0_i32 : i32, i32
  }
}

module attributes {stable_mosaic.version = 11 : i64} {
  func.func @_conv_mm_kernel(%arg0: i32, %arg1: memref<64x432xbf16, #tpu.memory_space<vmem>>, %arg2: memref<432x32xbf16, #tpu.memory_space<vmem>>, %arg3: memref<1x32xf32, #tpu.memory_space<vmem>>, %arg4: memref<1x32xf32, #tpu.memory_space<vmem>>, %arg5: memref<64x32xf32, #tpu.memory_space<vmem>>) attributes {dimension_semantics = [#tpu.dimension_semantics<parallel>], iteration_bounds = array<i64: 1>, scalar_prefetch = 0 : i64, scratch_operands = 0 : i64, tpu.core_type = #tpu.core_type<tc>, window_params = [{transform_indices = @transform_0, window_bounds = array<i64: 64, 432>}, {pipeline_mode = #tpu.pipeline_mode<synchronous>, transform_indices = @transform_1, window_bounds = array<i64: 432, 32>}, {pipeline_mode = #tpu.pipeline_mode<synchronous>, transform_indices = @transform_2, window_bounds = array<i64: 1, 32>}, {pipeline_mode = #tpu.pipeline_mode<synchronous>, transform_indices = @transform_3, window_bounds = array<i64: 1, 32>}, {transform_indices = @transform_4, window_bounds = array<i64: 64, 32>}]} {
    %c0 = arith.constant 0 : index
    %c0_0 = arith.constant 0 : index
    %0 = vector.load %arg1[%c0, %c0_0] : memref<64x432xbf16, #tpu.memory_space<vmem>>, vector<64x432xbf16>
    %c0_1 = arith.constant 0 : index
    %c0_2 = arith.constant 0 : index
    %1 = vector.load %arg2[%c0_1, %c0_2] : memref<432x32xbf16, #tpu.memory_space<vmem>>, vector<432x32xbf16>
    %cst = arith.constant dense<0.000000e+00> : vector<64x32xf32>
    %2 = tpu.matmul %0, %1, %cst {dimension_numbers = #tpu.dot_dimension_numbers<[1], [0], [0], [1], [0, 0, 1, 1], [], []>} : vector<64x432xbf16>, vector<432x32xbf16>, vector<64x32xf32> -> vector<64x32xf32>
    %c0_3 = arith.constant 0 : index
    %c0_4 = arith.constant 0 : index
    %3 = vector.load %arg3[%c0_3, %c0_4] : memref<1x32xf32, #tpu.memory_space<vmem>>, vector<1x32xf32>
    %4 = vector.broadcast %3 : vector<1x32xf32> to vector<64x32xf32>
    %5 = arith.mulf %2, %4 : vector<64x32xf32>
    %c0_5 = arith.constant 0 : index
    %c0_6 = arith.constant 0 : index
    %6 = vector.load %arg4[%c0_5, %c0_6] : memref<1x32xf32, #tpu.memory_space<vmem>>, vector<1x32xf32>
    %7 = vector.broadcast %6 : vector<1x32xf32> to vector<64x32xf32>
    %8 = arith.addf %5, %7 : vector<64x32xf32>
    %c0_7 = arith.constant 0 : index
    %c0_8 = arith.constant 0 : index
    %9 = vector.load %arg5[%c0_7, %c0_8] : memref<64x32xf32, #tpu.memory_space<vmem>>, vector<64x32xf32>
    tpu.vector_store %arg5[%c0_7, %c0_8], %8 {strides = array<i32>} : memref<64x32xf32, #tpu.memory_space<vmem>>, vector<64x32xf32>,
    return
  }
  func.func @transform_0(%arg0: i32) -> (i32, i32) {
    %c0_i32 = arith.constant 0 : i32
    %c0_i32_0 = arith.constant 0 : i32
    return %arg0, %c0_i32 : i32, i32
  }
  func.func @transform_1(%arg0: i32) -> (i32, i32) {
    %c0_i32 = arith.constant 0 : i32
    %c0_i32_0 = arith.constant 0 : i32
    %c0_i32_1 = arith.constant 0 : i32
    return %c0_i32, %c0_i32_0 : i32, i32
  }
  func.func @transform_2(%arg0: i32) -> (i32, i32) {
    %c0_i32 = arith.constant 0 : i32
    %c0_i32_0 = arith.constant 0 : i32
    %c0_i32_1 = arith.constant 0 : i32
    return %c0_i32, %c0_i32_0 : i32, i32
  }
  func.func @transform_3(%arg0: i32) -> (i32, i32) {
    %c0_i32 = arith.constant 0 : i32
    %c0_i32_0 = arith.constant 0 : i32
    %c0_i32_1 = arith.constant 0 : i32
    return %c0_i32, %c0_i32_0 : i32, i32
  }
  func.func @transform_4(%arg0: i32) -> (i32, i32) {
    %c0_i32 = arith.constant 0 : i32
    %c0_i32_0 = arith.constant 0 : i32
    return %arg0, %c0_i32 : i32, i32
  }
}

module attributes {stable_mosaic.version = 11 : i64} {
  func.func @_conv_mm_kernel(%arg0: i32, %arg1: memref<256x16xbf16, #tpu.memory_space<vmem>>, %arg2: memref<16x48xbf16, #tpu.memory_space<vmem>>, %arg3: memref<1x48xf32, #tpu.memory_space<vmem>>, %arg4: memref<1x48xf32, #tpu.memory_space<vmem>>, %arg5: memref<256x48xbf16, #tpu.memory_space<vmem>>, %arg6: memref<256x48xbf16, #tpu.memory_space<vmem>>) attributes {dimension_semantics = [#tpu.dimension_semantics<parallel>], iteration_bounds = array<i64: 1>, scalar_prefetch = 0 : i64, scratch_operands = 0 : i64, tpu.core_type = #tpu.core_type<tc>, window_params = [{transform_indices = @transform_0, window_bounds = array<i64: 256, 16>}, {pipeline_mode = #tpu.pipeline_mode<synchronous>, transform_indices = @transform_1, window_bounds = array<i64: 16, 48>}, {pipeline_mode = #tpu.pipeline_mode<synchronous>, transform_indices = @transform_2, window_bounds = array<i64: 1, 48>}, {pipeline_mode = #tpu.pipeline_mode<synchronous>, transform_indices = @transform_3, window_bounds = array<i64: 1, 48>}, {transform_indices = @transform_4, window_bounds = array<i64: 256, 48>}, {transform_indices = @transform_5, window_bounds = array<i64: 256, 48>}]} {
    %c0 = arith.constant 0 : index
    %c0_0 = arith.constant 0 : index
    %0 = vector.load %arg1[%c0, %c0_0] : memref<256x16xbf16, #tpu.memory_space<vmem>>, vector<256x16xbf16>
    %c0_1 = arith.constant 0 : index
    %c0_2 = arith.constant 0 : index
    %1 = vector.load %arg2[%c0_1, %c0_2] : memref<16x48xbf16, #tpu.memory_space<vmem>>, vector<16x48xbf16>
    %cst = arith.constant dense<0.000000e+00> : vector<256x48xf32>
    %2 = tpu.matmul %0, %1, %cst {dimension_numbers = #tpu.dot_dimension_numbers<[1], [0], [0], [1], [0, 0, 1, 1], [], []>} : vector<256x16xbf16>, vector<16x48xbf16>, vector<256x48xf32> -> vector<256x48xf32>
    %c0_3 = arith.constant 0 : index
    %c0_4 = arith.constant 0 : index
    %3 = vector.load %arg3[%c0_3, %c0_4] : memref<1x48xf32, #tpu.memory_space<vmem>>, vector<1x48xf32>
    %4 = vector.broadcast %3 : vector<1x48xf32> to vector<256x48xf32>
    %5 = arith.mulf %2, %4 : vector<256x48xf32>
    %c0_5 = arith.constant 0 : index
    %c0_6 = arith.constant 0 : index
    %6 = vector.load %arg4[%c0_5, %c0_6] : memref<1x48xf32, #tpu.memory_space<vmem>>, vector<1x48xf32>
    %7 = vector.broadcast %6 : vector<1x48xf32> to vector<256x48xf32>
    %8 = arith.addf %5, %7 : vector<256x48xf32>
    %c0_7 = arith.constant 0 : index
    %c0_8 = arith.constant 0 : index
    %9 = vector.load %arg5[%c0_7, %c0_8] : memref<256x48xbf16, #tpu.memory_space<vmem>>, vector<256x48xbf16>
    %10 = arith.extf %9 : vector<256x48xbf16> to vector<256x48xf32>
    %11 = arith.addf %8, %10 : vector<256x48xf32>
    %12 = arith.truncf %11 : vector<256x48xf32> to vector<256x48xbf16>
    %c0_9 = arith.constant 0 : index
    %c0_10 = arith.constant 0 : index
    %13 = vector.load %arg6[%c0_9, %c0_10] : memref<256x48xbf16, #tpu.memory_space<vmem>>, vector<256x48xbf16>
    tpu.vector_store %arg6[%c0_9, %c0_10], %12 {strides = array<i32>} : memref<256x48xbf16, #tpu.memory_space<vmem>>, vector<256x48xbf16>,
    return
  }
  func.func @transform_0(%arg0: i32) -> (i32, i32) {
    %c0_i32 = arith.constant 0 : i32
    %c0_i32_0 = arith.constant 0 : i32
    return %arg0, %c0_i32 : i32, i32
  }
  func.func @transform_1(%arg0: i32) -> (i32, i32) {
    %c0_i32 = arith.constant 0 : i32
    %c0_i32_0 = arith.constant 0 : i32
    %c0_i32_1 = arith.constant 0 : i32
    return %c0_i32, %c0_i32_0 : i32, i32
  }
  func.func @transform_2(%arg0: i32) -> (i32, i32) {
    %c0_i32 = arith.constant 0 : i32
    %c0_i32_0 = arith.constant 0 : i32
    %c0_i32_1 = arith.constant 0 : i32
    return %c0_i32, %c0_i32_0 : i32, i32
  }
  func.func @transform_3(%arg0: i32) -> (i32, i32) {
    %c0_i32 = arith.constant 0 : i32
    %c0_i32_0 = arith.constant 0 : i32
    %c0_i32_1 = arith.constant 0 : i32
    return %c0_i32, %c0_i32_0 : i32, i32
  }
  func.func @transform_4(%arg0: i32) -> (i32, i32) {
    %c0_i32 = arith.constant 0 : i32
    %c0_i32_0 = arith.constant 0 : i32
    return %arg0, %c0_i32 : i32, i32
  }
  func.func @transform_5(%arg0: i32) -> (i32, i32) {
    %c0_i32 = arith.constant 0 : i32
    %c0_i32_0 = arith.constant 0 : i32
    return %arg0, %c0_i32 : i32, i32
  }
}

module attributes {stable_mosaic.version = 11 : i64} {
  func.func @_conv_mm_kernel(%arg0: i32, %arg1: memref<256x432xbf16, #tpu.memory_space<vmem>>, %arg2: memref<432x16xbf16, #tpu.memory_space<vmem>>, %arg3: memref<1x16xf32, #tpu.memory_space<vmem>>, %arg4: memref<1x16xf32, #tpu.memory_space<vmem>>, %arg5: memref<256x16xf32, #tpu.memory_space<vmem>>) attributes {dimension_semantics = [#tpu.dimension_semantics<parallel>], iteration_bounds = array<i64: 1>, scalar_prefetch = 0 : i64, scratch_operands = 0 : i64, tpu.core_type = #tpu.core_type<tc>, window_params = [{transform_indices = @transform_0, window_bounds = array<i64: 256, 432>}, {pipeline_mode = #tpu.pipeline_mode<synchronous>, transform_indices = @transform_1, window_bounds = array<i64: 432, 16>}, {pipeline_mode = #tpu.pipeline_mode<synchronous>, transform_indices = @transform_2, window_bounds = array<i64: 1, 16>}, {pipeline_mode = #tpu.pipeline_mode<synchronous>, transform_indices = @transform_3, window_bounds = array<i64: 1, 16>}, {transform_indices = @transform_4, window_bounds = array<i64: 256, 16>}]} {
    %c0 = arith.constant 0 : index
    %c0_0 = arith.constant 0 : index
    %0 = vector.load %arg1[%c0, %c0_0] : memref<256x432xbf16, #tpu.memory_space<vmem>>, vector<256x432xbf16>
    %c0_1 = arith.constant 0 : index
    %c0_2 = arith.constant 0 : index
    %1 = vector.load %arg2[%c0_1, %c0_2] : memref<432x16xbf16, #tpu.memory_space<vmem>>, vector<432x16xbf16>
    %cst = arith.constant dense<0.000000e+00> : vector<256x16xf32>
    %2 = tpu.matmul %0, %1, %cst {dimension_numbers = #tpu.dot_dimension_numbers<[1], [0], [0], [1], [0, 0, 1, 1], [], []>} : vector<256x432xbf16>, vector<432x16xbf16>, vector<256x16xf32> -> vector<256x16xf32>
    %c0_3 = arith.constant 0 : index
    %c0_4 = arith.constant 0 : index
    %3 = vector.load %arg3[%c0_3, %c0_4] : memref<1x16xf32, #tpu.memory_space<vmem>>, vector<1x16xf32>
    %4 = vector.broadcast %3 : vector<1x16xf32> to vector<256x16xf32>
    %5 = arith.mulf %2, %4 : vector<256x16xf32>
    %c0_5 = arith.constant 0 : index
    %c0_6 = arith.constant 0 : index
    %6 = vector.load %arg4[%c0_5, %c0_6] : memref<1x16xf32, #tpu.memory_space<vmem>>, vector<1x16xf32>
    %7 = vector.broadcast %6 : vector<1x16xf32> to vector<256x16xf32>
    %8 = arith.addf %5, %7 : vector<256x16xf32>
    %c0_7 = arith.constant 0 : index
    %c0_8 = arith.constant 0 : index
    %9 = vector.load %arg5[%c0_7, %c0_8] : memref<256x16xf32, #tpu.memory_space<vmem>>, vector<256x16xf32>
    tpu.vector_store %arg5[%c0_7, %c0_8], %8 {strides = array<i32>} : memref<256x16xf32, #tpu.memory_space<vmem>>, vector<256x16xf32>,
    return
  }
  func.func @transform_0(%arg0: i32) -> (i32, i32) {
    %c0_i32 = arith.constant 0 : i32
    %c0_i32_0 = arith.constant 0 : i32
    return %arg0, %c0_i32 : i32, i32
  }
  func.func @transform_1(%arg0: i32) -> (i32, i32) {
    %c0_i32 = arith.constant 0 : i32
    %c0_i32_0 = arith.constant 0 : i32
    %c0_i32_1 = arith.constant 0 : i32
    return %c0_i32, %c0_i32_0 : i32, i32
  }
  func.func @transform_2(%arg0: i32) -> (i32, i32) {
    %c0_i32 = arith.constant 0 : i32
    %c0_i32_0 = arith.constant 0 : i32
    %c0_i32_1 = arith.constant 0 : i32
    return %c0_i32, %c0_i32_0 : i32, i32
  }
  func.func @transform_3(%arg0: i32) -> (i32, i32) {
    %c0_i32 = arith.constant 0 : i32
    %c0_i32_0 = arith.constant 0 : i32
    %c0_i32_1 = arith.constant 0 : i32
    return %c0_i32, %c0_i32_0 : i32, i32
  }
  func.func @transform_4(%arg0: i32) -> (i32, i32) {
    %c0_i32 = arith.constant 0 : i32
    %c0_i32_0 = arith.constant 0 : i32
    return %arg0, %c0_i32 : i32, i32
  }
}

</mosaic_0001>

<llo_original>
// kernel: _lambda_.21
$region0: #{_lambda_.21}
  #allocation0 [shape = 'u32[]', space=smem, size = 0x4, offset = 0x4, fixed_abs, tag = 'smem constant byte address 0x4 - core index']
  #allocation1 [shape = 'u32[144,128]{1,0:T(1,128)}', space=vmem, size = 0x12000, scoped, tag = 'internal scratch']
  %s0 = inlined_call_operand.vmem [shape: bf16[1024,27], index: 0, kind: input, shape index: {}]
  %s1 = inlined_call_operand.vmem [shape: bf16[27,8], index: 1, kind: input, shape index: {}]
  %s2 = inlined_call_operand.vmem [shape: f32[1,8], index: 2, kind: input, shape index: {}]
  %s3 = inlined_call_operand.vmem [shape: f32[1,8], index: 3, kind: input, shape index: {}]
  %s4 = inlined_call_operand.vmem [shape: bf16[1024,8], index: 4, kind: output, shape index: {}]
  %s5 = sld [smem:[#allocation0]]
  $region26: #{_lambda_.21} parent=0
    _
  %s7 = ssub.s32 1, %s5
  %s8 = scalar_select 0, %s7, %s5
  // Predicated region
  $region2: #{_lambda_.21} parent=0 // pred_check
    _
  $region3: #{_lambda_.21} parent=0 // pred_check_branch
    %10 = sbr.rel (0) target = $region5
  $region4: #{_lambda_.21} parent=0 // pred_region
    _
  $region5: #{_lambda_.21} parent=0 // pred_fallthru
    _
  // Predicated region
  $region6: #{_lambda_.21} parent=0 // pred_check
    _
  $region7: #{_lambda_.21} parent=0 // pred_check_branch
    %12 = sbr.rel (0) target = $region9
  $region8: #{_lambda_.21} parent=0 // pred_region
    _
  $region9: #{_lambda_.21} parent=0 // pred_fallthru
    _
  // Predicated region
  $region10: #{_lambda_.21} parent=0 // pred_check
    _
  $region11: #{_lambda_.21} parent=0 // pred_check_branch
    %14 = sbr.rel (0) target = $region13
  $region12: #{_lambda_.21} parent=0 // pred_region
    _
  $region13: #{_lambda_.21} parent=0 // pred_fallthru
    _
  // Predicated region
  $region14: #{_lambda_.21} parent=0 // pred_check
    _
  $region15: #{_lambda_.21} parent=0 // pred_check_branch
    %16 = sbr.rel (0) target = $region17
  $region16: #{_lambda_.21} parent=0 // pred_region
    _
  $region17: #{_lambda_.21} parent=0 // pred_fallthru
    _
  %v18 = vld [vmem:[%s0] sm:$0xf]
  %v19 = vld [vmem:[%s0 + $0x4] sm:$0xf]
  %v20 = vld [vmem:[%s0 + $0x8] sm:$0xf]
  %v21 = vld [vmem:[%s0 + $0xc] sm:$0xf]
  %v22 = vld [vmem:[%s0 + $0x10] sm:$0xf]
  %v23 = vld [vmem:[%s0 + $0x14] sm:$0xf]
  %v24 = vld [vmem:[%s0 + $0x18] sm:$0xf]
  %v25 = vld [vmem:[%s0 + $0x1c] sm:$0xf]
  %v26 = vld [vmem:[%s0 + $0x20] sm:$0xf]
  %v27 = vld [vmem:[%s0 + $0x24] sm:$0xf]
  %v28 = vld [vmem:[%s0 + $0x28] sm:$0xf]
  %v29 = vld [vmem:[%s0 + $0x2c] sm:$0xf]
  %v30 = vld [vmem:[%s0 + $0x30] sm:$0xf]
  %v31 = vld [vmem:[%s0 + $0x34] sm:$0xf]
  %v32 = vld [vmem:[%s0 + $0x38] sm:$0xf]
  %v33 = vld [vmem:[%s0 + $0x3c] sm:$0xf]
  %v34 = vld [vmem:[%s0 + $0x40] sm:$0xf]
  %v35 = vld [vmem:[%s0 + $0x44] sm:$0xf]
  %v36 = vld [vmem:[%s0 + $0x48] sm:$0xf]
  %v37 = vld [vmem:[%s0 + $0x4c] sm:$0xf]
  %v38 = vld [vmem:[%s0 + $0x50] sm:$0xf]
  %v39 = vld [vmem:[%s0 + $0x54] sm:$0xf]
  %v40 = vld [vmem:[%s0 + $0x58] sm:$0xf]
  %v41 = vld [vmem:[%s0 + $0x5c] sm:$0xf]
  %v42 = vld [vmem:[%s0 + $0x60] sm:$0xf]
  %v43 = vld [vmem:[%s0 + $0x64] sm:$0xf]
  %v44 = vld [vmem:[%s0 + $0x68] sm:$0xf]
  %v45 = vld [vmem:[%s0 + $0x6c] sm:$0xf]
  %v46 = vld [vmem:[%s0 + $0x70] sm:$0xf]
  %v47 = vld [vmem:[%s0 + $0x74] sm:$0xf]
  %v48 = vld [vmem:[%s0 + $0x78] sm:$0xf]
  %v49 = vld [vmem:[%s0 + $0x7c] sm:$0xf]
  %v50 = vld [vmem:[%s0 + $0x80] sm:$0xf]
  %v51 = vld [vmem:[%s0 + $0x84] sm:$0xf]
  %v52 = vld [vmem:[%s0 + $0x88] sm:$0xf]
  %v53 = vld [vmem:[%s0 + $0x8c] sm:$0xf]
  %v54 = vld [vmem:[%s0 + $0x90] sm:$0xf]
  %v55 = vld [vmem:[%s0 + $0x94] sm:$0xf]
  %v56 = vld [vmem:[%s0 + $0x98] sm:$0xf]
  %v57 = vld [vmem:[%s0 + $0x9c] sm:$0xf]
  %v58 = vld [vmem:[%s0 + $0xa0] sm:$0xf]
  %v59 = vld [vmem:[%s0 + $0xa4] sm:$0xf]
  %v60 = vld [vmem:[%s0 + $0xa8] sm:$0xf]
  %v61 = vld [vmem:[%s0 + $0xac] sm:$0xf]
  %v62 = vld [vmem:[%s0 + $0xb0] sm:$0xf]
  %v63 = vld [vmem:[%s0 + $0xb4] sm:$0xf]
  %v64 = vld [vmem:[%s0 + $0xb8] sm:$0xf]
  %v65 = vld [vmem:[%s0 + $0xbc] sm:$0xf]
  %v66 = vld [vmem:[%s0 + $0xc0] sm:$0xf]
  %v67 = vld [vmem:[%s0 + $0xc4] sm:$0xf]
  %v68 = vld [vmem:[%s0 + $0xc8] sm:$0xf]
  %v69 = vld [vmem:[%s0 + $0xcc] sm:$0xf]
  %v70 = vld [vmem:[%s0 + $0xd0] sm:$0xf]
  %v71 = vld [vmem:[%s0 + $0xd4] sm:$0xf]
  %v72 = vld [vmem:[%s0 + $0xd8] sm:$0xf]
  %v73 = vld [vmem:[%s0 + $0xdc] sm:$0xf]
  %v74 = vld [vmem:[%s0 + $0xe0] sm:$0xf]
  %v75 = vld [vmem:[%s0 + $0xe4] sm:$0xf]
  %v76 = vld [vmem:[%s0 + $0xe8] sm:$0xf]
  %v77 = vld [vmem:[%s0 + $0xec] sm:$0xf]
  %v78 = vld [vmem:[%s0 + $0xf0] sm:$0xf]
  %v79 = vld [vmem:[%s0 + $0xf4] sm:$0xf]
  %v80 = vld [vmem:[%s0 + $0xf8] sm:$0xf]
  %v81 = vld [vmem:[%s0 + $0xfc] sm:$0xf]
  %v82 = vld [vmem:[%s0 + $0x100] sm:$0xf]
  %v83 = vld [vmem:[%s0 + $0x104] sm:$0xf]
  %v84 = vld [vmem:[%s0 + $0x108] sm:$0xf]
  %v85 = vld [vmem:[%s0 + $0x10c] sm:$0xf]
  %v86 = vld [vmem:[%s0 + $0x110] sm:$0xf]
  %v87 = vld [vmem:[%s0 + $0x114] sm:$0xf]
  %v88 = vld [vmem:[%s0 + $0x118] sm:$0xf]
  %v89 = vld [vmem:[%s0 + $0x11c] sm:$0xf]
  %v90 = vld [vmem:[%s0 + $0x120] sm:$0xf]
  %v91 = vld [vmem:[%s0 + $0x124] sm:$0xf]
  %v92 = vld [vmem:[%s0 + $0x128] sm:$0xf]
  %v93 = vld [vmem:[%s0 + $0x12c] sm:$0xf]
  %v94 = vld [vmem:[%s0 + $0x130] sm:$0xf]
  %v95 = vld [vmem:[%s0 + $0x134] sm:$0xf]
  %v96 = vld [vmem:[%s0 + $0x138] sm:$0xf]
  %v97 = vld [vmem:[%s0 + $0x13c] sm:$0xf]
  %v98 = vld [vmem:[%s0 + $0x140] sm:$0xf]
  %v99 = vld [vmem:[%s0 + $0x144] sm:$0xf]
  %v100 = vld [vmem:[%s0 + $0x148] sm:$0xf]
  %v101 = vld [vmem:[%s0 + $0x14c] sm:$0xf]
  %v102 = vld [vmem:[%s0 + $0x150] sm:$0xf]
  %v103 = vld [vmem:[%s0 + $0x154] sm:$0xf]
  %v104 = vld [vmem:[%s0 + $0x158] sm:$0xf]
  %v105 = vld [vmem:[%s0 + $0x15c] sm:$0xf]
  %v106 = vld [vmem:[%s0 + $0x160] sm:$0xf]
  %v107 = vld [vmem:[%s0 + $0x164] sm:$0xf]
  %v108 = vld [vmem:[%s0 + $0x168] sm:$0xf]
  %v109 = vld [vmem:[%s0 + $0x16c] sm:$0xf]
  %v110 = vld [vmem:[%s0 + $0x170] sm:$0xf]
  %v111 = vld [vmem:[%s0 + $0x174] sm:$0xf]
  %v112 = vld [vmem:[%s0 + $0x178] sm:$0xf]
  %v113 = vld [vmem:[%s0 + $0x17c] sm:$0xf]
  %v114 = vld [vmem:[%s0 + $0x180] sm:$0xf]
  %v115 = vld [vmem:[%s0 + $0x184] sm:$0xf]
  %v116 = vld [vmem:[%s0 + $0x188] sm:$0xf]
  %v117 = vld [vmem:[%s0 + $0x18c] sm:$0xf]
  %v118 = vld [vmem:[%s0 + $0x190] sm:$0xf]
  %v119 = vld [vmem:[%s0 + $0x194] sm:$0xf]
  %v120 = vld [vmem:[%s0 + $0x198] sm:$0xf]
  %v121 = vld [vmem:[%s0 + $0x19c] sm:$0xf]
  %v122 = vld [vmem:[%s0 + $0x1a0] sm:$0xf]
  %v123 = vld [vmem:[%s0 + $0x1a4] sm:$0xf]
  %v124 = vld [vmem:[%s0 + $0x1a8] sm:$0xf]
  %v125 = vld [vmem:[%s0 + $0x1ac] sm:$0xf]
  %v126 = vld [vmem:[%s0 + $0x1b0] sm:$0xf]
  %v127 = vld [vmem:[%s0 + $0x1b4] sm:$0xf]
  %v128 = vld [vmem:[%s0 + $0x1b8] sm:$0xf]
  %v129 = vld [vmem:[%s0 + $0x1bc] sm:$0xf]
  %v130 = vld [vmem:[%s0 + $0x1c0] sm:$0xf]
  %v131 = vld [vmem:[%s0 + $0x1c4] sm:$0xf]
  %v132 = vld [vmem:[%s0 + $0x1c8] sm:$0xf]
  %v133 = vld [vmem:[%s0 + $0x1cc] sm:$0xf]
  %v134 = vld [vmem:[%s0 + $0x1d0] sm:$0xf]
  %v135 = vld [vmem:[%s0 + $0x1d4] sm:$0xf]
  %v136 = vld [vmem:[%s0 + $0x1d8] sm:$0xf]
  %v137 = vld [vmem:[%s0 + $0x1dc] sm:$0xf]
  %v138 = vld [vmem:[%s0 + $0x1e0] sm:$0xf]
  %v139 = vld [vmem:[%s0 + $0x1e4] sm:$0xf]
  %v140 = vld [vmem:[%s0 + $0x1e8] sm:$0xf]
  %v141 = vld [vmem:[%s0 + $0x1ec] sm:$0xf]
  %v142 = vld [vmem:[%s0 + $0x1f0] sm:$0xf]
  %v143 = vld [vmem:[%s0 + $0x1f4] sm:$0xf]
  %v144 = vld [vmem:[%s0 + $0x1f8] sm:$0xf]
  %v145 = vld [vmem:[%s0 + $0x1fc] sm:$0xf]
  %v146 = vld [vmem:[%s1] sm:$0xf]
  %v147 = vld [vmem:[%s1 + $0x4] sm:$0xf]
  %v148 = vld [vmem:[%s1 + $0x8] sm:$0xf]
  %v149 = vld [vmem:[%s1 + $0xc] sm:$0x3]
  %v278 = vunpack.c.l.b16 %v18
  %v279 = vunpack.c.l.b16 %v19
  %v280 = vunpack.c.l.b16 %v20
  %v281 = vunpack.c.l.b16 %v21
  %v282 = vunpack.c.l.b16 %v22
  %v283 = vunpack.c.l.b16 %v23
  %v284 = vunpack.c.l.b16 %v24
  %v285 = vunpack.c.l.b16 %v25
  %v286 = vunpack.c.l.b16 %v26
  %v287 = vunpack.c.l.b16 %v27
  %v288 = vunpack.c.l.b16 %v28
  %v289 = vunpack.c.l.b16 %v29
  %v290 = vunpack.c.l.b16 %v30
  %v291 = vunpack.c.l.b16 %v31
  %v292 = vunpack.c.l.b16 %v32
  %v293 = vunpack.c.l.b16 %v33
  %v294 = vunpack.c.l.b16 %v34
  %v295 = vunpack.c.l.b16 %v35
  %v296 = vunpack.c.l.b16 %v36
  %v297 = vunpack.c.l.b16 %v37
  %v298 = vunpack.c.l.b16 %v38
  %v299 = vunpack.c.l.b16 %v39
  %v300 = vunpack.c.l.b16 %v40
  %v301 = vunpack.c.l.b16 %v41
  %v302 = vunpack.c.l.b16 %v42
  %v303 = vunpack.c.l.b16 %v43
  %v304 = vunpack.c.l.b16 %v44
  %v305 = vunpack.c.l.b16 %v45
  %v306 = vunpack.c.l.b16 %v46
  %v307 = vunpack.c.l.b16 %v47
  %v308 = vunpack.c.l.b16 %v48
  %v309 = vunpack.c.l.b16 %v49
  %v310 = vunpack.c.l.b16 %v50
  %v311 = vunpack.c.l.b16 %v51
  %v312 = vunpack.c.l.b16 %v52
  %v313 = vunpack.c.l.b16 %v53
  %v314 = vunpack.c.l.b16 %v54
  %v315 = vunpack.c.l.b16 %v55
  %v316 = vunpack.c.l.b16 %v56
  %v317 = vunpack.c.l.b16 %v57
  %v318 = vunpack.c.l.b16 %v58
  %v319 = vunpack.c.l.b16 %v59
  %v320 = vunpack.c.l.b16 %v60
  %v321 = vunpack.c.l.b16 %v61
  %v322 = vunpack.c.l.b16 %v62
  %v323 = vunpack.c.l.b16 %v63
  %v324 = vunpack.c.l.b16 %v64
  %v325 = vunpack.c.l.b16 %v65
  %v326 = vunpack.c.l.b16 %v66
  %v327 = vunpack.c.l.b16 %v67
  %v328 = vunpack.c.l.b16 %v68
  %v329 = vunpack.c.l.b16 %v69
  %v330 = vunpack.c.l.b16 %v70
  %v331 = vunpack.c.l.b16 %v71
  %v332 = vunpack.c.l.b16 %v72
  %v333 = vunpack.c.l.b16 %v73
  %v334 = vunpack.c.l.b16 %v74
  %v335 = vunpack.c.l.b16 %v75
  %v336 = vunpack.c.l.b16 %v76
  %v337 = vunpack.c.l.b16 %v77
  %v338 = vunpack.c.l.b16 %v78
  %v339 = vunpack.c.l.b16 %v79
  %v340 = vunpack.c.l.b16 %v80
  %v341 = vunpack.c.l.b16 %v81
  %v342 = vunpack.c.l.b16 %v82
  %v343 = vunpack.c.l.b16 %v83
  %v344 = vunpack.c.l.b16 %v84
  %v345 = vunpack.c.l.b16 %v85
  %v346 = vunpack.c.l.b16 %v86
  %v347 = vunpack.c.l.b16 %v87
  %v348 = vunpack.c.l.b16 %v88
  %v349 = vunpack.c.l.b16 %v89
  %v350 = vunpack.c.l.b16 %v90
  %v351 = vunpack.c.l.b16 %v91
  %v352 = vunpack.c.l.b16 %v92
  %v353 = vunpack.c.l.b16 %v93
  %v354 = vunpack.c.l.b16 %v94
  %v355 = vunpack.c.l.b16 %v95
  %v356 = vunpack.c.l.b16 %v96
  %v357 = vunpack.c.l.b16 %v97
  %v358 = vunpack.c.l.b16 %v98
  %v359 = vunpack.c.l.b16 %v99
  %v360 = vunpack.c.l.b16 %v100
  %v361 = vunpack.c.l.b16 %v101
  %v362 = vunpack.c.l.b16 %v102
  %v363 = vunpack.c.l.b16 %v103
  %v364 = vunpack.c.l.b16 %v104
  %v365 = vunpack.c.l.b16 %v105
  %v366 = vunpack.c.l.b16 %v106
  %v367 = vunpack.c.l.b16 %v107
  %v368 = vunpack.c.l.b16 %v108
  %v369 = vunpack.c.l.b16 %v109
  %v370 = vunpack.c.l.b16 %v110
  %v371 = vunpack.c.l.b16 %v111
  %v372 = vunpack.c.l.b16 %v112
  %v373 = vunpack.c.l.b16 %v113
  %v374 = vunpack.c.l.b16 %v114
  %v375 = vunpack.c.l.b16 %v115
  %v376 = vunpack.c.l.b16 %v116
  %v377 = vunpack.c.l.b16 %v117
  %v378 = vunpack.c.l.b16 %v118
  %v379 = vunpack.c.l.b16 %v119
  %v380 = vunpack.c.l.b16 %v120
  %v381 = vunpack.c.l.b16 %v121
  %v382 = vunpack.c.l.b16 %v122
  %v383 = vunpack.c.l.b16 %v123
  %v384 = vunpack.c.l.b16 %v124
  %v385 = vunpack.c.l.b16 %v125
  %v386 = vunpack.c.l.b16 %v126
  %v387 = vunpack.c.l.b16 %v127
  %v388 = vunpack.c.l.b16 %v128
  %v389 = vunpack.c.l.b16 %v129
  %v390 = vunpack.c.l.b16 %v130
  %v391 = vunpack.c.l.b16 %v131
  %v392 = vunpack.c.l.b16 %v132
  %v393 = vunpack.c.l.b16 %v133
  %v394 = vunpack.c.l.b16 %v134
  %v395 = vunpack.c.l.b16 %v135
  %v396 = vunpack.c.l.b16 %v136
  %v397 = vunpack.c.l.b16 %v137
  %v398 = vunpack.c.l.b16 %v138
  %v399 = vunpack.c.l.b16 %v139
  %v400 = vunpack.c.l.b16 %v140
  %v401 = vunpack.c.l.b16 %v141
  %v402 = vunpack.c.l.b16 %v142
  %v403 = vunpack.c.l.b16 %v143
  %v404 = vunpack.c.l.b16 %v144
  %v405 = vunpack.c.l.b16 %v145
  %v406 = vpack.c.b16 %v279, %v278
  %v407 = vpack.c.b16 %v281, %v280
  %v408 = vpack.c.b16 %v283, %v282
  %v409 = vpack.c.b16 %v285, %v284
  %v410 = vpack.c.b16 %v287, %v286
  %v411 = vpack.c.b16 %v289, %v288
  %v412 = vpack.c.b16 %v291, %v290
  %v413 = vpack.c.b16 %v293, %v292
  %v414 = vpack.c.b16 %v295, %v294
  %v415 = vpack.c.b16 %v297, %v296
  %v416 = vpack.c.b16 %v299, %v298
  %v417 = vpack.c.b16 %v301, %v300
  %v418 = vpack.c.b16 %v303, %v302
  %v419 = vpack.c.b16 %v305, %v304
  %v420 = vpack.c.b16 %v307, %v306
  %v421 = vpack.c.b16 %v309, %v308
  %v422 = vpack.c.b16 %v311, %v310
  %v423 = vpack.c.b16 %v313, %v312
  %v424 = vpack.c.b16 %v315, %v314
  %v425 = vpack.c.b16 %v317, %v316
  %v426 = vpack.c.b16 %v319, %v318
  %v427 = vpack.c.b16 %v321, %v320
  %v428 = vpack.c.b16 %v323, %v322
  %v429 = vpack.c.b16 %v325, %v324
  %v430 = vpack.c.b16 %v327, %v326
  %v431 = vpack.c.b16 %v329, %v328
  %v432 = vpack.c.b16 %v331, %v330
  %v433 = vpack.c.b16 %v333, %v332
  %v434 = vpack.c.b16 %v335, %v334
  %v435 = vpack.c.b16 %v337, %v336
  %v436 = vpack.c.b16 %v339, %v338
  %v437 = vpack.c.b16 %v341, %v340
  %v438 = vpack.c.b16 %v343, %v342
  %v439 = vpack.c.b16 %v345, %v344
  %v440 = vpack.c.b16 %v347, %v346
  %v441 = vpack.c.b16 %v349, %v348
  %v442 = vpack.c.b16 %v351, %v350
  %v443 = vpack.c.b16 %v353, %v352
  %v444 = vpack.c.b16 %v355, %v354
  %v445 = vpack.c.b16 %v357, %v356
  %v446 = vpack.c.b16 %v359, %v358
  %v447 = vpack.c.b16 %v361, %v360
  %v448 = vpack.c.b16 %v363, %v362
  %v449 = vpack.c.b16 %v365, %v364
  %v450 = vpack.c.b16 %v367, %v366
  %v451 = vpack.c.b16 %v369, %v368
  %v452 = vpack.c.b16 %v371, %v370
  %v453 = vpack.c.b16 %v373, %v372
  %v454 = vpack.c.b16 %v375, %v374
  %v455 = vpack.c.b16 %v377, %v376
  %v456 = vpack.c.b16 %v379, %v378
  %v457 = vpack.c.b16 %v381, %v380
  %v458 = vpack.c.b16 %v383, %v382
  %v459 = vpack.c.b16 %v385, %v384
  %v460 = vpack.c.b16 %v387, %v386
  %v461 = vpack.c.b16 %v389, %v388
  %v462 = vpack.c.b16 %v391, %v390
  %v463 = vpack.c.b16 %v393, %v392
  %v464 = vpack.c.b16 %v395, %v394
  %v465 = vpack.c.b16 %v397, %v396
  %v466 = vpack.c.b16 %v399, %v398
  %v467 = vpack.c.b16 %v401, %v400
  %v468 = vpack.c.b16 %v403, %v402
  %v469 = vpack.c.b16 %v405, %v404
  %v474 = vunpack.c.l.b16 %v146
  %v475 = vunpack.c.l.b16 %v147
  %v476 = vunpack.c.l.b16 %v148
  %v477 = vunpack.c.l.b16 %v149
  %v478 = vpack.c.b16 %v475, %v474
  %v479 = vpack.c.b16 %v477, %v476
  %vm481 = vcmask 220160
  %v483 = vsel %vm481, %v406, 0
  %v486 = vsel %vm481, %v407, 0
  %v489 = vsel %vm481, %v408, 0
  %v492 = vsel %vm481, %v409, 0
  %v495 = vsel %vm481, %v410, 0
  %v498 = vsel %vm481, %v411, 0
  %v501 = vsel %vm481, %v412, 0
  %v504 = vsel %vm481, %v413, 0
  %v507 = vsel %vm481, %v414, 0
  %v510 = vsel %vm481, %v415, 0
  %v513 = vsel %vm481, %v416, 0
  %v516 = vsel %vm481, %v417, 0
  %v519 = vsel %vm481, %v418, 0
  %v522 = vsel %vm481, %v419, 0
  %v525 = vsel %vm481, %v420, 0
  %v528 = vsel %vm481, %v421, 0
  %v531 = vsel %vm481, %v422, 0
  %v534 = vsel %vm481, %v423, 0
  %v537 = vsel %vm481, %v424, 0
  %v540 = vsel %vm481, %v425, 0
  %v543 = vsel %vm481, %v426, 0
  %v546 = vsel %vm481, %v427, 0
  %v549 = vsel %vm481, %v428, 0
  %v552 = vsel %vm481, %v429, 0
  %v555 = vsel %vm481, %v430, 0
  %v558 = vsel %vm481, %v431, 0
  %v561 = vsel %vm481, %v432, 0
  %v564 = vsel %vm481, %v433, 0
  %v567 = vsel %vm481, %v434, 0
  %v570 = vsel %vm481, %v435, 0
  %v573 = vsel %vm481, %v436, 0
  %v576 = vsel %vm481, %v437, 0
  %v579 = vsel %vm481, %v438, 0
  %v582 = vsel %vm481, %v439, 0
  %v585 = vsel %vm481, %v440, 0
  %v588 = vsel %vm481, %v441, 0
  %v591 = vsel %vm481, %v442, 0
  %v594 = vsel %vm481, %v443, 0
  %v597 = vsel %vm481, %v444, 0
  %v600 = vsel %vm481, %v445, 0
  %v603 = vsel %vm481, %v446, 0
  %v606 = vsel %vm481, %v447, 0
  %v609 = vsel %vm481, %v448, 0
  %v612 = vsel %vm481, %v449, 0
  %v615 = vsel %vm481, %v450, 0
  %v618 = vsel %vm481, %v451, 0
  %v621 = vsel %vm481, %v452, 0
  %v624 = vsel %vm481, %v453, 0
  %v627 = vsel %vm481, %v454, 0
  %v630 = vsel %vm481, %v455, 0
  %v633 = vsel %vm481, %v456, 0
  %v636 = vsel %vm481, %v457, 0
  %v639 = vsel %vm481, %v458, 0
  %v642 = vsel %vm481, %v459, 0
  %v645 = vsel %vm481, %v460, 0
  %v648 = vsel %vm481, %v461, 0
  %v651 = vsel %vm481, %v462, 0
  %v654 = vsel %vm481, %v463, 0
  %v657 = vsel %vm481, %v464, 0
  %v660 = vsel %vm481, %v465, 0
  %v663 = vsel %vm481, %v466, 0
  %v666 = vsel %vm481, %v467, 0
  %v669 = vsel %vm481, %v468, 0
  %v672 = vsel %vm481, %v469, 0
  %vm674 = vcmask 1044480
  %vm675 = vcmask 1045504
  %v676 = vsel %vm674, 4294967295, 65535
  %v677 = vsel %vm675, %v676, 0
  %v679 = vand.u32 %v479, %v677
  %681 = vmatprep.subr.bf16.mxu0 0
  %682 = vmatpush1.bf16.msra.mxu0 %v478
  %683 = vmatprep.subr.bf16.mxu0 0
  %684 = vmatpush1.bf16.msra.mxu0 %v679
  %685 = vmatprep.subr.bf16.mxu0 0
  %686 = vmatpush1.bf16.msra.mxu0 0
  %687 = vmatprep.subr.bf16.mxu0 0
  %688 = vmatpush1.bf16.msra.mxu0 0
  %689 = vmatprep.subr.bf16.mxu0 0
  %690 = vmatpush1.bf16.msra.mxu0 0
  %691 = vmatprep.subr.bf16.mxu0 0
  %692 = vmatpush1.bf16.msra.mxu0 0
  %693 = vmatprep.subr.bf16.mxu0 0
  %694 = vmatpush1.bf16.msra.mxu0 0
  %695 = vmatprep.subr.bf16.mxu0 0
  %696 = vmatpush1.bf16.msra.mxu0 0
  %697 = vmatprep.subr.bf16.mxu0 0
  %698 = vmatpush1.bf16.msra.mxu0 0
  %699 = vmatprep.subr.bf16.mxu0 0
  %700 = vmatpush1.bf16.msra.mxu0 0
  %701 = vmatprep.subr.bf16.mxu0 0
  %702 = vmatpush1.bf16.msra.mxu0 0
  %703 = vmatprep.subr.bf16.mxu0 0
  %704 = vmatpush1.bf16.msra.mxu0 0
  %705 = vmatprep.subr.bf16.mxu0 0
  %706 = vmatpush1.bf16.msra.mxu0 0
  %707 = vmatprep.subr.bf16.mxu0 0
  %708 = vmatpush1.bf16.msra.mxu0 0
  %709 = vmatprep.subr.bf16.mxu0 0
  %710 = vmatpush1.bf16.msra.mxu0 0
  %711 = vmatprep.subr.bf16.mxu0 0
  %712 = vmatpush1.bf16.msra.mxu0 0
  %713 = vmatprep.mubr.bf16.mxu0 0
  %714 = vmatmul.mubr.bf16.gmra.mrb[0].mxu0 %v483
  %v715 = vpop.f32.mrb[0].mxu0
  %v716 = vadd.f32 0.0, %v715
  %v717 = vpop.f32.mrb[0].mxu0
  %v718 = vpop.f32.mrb[0].mxu0
  %v719 = vadd.f32 0.0, %v718
  %v720 = vpop.f32.mrb[0].mxu0
  %721 = vmatprep.mubr.bf16.mxu0 0
  %722 = vmatmul.mubr.bf16.gmra.mrb[0].mxu0 %v486
  %v723 = vpop.f32.mrb[0].mxu0
  %v724 = vadd.f32 0.0, %v723
  %v725 = vpop.f32.mrb[0].mxu0
  %v726 = vpop.f32.mrb[0].mxu0
  %v727 = vadd.f32 0.0, %v726
  %v728 = vpop.f32.mrb[0].mxu0
  %729 = vmatprep.mubr.bf16.mxu0 0
  %730 = vmatmul.mubr.bf16.gmra.mrb[0].mxu0 %v489
  %v731 = vpop.f32.mrb[0].mxu0
  %v732 = vadd.f32 0.0, %v731
  %v733 = vpop.f32.mrb[0].mxu0
  %v734 = vpop.f32.mrb[0].mxu0
  %v735 = vadd.f32 0.0, %v734
  %v736 = vpop.f32.mrb[0].mxu0
  %737 = vmatprep.mubr.bf16.mxu0 0
  %738 = vmatmul.mubr.bf16.gmra.mrb[0].mxu0 %v492
  %v739 = vpop.f32.mrb[0].mxu0
  %v740 = vadd.f32 0.0, %v739
  %v741 = vpop.f32.mrb[0].mxu0
  %v742 = vpop.f32.mrb[0].mxu0
  %v743 = vadd.f32 0.0, %v742
  %v744 = vpop.f32.mrb[0].mxu0
  %745 = vmatprep.mubr.bf16.mxu0 0
  %746 = vmatmul.mubr.bf16.gmra.mrb[0].mxu0 %v495
  %v747 = vpop.f32.mrb[0].mxu0
  %v748 = vadd.f32 0.0, %v747
  %v749 = vpop.f32.mrb[0].mxu0
  %v750 = vpop.f32.mrb[0].mxu0
  %v751 = vadd.f32 0.0, %v750
  %v752 = vpop.f32.mrb[0].mxu0
  %753 = vmatprep.mubr.bf16.mxu0 0
  %754 = vmatmul.mubr.bf16.gmra.mrb[0].mxu0 %v498
  %v755 = vpop.f32.mrb[0].mxu0
  %v756 = vadd.f32 0.0, %v755
  %v757 = vpop.f32.mrb[0].mxu0
  %v758 = vpop.f32.mrb[0].mxu0
  %v759 = vadd.f32 0.0, %v758
  %v760 = vpop.f32.mrb[0].mxu0
  %761 = vmatprep.mubr.bf16.mxu0 0
  %762 = vmatmul.mubr.bf16.gmra.mrb[0].mxu0 %v501
  %v763 = vpop.f32.mrb[0].mxu0
  %v764 = vadd.f32 0.0, %v763
  %v765 = vpop.f32.mrb[0].mxu0
  %v766 = vpop.f32.mrb[0].mxu0
  %v767 = vadd.f32 0.0, %v766
  %v768 = vpop.f32.mrb[0].mxu0
  %769 = vmatprep.mubr.bf16.mxu0 0
  %770 = vmatmul.mubr.bf16.gmra.mrb[0].mxu0 %v504
  %v771 = vpop.f32.mrb[0].mxu0
  %v772 = vadd.f32 0.0, %v771
  %v773 = vpop.f32.mrb[0].mxu0
  %v774 = vpop.f32.mrb[0].mxu0
  %v775 = vadd.f32 0.0, %v774
  %v776 = vpop.f32.mrb[0].mxu0
  %777 = vmatprep.mubr.bf16.mxu0 0
  %778 = vmatmul.mubr.bf16.gmra.mrb[0].mxu0 %v507
  %v779 = vpop.f32.mrb[0].mxu0
  %v780 = vadd.f32 0.0, %v779
  %v781 = vpop.f32.mrb[0].mxu0
  %v782 = vpop.f32.mrb[0].mxu0
  %v783 = vadd.f32 0.0, %v782
  %v784 = vpop.f32.mrb[0].mxu0
  %785 = vmatprep.mubr.bf16.mxu0 0
  %786 = vmatmul.mubr.bf16.gmra.mrb[0].mxu0 %v510
  %v787 = vpop.f32.mrb[0].mxu0
  %v788 = vadd.f32 0.0, %v787
  %v789 = vpop.f32.mrb[0].mxu0
  %v790 = vpop.f32.mrb[0].mxu0
  %v791 = vadd.f32 0.0, %v790
  %v792 = vpop.f32.mrb[0].mxu0
  %793 = vmatprep.mubr.bf16.mxu0 0
  %794 = vmatmul.mubr.bf16.gmra.mrb[0].mxu0 %v513
  %v795 = vpop.f32.mrb[0].mxu0
  %v796 = vadd.f32 0.0, %v795
  %v797 = vpop.f32.mrb[0].mxu0
  %v798 = vpop.f32.mrb[0].mxu0
  %v799 = vadd.f32 0.0, %v798
  %v800 = vpop.f32.mrb[0].mxu0
  %801 = vmatprep.mubr.bf16.mxu0 0
  %802 = vmatmul.mubr.bf16.gmra.mrb[0].mxu0 %v516
  %v803 = vpop.f32.mrb[0].mxu0
  %v804 = vadd.f32 0.0, %v803
  %v805 = vpop.f32.mrb[0].mxu0
  %v806 = vpop.f32.mrb[0].mxu0
  %v807 = vadd.f32 0.0, %v806
  %v808 = vpop.f32.mrb[0].mxu0
  %809 = vmatprep.mubr.bf16.mxu0 0
  %810 = vmatmul.mubr.bf16.gmra.mrb[0].mxu0 %v519
  %v811 = vpop.f32.mrb[0].mxu0
  %v812 = vadd.f32 0.0, %v811
  %v813 = vpop.f32.mrb[0].mxu0
  %v814 = vpop.f32.mrb[0].mxu0
  %v815 = vadd.f32 0.0, %v814
  %v816 = vpop.f32.mrb[0].mxu0
  %817 = vmatprep.mubr.bf16.mxu0 0
  %818 = vmatmul.mubr.bf16.gmra.mrb[0].mxu0 %v522
  %v819 = vpop.f32.mrb[0].mxu0
  %v820 = vadd.f32 0.0, %v819
  %v821 = vpop.f32.mrb[0].mxu0
  %v822 = vpop.f32.mrb[0].mxu0
  %v823 = vadd.f32 0.0, %v822
  %v824 = vpop.f32.mrb[0].mxu0
  %825 = vmatprep.mubr.bf16.mxu0 0
  %826 = vmatmul.mubr.bf16.gmra.mrb[0].mxu0 %v525
  %v827 = vpop.f32.mrb[0].mxu0
  %v828 = vadd.f32 0.0, %v827
  %v829 = vpop.f32.mrb[0].mxu0
  %v830 = vpop.f32.mrb[0].mxu0
  %v831 = vadd.f32 0.0, %v830
  %v832 = vpop.f32.mrb[0].mxu0
  %833 = vmatprep.mubr.bf16.mxu0 0
  %834 = vmatmul.mubr.bf16.gmra.mrb[0].mxu0 %v528
  %v835 = vpop.f32.mrb[0].mxu0
  %v836 = vadd.f32 0.0, %v835
  %v837 = vpop.f32.mrb[0].mxu0
  %v838 = vpop.f32.mrb[0].mxu0
  %v839 = vadd.f32 0.0, %v838
  %v840 = vpop.f32.mrb[0].mxu0
  %841 = vmatprep.mubr.bf16.mxu0 0
  %842 = vmatmul.mubr.bf16.gmra.mrb[0].mxu0 %v531
  %v843 = vpop.f32.mrb[0].mxu0
  %v844 = vadd.f32 0.0, %v843
  %v845 = vpop.f32.mrb[0].mxu0
  %v846 = vpop.f32.mrb[0].mxu0
  %v847 = vadd.f32 0.0, %v846
  %v848 = vpop.f32.mrb[0].mxu0
  %849 = vmatprep.mubr.bf16.mxu0 0
  %850 = vmatmul.mubr.bf16.gmra.mrb[0].mxu0 %v534
  %v851 = vpop.f32.mrb[0].mxu0
  %v852 = vadd.f32 0.0, %v851
  %v853 = vpop.f32.mrb[0].mxu0
  %v854 = vpop.f32.mrb[0].mxu0
  %v855 = vadd.f32 0.0, %v854
  %v856 = vpop.f32.mrb[0].mxu0
  %857 = vmatprep.mubr.bf16.mxu0 0
  %858 = vmatmul.mubr.bf16.gmra.mrb[0].mxu0 %v537
  %v859 = vpop.f32.mrb[0].mxu0
  %v860 = vadd.f32 0.0, %v859
  %v861 = vpop.f32.mrb[0].mxu0
  %v862 = vpop.f32.mrb[0].mxu0
  %v863 = vadd.f32 0.0, %v862
  %v864 = vpop.f32.mrb[0].mxu0
  %865 = vmatprep.mubr.bf16.mxu0 0
  %866 = vmatmul.mubr.bf16.gmra.mrb[0].mxu0 %v540
  %v867 = vpop.f32.mrb[0].mxu0
  %v868 = vadd.f32 0.0, %v867
  %v869 = vpop.f32.mrb[0].mxu0
  %v870 = vpop.f32.mrb[0].mxu0
  %v871 = vadd.f32 0.0, %v870
  %v872 = vpop.f32.mrb[0].mxu0
  %873 = vmatprep.mubr.bf16.mxu0 0
  %874 = vmatmul.mubr.bf16.gmra.mrb[0].mxu0 %v543
  %v875 = vpop.f32.mrb[0].mxu0
  %v876 = vadd.f32 0.0, %v875
  %v877 = vpop.f32.mrb[0].mxu0
  %v878 = vpop.f32.mrb[0].mxu0
  %v879 = vadd.f32 0.0, %v878
  %v880 = vpop.f32.mrb[0].mxu0
  %881 = vmatprep.mubr.bf16.mxu0 0
  %882 = vmatmul.mubr.bf16.gmra.mrb[0].mxu0 %v546
  %v883 = vpop.f32.mrb[0].mxu0
  %v884 = vadd.f32 0.0, %v883
  %v885 = vpop.f32.mrb[0].mxu0
  %v886 = vpop.f32.mrb[0].mxu0
  %v887 = vadd.f32 0.0, %v886
  %v888 = vpop.f32.mrb[0].mxu0
  %889 = vmatprep.mubr.bf16.mxu0 0
  %890 = vmatmul.mubr.bf16.gmra.mrb[0].mxu0 %v549
  %v891 = vpop.f32.mrb[0].mxu0
  %v892 = vadd.f32 0.0, %v891
  %v893 = vpop.f32.mrb[0].mxu0
  %v894 = vpop.f32.mrb[0].mxu0
  %v895 = vadd.f32 0.0, %v894
  %v896 = vpop.f32.mrb[0].mxu0
  %897 = vmatprep.mubr.bf16.mxu0 0
  %898 = vmatmul.mubr.bf16.gmra.mrb[0].mxu0 %v552
  %v899 = vpop.f32.mrb[0].mxu0
  %v900 = vadd.f32 0.0, %v899
  %v901 = vpop.f32.mrb[0].mxu0
  %v902 = vpop.f32.mrb[0].mxu0
  %v903 = vadd.f32 0.0, %v902
  %v904 = vpop.f32.mrb[0].mxu0
  %905 = vmatprep.mubr.bf16.mxu0 0
  %906 = vmatmul.mubr.bf16.gmra.mrb[0].mxu0 %v555
  %v907 = vpop.f32.mrb[0].mxu0
  %v908 = vadd.f32 0.0, %v907
  %v909 = vpop.f32.mrb[0].mxu0
  %v910 = vpop.f32.mrb[0].mxu0
  %v911 = vadd.f32 0.0, %v910
  %v912 = vpop.f32.mrb[0].mxu0
  %913 = vmatprep.mubr.bf16.mxu0 0
  %914 = vmatmul.mubr.bf16.gmra.mrb[0].mxu0 %v558
  %v915 = vpop.f32.mrb[0].mxu0
  %v916 = vadd.f32 0.0, %v915
  %v917 = vpop.f32.mrb[0].mxu0
  %v918 = vpop.f32.mrb[0].mxu0
  %v919 = vadd.f32 0.0, %v918
  %v920 = vpop.f32.mrb[0].mxu0
  %921 = vmatprep.mubr.bf16.mxu0 0
  %922 = vmatmul.mubr.bf16.gmra.mrb[0].mxu0 %v561
  %v923 = vpop.f32.mrb[0].mxu0
  %v924 = vadd.f32 0.0, %v923
  %v925 = vpop.f32.mrb[0].mxu0
  %v926 = vpop.f32.mrb[0].mxu0
  %v927 = vadd.f32 0.0, %v926
  %v928 = vpop.f32.mrb[0].mxu0
  %929 = vmatprep.mubr.bf16.mxu0 0
  %930 = vmatmul.mubr.bf16.gmra.mrb[0].mxu0 %v564
  %v931 = vpop.f32.mrb[0].mxu0
  %v932 = vadd.f32 0.0, %v931
  %v933 = vpop.f32.mrb[0].mxu0
  %v934 = vpop.f32.mrb[0].mxu0
  %v935 = vadd.f32 0.0, %v934
  %v936 = vpop.f32.mrb[0].mxu0
  %937 = vmatprep.mubr.bf16.mxu0 0
  %938 = vmatmul.mubr.bf16.gmra.mrb[0].mxu0 %v567
  %v939 = vpop.f32.mrb[0].mxu0
  %v940 = vadd.f32 0.0, %v939
  %v941 = vpop.f32.mrb[0].mxu0
  %v942 = vpop.f32.mrb[0].mxu0
  %v943 = vadd.f32 0.0, %v942
  %v944 = vpop.f32.mrb[0].mxu0
  %945 = vmatprep.mubr.bf16.mxu0 0
  %946 = vmatmul.mubr.bf16.gmra.mrb[0].mxu0 %v570
  %v947 = vpop.f32.mrb[0].mxu0
  %v948 = vadd.f32 0.0, %v947
  %v949 = vpop.f32.mrb[0].mxu0
  %v950 = vpop.f32.mrb[0].mxu0
  %v951 = vadd.f32 0.0, %v950
  %v952 = vpop.f32.mrb[0].mxu0
  %953 = vmatprep.mubr.bf16.mxu0 0
  %954 = vmatmul.mubr.bf16.gmra.mrb[0].mxu0 %v573
  %v955 = vpop.f32.mrb[0].mxu0
  %v956 = vadd.f32 0.0, %v955
  %v957 = vpop.f32.mrb[0].mxu0
  %v958 = vpop.f32.mrb[0].mxu0
  %v959 = vadd.f32 0.0, %v958
  %v960 = vpop.f32.mrb[0].mxu0
  %961 = vmatprep.mubr.bf16.mxu0 0
  %962 = vmatmul.mubr.bf16.gmra.mrb[0].mxu0 %v576
  %v963 = vpop.f32.mrb[0].mxu0
  %v964 = vadd.f32 0.0, %v963
  %v965 = vpop.f32.mrb[0].mxu0
  %v966 = vpop.f32.mrb[0].mxu0
  %v967 = vadd.f32 0.0, %v966
  %v968 = vpop.f32.mrb[0].mxu0
  %969 = vmatprep.mubr.bf16.mxu0 0
  %970 = vmatmul.mubr.bf16.gmra.mrb[0].mxu0 %v579
  %v971 = vpop.f32.mrb[0].mxu0
  %v972 = vadd.f32 0.0, %v971
  %v973 = vpop.f32.mrb[0].mxu0
  %v974 = vpop.f32.mrb[0].mxu0
  %v975 = vadd.f32 0.0, %v974
  %v976 = vpop.f32.mrb[0].mxu0
  %977 = vmatprep.mubr.bf16.mxu0 0
  %978 = vmatmul.mubr.bf16.gmra.mrb[0].mxu0 %v582
  %v979 = vpop.f32.mrb[0].mxu0
  %v980 = vadd.f32 0.0, %v979
  %v981 = vpop.f32.mrb[0].mxu0
  %v982 = vpop.f32.mrb[0].mxu0
  %v983 = vadd.f32 0.0, %v982
  %v984 = vpop.f32.mrb[0].mxu0
  %985 = vmatprep.mubr.bf16.mxu0 0
  %986 = vmatmul.mubr.bf16.gmra.mrb[0].mxu0 %v585
  %v987 = vpop.f32.mrb[0].mxu0
  %v988 = vadd.f32 0.0, %v987
  %v989 = vpop.f32.mrb[0].mxu0
  %v990 = vpop.f32.mrb[0].mxu0
  %v991 = vadd.f32 0.0, %v990
  %v992 = vpop.f32.mrb[0].mxu0
  %993 = vmatprep.mubr.bf16.mxu0 0
  %994 = vmatmul.mubr.bf16.gmra.mrb[0].mxu0 %v588
  %v995 = vpop.f32.mrb[0].mxu0
  %v996 = vadd.f32 0.0, %v995
  %v997 = vpop.f32.mrb[0].mxu0
  %v998 = vpop.f32.mrb[0].mxu0
  %v999 = vadd.f32 0.0, %v998
  %v1000 = vpop.f32.mrb[0].mxu0
  %1001 = vmatprep.mubr.bf16.mxu0 0
  %1002 = vmatmul.mubr.bf16.gmra.mrb[0].mxu0 %v591
  %v1003 = vpop.f32.mrb[0].mxu0
  %v1004 = vadd.f32 0.0, %v1003
  %v1005 = vpop.f32.mrb[0].mxu0
  %v1006 = vpop.f32.mrb[0].mxu0
  %v1007 = vadd.f32 0.0, %v1006
  %v1008 = vpop.f32.mrb[0].mxu0
  %1009 = vmatprep.mubr.bf16.mxu0 0
  %1010 = vmatmul.mubr.bf16.gmra.mrb[0].mxu0 %v594
  %v1011 = vpop.f32.mrb[0].mxu0
  %v1012 = vadd.f32 0.0, %v1011
  %v1013 = vpop.f32.mrb[0].mxu0
  %v1014 = vpop.f32.mrb[0].mxu0
  %v1015 = vadd.f32 0.0, %v1014
  %v1016 = vpop.f32.mrb[0].mxu0
  %1017 = vmatprep.mubr.bf16.mxu0 0
  %1018 = vmatmul.mubr.bf16.gmra.mrb[0].mxu0 %v597
  %v1019 = vpop.f32.mrb[0].mxu0
  %v1020 = vadd.f32 0.0, %v1019
  %v1021 = vpop.f32.mrb[0].mxu0
  %v1022 = vpop.f32.mrb[0].mxu0
  %v1023 = vadd.f32 0.0, %v1022
  %v1024 = vpop.f32.mrb[0].mxu0
  %1025 = vmatprep.mubr.bf16.mxu0 0
  %1026 = vmatmul.mubr.bf16.gmra.mrb[0].mxu0 %v600
  %v1027 = vpop.f32.mrb[0].mxu0
  %v1028 = vadd.f32 0.0, %v1027
  %v1029 = vpop.f32.mrb[0].mxu0
  %v1030 = vpop.f32.mrb[0].mxu0
  %v1031 = vadd.f32 0.0, %v1030
  %v1032 = vpop.f32.mrb[0].mxu0
  %1033 = vmatprep.mubr.bf16.mxu0 0
  %1034 = vmatmul.mubr.bf16.gmra.mrb[0].mxu0 %v603
  %v1035 = vpop.f32.mrb[0].mxu0
  %v1036 = vadd.f32 0.0, %v1035
  %v1037 = vpop.f32.mrb[0].mxu0
  %v1038 = vpop.f32.mrb[0].mxu0
  %v1039 = vadd.f32 0.0, %v1038
  %v1040 = vpop.f32.mrb[0].mxu0
  %1041 = vmatprep.mubr.bf16.mxu0 0
  %1042 = vmatmul.mubr.bf16.gmra.mrb[0].mxu0 %v606
  %v1043 = vpop.f32.mrb[0].mxu0
  %v1044 = vadd.f32 0.0, %v1043
  %v1045 = vpop.f32.mrb[0].mxu0
  %v1046 = vpop.f32.mrb[0].mxu0
  %v1047 = vadd.f32 0.0, %v1046
  %v1048 = vpop.f32.mrb[0].mxu0
  %1049 = vmatprep.mubr.bf16.mxu0 0
  %1050 = vmatmul.mubr.bf16.gmra.mrb[0].mxu0 %v609
  %v1051 = vpop.f32.mrb[0].mxu0
  %v1052 = vadd.f32 0.0, %v1051
  %v1053 = vpop.f32.mrb[0].mxu0
  %v1054 = vpop.f32.mrb[0].mxu0
  %v1055 = vadd.f32 0.0, %v1054
  %v1056 = vpop.f32.mrb[0].mxu0
  %1057 = vmatprep.mubr.bf16.mxu0 0
  %1058 = vmatmul.mubr.bf16.gmra.mrb[0].mxu0 %v612
  %v1059 = vpop.f32.mrb[0].mxu0
  %v1060 = vadd.f32 0.0, %v1059
  %v1061 = vpop.f32.mrb[0].mxu0
  %v1062 = vpop.f32.mrb[0].mxu0
  %v1063 = vadd.f32 0.0, %v1062
  %v1064 = vpop.f32.mrb[0].mxu0
  %1065 = vmatprep.mubr.bf16.mxu0 0
  %1066 = vmatmul.mubr.bf16.gmra.mrb[0].mxu0 %v615
  %v1067 = vpop.f32.mrb[0].mxu0
  %v1068 = vadd.f32 0.0, %v1067
  %v1069 = vpop.f32.mrb[0].mxu0
  %v1070 = vpop.f32.mrb[0].mxu0
  %v1071 = vadd.f32 0.0, %v1070
  %v1072 = vpop.f32.mrb[0].mxu0
  %1073 = vmatprep.mubr.bf16.mxu0 0
  %1074 = vmatmul.mubr.bf16.gmra.mrb[0].mxu0 %v618
  %v1075 = vpop.f32.mrb[0].mxu0
  %v1076 = vadd.f32 0.0, %v1075
  %v1077 = vpop.f32.mrb[0].mxu0
  %v1078 = vpop.f32.mrb[0].mxu0
  %v1079 = vadd.f32 0.0, %v1078
  %v1080 = vpop.f32.mrb[0].mxu0
  %1081 = vmatprep.mubr.bf16.mxu0 0
  %1082 = vmatmul.mubr.bf16.gmra.mrb[0].mxu0 %v621
  %v1083 = vpop.f32.mrb[0].mxu0
  %v1084 = vadd.f32 0.0, %v1083
  %v1085 = vpop.f32.mrb[0].mxu0
  %v1086 = vpop.f32.mrb[0].mxu0
  %v1087 = vadd.f32 0.0, %v1086
  %v1088 = vpop.f32.mrb[0].mxu0
  %1089 = vmatprep.mubr.bf16.mxu0 0
  %1090 = vmatmul.mubr.bf16.gmra.mrb[0].mxu0 %v624
  %v1091 = vpop.f32.mrb[0].mxu0
  %v1092 = vadd.f32 0.0, %v1091
  %v1093 = vpop.f32.mrb[0].mxu0
  %v1094 = vpop.f32.mrb[0].mxu0
  %v1095 = vadd.f32 0.0, %v1094
  %v1096 = vpop.f32.mrb[0].mxu0
  %1097 = vmatprep.mubr.bf16.mxu0 0
  %1098 = vmatmul.mubr.bf16.gmra.mrb[0].mxu0 %v627
  %v1099 = vpop.f32.mrb[0].mxu0
  %v1100 = vadd.f32 0.0, %v1099
  %v1101 = vpop.f32.mrb[0].mxu0
  %v1102 = vpop.f32.mrb[0].mxu0
  %v1103 = vadd.f32 0.0, %v1102
  %v1104 = vpop.f32.mrb[0].mxu0
  %1105 = vmatprep.mubr.bf16.mxu0 0
  %1106 = vmatmul.mubr.bf16.gmra.mrb[0].mxu0 %v630
  %v1107 = vpop.f32.mrb[0].mxu0
  %v1108 = vadd.f32 0.0, %v1107
  %v1109 = vpop.f32.mrb[0].mxu0
  %v1110 = vpop.f32.mrb[0].mxu0
  %v1111 = vadd.f32 0.0, %v1110
  %v1112 = vpop.f32.mrb[0].mxu0
  %1113 = vmatprep.mubr.bf16.mxu0 0
  %1114 = vmatmul.mubr.bf16.gmra.mrb[0].mxu0 %v633
  %v1115 = vpop.f32.mrb[0].mxu0
  %v1116 = vadd.f32 0.0, %v1115
  %v1117 = vpop.f32.mrb[0].mxu0
  %v1118 = vpop.f32.mrb[0].mxu0
  %v1119 = vadd.f32 0.0, %v1118
  %v1120 = vpop.f32.mrb[0].mxu0
  %1121 = vmatprep.mubr.bf16.mxu0 0
  %1122 = vmatmul.mubr.bf16.gmra.mrb[0].mxu0 %v636
  %v1123 = vpop.f32.mrb[0].mxu0
  %v1124 = vadd.f32 0.0, %v1123
  %v1125 = vpop.f32.mrb[0].mxu0
  %v1126 = vpop.f32.mrb[0].mxu0
  %v1127 = vadd.f32 0.0, %v1126
  %v1128 = vpop.f32.mrb[0].mxu0
  %1129 = vmatprep.mubr.bf16.mxu0 0
  %1130 = vmatmul.mubr.bf16.gmra.mrb[0].mxu0 %v639
  %v1131 = vpop.f32.mrb[0].mxu0
  %v1132 = vadd.f32 0.0, %v1131
  %v1133 = vpop.f32.mrb[0].mxu0
  %v1134 = vpop.f32.mrb[0].mxu0
  %v1135 = vadd.f32 0.0, %v1134
  %v1136 = vpop.f32.mrb[0].mxu0
  %1137 = vmatprep.mubr.bf16.mxu0 0
  %1138 = vmatmul.mubr.bf16.gmra.mrb[0].mxu0 %v642
  %v1139 = vpop.f32.mrb[0].mxu0
  %v1140 = vadd.f32 0.0, %v1139
  %v1141 = vpop.f32.mrb[0].mxu0
  %v1142 = vpop.f32.mrb[0].mxu0
  %v1143 = vadd.f32 0.0, %v1142
  %v1144 = vpop.f32.mrb[0].mxu0
  %1145 = vmatprep.mubr.bf16.mxu0 0
  %1146 = vmatmul.mubr.bf16.gmra.mrb[0].mxu0 %v645
  %v1147 = vpop.f32.mrb[0].mxu0
  %v1148 = vadd.f32 0.0, %v1147
  %v1149 = vpop.f32.mrb[0].mxu0
  %v1150 = vpop.f32.mrb[0].mxu0
  %v1151 = vadd.f32 0.0, %v1150
  %v1152 = vpop.f32.mrb[0].mxu0
  %1153 = vmatprep.mubr.bf16.mxu0 0
  %1154 = vmatmul.mubr.bf16.gmra.mrb[0].mxu0 %v648
  %v1155 = vpop.f32.mrb[0].mxu0
  %v1156 = vadd.f32 0.0, %v1155
  %v1157 = vpop.f32.mrb[0].mxu0
  %v1158 = vpop.f32.mrb[0].mxu0
  %v1159 = vadd.f32 0.0, %v1158
  %v1160 = vpop.f32.mrb[0].mxu0
  %1161 = vmatprep.mubr.bf16.mxu0 0
  %1162 = vmatmul.mubr.bf16.gmra.mrb[0].mxu0 %v651
  %v1163 = vpop.f32.mrb[0].mxu0
  %v1164 = vadd.f32 0.0, %v1163
  %v1165 = vpop.f32.mrb[0].mxu0
  %v1166 = vpop.f32.mrb[0].mxu0
  %v1167 = vadd.f32 0.0, %v1166
  %v1168 = vpop.f32.mrb[0].mxu0
  %1169 = vmatprep.mubr.bf16.mxu0 0
  %1170 = vmatmul.mubr.bf16.gmra.mrb[0].mxu0 %v654
  %v1171 = vpop.f32.mrb[0].mxu0
  %v1172 = vadd.f32 0.0, %v1171
  %v1173 = vpop.f32.mrb[0].mxu0
  %v1174 = vpop.f32.mrb[0].mxu0
  %v1175 = vadd.f32 0.0, %v1174
  %v1176 = vpop.f32.mrb[0].mxu0
  %1177 = vmatprep.mubr.bf16.mxu0 0
  %1178 = vmatmul.mubr.bf16.gmra.mrb[0].mxu0 %v657
  %v1179 = vpop.f32.mrb[0].mxu0
  %v1180 = vadd.f32 0.0, %v1179
  %v1181 = vpop.f32.mrb[0].mxu0
  %v1182 = vpop.f32.mrb[0].mxu0
  %v1183 = vadd.f32 0.0, %v1182
  %v1184 = vpop.f32.mrb[0].mxu0
  %1185 = vmatprep.mubr.bf16.mxu0 0
  %1186 = vmatmul.mubr.bf16.gmra.mrb[0].mxu0 %v660
  %v1187 = vpop.f32.mrb[0].mxu0
  %v1188 = vadd.f32 0.0, %v1187
  %v1189 = vpop.f32.mrb[0].mxu0
  %v1190 = vpop.f32.mrb[0].mxu0
  %v1191 = vadd.f32 0.0, %v1190
  %v1192 = vpop.f32.mrb[0].mxu0
  %1193 = vmatprep.mubr.bf16.mxu0 0
  %1194 = vmatmul.mubr.bf16.gmra.mrb[0].mxu0 %v663
  %v1195 = vpop.f32.mrb[0].mxu0
  %v1196 = vadd.f32 0.0, %v1195
  %v1197 = vpop.f32.mrb[0].mxu0
  %v1198 = vpop.f32.mrb[0].mxu0
  %v1199 = vadd.f32 0.0, %v1198
  %v1200 = vpop.f32.mrb[0].mxu0
  %1201 = vmatprep.mubr.bf16.mxu0 0
  %1202 = vmatmul.mubr.bf16.gmra.mrb[0].mxu0 %v666
  %v1203 = vpop.f32.mrb[0].mxu0
  %v1204 = vadd.f32 0.0, %v1203
  %v1205 = vpop.f32.mrb[0].mxu0
  %v1206 = vpop.f32.mrb[0].mxu0
  %v1207 = vadd.f32 0.0, %v1206
  %v1208 = vpop.f32.mrb[0].mxu0
  %1209 = vmatprep.mubr.bf16.mxu0 0
  %1210 = vmatmul.mubr.bf16.gmra.mrb[0].mxu0 %v669
  %v1211 = vpop.f32.mrb[0].mxu0
  %v1212 = vadd.f32 0.0, %v1211
  %v1213 = vpop.f32.mrb[0].mxu0
  %v1214 = vpop.f32.mrb[0].mxu0
  %v1215 = vadd.f32 0.0, %v1214
  %v1216 = vpop.f32.mrb[0].mxu0
  %1217 = vmatprep.mubr.bf16.mxu0 0
  %1218 = vmatmul.mubr.bf16.gmra.mrb[0].mxu0 %v672
  %v1219 = vpop.f32.mrb[0].mxu0
  %v1220 = vadd.f32 0.0, %v1219
  %v1221 = vpop.f32.mrb[0].mxu0
  %v1222 = vpop.f32.mrb[0].mxu0
  %v1223 = vadd.f32 0.0, %v1222
  %v1224 = vpop.f32.mrb[0].mxu0
  %1225 = vdwg.mxu0
  %v1226 = vld [vmem:[%s2] sm:$0x1]
  %v1228 = vlaneseq
  %v1229 = vshrl.u32 %v1228, 7
  %v1230 = vsub.s32 0, %v1229
  %v1231 = vrot.slane %v1226, %v1230
  %v1233 = vmul.f32 %v716, %v1231
  %v1234 = vmul.f32 %v719, %v1231
  %v1235 = vmul.f32 %v724, %v1231
  %v1236 = vmul.f32 %v727, %v1231
  %v1237 = vmul.f32 %v732, %v1231
  %v1238 = vmul.f32 %v735, %v1231
  %v1239 = vmul.f32 %v740, %v1231
  %v1240 = vmul.f32 %v743, %v1231
  %v1241 = vmul.f32 %v748, %v1231
  %v1242 = vmul.f32 %v751, %v1231
  %v1243 = vmul.f32 %v756, %v1231
  %v1244 = vmul.f32 %v759, %v1231
  %v1245 = vmul.f32 %v764, %v1231
  %v1246 = vmul.f32 %v767, %v1231
  %v1247 = vmul.f32 %v772, %v1231
  %v1248 = vmul.f32 %v775, %v1231
  %v1249 = vmul.f32 %v780, %v1231
  %v1250 = vmul.f32 %v783, %v1231
  %v1251 = vmul.f32 %v788, %v1231
  %v1252 = vmul.f32 %v791, %v1231
  %v1253 = vmul.f32 %v796, %v1231
  %v1254 = vmul.f32 %v799, %v1231
  %v1255 = vmul.f32 %v804, %v1231
  %v1256 = vmul.f32 %v807, %v1231
  %v1257 = vmul.f32 %v812, %v1231
  %v1258 = vmul.f32 %v815, %v1231
  %v1259 = vmul.f32 %v820, %v1231
  %v1260 = vmul.f32 %v823, %v1231
  %v1261 = vmul.f32 %v828, %v1231
  %v1262 = vmul.f32 %v831, %v1231
  %v1263 = vmul.f32 %v836, %v1231
  %v1264 = vmul.f32 %v839, %v1231
  %v1265 = vmul.f32 %v844, %v1231
  %v1266 = vmul.f32 %v847, %v1231
  %v1267 = vmul.f32 %v852, %v1231
  %v1268 = vmul.f32 %v855, %v1231
  %v1269 = vmul.f32 %v860, %v1231
  %v1270 = vmul.f32 %v863, %v1231
  %v1271 = vmul.f32 %v868, %v1231
  %v1272 = vmul.f32 %v871, %v1231
  %v1273 = vmul.f32 %v876, %v1231
  %v1274 = vmul.f32 %v879, %v1231
  %v1275 = vmul.f32 %v884, %v1231
  %v1276 = vmul.f32 %v887, %v1231
  %v1277 = vmul.f32 %v892, %v1231
  %v1278 = vmul.f32 %v895, %v1231
  %v1279 = vmul.f32 %v900, %v1231
  %v1280 = vmul.f32 %v903, %v1231
  %v1281 = vmul.f32 %v908, %v1231
  %v1282 = vmul.f32 %v911, %v1231
  %v1283 = vmul.f32 %v916, %v1231
  %v1284 = vmul.f32 %v919, %v1231
  %v1285 = vmul.f32 %v924, %v1231
  %v1286 = vmul.f32 %v927, %v1231
  %v1287 = vmul.f32 %v932, %v1231
  %v1288 = vmul.f32 %v935, %v1231
  %v1289 = vmul.f32 %v940, %v1231
  %v1290 = vmul.f32 %v943, %v1231
  %v1291 = vmul.f32 %v948, %v1231
  %v1292 = vmul.f32 %v951, %v1231
  %v1293 = vmul.f32 %v956, %v1231
  %v1294 = vmul.f32 %v959, %v1231
  %v1295 = vmul.f32 %v964, %v1231
  %v1296 = vmul.f32 %v967, %v1231
  %v1297 = vmul.f32 %v972, %v1231
  %v1298 = vmul.f32 %v975, %v1231
  %v1299 = vmul.f32 %v980, %v1231
  %v1300 = vmul.f32 %v983, %v1231
  %v1301 = vmul.f32 %v988, %v1231
  %v1302 = vmul.f32 %v991, %v1231
  %v1303 = vmul.f32 %v996, %v1231
  %v1304 = vmul.f32 %v999, %v1231
  %v1305 = vmul.f32 %v1004, %v1231
  %v1306 = vmul.f32 %v1007, %v1231
  %v1307 = vmul.f32 %v1012, %v1231
  %v1308 = vmul.f32 %v1015, %v1231
  %v1309 = vmul.f32 %v1020, %v1231
  %v1310 = vmul.f32 %v1023, %v1231
  %v1311 = vmul.f32 %v1028, %v1231
  %v1312 = vmul.f32 %v1031, %v1231
  %v1313 = vmul.f32 %v1036, %v1231
  %v1314 = vmul.f32 %v1039, %v1231
  %v1315 = vmul.f32 %v1044, %v1231
  %v1316 = vmul.f32 %v1047, %v1231
  %v1317 = vmul.f32 %v1052, %v1231
  %v1318 = vmul.f32 %v1055, %v1231
  %v1319 = vmul.f32 %v1060, %v1231
  %v1320 = vmul.f32 %v1063, %v1231
  %v1321 = vmul.f32 %v1068, %v1231
  %v1322 = vmul.f32 %v1071, %v1231
  %v1323 = vmul.f32 %v1076, %v1231
  %v1324 = vmul.f32 %v1079, %v1231
  %v1325 = vmul.f32 %v1084, %v1231
  %v1326 = vmul.f32 %v1087, %v1231
  %v1327 = vmul.f32 %v1092, %v1231
  %v1328 = vmul.f32 %v1095, %v1231
  %v1329 = vmul.f32 %v1100, %v1231
  %v1330 = vmul.f32 %v1103, %v1231
  %v1331 = vmul.f32 %v1108, %v1231
  %v1332 = vmul.f32 %v1111, %v1231
  %v1333 = vmul.f32 %v1116, %v1231
  %v1334 = vmul.f32 %v1119, %v1231
  %v1335 = vmul.f32 %v1124, %v1231
  %v1336 = vmul.f32 %v1127, %v1231
  %v1337 = vmul.f32 %v1132, %v1231
  %v1338 = vmul.f32 %v1135, %v1231
  %v1339 = vmul.f32 %v1140, %v1231
  %v1340 = vmul.f32 %v1143, %v1231
  %v1341 = vmul.f32 %v1148, %v1231
  %v1342 = vmul.f32 %v1151, %v1231
  %v1343 = vmul.f32 %v1156, %v1231
  %v1344 = vmul.f32 %v1159, %v1231
  %v1345 = vmul.f32 %v1164, %v1231
  %v1346 = vmul.f32 %v1167, %v1231
  %v1347 = vmul.f32 %v1172, %v1231
  %v1348 = vmul.f32 %v1175, %v1231
  %v1349 = vmul.f32 %v1180, %v1231
  %v1350 = vmul.f32 %v1183, %v1231
  %v1351 = vmul.f32 %v1188, %v1231
  %v1352 = vmul.f32 %v1191, %v1231
  %v1353 = vmul.f32 %v1196, %v1231
  %v1354 = vmul.f32 %v1199, %v1231
  %v1355 = vmul.f32 %v1204, %v1231
  %v1356 = vmul.f32 %v1207, %v1231
  %v1357 = vmul.f32 %v1212, %v1231
  %v1358 = vmul.f32 %v1215, %v1231
  %v1359 = vmul.f32 %v1220, %v1231
  %v1360 = vmul.f32 %v1223, %v1231
  %v1361 = vld [vmem:[%s3] sm:$0x1]
  %v1363 = vlaneseq
  %v1364 = vshrl.u32 %v1363, 7
  %v1365 = vsub.s32 0, %v1364
  %v1366 = vrot.slane %v1361, %v1365
  %v1368 = vadd.f32 %v1233, %v1366
  %v1369 = vadd.f32 %v1234, %v1366
  %v1370 = vadd.f32 %v1235, %v1366
  %v1371 = vadd.f32 %v1236, %v1366
  %v1372 = vadd.f32 %v1237, %v1366
  %v1373 = vadd.f32 %v1238, %v1366
  %v1374 = vadd.f32 %v1239, %v1366
  %v1375 = vadd.f32 %v1240, %v1366
  %v1376 = vadd.f32 %v1241, %v1366
  %v1377 = vadd.f32 %v1242, %v1366
  %v1378 = vadd.f32 %v1243, %v1366
  %v1379 = vadd.f32 %v1244, %v1366
  %v1380 = vadd.f32 %v1245, %v1366
  %v1381 = vadd.f32 %v1246, %v1366
  %v1382 = vadd.f32 %v1247, %v1366
  %v1383 = vadd.f32 %v1248, %v1366
  %v1384 = vadd.f32 %v1249, %v1366
  %v1385 = vadd.f32 %v1250, %v1366
  %v1386 = vadd.f32 %v1251, %v1366
  %v1387 = vadd.f32 %v1252, %v1366
  %v1388 = vadd.f32 %v1253, %v1366
  %v1389 = vadd.f32 %v1254, %v1366
  %v1390 = vadd.f32 %v1255, %v1366
  %v1391 = vadd.f32 %v1256, %v1366
  %v1392 = vadd.f32 %v1257, %v1366
  %v1393 = vadd.f32 %v1258, %v1366
  %v1394 = vadd.f32 %v1259, %v1366
  %v1395 = vadd.f32 %v1260, %v1366
  %v1396 = vadd.f32 %v1261, %v1366
  %v1397 = vadd.f32 %v1262, %v1366
  %v1398 = vadd.f32 %v1263, %v1366
  %v1399 = vadd.f32 %v1264, %v1366
  %v1400 = vadd.f32 %v1265, %v1366
  %v1401 = vadd.f32 %v1266, %v1366
  %v1402 = vadd.f32 %v1267, %v1366
  %v1403 = vadd.f32 %v1268, %v1366
  %v1404 = vadd.f32 %v1269, %v1366
  %v1405 = vadd.f32 %v1270, %v1366
  %v1406 = vadd.f32 %v1271, %v1366
  %v1407 = vadd.f32 %v1272, %v1366
  %v1408 = vadd.f32 %v1273, %v1366
  %v1409 = vadd.f32 %v1274, %v1366
  %v1410 = vadd.f32 %v1275, %v1366
  %v1411 = vadd.f32 %v1276, %v1366
  %v1412 = vadd.f32 %v1277, %v1366
  %v1413 = vadd.f32 %v1278, %v1366
  %v1414 = vadd.f32 %v1279, %v1366
  %v1415 = vadd.f32 %v1280, %v1366
  %v1416 = vadd.f32 %v1281, %v1366
  %v1417 = vadd.f32 %v1282, %v1366
  %v1418 = vadd.f32 %v1283, %v1366
  %v1419 = vadd.f32 %v1284, %v1366
  %v1420 = vadd.f32 %v1285, %v1366
  %v1421 = vadd.f32 %v1286, %v1366
  %v1422 = vadd.f32 %v1287, %v1366
  %v1423 = vadd.f32 %v1288, %v1366
  %v1424 = vadd.f32 %v1289, %v1366
  %v1425 = vadd.f32 %v1290, %v1366
  %v1426 = vadd.f32 %v1291, %v1366
  %v1427 = vadd.f32 %v1292, %v1366
  %v1428 = vadd.f32 %v1293, %v1366
  %v1429 = vadd.f32 %v1294, %v1366
  %v1430 = vadd.f32 %v1295, %v1366
  %v1431 = vadd.f32 %v1296, %v1366
  %v1432 = vadd.f32 %v1297, %v1366
  %v1433 = vadd.f32 %v1298, %v1366
  %v1434 = vadd.f32 %v1299, %v1366
  %v1435 = vadd.f32 %v1300, %v1366
  %v1436 = vadd.f32 %v1301, %v1366
  %v1437 = vadd.f32 %v1302, %v1366
  %v1438 = vadd.f32 %v1303, %v1366
  %v1439 = vadd.f32 %v1304, %v1366
  %v1440 = vadd.f32 %v1305, %v1366
  %v1441 = vadd.f32 %v1306, %v1366
  %v1442 = vadd.f32 %v1307, %v1366
  %v1443 = vadd.f32 %v1308, %v1366
  %v1444 = vadd.f32 %v1309, %v1366
  %v1445 = vadd.f32 %v1310, %v1366
  %v1446 = vadd.f32 %v1311, %v1366
  %v1447 = vadd.f32 %v1312, %v1366
  %v1448 = vadd.f32 %v1313, %v1366
  %v1449 = vadd.f32 %v1314, %v1366
  %v1450 = vadd.f32 %v1315, %v1366
  %v1451 = vadd.f32 %v1316, %v1366
  %v1452 = vadd.f32 %v1317, %v1366
  %v1453 = vadd.f32 %v1318, %v1366
  %v1454 = vadd.f32 %v1319, %v1366
  %v1455 = vadd.f32 %v1320, %v1366
  %v1456 = vadd.f32 %v1321, %v1366
  %v1457 = vadd.f32 %v1322, %v1366
  %v1458 = vadd.f32 %v1323, %v1366
  %v1459 = vadd.f32 %v1324, %v1366
  %v1460 = vadd.f32 %v1325, %v1366
  %v1461 = vadd.f32 %v1326, %v1366
  %v1462 = vadd.f32 %v1327, %v1366
  %v1463 = vadd.f32 %v1328, %v1366
  %v1464 = vadd.f32 %v1329, %v1366
  %v1465 = vadd.f32 %v1330, %v1366
  %v1466 = vadd.f32 %v1331, %v1366
  %v1467 = vadd.f32 %v1332, %v1366
  %v1468 = vadd.f32 %v1333, %v1366
  %v1469 = vadd.f32 %v1334, %v1366
  %v1470 = vadd.f32 %v1335, %v1366
  %v1471 = vadd.f32 %v1336, %v1366
  %v1472 = vadd.f32 %v1337, %v1366
  %v1473 = vadd.f32 %v1338, %v1366
  %v1474 = vadd.f32 %v1339, %v1366
  %v1475 = vadd.f32 %v1340, %v1366
  %v1476 = vadd.f32 %v1341, %v1366
  %v1477 = vadd.f32 %v1342, %v1366
  %v1478 = vadd.f32 %v1343, %v1366
  %v1479 = vadd.f32 %v1344, %v1366
  %v1480 = vadd.f32 %v1345, %v1366
  %v1481 = vadd.f32 %v1346, %v1366
  %v1482 = vadd.f32 %v1347, %v1366
  %v1483 = vadd.f32 %v1348, %v1366
  %v1484 = vadd.f32 %v1349, %v1366
  %v1485 = vadd.f32 %v1350, %v1366
  %v1486 = vadd.f32 %v1351, %v1366
  %v1487 = vadd.f32 %v1352, %v1366
  %v1488 = vadd.f32 %v1353, %v1366
  %v1489 = vadd.f32 %v1354, %v1366
  %v1490 = vadd.f32 %v1355, %v1366
  %v1491 = vadd.f32 %v1356, %v1366
  %v1492 = vadd.f32 %v1357, %v1366
  %v1493 = vadd.f32 %v1358, %v1366
  %v1494 = vadd.f32 %v1359, %v1366
  %v1495 = vadd.f32 %v1360, %v1366
  %v1496 = vmax.f32 %v1368, 0.0
  %v1497 = vmax.f32 %v1369, 0.0
  %v1498 = vmax.f32 %v1370, 0.0
  %v1499 = vmax.f32 %v1371, 0.0
  %v1500 = vmax.f32 %v1372, 0.0
  %v1501 = vmax.f32 %v1373, 0.0
  %v1502 = vmax.f32 %v1374, 0.0
  %v1503 = vmax.f32 %v1375, 0.0
  %v1504 = vmax.f32 %v1376, 0.0
  %v1505 = vmax.f32 %v1377, 0.0
  %v1506 = vmax.f32 %v1378, 0.0
  %v1507 = vmax.f32 %v1379, 0.0
  %v1508 = vmax.f32 %v1380, 0.0
  %v1509 = vmax.f32 %v1381, 0.0
  %v1510 = vmax.f32 %v1382, 0.0
  %v1511 = vmax.f32 %v1383, 0.0
  %v1512 = vmax.f32 %v1384, 0.0
  %v1513 = vmax.f32 %v1385, 0.0
  %v1514 = vmax.f32 %v1386, 0.0
  %v1515 = vmax.f32 %v1387, 0.0
  %v1516 = vmax.f32 %v1388, 0.0
  %v1517 = vmax.f32 %v1389, 0.0
  %v1518 = vmax.f32 %v1390, 0.0
  %v1519 = vmax.f32 %v1391, 0.0
  %v1520 = vmax.f32 %v1392, 0.0
  %v1521 = vmax.f32 %v1393, 0.0
  %v1522 = vmax.f32 %v1394, 0.0
  %v1523 = vmax.f32 %v1395, 0.0
  %v1524 = vmax.f32 %v1396, 0.0
  %v1525 = vmax.f32 %v1397, 0.0
  %v1526 = vmax.f32 %v1398, 0.0
  %v1527 = vmax.f32 %v1399, 0.0
  %v1528 = vmax.f32 %v1400, 0.0
  %v1529 = vmax.f32 %v1401, 0.0
  %v1530 = vmax.f32 %v1402, 0.0
  %v1531 = vmax.f32 %v1403, 0.0
  %v1532 = vmax.f32 %v1404, 0.0
  %v1533 = vmax.f32 %v1405, 0.0
  %v1534 = vmax.f32 %v1406, 0.0
  %v1535 = vmax.f32 %v1407, 0.0
  %v1536 = vmax.f32 %v1408, 0.0
  %v1537 = vmax.f32 %v1409, 0.0
  %v1538 = vmax.f32 %v1410, 0.0
  %v1539 = vmax.f32 %v1411, 0.0
  %v1540 = vmax.f32 %v1412, 0.0
  %v1541 = vmax.f32 %v1413, 0.0
  %v1542 = vmax.f32 %v1414, 0.0
  %v1543 = vmax.f32 %v1415, 0.0
  %v1544 = vmax.f32 %v1416, 0.0
  %v1545 = vmax.f32 %v1417, 0.0
  %v1546 = vmax.f32 %v1418, 0.0
  %v1547 = vmax.f32 %v1419, 0.0
  %v1548 = vmax.f32 %v1420, 0.0
  %v1549 = vmax.f32 %v1421, 0.0
  %v1550 = vmax.f32 %v1422, 0.0
  %v1551 = vmax.f32 %v1423, 0.0
  %v1552 = vmax.f32 %v1424, 0.0
  %v1553 = vmax.f32 %v1425, 0.0
  %v1554 = vmax.f32 %v1426, 0.0
  %v1555 = vmax.f32 %v1427, 0.0
  %v1556 = vmax.f32 %v1428, 0.0
  %v1557 = vmax.f32 %v1429, 0.0
  %v1558 = vmax.f32 %v1430, 0.0
  %v1559 = vmax.f32 %v1431, 0.0
  %v1560 = vmax.f32 %v1432, 0.0
  %v1561 = vmax.f32 %v1433, 0.0
  %v1562 = vmax.f32 %v1434, 0.0
  %v1563 = vmax.f32 %v1435, 0.0
  %v1564 = vmax.f32 %v1436, 0.0
  %v1565 = vmax.f32 %v1437, 0.0
  %v1566 = vmax.f32 %v1438, 0.0
  %v1567 = vmax.f32 %v1439, 0.0
  %v1568 = vmax.f32 %v1440, 0.0
  %v1569 = vmax.f32 %v1441, 0.0
  %v1570 = vmax.f32 %v1442, 0.0
  %v1571 = vmax.f32 %v1443, 0.0
  %v1572 = vmax.f32 %v1444, 0.0
  %v1573 = vmax.f32 %v1445, 0.0
  %v1574 = vmax.f32 %v1446, 0.0
  %v1575 = vmax.f32 %v1447, 0.0
  %v1576 = vmax.f32 %v1448, 0.0
  %v1577 = vmax.f32 %v1449, 0.0
  %v1578 = vmax.f32 %v1450, 0.0
  %v1579 = vmax.f32 %v1451, 0.0
  %v1580 = vmax.f32 %v1452, 0.0
  %v1581 = vmax.f32 %v1453, 0.0
  %v1582 = vmax.f32 %v1454, 0.0
  %v1583 = vmax.f32 %v1455, 0.0
  %v1584 = vmax.f32 %v1456, 0.0
  %v1585 = vmax.f32 %v1457, 0.0
  %v1586 = vmax.f32 %v1458, 0.0
  %v1587 = vmax.f32 %v1459, 0.0
  %v1588 = vmax.f32 %v1460, 0.0
  %v1589 = vmax.f32 %v1461, 0.0
  %v1590 = vmax.f32 %v1462, 0.0
  %v1591 = vmax.f32 %v1463, 0.0
  %v1592 = vmax.f32 %v1464, 0.0
  %v1593 = vmax.f32 %v1465, 0.0
  %v1594 = vmax.f32 %v1466, 0.0
  %v1595 = vmax.f32 %v1467, 0.0
  %v1596 = vmax.f32 %v1468, 0.0
  %v1597 = vmax.f32 %v1469, 0.0
  %v1598 = vmax.f32 %v1470, 0.0
  %v1599 = vmax.f32 %v1471, 0.0
  %v1600 = vmax.f32 %v1472, 0.0
  %v1601 = vmax.f32 %v1473, 0.0
  %v1602 = vmax.f32 %v1474, 0.0
  %v1603 = vmax.f32 %v1475, 0.0
  %v1604 = vmax.f32 %v1476, 0.0
  %v1605 = vmax.f32 %v1477, 0.0
  %v1606 = vmax.f32 %v1478, 0.0
  %v1607 = vmax.f32 %v1479, 0.0
  %v1608 = vmax.f32 %v1480, 0.0
  %v1609 = vmax.f32 %v1481, 0.0
  %v1610 = vmax.f32 %v1482, 0.0
  %v1611 = vmax.f32 %v1483, 0.0
  %v1612 = vmax.f32 %v1484, 0.0
  %v1613 = vmax.f32 %v1485, 0.0
  %v1614 = vmax.f32 %v1486, 0.0
  %v1615 = vmax.f32 %v1487, 0.0
  %v1616 = vmax.f32 %v1488, 0.0
  %v1617 = vmax.f32 %v1489, 0.0
  %v1618 = vmax.f32 %v1490, 0.0
  %v1619 = vmax.f32 %v1491, 0.0
  %v1620 = vmax.f32 %v1492, 0.0
  %v1621 = vmax.f32 %v1493, 0.0
  %v1622 = vmax.f32 %v1494, 0.0
  %v1623 = vmax.f32 %v1495, 0.0
  %v1624 = vpack.c.bf16 %v1497, %v1496
  %v1625 = vpack.c.bf16 %v1499, %v1498
  %v1626 = vpack.c.bf16 %v1501, %v1500
  %v1627 = vpack.c.bf16 %v1503, %v1502
  %v1628 = vpack.c.bf16 %v1505, %v1504
  %v1629 = vpack.c.bf16 %v1507, %v1506
  %v1630 = vpack.c.bf16 %v1509, %v1508
  %v1631 = vpack.c.bf16 %v1511, %v1510
  %v1632 = vpack.c.bf16 %v1513, %v1512
  %v1633 = vpack.c.bf16 %v1515, %v1514
  %v1634 = vpack.c.bf16 %v1517, %v1516
  %v1635 = vpack.c.bf16 %v1519, %v1518
  %v1636 = vpack.c.bf16 %v1521, %v1520
  %v1637 = vpack.c.bf16 %v1523, %v1522
  %v1638 = vpack.c.bf16 %v1525, %v1524
  %v1639 = vpack.c.bf16 %v1527, %v1526
  %v1640 = vpack.c.bf16 %v1529, %v1528
  %v1641 = vpack.c.bf16 %v1531, %v1530
  %v1642 = vpack.c.bf16 %v1533, %v1532
  %v1643 = vpack.c.bf16 %v1535, %v1534
  %v1644 = vpack.c.bf16 %v1537, %v1536
  %v1645 = vpack.c.bf16 %v1539, %v1538
  %v1646 = vpack.c.bf16 %v1541, %v1540
  %v1647 = vpack.c.bf16 %v1543, %v1542
  %v1648 = vpack.c.bf16 %v1545, %v1544
  %v1649 = vpack.c.bf16 %v1547, %v1546
  %v1650 = vpack.c.bf16 %v1549, %v1548
  %v1651 = vpack.c.bf16 %v1551, %v1550
  %v1652 = vpack.c.bf16 %v1553, %v1552
  %v1653 = vpack.c.bf16 %v1555, %v1554
  %v1654 = vpack.c.bf16 %v1557, %v1556
  %v1655 = vpack.c.bf16 %v1559, %v1558
  %v1656 = vpack.c.bf16 %v1561, %v1560
  %v1657 = vpack.c.bf16 %v1563, %v1562
  %v1658 = vpack.c.bf16 %v1565, %v1564
  %v1659 = vpack.c.bf16 %v1567, %v1566
  %v1660 = vpack.c.bf16 %v1569, %v1568
  %v1661 = vpack.c.bf16 %v1571, %v1570
  %v1662 = vpack.c.bf16 %v1573, %v1572
  %v1663 = vpack.c.bf16 %v1575, %v1574
  %v1664 = vpack.c.bf16 %v1577, %v1576
  %v1665 = vpack.c.bf16 %v1579, %v1578
  %v1666 = vpack.c.bf16 %v1581, %v1580
  %v1667 = vpack.c.bf16 %v1583, %v1582
  %v1668 = vpack.c.bf16 %v1585, %v1584
  %v1669 = vpack.c.bf16 %v1587, %v1586
  %v1670 = vpack.c.bf16 %v1589, %v1588
  %v1671 = vpack.c.bf16 %v1591, %v1590
  %v1672 = vpack.c.bf16 %v1593, %v1592
  %v1673 = vpack.c.bf16 %v1595, %v1594
  %v1674 = vpack.c.bf16 %v1597, %v1596
  %v1675 = vpack.c.bf16 %v1599, %v1598
  %v1676 = vpack.c.bf16 %v1601, %v1600
  %v1677 = vpack.c.bf16 %v1603, %v1602
  %v1678 = vpack.c.bf16 %v1605, %v1604
  %v1679 = vpack.c.bf16 %v1607, %v1606
  %v1680 = vpack.c.bf16 %v1609, %v1608
  %v1681 = vpack.c.bf16 %v1611, %v1610
  %v1682 = vpack.c.bf16 %v1613, %v1612
  %v1683 = vpack.c.bf16 %v1615, %v1614
  %v1684 = vpack.c.bf16 %v1617, %v1616
  %v1685 = vpack.c.bf16 %v1619, %v1618
  %v1686 = vpack.c.bf16 %v1621, %v1620
  %v1687 = vpack.c.bf16 %v1623, %v1622
  %v1752 = vunpack.c.l.b16 %v1624
  %v1753 = vunpack.c.h.b16 %v1624
  %v1754 = vunpack.c.l.b16 %v1625
  %v1755 = vunpack.c.h.b16 %v1625
  %v1756 = vunpack.c.l.b16 %v1626
  %v1757 = vunpack.c.h.b16 %v1626
  %v1758 = vunpack.c.l.b16 %v1627
  %v1759 = vunpack.c.h.b16 %v1627
  %v1760 = vunpack.c.l.b16 %v1628
  %v1761 = vunpack.c.h.b16 %v1628
  %v1762 = vunpack.c.l.b16 %v1629
  %v1763 = vunpack.c.h.b16 %v1629
  %v1764 = vunpack.c.l.b16 %v1630
  %v1765 = vunpack.c.h.b16 %v1630
  %v1766 = vunpack.c.l.b16 %v1631
  %v1767 = vunpack.c.h.b16 %v1631
  %v1768 = vunpack.c.l.b16 %v1632
  %v1769 = vunpack.c.h.b16 %v1632
  %v1770 = vunpack.c.l.b16 %v1633
  %v1771 = vunpack.c.h.b16 %v1633
  %v1772 = vunpack.c.l.b16 %v1634
  %v1773 = vunpack.c.h.b16 %v1634
  %v1774 = vunpack.c.l.b16 %v1635
  %v1775 = vunpack.c.h.b16 %v1635
  %v1776 = vunpack.c.l.b16 %v1636
  %v1777 = vunpack.c.h.b16 %v1636
  %v1778 = vunpack.c.l.b16 %v1637
  %v1779 = vunpack.c.h.b16 %v1637
  %v1780 = vunpack.c.l.b16 %v1638
  %v1781 = vunpack.c.h.b16 %v1638
  %v1782 = vunpack.c.l.b16 %v1639
  %v1783 = vunpack.c.h.b16 %v1639
  %v1784 = vunpack.c.l.b16 %v1640
  %v1785 = vunpack.c.h.b16 %v1640
  %v1786 = vunpack.c.l.b16 %v1641
  %v1787 = vunpack.c.h.b16 %v1641
  %v1788 = vunpack.c.l.b16 %v1642
  %v1789 = vunpack.c.h.b16 %v1642
  %v1790 = vunpack.c.l.b16 %v1643
  %v1791 = vunpack.c.h.b16 %v1643
  %v1792 = vunpack.c.l.b16 %v1644
  %v1793 = vunpack.c.h.b16 %v1644
  %v1794 = vunpack.c.l.b16 %v1645
  %v1795 = vunpack.c.h.b16 %v1645
  %v1796 = vunpack.c.l.b16 %v1646
  %v1797 = vunpack.c.h.b16 %v1646
  %v1798 = vunpack.c.l.b16 %v1647
  %v1799 = vunpack.c.h.b16 %v1647
  %v1800 = vunpack.c.l.b16 %v1648
  %v1801 = vunpack.c.h.b16 %v1648
  %v1802 = vunpack.c.l.b16 %v1649
  %v1803 = vunpack.c.h.b16 %v1649
  %v1804 = vunpack.c.l.b16 %v1650
  %v1805 = vunpack.c.h.b16 %v1650
  %v1806 = vunpack.c.l.b16 %v1651
  %v1807 = vunpack.c.h.b16 %v1651
  %v1808 = vunpack.c.l.b16 %v1652
  %v1809 = vunpack.c.h.b16 %v1652
  %v1810 = vunpack.c.l.b16 %v1653
  %v1811 = vunpack.c.h.b16 %v1653
  %v1812 = vunpack.c.l.b16 %v1654
  %v1813 = vunpack.c.h.b16 %v1654
  %v1814 = vunpack.c.l.b16 %v1655
  %v1815 = vunpack.c.h.b16 %v1655
  %v1816 = vunpack.c.l.b16 %v1656
  %v1817 = vunpack.c.h.b16 %v1656
  %v1818 = vunpack.c.l.b16 %v1657
  %v1819 = vunpack.c.h.b16 %v1657
  %v1820 = vunpack.c.l.b16 %v1658
  %v1821 = vunpack.c.h.b16 %v1658
  %v1822 = vunpack.c.l.b16 %v1659
  %v1823 = vunpack.c.h.b16 %v1659
  %v1824 = vunpack.c.l.b16 %v1660
  %v1825 = vunpack.c.h.b16 %v1660
  %v1826 = vunpack.c.l.b16 %v1661
  %v1827 = vunpack.c.h.b16 %v1661
  %v1828 = vunpack.c.l.b16 %v1662
  %v1829 = vunpack.c.h.b16 %v1662
  %v1830 = vunpack.c.l.b16 %v1663
  %v1831 = vunpack.c.h.b16 %v1663
  %v1832 = vunpack.c.l.b16 %v1664
  %v1833 = vunpack.c.h.b16 %v1664
  %v1834 = vunpack.c.l.b16 %v1665
  %v1835 = vunpack.c.h.b16 %v1665
  %v1836 = vunpack.c.l.b16 %v1666
  %v1837 = vunpack.c.h.b16 %v1666
  %v1838 = vunpack.c.l.b16 %v1667
  %v1839 = vunpack.c.h.b16 %v1667
  %v1840 = vunpack.c.l.b16 %v1668
  %v1841 = vunpack.c.h.b16 %v1668
  %v1842 = vunpack.c.l.b16 %v1669
  %v1843 = vunpack.c.h.b16 %v1669
  %v1844 = vunpack.c.l.b16 %v1670
  %v1845 = vunpack.c.h.b16 %v1670
  %v1846 = vunpack.c.l.b16 %v1671
  %v1847 = vunpack.c.h.b16 %v1671
  %v1848 = vunpack.c.l.b16 %v1672
  %v1849 = vunpack.c.h.b16 %v1672
  %v1850 = vunpack.c.l.b16 %v1673
  %v1851 = vunpack.c.h.b16 %v1673
  %v1852 = vunpack.c.l.b16 %v1674
  %v1853 = vunpack.c.h.b16 %v1674
  %v1854 = vunpack.c.l.b16 %v1675
  %v1855 = vunpack.c.h.b16 %v1675
  %v1856 = vunpack.c.l.b16 %v1676
  %v1857 = vunpack.c.h.b16 %v1676
  %v1858 = vunpack.c.l.b16 %v1677
  %v1859 = vunpack.c.h.b16 %v1677
  %v1860 = vunpack.c.l.b16 %v1678
  %v1861 = vunpack.c.h.b16 %v1678
  %v1862 = vunpack.c.l.b16 %v1679
  %v1863 = vunpack.c.h.b16 %v1679
  %v1864 = vunpack.c.l.b16 %v1680
  %v1865 = vunpack.c.h.b16 %v1680
  %v1866 = vunpack.c.l.b16 %v1681
  %v1867 = vunpack.c.h.b16 %v1681
  %v1868 = vunpack.c.l.b16 %v1682
  %v1869 = vunpack.c.h.b16 %v1682
  %v1870 = vunpack.c.l.b16 %v1683
  %v1871 = vunpack.c.h.b16 %v1683
  %v1872 = vunpack.c.l.b16 %v1684
  %v1873 = vunpack.c.h.b16 %v1684
  %v1874 = vunpack.c.l.b16 %v1685
  %v1875 = vunpack.c.h.b16 %v1685
  %v1876 = vunpack.c.l.b16 %v1686
  %v1877 = vunpack.c.h.b16 %v1686
  %v1878 = vunpack.c.l.b16 %v1687
  %v1879 = vunpack.c.h.b16 %v1687
  %v1880 = vpack.c.b16 %v1752, %v1752
  %v1881 = vpack.c.b16 %v1753, %v1753
  %v1882 = vpack.c.b16 %v1754, %v1754
  %v1883 = vpack.c.b16 %v1755, %v1755
  %v1884 = vpack.c.b16 %v1756, %v1756
  %v1885 = vpack.c.b16 %v1757, %v1757
  %v1886 = vpack.c.b16 %v1758, %v1758
  %v1887 = vpack.c.b16 %v1759, %v1759
  %v1888 = vpack.c.b16 %v1760, %v1760
  %v1889 = vpack.c.b16 %v1761, %v1761
  %v1890 = vpack.c.b16 %v1762, %v1762
  %v1891 = vpack.c.b16 %v1763, %v1763
  %v1892 = vpack.c.b16 %v1764, %v1764
  %v1893 = vpack.c.b16 %v1765, %v1765
  %v1894 = vpack.c.b16 %v1766, %v1766
  %v1895 = vpack.c.b16 %v1767, %v1767
  %v1896 = vpack.c.b16 %v1768, %v1768
  %v1897 = vpack.c.b16 %v1769, %v1769
  %v1898 = vpack.c.b16 %v1770, %v1770
  %v1899 = vpack.c.b16 %v1771, %v1771
  %v1900 = vpack.c.b16 %v1772, %v1772
  %v1901 = vpack.c.b16 %v1773, %v1773
  %v1902 = vpack.c.b16 %v1774, %v1774
  %v1903 = vpack.c.b16 %v1775, %v1775
  %v1904 = vpack.c.b16 %v1776, %v1776
  %v1905 = vpack.c.b16 %v1777, %v1777
  %v1906 = vpack.c.b16 %v1778, %v1778
  %v1907 = vpack.c.b16 %v1779, %v1779
  %v1908 = vpack.c.b16 %v1780, %v1780
  %v1909 = vpack.c.b16 %v1781, %v1781
  %v1910 = vpack.c.b16 %v1782, %v1782
  %v1911 = vpack.c.b16 %v1783, %v1783
  %v1912 = vpack.c.b16 %v1784, %v1784
  %v1913 = vpack.c.b16 %v1785, %v1785
  %v1914 = vpack.c.b16 %v1786, %v1786
  %v1915 = vpack.c.b16 %v1787, %v1787
  %v1916 = vpack.c.b16 %v1788, %v1788
  %v1917 = vpack.c.b16 %v1789, %v1789
  %v1918 = vpack.c.b16 %v1790, %v1790
  %v1919 = vpack.c.b16 %v1791, %v1791
  %v1920 = vpack.c.b16 %v1792, %v1792
  %v1921 = vpack.c.b16 %v1793, %v1793
  %v1922 = vpack.c.b16 %v1794, %v1794
  %v1923 = vpack.c.b16 %v1795, %v1795
  %v1924 = vpack.c.b16 %v1796, %v1796
  %v1925 = vpack.c.b16 %v1797, %v1797
  %v1926 = vpack.c.b16 %v1798, %v1798
  %v1927 = vpack.c.b16 %v1799, %v1799
  %v1928 = vpack.c.b16 %v1800, %v1800
  %v1929 = vpack.c.b16 %v1801, %v1801
  %v1930 = vpack.c.b16 %v1802, %v1802
  %v1931 = vpack.c.b16 %v1803, %v1803
  %v1932 = vpack.c.b16 %v1804, %v1804
  %v1933 = vpack.c.b16 %v1805, %v1805
  %v1934 = vpack.c.b16 %v1806, %v1806
  %v1935 = vpack.c.b16 %v1807, %v1807
  %v1936 = vpack.c.b16 %v1808, %v1808
  %v1937 = vpack.c.b16 %v1809, %v1809
  %v1938 = vpack.c.b16 %v1810, %v1810
  %v1939 = vpack.c.b16 %v1811, %v1811
  %v1940 = vpack.c.b16 %v1812, %v1812
  %v1941 = vpack.c.b16 %v1813, %v1813
  %v1942 = vpack.c.b16 %v1814, %v1814
  %v1943 = vpack.c.b16 %v1815, %v1815
  %v1944 = vpack.c.b16 %v1816, %v1816
  %v1945 = vpack.c.b16 %v1817, %v1817
  %v1946 = vpack.c.b16 %v1818, %v1818
  %v1947 = vpack.c.b16 %v1819, %v1819
  %v1948 = vpack.c.b16 %v1820, %v1820
  %v1949 = vpack.c.b16 %v1821, %v1821
  %v1950 = vpack.c.b16 %v1822, %v1822
  %v1951 = vpack.c.b16 %v1823, %v1823
  %v1952 = vpack.c.b16 %v1824, %v1824
  %v1953 = vpack.c.b16 %v1825, %v1825
  %v1954 = vpack.c.b16 %v1826, %v1826
  %v1955 = vpack.c.b16 %v1827, %v1827
  %v1956 = vpack.c.b16 %v1828, %v1828
  %v1957 = vpack.c.b16 %v1829, %v1829
  %v1958 = vpack.c.b16 %v1830, %v1830
  %v1959 = vpack.c.b16 %v1831, %v1831
  %v1960 = vpack.c.b16 %v1832, %v1832
  %v1961 = vpack.c.b16 %v1833, %v1833
  %v1962 = vpack.c.b16 %v1834, %v1834
  %v1963 = vpack.c.b16 %v1835, %v1835
  %v1964 = vpack.c.b16 %v1836, %v1836
  %v1965 = vpack.c.b16 %v1837, %v1837
  %v1966 = vpack.c.b16 %v1838, %v1838
  %v1967 = vpack.c.b16 %v1839, %v1839
  %v1968 = vpack.c.b16 %v1840, %v1840
  %v1969 = vpack.c.b16 %v1841, %v1841
  %v1970 = vpack.c.b16 %v1842, %v1842
  %v1971 = vpack.c.b16 %v1843, %v1843
  %v1972 = vpack.c.b16 %v1844, %v1844
  %v1973 = vpack.c.b16 %v1845, %v1845
  %v1974 = vpack.c.b16 %v1846, %v1846
  %v1975 = vpack.c.b16 %v1847, %v1847
  %v1976 = vpack.c.b16 %v1848, %v1848
  %v1977 = vpack.c.b16 %v1849, %v1849
  %v1978 = vpack.c.b16 %v1850, %v1850
  %v1979 = vpack.c.b16 %v1851, %v1851
  %v1980 = vpack.c.b16 %v1852, %v1852
  %v1981 = vpack.c.b16 %v1853, %v1853
  %v1982 = vpack.c.b16 %v1854, %v1854
  %v1983 = vpack.c.b16 %v1855, %v1855
  %v1984 = vpack.c.b16 %v1856, %v1856
  %v1985 = vpack.c.b16 %v1857, %v1857
  %v1986 = vpack.c.b16 %v1858, %v1858
  %v1987 = vpack.c.b16 %v1859, %v1859
  %v1988 = vpack.c.b16 %v1860, %v1860
  %v1989 = vpack.c.b16 %v1861, %v1861
  %v1990 = vpack.c.b16 %v1862, %v1862
  %v1991 = vpack.c.b16 %v1863, %v1863
  %v1992 = vpack.c.b16 %v1864, %v1864
  %v1993 = vpack.c.b16 %v1865, %v1865
  %v1994 = vpack.c.b16 %v1866, %v1866
  %v1995 = vpack.c.b16 %v1867, %v1867
  %v1996 = vpack.c.b16 %v1868, %v1868
  %v1997 = vpack.c.b16 %v1869, %v1869
  %v1998 = vpack.c.b16 %v1870, %v1870
  %v1999 = vpack.c.b16 %v1871, %v1871
  %v2000 = vpack.c.b16 %v1872, %v1872
  %v2001 = vpack.c.b16 %v1873, %v1873
  %v2002 = vpack.c.b16 %v1874, %v1874
  %v2003 = vpack.c.b16 %v1875, %v1875
  %v2004 = vpack.c.b16 %v1876, %v1876
  %v2005 = vpack.c.b16 %v1877, %v1877
  %v2006 = vpack.c.b16 %v1878, %v1878
  %v2007 = vpack.c.b16 %v1879, %v1879
  %vm2136 = vcmask 60416
  %2137 = vst.msk [vmem:[%s4] sm:$0xf] %vm2136, %v1880
  %2138 = vst.msk [vmem:[%s4 + $0x4] sm:$0xf] %vm2136, %v1881
  %2139 = vst.msk [vmem:[%s4 + $0x8] sm:$0xf] %vm2136, %v1882
  %2140 = vst.msk [vmem:[%s4 + $0xc] sm:$0xf] %vm2136, %v1883
  %2141 = vst.msk [vmem:[%s4 + $0x10] sm:$0xf] %vm2136, %v1884
  %2142 = vst.msk [vmem:[%s4 + $0x14] sm:$0xf] %vm2136, %v1885
  %2143 = vst.msk [vmem:[%s4 + $0x18] sm:$0xf] %vm2136, %v1886
  %2144 = vst.msk [vmem:[%s4 + $0x1c] sm:$0xf] %vm2136, %v1887
  %2145 = vst.msk [vmem:[%s4 + $0x20] sm:$0xf] %vm2136, %v1888
  %2146 = vst.msk [vmem:[%s4 + $0x24] sm:$0xf] %vm2136, %v1889
  %2147 = vst.msk [vmem:[%s4 + $0x28] sm:$0xf] %vm2136, %v1890
  %2148 = vst.msk [vmem:[%s4 + $0x2c] sm:$0xf] %vm2136, %v1891
  %2149 = vst.msk [vmem:[%s4 + $0x30] sm:$0xf] %vm2136, %v1892
  %2150 = vst.msk [vmem:[%s4 + $0x34] sm:$0xf] %vm2136, %v1893
  %2151 = vst.msk [vmem:[%s4 + $0x38] sm:$0xf] %vm2136, %v1894
  %2152 = vst.msk [vmem:[%s4 + $0x3c] sm:$0xf] %vm2136, %v1895
  %2153 = vst.msk [vmem:[%s4 + $0x40] sm:$0xf] %vm2136, %v1896
  %2154 = vst.msk [vmem:[%s4 + $0x44] sm:$0xf] %vm2136, %v1897
  %2155 = vst.msk [vmem:[%s4 + $0x48] sm:$0xf] %vm2136, %v1898
  %2156 = vst.msk [vmem:[%s4 + $0x4c] sm:$0xf] %vm2136, %v1899
  %2157 = vst.msk [vmem:[%s4 + $0x50] sm:$0xf] %vm2136, %v1900
  %2158 = vst.msk [vmem:[%s4 + $0x54] sm:$0xf] %vm2136, %v1901
  %2159 = vst.msk [vmem:[%s4 + $0x58] sm:$0xf] %vm2136, %v1902
  %2160 = vst.msk [vmem:[%s4 + $0x5c] sm:$0xf] %vm2136, %v1903
  %2161 = vst.msk [vmem:[%s4 + $0x60] sm:$0xf] %vm2136, %v1904
  %2162 = vst.msk [vmem:[%s4 + $0x64] sm:$0xf] %vm2136, %v1905
  %2163 = vst.msk [vmem:[%s4 + $0x68] sm:$0xf] %vm2136, %v1906
  %2164 = vst.msk [vmem:[%s4 + $0x6c] sm:$0xf] %vm2136, %v1907
  %2165 = vst.msk [vmem:[%s4 + $0x70] sm:$0xf] %vm2136, %v1908
  %2166 = vst.msk [vmem:[%s4 + $0x74] sm:$0xf] %vm2136, %v1909
  %2167 = vst.msk [vmem:[%s4 + $0x78] sm:$0xf] %vm2136, %v1910
  %2168 = vst.msk [vmem:[%s4 + $0x7c] sm:$0xf] %vm2136, %v1911
  %2169 = vst.msk [vmem:[%s4 + $0x80] sm:$0xf] %vm2136, %v1912
  %2170 = vst.msk [vmem:[%s4 + $0x84] sm:$0xf] %vm2136, %v1913
  %2171 = vst.msk [vmem:[%s4 + $0x88] sm:$0xf] %vm2136, %v1914
  %2172 = vst.msk [vmem:[%s4 + $0x8c] sm:$0xf] %vm2136, %v1915
  %2173 = vst.msk [vmem:[%s4 + $0x90] sm:$0xf] %vm2136, %v1916
  %2174 = vst.msk [vmem:[%s4 + $0x94] sm:$0xf] %vm2136, %v1917
  %2175 = vst.msk [vmem:[%s4 + $0x98] sm:$0xf] %vm2136, %v1918
  %2176 = vst.msk [vmem:[%s4 + $0x9c] sm:$0xf] %vm2136, %v1919
  %2177 = vst.msk [vmem:[%s4 + $0xa0] sm:$0xf] %vm2136, %v1920
  %2178 = vst.msk [vmem:[%s4 + $0xa4] sm:$0xf] %vm2136, %v1921
  %2179 = vst.msk [vmem:[%s4 + $0xa8] sm:$0xf] %vm2136, %v1922
  %2180 = vst.msk [vmem:[%s4 + $0xac] sm:$0xf] %vm2136, %v1923
  %2181 = vst.msk [vmem:[%s4 + $0xb0] sm:$0xf] %vm2136, %v1924
  %2182 = vst.msk [vmem:[%s4 + $0xb4] sm:$0xf] %vm2136, %v1925
  %2183 = vst.msk [vmem:[%s4 + $0xb8] sm:$0xf] %vm2136, %v1926
  %2184 = vst.msk [vmem:[%s4 + $0xbc] sm:$0xf] %vm2136, %v1927
  %2185 = vst.msk [vmem:[%s4 + $0xc0] sm:$0xf] %vm2136, %v1928
  %2186 = vst.msk [vmem:[%s4 + $0xc4] sm:$0xf] %vm2136, %v1929
  %2187 = vst.msk [vmem:[%s4 + $0xc8] sm:$0xf] %vm2136, %v1930
  %2188 = vst.msk [vmem:[%s4 + $0xcc] sm:$0xf] %vm2136, %v1931
  %2189 = vst.msk [vmem:[%s4 + $0xd0] sm:$0xf] %vm2136, %v1932
  %2190 = vst.msk [vmem:[%s4 + $0xd4] sm:$0xf] %vm2136, %v1933
  %2191 = vst.msk [vmem:[%s4 + $0xd8] sm:$0xf] %vm2136, %v1934
  %2192 = vst.msk [vmem:[%s4 + $0xdc] sm:$0xf] %vm2136, %v1935
  %2193 = vst.msk [vmem:[%s4 + $0xe0] sm:$0xf] %vm2136, %v1936
  %2194 = vst.msk [vmem:[%s4 + $0xe4] sm:$0xf] %vm2136, %v1937
  %2195 = vst.msk [vmem:[%s4 + $0xe8] sm:$0xf] %vm2136, %v1938
  %2196 = vst.msk [vmem:[%s4 + $0xec] sm:$0xf] %vm2136, %v1939
  %2197 = vst.msk [vmem:[%s4 + $0xf0] sm:$0xf] %vm2136, %v1940
  %2198 = vst.msk [vmem:[%s4 + $0xf4] sm:$0xf] %vm2136, %v1941
  %2199 = vst.msk [vmem:[%s4 + $0xf8] sm:$0xf] %vm2136, %v1942
  %2200 = vst.msk [vmem:[%s4 + $0xfc] sm:$0xf] %vm2136, %v1943
  %2201 = vst.msk [vmem:[%s4 + $0x100] sm:$0xf] %vm2136, %v1944
  %2202 = vst.msk [vmem:[%s4 + $0x104] sm:$0xf] %vm2136, %v1945
  %2203 = vst.msk [vmem:[%s4 + $0x108] sm:$0xf] %vm2136, %v1946
  %2204 = vst.msk [vmem:[%s4 + $0x10c] sm:$0xf] %vm2136, %v1947
  %2205 = vst.msk [vmem:[%s4 + $0x110] sm:$0xf] %vm2136, %v1948
  %2206 = vst.msk [vmem:[%s4 + $0x114] sm:$0xf] %vm2136, %v1949
  %2207 = vst.msk [vmem:[%s4 + $0x118] sm:$0xf] %vm2136, %v1950
  %2208 = vst.msk [vmem:[%s4 + $0x11c] sm:$0xf] %vm2136, %v1951
  %2209 = vst.msk [vmem:[%s4 + $0x120] sm:$0xf] %vm2136, %v1952
  %2210 = vst.msk [vmem:[%s4 + $0x124] sm:$0xf] %vm2136, %v1953
  %2211 = vst.msk [vmem:[%s4 + $0x128] sm:$0xf] %vm2136, %v1954
  %2212 = vst.msk [vmem:[%s4 + $0x12c] sm:$0xf] %vm2136, %v1955
  %2213 = vst.msk [vmem:[%s4 + $0x130] sm:$0xf] %vm2136, %v1956
  %2214 = vst.msk [vmem:[%s4 + $0x134] sm:$0xf] %vm2136, %v1957
  %2215 = vst.msk [vmem:[%s4 + $0x138] sm:$0xf] %vm2136, %v1958
  %2216 = vst.msk [vmem:[%s4 + $0x13c] sm:$0xf] %vm2136, %v1959
  %2217 = vst.msk [vmem:[%s4 + $0x140] sm:$0xf] %vm2136, %v1960
  %2218 = vst.msk [vmem:[%s4 + $0x144] sm:$0xf] %vm2136, %v1961
  %2219 = vst.msk [vmem:[%s4 + $0x148] sm:$0xf] %vm2136, %v1962
  %2220 = vst.msk [vmem:[%s4 + $0x14c] sm:$0xf] %vm2136, %v1963
  %2221 = vst.msk [vmem:[%s4 + $0x150] sm:$0xf] %vm2136, %v1964
  %2222 = vst.msk [vmem:[%s4 + $0x154] sm:$0xf] %vm2136, %v1965
  %2223 = vst.msk [vmem:[%s4 + $0x158] sm:$0xf] %vm2136, %v1966
  %2224 = vst.msk [vmem:[%s4 + $0x15c] sm:$0xf] %vm2136, %v1967
  %2225 = vst.msk [vmem:[%s4 + $0x160] sm:$0xf] %vm2136, %v1968
  %2226 = vst.msk [vmem:[%s4 + $0x164] sm:$0xf] %vm2136, %v1969
  %2227 = vst.msk [vmem:[%s4 + $0x168] sm:$0xf] %vm2136, %v1970
  %2228 = vst.msk [vmem:[%s4 + $0x16c] sm:$0xf] %vm2136, %v1971
  %2229 = vst.msk [vmem:[%s4 + $0x170] sm:$0xf] %vm2136, %v1972
  %2230 = vst.msk [vmem:[%s4 + $0x174] sm:$0xf] %vm2136, %v1973
  %2231 = vst.msk [vmem:[%s4 + $0x178] sm:$0xf] %vm2136, %v1974
  %2232 = vst.msk [vmem:[%s4 + $0x17c] sm:$0xf] %vm2136, %v1975
  %2233 = vst.msk [vmem:[%s4 + $0x180] sm:$0xf] %vm2136, %v1976
  %2234 = vst.msk [vmem:[%s4 + $0x184] sm:$0xf] %vm2136, %v1977
  %2235 = vst.msk [vmem:[%s4 + $0x188] sm:$0xf] %vm2136, %v1978
  %2236 = vst.msk [vmem:[%s4 + $0x18c] sm:$0xf] %vm2136, %v1979
  %2237 = vst.msk [vmem:[%s4 + $0x190] sm:$0xf] %vm2136, %v1980
  %2238 = vst.msk [vmem:[%s4 + $0x194] sm:$0xf] %vm2136, %v1981
  %2239 = vst.msk [vmem:[%s4 + $0x198] sm:$0xf] %vm2136, %v1982
  %2240 = vst.msk [vmem:[%s4 + $0x19c] sm:$0xf] %vm2136, %v1983
  %2241 = vst.msk [vmem:[%s4 + $0x1a0] sm:$0xf] %vm2136, %v1984
  %2242 = vst.msk [vmem:[%s4 + $0x1a4] sm:$0xf] %vm2136, %v1985
  %2243 = vst.msk [vmem:[%s4 + $0x1a8] sm:$0xf] %vm2136, %v1986
  %2244 = vst.msk [vmem:[%s4 + $0x1ac] sm:$0xf] %vm2136, %v1987
  %2245 = vst.msk [vmem:[%s4 + $0x1b0] sm:$0xf] %vm2136, %v1988
  %2246 = vst.msk [vmem:[%s4 + $0x1b4] sm:$0xf] %vm2136, %v1989
  %2247 = vst.msk [vmem:[%s4 + $0x1b8] sm:$0xf] %vm2136, %v1990
  %2248 = vst.msk [vmem:[%s4 + $0x1bc] sm:$0xf] %vm2136, %v1991
  %2249 = vst.msk [vmem:[%s4 + $0x1c0] sm:$0xf] %vm2136, %v1992
  %2250 = vst.msk [vmem:[%s4 + $0x1c4] sm:$0xf] %vm2136, %v1993
  %2251 = vst.msk [vmem:[%s4 + $0x1c8] sm:$0xf] %vm2136, %v1994
  %2252 = vst.msk [vmem:[%s4 + $0x1cc] sm:$0xf] %vm2136, %v1995
  %2253 = vst.msk [vmem:[%s4 + $0x1d0] sm:$0xf] %vm2136, %v1996
  %2254 = vst.msk [vmem:[%s4 + $0x1d4] sm:$0xf] %vm2136, %v1997
  %2255 = vst.msk [vmem:[%s4 + $0x1d8] sm:$0xf] %vm2136, %v1998
  %2256 = vst.msk [vmem:[%s4 + $0x1dc] sm:$0xf] %vm2136, %v1999
  %2257 = vst.msk [vmem:[%s4 + $0x1e0] sm:$0xf] %vm2136, %v2000
  %2258 = vst.msk [vmem:[%s4 + $0x1e4] sm:$0xf] %vm2136, %v2001
  %2259 = vst.msk [vmem:[%s4 + $0x1e8] sm:$0xf] %vm2136, %v2002
  %2260 = vst.msk [vmem:[%s4 + $0x1ec] sm:$0xf] %vm2136, %v2003
  %2261 = vst.msk [vmem:[%s4 + $0x1f0] sm:$0xf] %vm2136, %v2004
  %2262 = vst.msk [vmem:[%s4 + $0x1f4] sm:$0xf] %vm2136, %v2005
  %2263 = vst.msk [vmem:[%s4 + $0x1f8] sm:$0xf] %vm2136, %v2006
  %2264 = vst.msk [vmem:[%s4 + $0x1fc] sm:$0xf] %vm2136, %v2007
  // Predicated region
  $region18: #{_lambda_.21} parent=0 // pred_check
    _
  $region19: #{_lambda_.21} parent=0 // pred_check_branch
    %2266 = sbr.rel (0) target = $region21
  $region20: #{_lambda_.21} parent=0 // pred_region
    _
  $region21: #{_lambda_.21} parent=0 // pred_fallthru
    _
  // Predicated region
  $region22: #{_lambda_.21} parent=0 // pred_check
    _
  $region23: #{_lambda_.21} parent=0 // pred_check_branch
    %2268 = sbr.rel (0) target = $region25
  $region24: #{_lambda_.21} parent=0 // pred_region
    _
  $region25: #{_lambda_.21} parent=0 // pred_fallthru
    _

// kernel: _lambda_.23
$region0: #{_lambda_.23}
  #allocation0 [shape = 'u32[]', space=smem, size = 0x4, offset = 0x4, fixed_abs, tag = 'smem constant byte address 0x4 - core index']
  #allocation1 [shape = 'u32[144,128]{1,0:T(1,128)}', space=vmem, size = 0x12000, scoped, tag = 'internal scratch']
  %s0 = inlined_call_operand.vmem [shape: bf16[256,72], index: 0, kind: input, shape index: {}]
  %s1 = inlined_call_operand.vmem [shape: bf16[72,16], index: 1, kind: input, shape index: {}]
  %s2 = inlined_call_operand.vmem [shape: f32[1,16], index: 2, kind: input, shape index: {}]
  %s3 = inlined_call_operand.vmem [shape: f32[1,16], index: 3, kind: input, shape index: {}]
  %s4 = inlined_call_operand.vmem [shape: bf16[256,16], index: 4, kind: output, shape index: {}]
  %s5 = sld [smem:[#allocation0]]
  $region26: #{_lambda_.23} parent=0
    _
  %s7 = ssub.s32 1, %s5
  %s8 = scalar_select 0, %s7, %s5
  // Predicated region
  $region2: #{_lambda_.23} parent=0 // pred_check
    _
  $region3: #{_lambda_.23} parent=0 // pred_check_branch
    %10 = sbr.rel (0) target = $region5
  $region4: #{_lambda_.23} parent=0 // pred_region
    _
  $region5: #{_lambda_.23} parent=0 // pred_fallthru
    _
  // Predicated region
  $region6: #{_lambda_.23} parent=0 // pred_check
    _
  $region7: #{_lambda_.23} parent=0 // pred_check_branch
    %12 = sbr.rel (0) target = $region9
  $region8: #{_lambda_.23} parent=0 // pred_region
    _
  $region9: #{_lambda_.23} parent=0 // pred_fallthru
    _
  // Predicated region
  $region10: #{_lambda_.23} parent=0 // pred_check
    _
  $region11: #{_lambda_.23} parent=0 // pred_check_branch
    %14 = sbr.rel (0) target = $region13
  $region12: #{_lambda_.23} parent=0 // pred_region
    _
  $region13: #{_lambda_.23} parent=0 // pred_fallthru
    _
  // Predicated region
  $region14: #{_lambda_.23} parent=0 // pred_check
    _
  $region15: #{_lambda_.23} parent=0 // pred_check_branch
    %16 = sbr.rel (0) target = $region17
  $region16: #{_lambda_.23} parent=0 // pred_region
    _
  $region17: #{_lambda_.23} parent=0 // pred_fallthru
    _
  %v18 = vld [vmem:[%s0] sm:$0xf]
  %v19 = vld [vmem:[%s0 + $0x4] sm:$0xf]
  %v20 = vld [vmem:[%s0 + $0x8] sm:$0xf]
  %v21 = vld [vmem:[%s0 + $0xc] sm:$0xf]
  %v22 = vld [vmem:[%s0 + $0x10] sm:$0xf]
  %v23 = vld [vmem:[%s0 + $0x14] sm:$0xf]
  %v24 = vld [vmem:[%s0 + $0x18] sm:$0xf]
  %v25 = vld [vmem:[%s0 + $0x1c] sm:$0xf]
  %v26 = vld [vmem:[%s0 + $0x20] sm:$0xf]
  %v27 = vld [vmem:[%s0 + $0x24] sm:$0xf]
  %v28 = vld [vmem:[%s0 + $0x28] sm:$0xf]
  %v29 = vld [vmem:[%s0 + $0x2c] sm:$0xf]
  %v30 = vld [vmem:[%s0 + $0x30] sm:$0xf]
  %v31 = vld [vmem:[%s0 + $0x34] sm:$0xf]
  %v32 = vld [vmem:[%s0 + $0x38] sm:$0xf]
  %v33 = vld [vmem:[%s0 + $0x3c] sm:$0xf]
  %v34 = vld [vmem:[%s0 + $0x40] sm:$0xf]
  %v35 = vld [vmem:[%s0 + $0x44] sm:$0xf]
  %v36 = vld [vmem:[%s0 + $0x48] sm:$0xf]
  %v37 = vld [vmem:[%s0 + $0x4c] sm:$0xf]
  %v38 = vld [vmem:[%s0 + $0x50] sm:$0xf]
  %v39 = vld [vmem:[%s0 + $0x54] sm:$0xf]
  %v40 = vld [vmem:[%s0 + $0x58] sm:$0xf]
  %v41 = vld [vmem:[%s0 + $0x5c] sm:$0xf]
  %v42 = vld [vmem:[%s0 + $0x60] sm:$0xf]
  %v43 = vld [vmem:[%s0 + $0x64] sm:$0xf]
  %v44 = vld [vmem:[%s0 + $0x68] sm:$0xf]
  %v45 = vld [vmem:[%s0 + $0x6c] sm:$0xf]
  %v46 = vld [vmem:[%s0 + $0x70] sm:$0xf]
  %v47 = vld [vmem:[%s0 + $0x74] sm:$0xf]
  %v48 = vld [vmem:[%s0 + $0x78] sm:$0xf]
  %v49 = vld [vmem:[%s0 + $0x7c] sm:$0xf]
  %v50 = vld [vmem:[%s1] sm:$0xf]
  %v51 = vld [vmem:[%s1 + $0x4] sm:$0xf]
  %v52 = vld [vmem:[%s1 + $0x8] sm:$0xf]
  %v53 = vld [vmem:[%s1 + $0xc] sm:$0xf]
  %v54 = vld [vmem:[%s1 + $0x10] sm:$0xf]
  %v55 = vld [vmem:[%s1 + $0x14] sm:$0xf]
  %v56 = vld [vmem:[%s1 + $0x18] sm:$0xf]
  %v57 = vld [vmem:[%s1 + $0x1c] sm:$0xf]
  %v58 = vld [vmem:[%s1 + $0x20] sm:$0xf]
  %v91 = vunpack.c.l.b16 %v18
  %v92 = vunpack.c.l.b16 %v19
  %v93 = vunpack.c.l.b16 %v20
  %v94 = vunpack.c.l.b16 %v21
  %v95 = vunpack.c.l.b16 %v22
  %v96 = vunpack.c.l.b16 %v23
  %v97 = vunpack.c.l.b16 %v24
  %v98 = vunpack.c.l.b16 %v25
  %v99 = vunpack.c.l.b16 %v26
  %v100 = vunpack.c.l.b16 %v27
  %v101 = vunpack.c.l.b16 %v28
  %v102 = vunpack.c.l.b16 %v29
  %v103 = vunpack.c.l.b16 %v30
  %v104 = vunpack.c.l.b16 %v31
  %v105 = vunpack.c.l.b16 %v32
  %v106 = vunpack.c.l.b16 %v33
  %v107 = vunpack.c.l.b16 %v34
  %v108 = vunpack.c.l.b16 %v35
  %v109 = vunpack.c.l.b16 %v36
  %v110 = vunpack.c.l.b16 %v37
  %v111 = vunpack.c.l.b16 %v38
  %v112 = vunpack.c.l.b16 %v39
  %v113 = vunpack.c.l.b16 %v40
  %v114 = vunpack.c.l.b16 %v41
  %v115 = vunpack.c.l.b16 %v42
  %v116 = vunpack.c.l.b16 %v43
  %v117 = vunpack.c.l.b16 %v44
  %v118 = vunpack.c.l.b16 %v45
  %v119 = vunpack.c.l.b16 %v46
  %v120 = vunpack.c.l.b16 %v47
  %v121 = vunpack.c.l.b16 %v48
  %v122 = vunpack.c.l.b16 %v49
  %v123 = vpack.c.b16 %v92, %v91
  %v124 = vpack.c.b16 %v94, %v93
  %v125 = vpack.c.b16 %v96, %v95
  %v126 = vpack.c.b16 %v98, %v97
  %v127 = vpack.c.b16 %v100, %v99
  %v128 = vpack.c.b16 %v102, %v101
  %v129 = vpack.c.b16 %v104, %v103
  %v130 = vpack.c.b16 %v106, %v105
  %v131 = vpack.c.b16 %v108, %v107
  %v132 = vpack.c.b16 %v110, %v109
  %v133 = vpack.c.b16 %v112, %v111
  %v134 = vpack.c.b16 %v114, %v113
  %v135 = vpack.c.b16 %v116, %v115
  %v136 = vpack.c.b16 %v118, %v117
  %v137 = vpack.c.b16 %v120, %v119
  %v138 = vpack.c.b16 %v122, %v121
  %v148 = vunpack.c.l.b16 %v50
  %v149 = vunpack.c.l.b16 %v51
  %v150 = vunpack.c.l.b16 %v52
  %v151 = vunpack.c.l.b16 %v53
  %v152 = vunpack.c.l.b16 %v54
  %v153 = vunpack.c.l.b16 %v55
  %v154 = vunpack.c.l.b16 %v56
  %v155 = vunpack.c.l.b16 %v57
  %v156 = vunpack.c.l.b16 %v58
  %v157 = vpack.c.b16 %v149, %v148
  %v158 = vpack.c.b16 %v151, %v150
  %v159 = vpack.c.b16 %v153, %v152
  %v160 = vpack.c.b16 %v155, %v154
  %v161 = vpack.c.b16 %v156, %v156
  %vm166 = vcmask 588800
  %v168 = vsel %vm166, %v123, 0
  %v171 = vsel %vm166, %v124, 0
  %v174 = vsel %vm166, %v125, 0
  %v177 = vsel %vm166, %v126, 0
  %v180 = vsel %vm166, %v127, 0
  %v183 = vsel %vm166, %v128, 0
  %v186 = vsel %vm166, %v129, 0
  %v189 = vsel %vm166, %v130, 0
  %v192 = vsel %vm166, %v131, 0
  %v195 = vsel %vm166, %v132, 0
  %v198 = vsel %vm166, %v133, 0
  %v201 = vsel %vm166, %v134, 0
  %v204 = vsel %vm166, %v135, 0
  %v207 = vsel %vm166, %v136, 0
  %v210 = vsel %vm166, %v137, 0
  %v213 = vsel %vm166, %v138, 0
  %vm215 = vcmask 1043456
  %v217 = vsel %vm215, %v161, 0
  %219 = vmatprep.subr.bf16.mxu0 0
  %220 = vmatpush1.bf16.msra.mxu0 %v157
  %221 = vmatprep.subr.bf16.mxu0 0
  %222 = vmatpush1.bf16.msra.mxu0 %v158
  %223 = vmatprep.subr.bf16.mxu0 0
  %224 = vmatpush1.bf16.msra.mxu0 %v159
  %225 = vmatprep.subr.bf16.mxu0 0
  %226 = vmatpush1.bf16.msra.mxu0 %v160
  %227 = vmatprep.subr.bf16.mxu0 0
  %228 = vmatpush1.bf16.msra.mxu0 %v217
  %229 = vmatprep.subr.bf16.mxu0 0
  %230 = vmatpush1.bf16.msra.mxu0 0
  %231 = vmatprep.subr.bf16.mxu0 0
  %232 = vmatpush1.bf16.msra.mxu0 0
  %233 = vmatprep.subr.bf16.mxu0 0
  %234 = vmatpush1.bf16.msra.mxu0 0
  %235 = vmatprep.subr.bf16.mxu0 0
  %236 = vmatpush1.bf16.msra.mxu0 0
  %237 = vmatprep.subr.bf16.mxu0 0
  %238 = vmatpush1.bf16.msra.mxu0 0
  %239 = vmatprep.subr.bf16.mxu0 0
  %240 = vmatpush1.bf16.msra.mxu0 0
  %241 = vmatprep.subr.bf16.mxu0 0
  %242 = vmatpush1.bf16.msra.mxu0 0
  %243 = vmatprep.subr.bf16.mxu0 0
  %244 = vmatpush1.bf16.msra.mxu0 0
  %245 = vmatprep.subr.bf16.mxu0 0
  %246 = vmatpush1.bf16.msra.mxu0 0
  %247 = vmatprep.subr.bf16.mxu0 0
  %248 = vmatpush1.bf16.msra.mxu0 0
  %249 = vmatprep.subr.bf16.mxu0 0
  %250 = vmatpush1.bf16.msra.mxu0 0
  %251 = vmatprep.mubr.bf16.mxu0 0
  %252 = vmatmul.mubr.bf16.gmra.mrb[0].mxu0 %v168
  %v253 = vpop.f32.mrb[0].mxu0
  %v254 = vadd.f32 0.0, %v253
  %v255 = vpop.f32.mrb[0].mxu0
  %v256 = vpop.f32.mrb[0].mxu0
  %v257 = vadd.f32 0.0, %v256
  %v258 = vpop.f32.mrb[0].mxu0
  %259 = vmatprep.mubr.bf16.mxu0 0
  %260 = vmatmul.mubr.bf16.gmra.mrb[0].mxu0 %v171
  %v261 = vpop.f32.mrb[0].mxu0
  %v262 = vadd.f32 0.0, %v261
  %v263 = vpop.f32.mrb[0].mxu0
  %v264 = vpop.f32.mrb[0].mxu0
  %v265 = vadd.f32 0.0, %v264
  %v266 = vpop.f32.mrb[0].mxu0
  %267 = vmatprep.mubr.bf16.mxu0 0
  %268 = vmatmul.mubr.bf16.gmra.mrb[0].mxu0 %v174
  %v269 = vpop.f32.mrb[0].mxu0
  %v270 = vadd.f32 0.0, %v269
  %v271 = vpop.f32.mrb[0].mxu0
  %v272 = vpop.f32.mrb[0].mxu0
  %v273 = vadd.f32 0.0, %v272
  %v274 = vpop.f32.mrb[0].mxu0
  %275 = vmatprep.mubr.bf16.mxu0 0
  %276 = vmatmul.mubr.bf16.gmra.mrb[0].mxu0 %v177
  %v277 = vpop.f32.mrb[0].mxu0
  %v278 = vadd.f32 0.0, %v277
  %v279 = vpop.f32.mrb[0].mxu0
  %v280 = vpop.f32.mrb[0].mxu0
  %v281 = vadd.f32 0.0, %v280
  %v282 = vpop.f32.mrb[0].mxu0
  %283 = vmatprep.mubr.bf16.mxu0 0
  %284 = vmatmul.mubr.bf16.gmra.mrb[0].mxu0 %v180
  %v285 = vpop.f32.mrb[0].mxu0
  %v286 = vadd.f32 0.0, %v285
  %v287 = vpop.f32.mrb[0].mxu0
  %v288 = vpop.f32.mrb[0].mxu0
  %v289 = vadd.f32 0.0, %v288
  %v290 = vpop.f32.mrb[0].mxu0
  %291 = vmatprep.mubr.bf16.mxu0 0
  %292 = vmatmul.mubr.bf16.gmra.mrb[0].mxu0 %v183
  %v293 = vpop.f32.mrb[0].mxu0
  %v294 = vadd.f32 0.0, %v293
  %v295 = vpop.f32.mrb[0].mxu0
  %v296 = vpop.f32.mrb[0].mxu0
  %v297 = vadd.f32 0.0, %v296
  %v298 = vpop.f32.mrb[0].mxu0
  %299 = vmatprep.mubr.bf16.mxu0 0
  %300 = vmatmul.mubr.bf16.gmra.mrb[0].mxu0 %v186
  %v301 = vpop.f32.mrb[0].mxu0
  %v302 = vadd.f32 0.0, %v301
  %v303 = vpop.f32.mrb[0].mxu0
  %v304 = vpop.f32.mrb[0].mxu0
  %v305 = vadd.f32 0.0, %v304
  %v306 = vpop.f32.mrb[0].mxu0
  %307 = vmatprep.mubr.bf16.mxu0 0
  %308 = vmatmul.mubr.bf16.gmra.mrb[0].mxu0 %v189
  %v309 = vpop.f32.mrb[0].mxu0
  %v310 = vadd.f32 0.0, %v309
  %v311 = vpop.f32.mrb[0].mxu0
  %v312 = vpop.f32.mrb[0].mxu0
  %v313 = vadd.f32 0.0, %v312
  %v314 = vpop.f32.mrb[0].mxu0
  %315 = vmatprep.mubr.bf16.mxu0 0
  %316 = vmatmul.mubr.bf16.gmra.mrb[0].mxu0 %v192
  %v317 = vpop.f32.mrb[0].mxu0
  %v318 = vadd.f32 0.0, %v317
  %v319 = vpop.f32.mrb[0].mxu0
  %v320 = vpop.f32.mrb[0].mxu0
  %v321 = vadd.f32 0.0, %v320
  %v322 = vpop.f32.mrb[0].mxu0
  %323 = vmatprep.mubr.bf16.mxu0 0
  %324 = vmatmul.mubr.bf16.gmra.mrb[0].mxu0 %v195
  %v325 = vpop.f32.mrb[0].mxu0
  %v326 = vadd.f32 0.0, %v325
  %v327 = vpop.f32.mrb[0].mxu0
  %v328 = vpop.f32.mrb[0].mxu0
  %v329 = vadd.f32 0.0, %v328
  %v330 = vpop.f32.mrb[0].mxu0
  %331 = vmatprep.mubr.bf16.mxu0 0
  %332 = vmatmul.mubr.bf16.gmra.mrb[0].mxu0 %v198
  %v333 = vpop.f32.mrb[0].mxu0
  %v334 = vadd.f32 0.0, %v333
  %v335 = vpop.f32.mrb[0].mxu0
  %v336 = vpop.f32.mrb[0].mxu0
  %v337 = vadd.f32 0.0, %v336
  %v338 = vpop.f32.mrb[0].mxu0
  %339 = vmatprep.mubr.bf16.mxu0 0
  %340 = vmatmul.mubr.bf16.gmra.mrb[0].mxu0 %v201
  %v341 = vpop.f32.mrb[0].mxu0
  %v342 = vadd.f32 0.0, %v341
  %v343 = vpop.f32.mrb[0].mxu0
  %v344 = vpop.f32.mrb[0].mxu0
  %v345 = vadd.f32 0.0, %v344
  %v346 = vpop.f32.mrb[0].mxu0
  %347 = vmatprep.mubr.bf16.mxu0 0
  %348 = vmatmul.mubr.bf16.gmra.mrb[0].mxu0 %v204
  %v349 = vpop.f32.mrb[0].mxu0
  %v350 = vadd.f32 0.0, %v349
  %v351 = vpop.f32.mrb[0].mxu0
  %v352 = vpop.f32.mrb[0].mxu0
  %v353 = vadd.f32 0.0, %v352
  %v354 = vpop.f32.mrb[0].mxu0
  %355 = vmatprep.mubr.bf16.mxu0 0
  %356 = vmatmul.mubr.bf16.gmra.mrb[0].mxu0 %v207
  %v357 = vpop.f32.mrb[0].mxu0
  %v358 = vadd.f32 0.0, %v357
  %v359 = vpop.f32.mrb[0].mxu0
  %v360 = vpop.f32.mrb[0].mxu0
  %v361 = vadd.f32 0.0, %v360
  %v362 = vpop.f32.mrb[0].mxu0
  %363 = vmatprep.mubr.bf16.mxu0 0
  %364 = vmatmul.mubr.bf16.gmra.mrb[0].mxu0 %v210
  %v365 = vpop.f32.mrb[0].mxu0
  %v366 = vadd.f32 0.0, %v365
  %v367 = vpop.f32.mrb[0].mxu0
  %v368 = vpop.f32.mrb[0].mxu0
  %v369 = vadd.f32 0.0, %v368
  %v370 = vpop.f32.mrb[0].mxu0
  %371 = vmatprep.mubr.bf16.mxu0 0
  %372 = vmatmul.mubr.bf16.gmra.mrb[0].mxu0 %v213
  %v373 = vpop.f32.mrb[0].mxu0
  %v374 = vadd.f32 0.0, %v373
  %v375 = vpop.f32.mrb[0].mxu0
  %v376 = vpop.f32.mrb[0].mxu0
  %v377 = vadd.f32 0.0, %v376
  %v378 = vpop.f32.mrb[0].mxu0
  %379 = vdwg.mxu0
  %v380 = vld [vmem:[%s2] sm:$0x1]
  %v382 = vlaneseq
  %v383 = vshrl.u32 %v382, 7
  %v384 = vsub.s32 0, %v383
  %v385 = vrot.slane %v380, %v384
  %v387 = vmul.f32 %v254, %v385
  %v388 = vmul.f32 %v257, %v385
  %v389 = vmul.f32 %v262, %v385
  %v390 = vmul.f32 %v265, %v385
  %v391 = vmul.f32 %v270, %v385
  %v392 = vmul.f32 %v273, %v385
  %v393 = vmul.f32 %v278, %v385
  %v394 = vmul.f32 %v281, %v385
  %v395 = vmul.f32 %v286, %v385
  %v396 = vmul.f32 %v289, %v385
  %v397 = vmul.f32 %v294, %v385
  %v398 = vmul.f32 %v297, %v385
  %v399 = vmul.f32 %v302, %v385
  %v400 = vmul.f32 %v305, %v385
  %v401 = vmul.f32 %v310, %v385
  %v402 = vmul.f32 %v313, %v385
  %v403 = vmul.f32 %v318, %v385
  %v404 = vmul.f32 %v321, %v385
  %v405 = vmul.f32 %v326, %v385
  %v406 = vmul.f32 %v329, %v385
  %v407 = vmul.f32 %v334, %v385
  %v408 = vmul.f32 %v337, %v385
  %v409 = vmul.f32 %v342, %v385
  %v410 = vmul.f32 %v345, %v385
  %v411 = vmul.f32 %v350, %v385
  %v412 = vmul.f32 %v353, %v385
  %v413 = vmul.f32 %v358, %v385
  %v414 = vmul.f32 %v361, %v385
  %v415 = vmul.f32 %v366, %v385
  %v416 = vmul.f32 %v369, %v385
  %v417 = vmul.f32 %v374, %v385
  %v418 = vmul.f32 %v377, %v385
  %v419 = vld [vmem:[%s3] sm:$0x1]
  %v421 = vlaneseq
  %v422 = vshrl.u32 %v421, 7
  %v423 = vsub.s32 0, %v422
  %v424 = vrot.slane %v419, %v423
  %v426 = vadd.f32 %v387, %v424
  %v427 = vadd.f32 %v388, %v424
  %v428 = vadd.f32 %v389, %v424
  %v429 = vadd.f32 %v390, %v424
  %v430 = vadd.f32 %v391, %v424
  %v431 = vadd.f32 %v392, %v424
  %v432 = vadd.f32 %v393, %v424
  %v433 = vadd.f32 %v394, %v424
  %v434 = vadd.f32 %v395, %v424
  %v435 = vadd.f32 %v396, %v424
  %v436 = vadd.f32 %v397, %v424
  %v437 = vadd.f32 %v398, %v424
  %v438 = vadd.f32 %v399, %v424
  %v439 = vadd.f32 %v400, %v424
  %v440 = vadd.f32 %v401, %v424
  %v441 = vadd.f32 %v402, %v424
  %v442 = vadd.f32 %v403, %v424
  %v443 = vadd.f32 %v404, %v424
  %v444 = vadd.f32 %v405, %v424
  %v445 = vadd.f32 %v406, %v424
  %v446 = vadd.f32 %v407, %v424
  %v447 = vadd.f32 %v408, %v424
  %v448 = vadd.f32 %v409, %v424
  %v449 = vadd.f32 %v410, %v424
  %v450 = vadd.f32 %v411, %v424
  %v451 = vadd.f32 %v412, %v424
  %v452 = vadd.f32 %v413, %v424
  %v453 = vadd.f32 %v414, %v424
  %v454 = vadd.f32 %v415, %v424
  %v455 = vadd.f32 %v416, %v424
  %v456 = vadd.f32 %v417, %v424
  %v457 = vadd.f32 %v418, %v424
  %v458 = vmax.f32 %v426, 0.0
  %v459 = vmax.f32 %v427, 0.0
  %v460 = vmax.f32 %v428, 0.0
  %v461 = vmax.f32 %v429, 0.0
  %v462 = vmax.f32 %v430, 0.0
  %v463 = vmax.f32 %v431, 0.0
  %v464 = vmax.f32 %v432, 0.0
  %v465 = vmax.f32 %v433, 0.0
  %v466 = vmax.f32 %v434, 0.0
  %v467 = vmax.f32 %v435, 0.0
  %v468 = vmax.f32 %v436, 0.0
  %v469 = vmax.f32 %v437, 0.0
  %v470 = vmax.f32 %v438, 0.0
  %v471 = vmax.f32 %v439, 0.0
  %v472 = vmax.f32 %v440, 0.0
  %v473 = vmax.f32 %v441, 0.0
  %v474 = vmax.f32 %v442, 0.0
  %v475 = vmax.f32 %v443, 0.0
  %v476 = vmax.f32 %v444, 0.0
  %v477 = vmax.f32 %v445, 0.0
  %v478 = vmax.f32 %v446, 0.0
  %v479 = vmax.f32 %v447, 0.0
  %v480 = vmax.f32 %v448, 0.0
  %v481 = vmax.f32 %v449, 0.0
  %v482 = vmax.f32 %v450, 0.0
  %v483 = vmax.f32 %v451, 0.0
  %v484 = vmax.f32 %v452, 0.0
  %v485 = vmax.f32 %v453, 0.0
  %v486 = vmax.f32 %v454, 0.0
  %v487 = vmax.f32 %v455, 0.0
  %v488 = vmax.f32 %v456, 0.0
  %v489 = vmax.f32 %v457, 0.0
  %v490 = vpack.c.bf16 %v459, %v458
  %v491 = vpack.c.bf16 %v461, %v460
  %v492 = vpack.c.bf16 %v463, %v462
  %v493 = vpack.c.bf16 %v465, %v464
  %v494 = vpack.c.bf16 %v467, %v466
  %v495 = vpack.c.bf16 %v469, %v468
  %v496 = vpack.c.bf16 %v471, %v470
  %v497 = vpack.c.bf16 %v473, %v472
  %v498 = vpack.c.bf16 %v475, %v474
  %v499 = vpack.c.bf16 %v477, %v476
  %v500 = vpack.c.bf16 %v479, %v478
  %v501 = vpack.c.bf16 %v481, %v480
  %v502 = vpack.c.bf16 %v483, %v482
  %v503 = vpack.c.bf16 %v485, %v484
  %v504 = vpack.c.bf16 %v487, %v486
  %v505 = vpack.c.bf16 %v489, %v488
  %v522 = vunpack.c.l.b16 %v490
  %v523 = vunpack.c.h.b16 %v490
  %v524 = vunpack.c.l.b16 %v491
  %v525 = vunpack.c.h.b16 %v491
  %v526 = vunpack.c.l.b16 %v492
  %v527 = vunpack.c.h.b16 %v492
  %v528 = vunpack.c.l.b16 %v493
  %v529 = vunpack.c.h.b16 %v493
  %v530 = vunpack.c.l.b16 %v494
  %v531 = vunpack.c.h.b16 %v494
  %v532 = vunpack.c.l.b16 %v495
  %v533 = vunpack.c.h.b16 %v495
  %v534 = vunpack.c.l.b16 %v496
  %v535 = vunpack.c.h.b16 %v496
  %v536 = vunpack.c.l.b16 %v497
  %v537 = vunpack.c.h.b16 %v497
  %v538 = vunpack.c.l.b16 %v498
  %v539 = vunpack.c.h.b16 %v498
  %v540 = vunpack.c.l.b16 %v499
  %v541 = vunpack.c.h.b16 %v499
  %v542 = vunpack.c.l.b16 %v500
  %v543 = vunpack.c.h.b16 %v500
  %v544 = vunpack.c.l.b16 %v501
  %v545 = vunpack.c.h.b16 %v501
  %v546 = vunpack.c.l.b16 %v502
  %v547 = vunpack.c.h.b16 %v502
  %v548 = vunpack.c.l.b16 %v503
  %v549 = vunpack.c.h.b16 %v503
  %v550 = vunpack.c.l.b16 %v504
  %v551 = vunpack.c.h.b16 %v504
  %v552 = vunpack.c.l.b16 %v505
  %v553 = vunpack.c.h.b16 %v505
  %v554 = vpack.c.b16 %v522, %v522
  %v555 = vpack.c.b16 %v523, %v523
  %v556 = vpack.c.b16 %v524, %v524
  %v557 = vpack.c.b16 %v525, %v525
  %v558 = vpack.c.b16 %v526, %v526
  %v559 = vpack.c.b16 %v527, %v527
  %v560 = vpack.c.b16 %v528, %v528
  %v561 = vpack.c.b16 %v529, %v529
  %v562 = vpack.c.b16 %v530, %v530
  %v563 = vpack.c.b16 %v531, %v531
  %v564 = vpack.c.b16 %v532, %v532
  %v565 = vpack.c.b16 %v533, %v533
  %v566 = vpack.c.b16 %v534, %v534
  %v567 = vpack.c.b16 %v535, %v535
  %v568 = vpack.c.b16 %v536, %v536
  %v569 = vpack.c.b16 %v537, %v537
  %v570 = vpack.c.b16 %v538, %v538
  %v571 = vpack.c.b16 %v539, %v539
  %v572 = vpack.c.b16 %v540, %v540
  %v573 = vpack.c.b16 %v541, %v541
  %v574 = vpack.c.b16 %v542, %v542
  %v575 = vpack.c.b16 %v543, %v543
  %v576 = vpack.c.b16 %v544, %v544
  %v577 = vpack.c.b16 %v545, %v545
  %v578 = vpack.c.b16 %v546, %v546
  %v579 = vpack.c.b16 %v547, %v547
  %v580 = vpack.c.b16 %v548, %v548
  %v581 = vpack.c.b16 %v549, %v549
  %v582 = vpack.c.b16 %v550, %v550
  %v583 = vpack.c.b16 %v551, %v551
  %v584 = vpack.c.b16 %v552, %v552
  %v585 = vpack.c.b16 %v553, %v553
  %vm618 = vcmask 125952
  %619 = vst.msk [vmem:[%s4] sm:$0xf] %vm618, %v554
  %620 = vst.msk [vmem:[%s4 + $0x4] sm:$0xf] %vm618, %v555
  %621 = vst.msk [vmem:[%s4 + $0x8] sm:$0xf] %vm618, %v556
  %622 = vst.msk [vmem:[%s4 + $0xc] sm:$0xf] %vm618, %v557
  %623 = vst.msk [vmem:[%s4 + $0x10] sm:$0xf] %vm618, %v558
  %624 = vst.msk [vmem:[%s4 + $0x14] sm:$0xf] %vm618, %v559
  %625 = vst.msk [vmem:[%s4 + $0x18] sm:$0xf] %vm618, %v560
  %626 = vst.msk [vmem:[%s4 + $0x1c] sm:$0xf] %vm618, %v561
  %627 = vst.msk [vmem:[%s4 + $0x20] sm:$0xf] %vm618, %v562
  %628 = vst.msk [vmem:[%s4 + $0x24] sm:$0xf] %vm618, %v563
  %629 = vst.msk [vmem:[%s4 + $0x28] sm:$0xf] %vm618, %v564
  %630 = vst.msk [vmem:[%s4 + $0x2c] sm:$0xf] %vm618, %v565
  %631 = vst.msk [vmem:[%s4 + $0x30] sm:$0xf] %vm618, %v566
  %632 = vst.msk [vmem:[%s4 + $0x34] sm:$0xf] %vm618, %v567
  %633 = vst.msk [vmem:[%s4 + $0x38] sm:$0xf] %vm618, %v568
  %634 = vst.msk [vmem:[%s4 + $0x3c] sm:$0xf] %vm618, %v569
  %635 = vst.msk [vmem:[%s4 + $0x40] sm:$0xf] %vm618, %v570
  %636 = vst.msk [vmem:[%s4 + $0x44] sm:$0xf] %vm618, %v571
  %637 = vst.msk [vmem:[%s4 + $0x48] sm:$0xf] %vm618, %v572
  %638 = vst.msk [vmem:[%s4 + $0x4c] sm:$0xf] %vm618, %v573
  %639 = vst.msk [vmem:[%s4 + $0x50] sm:$0xf] %vm618, %v574
  %640 = vst.msk [vmem:[%s4 + $0x54] sm:$0xf] %vm618, %v575
  %641 = vst.msk [vmem:[%s4 + $0x58] sm:$0xf] %vm618, %v576
  %642 = vst.msk [vmem:[%s4 + $0x5c] sm:$0xf] %vm618, %v577
  %643 = vst.msk [vmem:[%s4 + $0x60] sm:$0xf] %vm618, %v578
  %644 = vst.msk [vmem:[%s4 + $0x64] sm:$0xf] %vm618, %v579
  %645 = vst.msk [vmem:[%s4 + $0x68] sm:$0xf] %vm618, %v580
  %646 = vst.msk [vmem:[%s4 + $0x6c] sm:$0xf] %vm618, %v581
  %647 = vst.msk [vmem:[%s4 + $0x70] sm:$0xf] %vm618, %v582
  %648 = vst.msk [vmem:[%s4 + $0x74] sm:$0xf] %vm618, %v583
  %649 = vst.msk [vmem:[%s4 + $0x78] sm:$0xf] %vm618, %v584
  %650 = vst.msk [vmem:[%s4 + $0x7c] sm:$0xf] %vm618, %v585
  // Predicated region
  $region18: #{_lambda_.23} parent=0 // pred_check
    _
  $region19: #{_lambda_.23} parent=0 // pred_check_branch
    %652 = sbr.rel (0) target = $region21
  $region20: #{_lambda_.23} parent=0 // pred_region
    _
  $region21: #{_lambda_.23} parent=0 // pred_fallthru
    _
  // Predicated region
  $region22: #{_lambda_.23} parent=0 // pred_check
    _
  $region23: #{_lambda_.23} parent=0 // pred_check_branch
    %654 = sbr.rel (0) target = $region25
  $region24: #{_lambda_.23} parent=0 // pred_region
    _
  $region25: #{_lambda_.23} parent=0 // pred_fallthru
    _

// kernel: _lambda_.22
$region0: #{_lambda_.22}
  #allocation0 [shape = 'u32[]', space=smem, size = 0x4, offset = 0x4, fixed_abs, tag = 'smem constant byte address 0x4 - core index']
  #allocation1 [shape = 'u32[144,128]{1,0:T(1,128)}', space=vmem, size = 0x12000, scoped, tag = 'internal scratch']
  %s0 = inlined_call_operand.vmem [shape: bf16[256,8], index: 0, kind: input, shape index: {}]
  %s1 = inlined_call_operand.vmem [shape: bf16[8,16], index: 1, kind: input, shape index: {}]
  %s2 = inlined_call_operand.vmem [shape: f32[1,16], index: 2, kind: input, shape index: {}]
  %s3 = inlined_call_operand.vmem [shape: f32[1,16], index: 3, kind: input, shape index: {}]
  %s4 = inlined_call_operand.vmem [shape: bf16[256,16], index: 4, kind: output, shape index: {}]
  %s5 = sld [smem:[#allocation0]]
  $region26: #{_lambda_.22} parent=0
    _
  %s7 = ssub.s32 1, %s5
  %s8 = scalar_select 0, %s7, %s5
  // Predicated region
  $region2: #{_lambda_.22} parent=0 // pred_check
    _
  $region3: #{_lambda_.22} parent=0 // pred_check_branch
    %10 = sbr.rel (0) target = $region5
  $region4: #{_lambda_.22} parent=0 // pred_region
    _
  $region5: #{_lambda_.22} parent=0 // pred_fallthru
    _
  // Predicated region
  $region6: #{_lambda_.22} parent=0 // pred_check
    _
  $region7: #{_lambda_.22} parent=0 // pred_check_branch
    %12 = sbr.rel (0) target = $region9
  $region8: #{_lambda_.22} parent=0 // pred_region
    _
  $region9: #{_lambda_.22} parent=0 // pred_fallthru
    _
  // Predicated region
  $region10: #{_lambda_.22} parent=0 // pred_check
    _
  $region11: #{_lambda_.22} parent=0 // pred_check_branch
    %14 = sbr.rel (0) target = $region13
  $region12: #{_lambda_.22} parent=0 // pred_region
    _
  $region13: #{_lambda_.22} parent=0 // pred_fallthru
    _
  // Predicated region
  $region14: #{_lambda_.22} parent=0 // pred_check
    _
  $region15: #{_lambda_.22} parent=0 // pred_check_branch
    %16 = sbr.rel (0) target = $region17
  $region16: #{_lambda_.22} parent=0 // pred_region
    _
  $region17: #{_lambda_.22} parent=0 // pred_fallthru
    _
  %v18 = vld [vmem:[%s0] sm:$0xf]
  %v19 = vld [vmem:[%s0 + $0x4] sm:$0xf]
  %v20 = vld [vmem:[%s0 + $0x8] sm:$0xf]
  %v21 = vld [vmem:[%s0 + $0xc] sm:$0xf]
  %v22 = vld [vmem:[%s0 + $0x10] sm:$0xf]
  %v23 = vld [vmem:[%s0 + $0x14] sm:$0xf]
  %v24 = vld [vmem:[%s0 + $0x18] sm:$0xf]
  %v25 = vld [vmem:[%s0 + $0x1c] sm:$0xf]
  %v26 = vld [vmem:[%s0 + $0x20] sm:$0xf]
  %v27 = vld [vmem:[%s0 + $0x24] sm:$0xf]
  %v28 = vld [vmem:[%s0 + $0x28] sm:$0xf]
  %v29 = vld [vmem:[%s0 + $0x2c] sm:$0xf]
  %v30 = vld [vmem:[%s0 + $0x30] sm:$0xf]
  %v31 = vld [vmem:[%s0 + $0x34] sm:$0xf]
  %v32 = vld [vmem:[%s0 + $0x38] sm:$0xf]
  %v33 = vld [vmem:[%s0 + $0x3c] sm:$0xf]
  %v34 = vld [vmem:[%s0 + $0x40] sm:$0xf]
  %v35 = vld [vmem:[%s0 + $0x44] sm:$0xf]
  %v36 = vld [vmem:[%s0 + $0x48] sm:$0xf]
  %v37 = vld [vmem:[%s0 + $0x4c] sm:$0xf]
  %v38 = vld [vmem:[%s0 + $0x50] sm:$0xf]
  %v39 = vld [vmem:[%s0 + $0x54] sm:$0xf]
  %v40 = vld [vmem:[%s0 + $0x58] sm:$0xf]
  %v41 = vld [vmem:[%s0 + $0x5c] sm:$0xf]
  %v42 = vld [vmem:[%s0 + $0x60] sm:$0xf]
  %v43 = vld [vmem:[%s0 + $0x64] sm:$0xf]
  %v44 = vld [vmem:[%s0 + $0x68] sm:$0xf]
  %v45 = vld [vmem:[%s0 + $0x6c] sm:$0xf]
  %v46 = vld [vmem:[%s0 + $0x70] sm:$0xf]
  %v47 = vld [vmem:[%s0 + $0x74] sm:$0xf]
  %v48 = vld [vmem:[%s0 + $0x78] sm:$0xf]
  %v49 = vld [vmem:[%s0 + $0x7c] sm:$0xf]
  %v50 = vld [vmem:[%s1] sm:$0xf]
  %v83 = vunpack.c.l.b16 %v18
  %v84 = vunpack.c.l.b16 %v19
  %v85 = vunpack.c.l.b16 %v20
  %v86 = vunpack.c.l.b16 %v21
  %v87 = vunpack.c.l.b16 %v22
  %v88 = vunpack.c.l.b16 %v23
  %v89 = vunpack.c.l.b16 %v24
  %v90 = vunpack.c.l.b16 %v25
  %v91 = vunpack.c.l.b16 %v26
  %v92 = vunpack.c.l.b16 %v27
  %v93 = vunpack.c.l.b16 %v28
  %v94 = vunpack.c.l.b16 %v29
  %v95 = vunpack.c.l.b16 %v30
  %v96 = vunpack.c.l.b16 %v31
  %v97 = vunpack.c.l.b16 %v32
  %v98 = vunpack.c.l.b16 %v33
  %v99 = vunpack.c.l.b16 %v34
  %v100 = vunpack.c.l.b16 %v35
  %v101 = vunpack.c.l.b16 %v36
  %v102 = vunpack.c.l.b16 %v37
  %v103 = vunpack.c.l.b16 %v38
  %v104 = vunpack.c.l.b16 %v39
  %v105 = vunpack.c.l.b16 %v40
  %v106 = vunpack.c.l.b16 %v41
  %v107 = vunpack.c.l.b16 %v42
  %v108 = vunpack.c.l.b16 %v43
  %v109 = vunpack.c.l.b16 %v44
  %v110 = vunpack.c.l.b16 %v45
  %v111 = vunpack.c.l.b16 %v46
  %v112 = vunpack.c.l.b16 %v47
  %v113 = vunpack.c.l.b16 %v48
  %v114 = vunpack.c.l.b16 %v49
  %v115 = vpack.c.b16 %v84, %v83
  %v116 = vpack.c.b16 %v86, %v85
  %v117 = vpack.c.b16 %v88, %v87
  %v118 = vpack.c.b16 %v90, %v89
  %v119 = vpack.c.b16 %v92, %v91
  %v120 = vpack.c.b16 %v94, %v93
  %v121 = vpack.c.b16 %v96, %v95
  %v122 = vpack.c.b16 %v98, %v97
  %v123 = vpack.c.b16 %v100, %v99
  %v124 = vpack.c.b16 %v102, %v101
  %v125 = vpack.c.b16 %v104, %v103
  %v126 = vpack.c.b16 %v106, %v105
  %v127 = vpack.c.b16 %v108, %v107
  %v128 = vpack.c.b16 %v110, %v109
  %v129 = vpack.c.b16 %v112, %v111
  %v130 = vpack.c.b16 %v114, %v113
  %vm131 = vcmask 64512
  %v133 = vsel %vm131, %v115, 0
  %v136 = vsel %vm131, %v116, 0
  %v139 = vsel %vm131, %v117, 0
  %v142 = vsel %vm131, %v118, 0
  %v145 = vsel %vm131, %v119, 0
  %v148 = vsel %vm131, %v120, 0
  %v151 = vsel %vm131, %v121, 0
  %v154 = vsel %vm131, %v122, 0
  %v157 = vsel %vm131, %v123, 0
  %v160 = vsel %vm131, %v124, 0
  %v163 = vsel %vm131, %v125, 0
  %v166 = vsel %vm131, %v126, 0
  %v169 = vsel %vm131, %v127, 0
  %v172 = vsel %vm131, %v128, 0
  %v175 = vsel %vm131, %v129, 0
  %v178 = vsel %vm131, %v130, 0
  %vm180 = vcmask 1043456
  %v182 = vsel %vm180, %v50, 0
  %184 = vmatprep.subr.bf16.mxu0 0
  %185 = vmatpush1.bf16.msra.mxu0 %v182
  %186 = vmatprep.subr.bf16.mxu0 0
  %187 = vmatpush1.bf16.msra.mxu0 0
  %188 = vmatprep.subr.bf16.mxu0 0
  %189 = vmatpush1.bf16.msra.mxu0 0
  %190 = vmatprep.subr.bf16.mxu0 0
  %191 = vmatpush1.bf16.msra.mxu0 0
  %192 = vmatprep.subr.bf16.mxu0 0
  %193 = vmatpush1.bf16.msra.mxu0 0
  %194 = vmatprep.subr.bf16.mxu0 0
  %195 = vmatpush1.bf16.msra.mxu0 0
  %196 = vmatprep.subr.bf16.mxu0 0
  %197 = vmatpush1.bf16.msra.mxu0 0
  %198 = vmatprep.subr.bf16.mxu0 0
  %199 = vmatpush1.bf16.msra.mxu0 0
  %200 = vmatprep.subr.bf16.mxu0 0
  %201 = vmatpush1.bf16.msra.mxu0 0
  %202 = vmatprep.subr.bf16.mxu0 0
  %203 = vmatpush1.bf16.msra.mxu0 0
  %204 = vmatprep.subr.bf16.mxu0 0
  %205 = vmatpush1.bf16.msra.mxu0 0
  %206 = vmatprep.subr.bf16.mxu0 0
  %207 = vmatpush1.bf16.msra.mxu0 0
  %208 = vmatprep.subr.bf16.mxu0 0
  %209 = vmatpush1.bf16.msra.mxu0 0
  %210 = vmatprep.subr.bf16.mxu0 0
  %211 = vmatpush1.bf16.msra.mxu0 0
  %212 = vmatprep.subr.bf16.mxu0 0
  %213 = vmatpush1.bf16.msra.mxu0 0
  %214 = vmatprep.subr.bf16.mxu0 0
  %215 = vmatpush1.bf16.msra.mxu0 0
  %216 = vmatprep.mubr.bf16.mxu0 0
  %217 = vmatmul.mubr.bf16.gmra.mrb[0].mxu0 %v133
  %v218 = vpop.f32.mrb[0].mxu0
  %v219 = vadd.f32 0.0, %v218
  %v220 = vpop.f32.mrb[0].mxu0
  %v221 = vpop.f32.mrb[0].mxu0
  %v222 = vadd.f32 0.0, %v221
  %v223 = vpop.f32.mrb[0].mxu0
  %224 = vmatprep.mubr.bf16.mxu0 0
  %225 = vmatmul.mubr.bf16.gmra.mrb[0].mxu0 %v136
  %v226 = vpop.f32.mrb[0].mxu0
  %v227 = vadd.f32 0.0, %v226
  %v228 = vpop.f32.mrb[0].mxu0
  %v229 = vpop.f32.mrb[0].mxu0
  %v230 = vadd.f32 0.0, %v229
  %v231 = vpop.f32.mrb[0].mxu0
  %232 = vmatprep.mubr.bf16.mxu0 0
  %233 = vmatmul.mubr.bf16.gmra.mrb[0].mxu0 %v139
  %v234 = vpop.f32.mrb[0].mxu0
  %v235 = vadd.f32 0.0, %v234
  %v236 = vpop.f32.mrb[0].mxu0
  %v237 = vpop.f32.mrb[0].mxu0
  %v238 = vadd.f32 0.0, %v237
  %v239 = vpop.f32.mrb[0].mxu0
  %240 = vmatprep.mubr.bf16.mxu0 0
  %241 = vmatmul.mubr.bf16.gmra.mrb[0].mxu0 %v142
  %v242 = vpop.f32.mrb[0].mxu0
  %v243 = vadd.f32 0.0, %v242
  %v244 = vpop.f32.mrb[0].mxu0
  %v245 = vpop.f32.mrb[0].mxu0
  %v246 = vadd.f32 0.0, %v245
  %v247 = vpop.f32.mrb[0].mxu0
  %248 = vmatprep.mubr.bf16.mxu0 0
  %249 = vmatmul.mubr.bf16.gmra.mrb[0].mxu0 %v145
  %v250 = vpop.f32.mrb[0].mxu0
  %v251 = vadd.f32 0.0, %v250
  %v252 = vpop.f32.mrb[0].mxu0
  %v253 = vpop.f32.mrb[0].mxu0
  %v254 = vadd.f32 0.0, %v253
  %v255 = vpop.f32.mrb[0].mxu0
  %256 = vmatprep.mubr.bf16.mxu0 0
  %257 = vmatmul.mubr.bf16.gmra.mrb[0].mxu0 %v148
  %v258 = vpop.f32.mrb[0].mxu0
  %v259 = vadd.f32 0.0, %v258
  %v260 = vpop.f32.mrb[0].mxu0
  %v261 = vpop.f32.mrb[0].mxu0
  %v262 = vadd.f32 0.0, %v261
  %v263 = vpop.f32.mrb[0].mxu0
  %264 = vmatprep.mubr.bf16.mxu0 0
  %265 = vmatmul.mubr.bf16.gmra.mrb[0].mxu0 %v151
  %v266 = vpop.f32.mrb[0].mxu0
  %v267 = vadd.f32 0.0, %v266
  %v268 = vpop.f32.mrb[0].mxu0
  %v269 = vpop.f32.mrb[0].mxu0
  %v270 = vadd.f32 0.0, %v269
  %v271 = vpop.f32.mrb[0].mxu0
  %272 = vmatprep.mubr.bf16.mxu0 0
  %273 = vmatmul.mubr.bf16.gmra.mrb[0].mxu0 %v154
  %v274 = vpop.f32.mrb[0].mxu0
  %v275 = vadd.f32 0.0, %v274
  %v276 = vpop.f32.mrb[0].mxu0
  %v277 = vpop.f32.mrb[0].mxu0
  %v278 = vadd.f32 0.0, %v277
  %v279 = vpop.f32.mrb[0].mxu0
  %280 = vmatprep.mubr.bf16.mxu0 0
  %281 = vmatmul.mubr.bf16.gmra.mrb[0].mxu0 %v157
  %v282 = vpop.f32.mrb[0].mxu0
  %v283 = vadd.f32 0.0, %v282
  %v284 = vpop.f32.mrb[0].mxu0
  %v285 = vpop.f32.mrb[0].mxu0
  %v286 = vadd.f32 0.0, %v285
  %v287 = vpop.f32.mrb[0].mxu0
  %288 = vmatprep.mubr.bf16.mxu0 0
  %289 = vmatmul.mubr.bf16.gmra.mrb[0].mxu0 %v160
  %v290 = vpop.f32.mrb[0].mxu0
  %v291 = vadd.f32 0.0, %v290
  %v292 = vpop.f32.mrb[0].mxu0
  %v293 = vpop.f32.mrb[0].mxu0
  %v294 = vadd.f32 0.0, %v293
  %v295 = vpop.f32.mrb[0].mxu0
  %296 = vmatprep.mubr.bf16.mxu0 0
  %297 = vmatmul.mubr.bf16.gmra.mrb[0].mxu0 %v163
  %v298 = vpop.f32.mrb[0].mxu0
  %v299 = vadd.f32 0.0, %v298
  %v300 = vpop.f32.mrb[0].mxu0
  %v301 = vpop.f32.mrb[0].mxu0
  %v302 = vadd.f32 0.0, %v301
  %v303 = vpop.f32.mrb[0].mxu0
  %304 = vmatprep.mubr.bf16.mxu0 0
  %305 = vmatmul.mubr.bf16.gmra.mrb[0].mxu0 %v166
  %v306 = vpop.f32.mrb[0].mxu0
  %v307 = vadd.f32 0.0, %v306
  %v308 = vpop.f32.mrb[0].mxu0
  %v309 = vpop.f32.mrb[0].mxu0
  %v310 = vadd.f32 0.0, %v309
  %v311 = vpop.f32.mrb[0].mxu0
  %312 = vmatprep.mubr.bf16.mxu0 0
  %313 = vmatmul.mubr.bf16.gmra.mrb[0].mxu0 %v169
  %v314 = vpop.f32.mrb[0].mxu0
  %v315 = vadd.f32 0.0, %v314
  %v316 = vpop.f32.mrb[0].mxu0
  %v317 = vpop.f32.mrb[0].mxu0
  %v318 = vadd.f32 0.0, %v317
  %v319 = vpop.f32.mrb[0].mxu0
  %320 = vmatprep.mubr.bf16.mxu0 0
  %321 = vmatmul.mubr.bf16.gmra.mrb[0].mxu0 %v172
  %v322 = vpop.f32.mrb[0].mxu0
  %v323 = vadd.f32 0.0, %v322
  %v324 = vpop.f32.mrb[0].mxu0
  %v325 = vpop.f32.mrb[0].mxu0
  %v326 = vadd.f32 0.0, %v325
  %v327 = vpop.f32.mrb[0].mxu0
  %328 = vmatprep.mubr.bf16.mxu0 0
  %329 = vmatmul.mubr.bf16.gmra.mrb[0].mxu0 %v175
  %v330 = vpop.f32.mrb[0].mxu0
  %v331 = vadd.f32 0.0, %v330
  %v332 = vpop.f32.mrb[0].mxu0
  %v333 = vpop.f32.mrb[0].mxu0
  %v334 = vadd.f32 0.0, %v333
  %v335 = vpop.f32.mrb[0].mxu0
  %336 = vmatprep.mubr.bf16.mxu0 0
  %337 = vmatmul.mubr.bf16.gmra.mrb[0].mxu0 %v178
  %v338 = vpop.f32.mrb[0].mxu0
  %v339 = vadd.f32 0.0, %v338
  %v340 = vpop.f32.mrb[0].mxu0
  %v341 = vpop.f32.mrb[0].mxu0
  %v342 = vadd.f32 0.0, %v341
  %v343 = vpop.f32.mrb[0].mxu0
  %344 = vdwg.mxu0
  %v345 = vld [vmem:[%s2] sm:$0x1]
  %v347 = vlaneseq
  %v348 = vshrl.u32 %v347, 7
  %v349 = vsub.s32 0, %v348
  %v350 = vrot.slane %v345, %v349
  %v352 = vmul.f32 %v219, %v350
  %v353 = vmul.f32 %v222, %v350
  %v354 = vmul.f32 %v227, %v350
  %v355 = vmul.f32 %v230, %v350
  %v356 = vmul.f32 %v235, %v350
  %v357 = vmul.f32 %v238, %v350
  %v358 = vmul.f32 %v243, %v350
  %v359 = vmul.f32 %v246, %v350
  %v360 = vmul.f32 %v251, %v350
  %v361 = vmul.f32 %v254, %v350
  %v362 = vmul.f32 %v259, %v350
  %v363 = vmul.f32 %v262, %v350
  %v364 = vmul.f32 %v267, %v350
  %v365 = vmul.f32 %v270, %v350
  %v366 = vmul.f32 %v275, %v350
  %v367 = vmul.f32 %v278, %v350
  %v368 = vmul.f32 %v283, %v350
  %v369 = vmul.f32 %v286, %v350
  %v370 = vmul.f32 %v291, %v350
  %v371 = vmul.f32 %v294, %v350
  %v372 = vmul.f32 %v299, %v350
  %v373 = vmul.f32 %v302, %v350
  %v374 = vmul.f32 %v307, %v350
  %v375 = vmul.f32 %v310, %v350
  %v376 = vmul.f32 %v315, %v350
  %v377 = vmul.f32 %v318, %v350
  %v378 = vmul.f32 %v323, %v350
  %v379 = vmul.f32 %v326, %v350
  %v380 = vmul.f32 %v331, %v350
  %v381 = vmul.f32 %v334, %v350
  %v382 = vmul.f32 %v339, %v350
  %v383 = vmul.f32 %v342, %v350
  %v384 = vld [vmem:[%s3] sm:$0x1]
  %v386 = vlaneseq
  %v387 = vshrl.u32 %v386, 7
  %v388 = vsub.s32 0, %v387
  %v389 = vrot.slane %v384, %v388
  %v391 = vadd.f32 %v352, %v389
  %v392 = vadd.f32 %v353, %v389
  %v393 = vadd.f32 %v354, %v389
  %v394 = vadd.f32 %v355, %v389
  %v395 = vadd.f32 %v356, %v389
  %v396 = vadd.f32 %v357, %v389
  %v397 = vadd.f32 %v358, %v389
  %v398 = vadd.f32 %v359, %v389
  %v399 = vadd.f32 %v360, %v389
  %v400 = vadd.f32 %v361, %v389
  %v401 = vadd.f32 %v362, %v389
  %v402 = vadd.f32 %v363, %v389
  %v403 = vadd.f32 %v364, %v389
  %v404 = vadd.f32 %v365, %v389
  %v405 = vadd.f32 %v366, %v389
  %v406 = vadd.f32 %v367, %v389
  %v407 = vadd.f32 %v368, %v389
  %v408 = vadd.f32 %v369, %v389
  %v409 = vadd.f32 %v370, %v389
  %v410 = vadd.f32 %v371, %v389
  %v411 = vadd.f32 %v372, %v389
  %v412 = vadd.f32 %v373, %v389
  %v413 = vadd.f32 %v374, %v389
  %v414 = vadd.f32 %v375, %v389
  %v415 = vadd.f32 %v376, %v389
  %v416 = vadd.f32 %v377, %v389
  %v417 = vadd.f32 %v378, %v389
  %v418 = vadd.f32 %v379, %v389
  %v419 = vadd.f32 %v380, %v389
  %v420 = vadd.f32 %v381, %v389
  %v421 = vadd.f32 %v382, %v389
  %v422 = vadd.f32 %v383, %v389
  %v423 = vpack.c.bf16 %v392, %v391
  %v424 = vpack.c.bf16 %v394, %v393
  %v425 = vpack.c.bf16 %v396, %v395
  %v426 = vpack.c.bf16 %v398, %v397
  %v427 = vpack.c.bf16 %v400, %v399
  %v428 = vpack.c.bf16 %v402, %v401
  %v429 = vpack.c.bf16 %v404, %v403
  %v430 = vpack.c.bf16 %v406, %v405
  %v431 = vpack.c.bf16 %v408, %v407
  %v432 = vpack.c.bf16 %v410, %v409
  %v433 = vpack.c.bf16 %v412, %v411
  %v434 = vpack.c.bf16 %v414, %v413
  %v435 = vpack.c.bf16 %v416, %v415
  %v436 = vpack.c.bf16 %v418, %v417
  %v437 = vpack.c.bf16 %v420, %v419
  %v438 = vpack.c.bf16 %v422, %v421
  %v455 = vunpack.c.l.b16 %v423
  %v456 = vunpack.c.h.b16 %v423
  %v457 = vunpack.c.l.b16 %v424
  %v458 = vunpack.c.h.b16 %v424
  %v459 = vunpack.c.l.b16 %v425
  %v460 = vunpack.c.h.b16 %v425
  %v461 = vunpack.c.l.b16 %v426
  %v462 = vunpack.c.h.b16 %v426
  %v463 = vunpack.c.l.b16 %v427
  %v464 = vunpack.c.h.b16 %v427
  %v465 = vunpack.c.l.b16 %v428
  %v466 = vunpack.c.h.b16 %v428
  %v467 = vunpack.c.l.b16 %v429
  %v468 = vunpack.c.h.b16 %v429
  %v469 = vunpack.c.l.b16 %v430
  %v470 = vunpack.c.h.b16 %v430
  %v471 = vunpack.c.l.b16 %v431
  %v472 = vunpack.c.h.b16 %v431
  %v473 = vunpack.c.l.b16 %v432
  %v474 = vunpack.c.h.b16 %v432
  %v475 = vunpack.c.l.b16 %v433
  %v476 = vunpack.c.h.b16 %v433
  %v477 = vunpack.c.l.b16 %v434
  %v478 = vunpack.c.h.b16 %v434
  %v479 = vunpack.c.l.b16 %v435
  %v480 = vunpack.c.h.b16 %v435
  %v481 = vunpack.c.l.b16 %v436
  %v482 = vunpack.c.h.b16 %v436
  %v483 = vunpack.c.l.b16 %v437
  %v484 = vunpack.c.h.b16 %v437
  %v485 = vunpack.c.l.b16 %v438
  %v486 = vunpack.c.h.b16 %v438
  %v487 = vpack.c.b16 %v455, %v455
  %v488 = vpack.c.b16 %v456, %v456
  %v489 = vpack.c.b16 %v457, %v457
  %v490 = vpack.c.b16 %v458, %v458
  %v491 = vpack.c.b16 %v459, %v459
  %v492 = vpack.c.b16 %v460, %v460
  %v493 = vpack.c.b16 %v461, %v461
  %v494 = vpack.c.b16 %v462, %v462
  %v495 = vpack.c.b16 %v463, %v463
  %v496 = vpack.c.b16 %v464, %v464
  %v497 = vpack.c.b16 %v465, %v465
  %v498 = vpack.c.b16 %v466, %v466
  %v499 = vpack.c.b16 %v467, %v467
  %v500 = vpack.c.b16 %v468, %v468
  %v501 = vpack.c.b16 %v469, %v469
  %v502 = vpack.c.b16 %v470, %v470
  %v503 = vpack.c.b16 %v471, %v471
  %v504 = vpack.c.b16 %v472, %v472
  %v505 = vpack.c.b16 %v473, %v473
  %v506 = vpack.c.b16 %v474, %v474
  %v507 = vpack.c.b16 %v475, %v475
  %v508 = vpack.c.b16 %v476, %v476
  %v509 = vpack.c.b16 %v477, %v477
  %v510 = vpack.c.b16 %v478, %v478
  %v511 = vpack.c.b16 %v479, %v479
  %v512 = vpack.c.b16 %v480, %v480
  %v513 = vpack.c.b16 %v481, %v481
  %v514 = vpack.c.b16 %v482, %v482
  %v515 = vpack.c.b16 %v483, %v483
  %v516 = vpack.c.b16 %v484, %v484
  %v517 = vpack.c.b16 %v485, %v485
  %v518 = vpack.c.b16 %v486, %v486
  %vm551 = vcmask 125952
  %552 = vst.msk [vmem:[%s4] sm:$0xf] %vm551, %v487
  %553 = vst.msk [vmem:[%s4 + $0x4] sm:$0xf] %vm551, %v488
  %554 = vst.msk [vmem:[%s4 + $0x8] sm:$0xf] %vm551, %v489
  %555 = vst.msk [vmem:[%s4 + $0xc] sm:$0xf] %vm551, %v490
  %556 = vst.msk [vmem:[%s4 + $0x10] sm:$0xf] %vm551, %v491
  %557 = vst.msk [vmem:[%s4 + $0x14] sm:$0xf] %vm551, %v492
  %558 = vst.msk [vmem:[%s4 + $0x18] sm:$0xf] %vm551, %v493
  %559 = vst.msk [vmem:[%s4 + $0x1c] sm:$0xf] %vm551, %v494
  %560 = vst.msk [vmem:[%s4 + $0x20] sm:$0xf] %vm551, %v495
  %561 = vst.msk [vmem:[%s4 + $0x24] sm:$0xf] %vm551, %v496
  %562 = vst.msk [vmem:[%s4 + $0x28] sm:$0xf] %vm551, %v497
  %563 = vst.msk [vmem:[%s4 + $0x2c] sm:$0xf] %vm551, %v498
  %564 = vst.msk [vmem:[%s4 + $0x30] sm:$0xf] %vm551, %v499
  %565 = vst.msk [vmem:[%s4 + $0x34] sm:$0xf] %vm551, %v500
  %566 = vst.msk [vmem:[%s4 + $0x38] sm:$0xf] %vm551, %v501
  %567 = vst.msk [vmem:[%s4 + $0x3c] sm:$0xf] %vm551, %v502
  %568 = vst.msk [vmem:[%s4 + $0x40] sm:$0xf] %vm551, %v503
  %569 = vst.msk [vmem:[%s4 + $0x44] sm:$0xf] %vm551, %v504
  %570 = vst.msk [vmem:[%s4 + $0x48] sm:$0xf] %vm551, %v505
  %571 = vst.msk [vmem:[%s4 + $0x4c] sm:$0xf] %vm551, %v506
  %572 = vst.msk [vmem:[%s4 + $0x50] sm:$0xf] %vm551, %v507
  %573 = vst.msk [vmem:[%s4 + $0x54] sm:$0xf] %vm551, %v508
  %574 = vst.msk [vmem:[%s4 + $0x58] sm:$0xf] %vm551, %v509
  %575 = vst.msk [vmem:[%s4 + $0x5c] sm:$0xf] %vm551, %v510
  %576 = vst.msk [vmem:[%s4 + $0x60] sm:$0xf] %vm551, %v511
  %577 = vst.msk [vmem:[%s4 + $0x64] sm:$0xf] %vm551, %v512
  %578 = vst.msk [vmem:[%s4 + $0x68] sm:$0xf] %vm551, %v513
  %579 = vst.msk [vmem:[%s4 + $0x6c] sm:$0xf] %vm551, %v514
  %580 = vst.msk [vmem:[%s4 + $0x70] sm:$0xf] %vm551, %v515
  %581 = vst.msk [vmem:[%s4 + $0x74] sm:$0xf] %vm551, %v516
  %582 = vst.msk [vmem:[%s4 + $0x78] sm:$0xf] %vm551, %v517
  %583 = vst.msk [vmem:[%s4 + $0x7c] sm:$0xf] %vm551, %v518
  // Predicated region
  $region18: #{_lambda_.22} parent=0 // pred_check
    _
  $region19: #{_lambda_.22} parent=0 // pred_check_branch
    %585 = sbr.rel (0) target = $region21
  $region20: #{_lambda_.22} parent=0 // pred_region
    _
  $region21: #{_lambda_.22} parent=0 // pred_fallthru
    _
  // Predicated region
  $region22: #{_lambda_.22} parent=0 // pred_check
    _
  $region23: #{_lambda_.22} parent=0 // pred_check_branch
    %587 = sbr.rel (0) target = $region25
  $region24: #{_lambda_.22} parent=0 // pred_region
    _
  $region25: #{_lambda_.22} parent=0 // pred_fallthru
    _

// kernel: _lambda_.24
$region0: #{_lambda_.24}
  #allocation0 [shape = 'u32[]', space=smem, size = 0x4, offset = 0x4, fixed_abs, tag = 'smem constant byte address 0x4 - core index']
  #allocation1 [shape = 'u32[144,128]{1,0:T(1,128)}', space=vmem, size = 0x12000, scoped, tag = 'internal scratch']
  %s0 = inlined_call_operand.vmem [shape: bf16[256,144], index: 0, kind: input, shape index: {}]
  %s1 = inlined_call_operand.vmem [shape: bf16[144,16], index: 1, kind: input, shape index: {}]
  %s2 = inlined_call_operand.vmem [shape: f32[1,16], index: 2, kind: input, shape index: {}]
  %s3 = inlined_call_operand.vmem [shape: f32[1,16], index: 3, kind: input, shape index: {}]
  %s4 = inlined_call_operand.vmem [shape: bf16[256,16], index: 4, kind: input, shape index: {}]
  %s5 = inlined_call_operand.vmem [shape: bf16[256,16], index: 5, kind: output, shape index: {}]
  %s6 = sld [smem:[#allocation0]]
  $region30: #{_lambda_.24} parent=0
    _
  %s8 = ssub.s32 1, %s6
  %s9 = scalar_select 0, %s8, %s6
  // Predicated region
  $region2: #{_lambda_.24} parent=0 // pred_check
    _
  $region3: #{_lambda_.24} parent=0 // pred_check_branch
    %11 = sbr.rel (0) target = $region5
  $region4: #{_lambda_.24} parent=0 // pred_region
    _
  $region5: #{_lambda_.24} parent=0 // pred_fallthru
    _
  // Predicated region
  $region6: #{_lambda_.24} parent=0 // pred_check
    _
  $region7: #{_lambda_.24} parent=0 // pred_check_branch
    %13 = sbr.rel (0) target = $region9
  $region8: #{_lambda_.24} parent=0 // pred_region
    _
  $region9: #{_lambda_.24} parent=0 // pred_fallthru
    _
  // Predicated region
  $region10: #{_lambda_.24} parent=0 // pred_check
    _
  $region11: #{_lambda_.24} parent=0 // pred_check_branch
    %15 = sbr.rel (0) target = $region13
  $region12: #{_lambda_.24} parent=0 // pred_region
    _
  $region13: #{_lambda_.24} parent=0 // pred_fallthru
    _
  // Predicated region
  $region14: #{_lambda_.24} parent=0 // pred_check
    _
  $region15: #{_lambda_.24} parent=0 // pred_check_branch
    %17 = sbr.rel (0) target = $region17
  $region16: #{_lambda_.24} parent=0 // pred_region
    _
  $region17: #{_lambda_.24} parent=0 // pred_fallthru
    _
  // Predicated region
  $region18: #{_lambda_.24} parent=0 // pred_check
    _
  $region19: #{_lambda_.24} parent=0 // pred_check_branch
    %19 = sbr.rel (0) target = $region21
  $region20: #{_lambda_.24} parent=0 // pred_region
    _
  $region21: #{_lambda_.24} parent=0 // pred_fallthru
    _
  %v21 = vld [vmem:[%s0] sm:$0xff]
  %v22 = vld [vmem:[%s0 + $0x8] sm:$0xff]
  %v23 = vld [vmem:[%s0 + $0x10] sm:$0xff]
  %v24 = vld [vmem:[%s0 + $0x18] sm:$0xff]
  %v25 = vld [vmem:[%s0 + $0x20] sm:$0xff]
  %v26 = vld [vmem:[%s0 + $0x28] sm:$0xff]
  %v27 = vld [vmem:[%s0 + $0x30] sm:$0xff]
  %v28 = vld [vmem:[%s0 + $0x38] sm:$0xff]
  %v29 = vld [vmem:[%s0 + $0x40] sm:$0xff]
  %v30 = vld [vmem:[%s0 + $0x48] sm:$0xff]
  %v31 = vld [vmem:[%s0 + $0x50] sm:$0xff]
  %v32 = vld [vmem:[%s0 + $0x58] sm:$0xff]
  %v33 = vld [vmem:[%s0 + $0x60] sm:$0xff]
  %v34 = vld [vmem:[%s0 + $0x68] sm:$0xff]
  %v35 = vld [vmem:[%s0 + $0x70] sm:$0xff]
  %v36 = vld [vmem:[%s0 + $0x78] sm:$0xff]
  %v37 = vld [vmem:[%s0 + $0x80] sm:$0xff]
  %v38 = vld [vmem:[%s0 + $0x88] sm:$0xff]
  %v39 = vld [vmem:[%s0 + $0x90] sm:$0xff]
  %v40 = vld [vmem:[%s0 + $0x98] sm:$0xff]
  %v41 = vld [vmem:[%s0 + $0xa0] sm:$0xff]
  %v42 = vld [vmem:[%s0 + $0xa8] sm:$0xff]
  %v43 = vld [vmem:[%s0 + $0xb0] sm:$0xff]
  %v44 = vld [vmem:[%s0 + $0xb8] sm:$0xff]
  %v45 = vld [vmem:[%s0 + $0xc0] sm:$0xff]
  %v46 = vld [vmem:[%s0 + $0xc8] sm:$0xff]
  %v47 = vld [vmem:[%s0 + $0xd0] sm:$0xff]
  %v48 = vld [vmem:[%s0 + $0xd8] sm:$0xff]
  %v49 = vld [vmem:[%s0 + $0xe0] sm:$0xff]
  %v50 = vld [vmem:[%s0 + $0xe8] sm:$0xff]
  %v51 = vld [vmem:[%s0 + $0xf0] sm:$0xff]
  %v52 = vld [vmem:[%s0 + $0xf8] sm:$0xff]
  %v53 = vld [vmem:[%s1] sm:$0xf]
  %v54 = vld [vmem:[%s1 + $0x4] sm:$0xf]
  %v55 = vld [vmem:[%s1 + $0x8] sm:$0xf]
  %v56 = vld [vmem:[%s1 + $0xc] sm:$0xf]
  %v57 = vld [vmem:[%s1 + $0x10] sm:$0xf]
  %v58 = vld [vmem:[%s1 + $0x14] sm:$0xf]
  %v59 = vld [vmem:[%s1 + $0x18] sm:$0xf]
  %v60 = vld [vmem:[%s1 + $0x1c] sm:$0xf]
  %v61 = vld [vmem:[%s1 + $0x20] sm:$0xf]
  %v62 = vld [vmem:[%s1 + $0x24] sm:$0xf]
  %v63 = vld [vmem:[%s1 + $0x28] sm:$0xf]
  %v64 = vld [vmem:[%s1 + $0x2c] sm:$0xf]
  %v65 = vld [vmem:[%s1 + $0x30] sm:$0xf]
  %v66 = vld [vmem:[%s1 + $0x34] sm:$0xf]
  %v67 = vld [vmem:[%s1 + $0x38] sm:$0xf]
  %v68 = vld [vmem:[%s1 + $0x3c] sm:$0xf]
  %v69 = vld [vmem:[%s1 + $0x40] sm:$0xf]
  %v70 = vld [vmem:[%s1 + $0x44] sm:$0xf]
  %v103 = vunpack.c.l.b16 %v21
  %v104 = vunpack.c.h.b16 %v21
  %v105 = vunpack.c.l.b16 %v22
  %v106 = vunpack.c.h.b16 %v22
  %v107 = vunpack.c.l.b16 %v23
  %v108 = vunpack.c.h.b16 %v23
  %v109 = vunpack.c.l.b16 %v24
  %v110 = vunpack.c.h.b16 %v24
  %v111 = vunpack.c.l.b16 %v25
  %v112 = vunpack.c.h.b16 %v25
  %v113 = vunpack.c.l.b16 %v26
  %v114 = vunpack.c.h.b16 %v26
  %v115 = vunpack.c.l.b16 %v27
  %v116 = vunpack.c.h.b16 %v27
  %v117 = vunpack.c.l.b16 %v28
  %v118 = vunpack.c.h.b16 %v28
  %v119 = vunpack.c.l.b16 %v29
  %v120 = vunpack.c.h.b16 %v29
  %v121 = vunpack.c.l.b16 %v30
  %v122 = vunpack.c.h.b16 %v30
  %v123 = vunpack.c.l.b16 %v31
  %v124 = vunpack.c.h.b16 %v31
  %v125 = vunpack.c.l.b16 %v32
  %v126 = vunpack.c.h.b16 %v32
  %v127 = vunpack.c.l.b16 %v33
  %v128 = vunpack.c.h.b16 %v33
  %v129 = vunpack.c.l.b16 %v34
  %v130 = vunpack.c.h.b16 %v34
  %v131 = vunpack.c.l.b16 %v35
  %v132 = vunpack.c.h.b16 %v35
  %v133 = vunpack.c.l.b16 %v36
  %v134 = vunpack.c.h.b16 %v36
  %v135 = vunpack.c.l.b16 %v37
  %v136 = vunpack.c.h.b16 %v37
  %v137 = vunpack.c.l.b16 %v38
  %v138 = vunpack.c.h.b16 %v38
  %v139 = vunpack.c.l.b16 %v39
  %v140 = vunpack.c.h.b16 %v39
  %v141 = vunpack.c.l.b16 %v40
  %v142 = vunpack.c.h.b16 %v40
  %v143 = vunpack.c.l.b16 %v41
  %v144 = vunpack.c.h.b16 %v41
  %v145 = vunpack.c.l.b16 %v42
  %v146 = vunpack.c.h.b16 %v42
  %v147 = vunpack.c.l.b16 %v43
  %v148 = vunpack.c.h.b16 %v43
  %v149 = vunpack.c.l.b16 %v44
  %v150 = vunpack.c.h.b16 %v44
  %v151 = vunpack.c.l.b16 %v45
  %v152 = vunpack.c.h.b16 %v45
  %v153 = vunpack.c.l.b16 %v46
  %v154 = vunpack.c.h.b16 %v46
  %v155 = vunpack.c.l.b16 %v47
  %v156 = vunpack.c.h.b16 %v47
  %v157 = vunpack.c.l.b16 %v48
  %v158 = vunpack.c.h.b16 %v48
  %v159 = vunpack.c.l.b16 %v49
  %v160 = vunpack.c.h.b16 %v49
  %v161 = vunpack.c.l.b16 %v50
  %v162 = vunpack.c.h.b16 %v50
  %v163 = vunpack.c.l.b16 %v51
  %v164 = vunpack.c.h.b16 %v51
  %v165 = vunpack.c.l.b16 %v52
  %v166 = vunpack.c.h.b16 %v52
  %v167 = vpack.c.b16 %v105, %v103
  %v168 = vpack.c.b16 %v106, %v104
  %v169 = vpack.c.b16 %v109, %v107
  %v170 = vpack.c.b16 %v110, %v108
  %v171 = vpack.c.b16 %v113, %v111
  %v172 = vpack.c.b16 %v114, %v112
  %v173 = vpack.c.b16 %v117, %v115
  %v174 = vpack.c.b16 %v118, %v116
  %v175 = vpack.c.b16 %v121, %v119
  %v176 = vpack.c.b16 %v122, %v120
  %v177 = vpack.c.b16 %v125, %v123
  %v178 = vpack.c.b16 %v126, %v124
  %v179 = vpack.c.b16 %v129, %v127
  %v180 = vpack.c.b16 %v130, %v128
  %v181 = vpack.c.b16 %v133, %v131
  %v182 = vpack.c.b16 %v134, %v132
  %v183 = vpack.c.b16 %v137, %v135
  %v184 = vpack.c.b16 %v138, %v136
  %v185 = vpack.c.b16 %v141, %v139
  %v186 = vpack.c.b16 %v142, %v140
  %v187 = vpack.c.b16 %v145, %v143
  %v188 = vpack.c.b16 %v146, %v144
  %v189 = vpack.c.b16 %v149, %v147
  %v190 = vpack.c.b16 %v150, %v148
  %v191 = vpack.c.b16 %v153, %v151
  %v192 = vpack.c.b16 %v154, %v152
  %v193 = vpack.c.b16 %v157, %v155
  %v194 = vpack.c.b16 %v158, %v156
  %v195 = vpack.c.b16 %v161, %v159
  %v196 = vpack.c.b16 %v162, %v160
  %v197 = vpack.c.b16 %v165, %v163
  %v198 = vpack.c.b16 %v166, %v164
  %v233 = vunpack.c.l.b16 %v53
  %v234 = vunpack.c.l.b16 %v54
  %v235 = vunpack.c.l.b16 %v55
  %v236 = vunpack.c.l.b16 %v56
  %v237 = vunpack.c.l.b16 %v57
  %v238 = vunpack.c.l.b16 %v58
  %v239 = vunpack.c.l.b16 %v59
  %v240 = vunpack.c.l.b16 %v60
  %v241 = vunpack.c.l.b16 %v61
  %v242 = vunpack.c.l.b16 %v62
  %v243 = vunpack.c.l.b16 %v63
  %v244 = vunpack.c.l.b16 %v64
  %v245 = vunpack.c.l.b16 %v65
  %v246 = vunpack.c.l.b16 %v66
  %v247 = vunpack.c.l.b16 %v67
  %v248 = vunpack.c.l.b16 %v68
  %v249 = vunpack.c.l.b16 %v69
  %v250 = vunpack.c.l.b16 %v70
  %v251 = vpack.c.b16 %v234, %v233
  %v252 = vpack.c.b16 %v236, %v235
  %v253 = vpack.c.b16 %v238, %v237
  %v254 = vpack.c.b16 %v240, %v239
  %v255 = vpack.c.b16 %v242, %v241
  %v256 = vpack.c.b16 %v244, %v243
  %v257 = vpack.c.b16 %v246, %v245
  %v258 = vpack.c.b16 %v248, %v247
  %v259 = vpack.c.b16 %v250, %v249
  %vm269 = vcmask 130048
  %v271 = vsel %vm269, %v168, 0
  %v274 = vsel %vm269, %v170, 0
  %v277 = vsel %vm269, %v172, 0
  %v280 = vsel %vm269, %v174, 0
  %v283 = vsel %vm269, %v176, 0
  %v286 = vsel %vm269, %v178, 0
  %v289 = vsel %vm269, %v180, 0
  %v292 = vsel %vm269, %v182, 0
  %v295 = vsel %vm269, %v184, 0
  %v298 = vsel %vm269, %v186, 0
  %v301 = vsel %vm269, %v188, 0
  %v304 = vsel %vm269, %v190, 0
  %v307 = vsel %vm269, %v192, 0
  %v310 = vsel %vm269, %v194, 0
  %v313 = vsel %vm269, %v196, 0
  %v316 = vsel %vm269, %v198, 0
  %318 = vmatprep.subr.bf16.mxu0 0
  %319 = vmatpush1.bf16.msra.mxu0 %v251
  %320 = vmatprep.subr.bf16.mxu0 0
  %321 = vmatpush1.bf16.msra.mxu0 %v252
  %322 = vmatprep.subr.bf16.mxu0 0
  %323 = vmatpush1.bf16.msra.mxu0 %v253
  %324 = vmatprep.subr.bf16.mxu0 0
  %325 = vmatpush1.bf16.msra.mxu0 %v254
  %326 = vmatprep.subr.bf16.mxu0 0
  %327 = vmatpush1.bf16.msra.mxu0 %v255
  %328 = vmatprep.subr.bf16.mxu0 0
  %329 = vmatpush1.bf16.msra.mxu0 %v256
  %330 = vmatprep.subr.bf16.mxu0 0
  %331 = vmatpush1.bf16.msra.mxu0 %v257
  %332 = vmatprep.subr.bf16.mxu0 0
  %333 = vmatpush1.bf16.msra.mxu0 %v258
  %334 = vmatprep.subr.bf16.mxu0 0
  %335 = vmatpush1.bf16.msra.mxu0 %v259
  %336 = vmatprep.subr.bf16.mxu0 0
  %337 = vmatpush1.bf16.msra.mxu0 0
  %338 = vmatprep.subr.bf16.mxu0 0
  %339 = vmatpush1.bf16.msra.mxu0 0
  %340 = vmatprep.subr.bf16.mxu0 0
  %341 = vmatpush1.bf16.msra.mxu0 0
  %342 = vmatprep.subr.bf16.mxu0 0
  %343 = vmatpush1.bf16.msra.mxu0 0
  %344 = vmatprep.subr.bf16.mxu0 0
  %345 = vmatpush1.bf16.msra.mxu0 0
  %346 = vmatprep.subr.bf16.mxu0 0
  %347 = vmatpush1.bf16.msra.mxu0 0
  %348 = vmatprep.subr.bf16.mxu0 0
  %349 = vmatpush1.bf16.msra.mxu0 0
  %350 = vmatprep.mubr.bf16.mxu0 %v271
  %351 = vmatmul.mubr.bf16.gmra.mrb[0].mxu0 %v167
  %v352 = vpop.f32.mrb[0].mxu0
  %v353 = vadd.f32 0.0, %v352
  %v354 = vpop.f32.mrb[0].mxu0
  %v355 = vpop.f32.mrb[0].mxu0
  %v356 = vadd.f32 0.0, %v355
  %v357 = vpop.f32.mrb[0].mxu0
  %358 = vmatprep.mubr.bf16.mxu0 %v274
  %359 = vmatmul.mubr.bf16.gmra.mrb[0].mxu0 %v169
  %v360 = vpop.f32.mrb[0].mxu0
  %v361 = vadd.f32 0.0, %v360
  %v362 = vpop.f32.mrb[0].mxu0
  %v363 = vpop.f32.mrb[0].mxu0
  %v364 = vadd.f32 0.0, %v363
  %v365 = vpop.f32.mrb[0].mxu0
  %366 = vmatprep.mubr.bf16.mxu0 %v277
  %367 = vmatmul.mubr.bf16.gmra.mrb[0].mxu0 %v171
  %v368 = vpop.f32.mrb[0].mxu0
  %v369 = vadd.f32 0.0, %v368
  %v370 = vpop.f32.mrb[0].mxu0
  %v371 = vpop.f32.mrb[0].mxu0
  %v372 = vadd.f32 0.0, %v371
  %v373 = vpop.f32.mrb[0].mxu0
  %374 = vmatprep.mubr.bf16.mxu0 %v280
  %375 = vmatmul.mubr.bf16.gmra.mrb[0].mxu0 %v173
  %v376 = vpop.f32.mrb[0].mxu0
  %v377 = vadd.f32 0.0, %v376
  %v378 = vpop.f32.mrb[0].mxu0
  %v379 = vpop.f32.mrb[0].mxu0
  %v380 = vadd.f32 0.0, %v379
  %v381 = vpop.f32.mrb[0].mxu0
  %382 = vmatprep.mubr.bf16.mxu0 %v283
  %383 = vmatmul.mubr.bf16.gmra.mrb[0].mxu0 %v175
  %v384 = vpop.f32.mrb[0].mxu0
  %v385 = vadd.f32 0.0, %v384
  %v386 = vpop.f32.mrb[0].mxu0
  %v387 = vpop.f32.mrb[0].mxu0
  %v388 = vadd.f32 0.0, %v387
  %v389 = vpop.f32.mrb[0].mxu0
  %390 = vmatprep.mubr.bf16.mxu0 %v286
  %391 = vmatmul.mubr.bf16.gmra.mrb[0].mxu0 %v177
  %v392 = vpop.f32.mrb[0].mxu0
  %v393 = vadd.f32 0.0, %v392
  %v394 = vpop.f32.mrb[0].mxu0
  %v395 = vpop.f32.mrb[0].mxu0
  %v396 = vadd.f32 0.0, %v395
  %v397 = vpop.f32.mrb[0].mxu0
  %398 = vmatprep.mubr.bf16.mxu0 %v289
  %399 = vmatmul.mubr.bf16.gmra.mrb[0].mxu0 %v179
  %v400 = vpop.f32.mrb[0].mxu0
  %v401 = vadd.f32 0.0, %v400
  %v402 = vpop.f32.mrb[0].mxu0
  %v403 = vpop.f32.mrb[0].mxu0
  %v404 = vadd.f32 0.0, %v403
  %v405 = vpop.f32.mrb[0].mxu0
  %406 = vmatprep.mubr.bf16.mxu0 %v292
  %407 = vmatmul.mubr.bf16.gmra.mrb[0].mxu0 %v181
  %v408 = vpop.f32.mrb[0].mxu0
  %v409 = vadd.f32 0.0, %v408
  %v410 = vpop.f32.mrb[0].mxu0
  %v411 = vpop.f32.mrb[0].mxu0
  %v412 = vadd.f32 0.0, %v411
  %v413 = vpop.f32.mrb[0].mxu0
  %414 = vmatprep.mubr.bf16.mxu0 %v295
  %415 = vmatmul.mubr.bf16.gmra.mrb[0].mxu0 %v183
  %v416 = vpop.f32.mrb[0].mxu0
  %v417 = vadd.f32 0.0, %v416
  %v418 = vpop.f32.mrb[0].mxu0
  %v419 = vpop.f32.mrb[0].mxu0
  %v420 = vadd.f32 0.0, %v419
  %v421 = vpop.f32.mrb[0].mxu0
  %422 = vmatprep.mubr.bf16.mxu0 %v298
  %423 = vmatmul.mubr.bf16.gmra.mrb[0].mxu0 %v185
  %v424 = vpop.f32.mrb[0].mxu0
  %v425 = vadd.f32 0.0, %v424
  %v426 = vpop.f32.mrb[0].mxu0
  %v427 = vpop.f32.mrb[0].mxu0
  %v428 = vadd.f32 0.0, %v427
  %v429 = vpop.f32.mrb[0].mxu0
  %430 = vmatprep.mubr.bf16.mxu0 %v301
  %431 = vmatmul.mubr.bf16.gmra.mrb[0].mxu0 %v187
  %v432 = vpop.f32.mrb[0].mxu0
  %v433 = vadd.f32 0.0, %v432
  %v434 = vpop.f32.mrb[0].mxu0
  %v435 = vpop.f32.mrb[0].mxu0
  %v436 = vadd.f32 0.0, %v435
  %v437 = vpop.f32.mrb[0].mxu0
  %438 = vmatprep.mubr.bf16.mxu0 %v304
  %439 = vmatmul.mubr.bf16.gmra.mrb[0].mxu0 %v189
  %v440 = vpop.f32.mrb[0].mxu0
  %v441 = vadd.f32 0.0, %v440
  %v442 = vpop.f32.mrb[0].mxu0
  %v443 = vpop.f32.mrb[0].mxu0
  %v444 = vadd.f32 0.0, %v443
  %v445 = vpop.f32.mrb[0].mxu0
  %446 = vmatprep.mubr.bf16.mxu0 %v307
  %447 = vmatmul.mubr.bf16.gmra.mrb[0].mxu0 %v191
  %v448 = vpop.f32.mrb[0].mxu0
  %v449 = vadd.f32 0.0, %v448
  %v450 = vpop.f32.mrb[0].mxu0
  %v451 = vpop.f32.mrb[0].mxu0
  %v452 = vadd.f32 0.0, %v451
  %v453 = vpop.f32.mrb[0].mxu0
  %454 = vmatprep.mubr.bf16.mxu0 %v310
  %455 = vmatmul.mubr.bf16.gmra.mrb[0].mxu0 %v193
  %v456 = vpop.f32.mrb[0].mxu0
  %v457 = vadd.f32 0.0, %v456
  %v458 = vpop.f32.mrb[0].mxu0
  %v459 = vpop.f32.mrb[0].mxu0
  %v460 = vadd.f32 0.0, %v459
  %v461 = vpop.f32.mrb[0].mxu0
  %462 = vmatprep.mubr.bf16.mxu0 %v313
  %463 = vmatmul.mubr.bf16.gmra.mrb[0].mxu0 %v195
  %v464 = vpop.f32.mrb[0].mxu0
  %v465 = vadd.f32 0.0, %v464
  %v466 = vpop.f32.mrb[0].mxu0
  %v467 = vpop.f32.mrb[0].mxu0
  %v468 = vadd.f32 0.0, %v467
  %v469 = vpop.f32.mrb[0].mxu0
  %470 = vmatprep.mubr.bf16.mxu0 %v316
  %471 = vmatmul.mubr.bf16.gmra.mrb[0].mxu0 %v197
  %v472 = vpop.f32.mrb[0].mxu0
  %v473 = vadd.f32 0.0, %v472
  %v474 = vpop.f32.mrb[0].mxu0
  %v475 = vpop.f32.mrb[0].mxu0
  %v476 = vadd.f32 0.0, %v475
  %v477 = vpop.f32.mrb[0].mxu0
  %478 = vdwg.mxu0
  %v479 = vld [vmem:[%s2] sm:$0x1]
  %v481 = vlaneseq
  %v482 = vshrl.u32 %v481, 7
  %v483 = vsub.s32 0, %v482
  %v484 = vrot.slane %v479, %v483
  %v486 = vmul.f32 %v353, %v484
  %v487 = vmul.f32 %v356, %v484
  %v488 = vmul.f32 %v361, %v484
  %v489 = vmul.f32 %v364, %v484
  %v490 = vmul.f32 %v369, %v484
  %v491 = vmul.f32 %v372, %v484
  %v492 = vmul.f32 %v377, %v484
  %v493 = vmul.f32 %v380, %v484
  %v494 = vmul.f32 %v385, %v484
  %v495 = vmul.f32 %v388, %v484
  %v496 = vmul.f32 %v393, %v484
  %v497 = vmul.f32 %v396, %v484
  %v498 = vmul.f32 %v401, %v484
  %v499 = vmul.f32 %v404, %v484
  %v500 = vmul.f32 %v409, %v484
  %v501 = vmul.f32 %v412, %v484
  %v502 = vmul.f32 %v417, %v484
  %v503 = vmul.f32 %v420, %v484
  %v504 = vmul.f32 %v425, %v484
  %v505 = vmul.f32 %v428, %v484
  %v506 = vmul.f32 %v433, %v484
  %v507 = vmul.f32 %v436, %v484
  %v508 = vmul.f32 %v441, %v484
  %v509 = vmul.f32 %v444, %v484
  %v510 = vmul.f32 %v449, %v484
  %v511 = vmul.f32 %v452, %v484
  %v512 = vmul.f32 %v457, %v484
  %v513 = vmul.f32 %v460, %v484
  %v514 = vmul.f32 %v465, %v484
  %v515 = vmul.f32 %v468, %v484
  %v516 = vmul.f32 %v473, %v484
  %v517 = vmul.f32 %v476, %v484
  %v518 = vld [vmem:[%s3] sm:$0x1]
  %v520 = vlaneseq
  %v521 = vshrl.u32 %v520, 7
  %v522 = vsub.s32 0, %v521
  %v523 = vrot.slane %v518, %v522
  %v525 = vadd.f32 %v486, %v523
  %v526 = vadd.f32 %v487, %v523
  %v527 = vadd.f32 %v488, %v523
  %v528 = vadd.f32 %v489, %v523
  %v529 = vadd.f32 %v490, %v523
  %v530 = vadd.f32 %v491, %v523
  %v531 = vadd.f32 %v492, %v523
  %v532 = vadd.f32 %v493, %v523
  %v533 = vadd.f32 %v494, %v523
  %v534 = vadd.f32 %v495, %v523
  %v535 = vadd.f32 %v496, %v523
  %v536 = vadd.f32 %v497, %v523
  %v537 = vadd.f32 %v498, %v523
  %v538 = vadd.f32 %v499, %v523
  %v539 = vadd.f32 %v500, %v523
  %v540 = vadd.f32 %v501, %v523
  %v541 = vadd.f32 %v502, %v523
  %v542 = vadd.f32 %v503, %v523
  %v543 = vadd.f32 %v504, %v523
  %v544 = vadd.f32 %v505, %v523
  %v545 = vadd.f32 %v506, %v523
  %v546 = vadd.f32 %v507, %v523
  %v547 = vadd.f32 %v508, %v523
  %v548 = vadd.f32 %v509, %v523
  %v549 = vadd.f32 %v510, %v523
  %v550 = vadd.f32 %v511, %v523
  %v551 = vadd.f32 %v512, %v523
  %v552 = vadd.f32 %v513, %v523
  %v553 = vadd.f32 %v514, %v523
  %v554 = vadd.f32 %v515, %v523
  %v555 = vadd.f32 %v516, %v523
  %v556 = vadd.f32 %v517, %v523
  %v557 = vmax.f32 %v525, 0.0
  %v558 = vmax.f32 %v526, 0.0
  %v559 = vmax.f32 %v527, 0.0
  %v560 = vmax.f32 %v528, 0.0
  %v561 = vmax.f32 %v529, 0.0
  %v562 = vmax.f32 %v530, 0.0
  %v563 = vmax.f32 %v531, 0.0
  %v564 = vmax.f32 %v532, 0.0
  %v565 = vmax.f32 %v533, 0.0
  %v566 = vmax.f32 %v534, 0.0
  %v567 = vmax.f32 %v535, 0.0
  %v568 = vmax.f32 %v536, 0.0
  %v569 = vmax.f32 %v537, 0.0
  %v570 = vmax.f32 %v538, 0.0
  %v571 = vmax.f32 %v539, 0.0
  %v572 = vmax.f32 %v540, 0.0
  %v573 = vmax.f32 %v541, 0.0
  %v574 = vmax.f32 %v542, 0.0
  %v575 = vmax.f32 %v543, 0.0
  %v576 = vmax.f32 %v544, 0.0
  %v577 = vmax.f32 %v545, 0.0
  %v578 = vmax.f32 %v546, 0.0
  %v579 = vmax.f32 %v547, 0.0
  %v580 = vmax.f32 %v548, 0.0
  %v581 = vmax.f32 %v549, 0.0
  %v582 = vmax.f32 %v550, 0.0
  %v583 = vmax.f32 %v551, 0.0
  %v584 = vmax.f32 %v552, 0.0
  %v585 = vmax.f32 %v553, 0.0
  %v586 = vmax.f32 %v554, 0.0
  %v587 = vmax.f32 %v555, 0.0
  %v588 = vmax.f32 %v556, 0.0
  %v589 = vld [vmem:[%s4] sm:$0xf]
  %v590 = vld [vmem:[%s4 + $0x4] sm:$0xf]
  %v591 = vld [vmem:[%s4 + $0x8] sm:$0xf]
  %v592 = vld [vmem:[%s4 + $0xc] sm:$0xf]
  %v593 = vld [vmem:[%s4 + $0x10] sm:$0xf]
  %v594 = vld [vmem:[%s4 + $0x14] sm:$0xf]
  %v595 = vld [vmem:[%s4 + $0x18] sm:$0xf]
  %v596 = vld [vmem:[%s4 + $0x1c] sm:$0xf]
  %v597 = vld [vmem:[%s4 + $0x20] sm:$0xf]
  %v598 = vld [vmem:[%s4 + $0x24] sm:$0xf]
  %v599 = vld [vmem:[%s4 + $0x28] sm:$0xf]
  %v600 = vld [vmem:[%s4 + $0x2c] sm:$0xf]
  %v601 = vld [vmem:[%s4 + $0x30] sm:$0xf]
  %v602 = vld [vmem:[%s4 + $0x34] sm:$0xf]
  %v603 = vld [vmem:[%s4 + $0x38] sm:$0xf]
  %v604 = vld [vmem:[%s4 + $0x3c] sm:$0xf]
  %v605 = vld [vmem:[%s4 + $0x40] sm:$0xf]
  %v606 = vld [vmem:[%s4 + $0x44] sm:$0xf]
  %v607 = vld [vmem:[%s4 + $0x48] sm:$0xf]
  %v608 = vld [vmem:[%s4 + $0x4c] sm:$0xf]
  %v609 = vld [vmem:[%s4 + $0x50] sm:$0xf]
  %v610 = vld [vmem:[%s4 + $0x54] sm:$0xf]
  %v611 = vld [vmem:[%s4 + $0x58] sm:$0xf]
  %v612 = vld [vmem:[%s4 + $0x5c] sm:$0xf]
  %v613 = vld [vmem:[%s4 + $0x60] sm:$0xf]
  %v614 = vld [vmem:[%s4 + $0x64] sm:$0xf]
  %v615 = vld [vmem:[%s4 + $0x68] sm:$0xf]
  %v616 = vld [vmem:[%s4 + $0x6c] sm:$0xf]
  %v617 = vld [vmem:[%s4 + $0x70] sm:$0xf]
  %v618 = vld [vmem:[%s4 + $0x74] sm:$0xf]
  %v619 = vld [vmem:[%s4 + $0x78] sm:$0xf]
  %v620 = vld [vmem:[%s4 + $0x7c] sm:$0xf]
  %v621 = vunpack.c.l.bf16 %v589
  %v622 = vunpack.c.l.bf16 %v590
  %v623 = vunpack.c.l.bf16 %v591
  %v624 = vunpack.c.l.bf16 %v592
  %v625 = vunpack.c.l.bf16 %v593
  %v626 = vunpack.c.l.bf16 %v594
  %v627 = vunpack.c.l.bf16 %v595
  %v628 = vunpack.c.l.bf16 %v596
  %v629 = vunpack.c.l.bf16 %v597
  %v630 = vunpack.c.l.bf16 %v598
  %v631 = vunpack.c.l.bf16 %v599
  %v632 = vunpack.c.l.bf16 %v600
  %v633 = vunpack.c.l.bf16 %v601
  %v634 = vunpack.c.l.bf16 %v602
  %v635 = vunpack.c.l.bf16 %v603
  %v636 = vunpack.c.l.bf16 %v604
  %v637 = vunpack.c.l.bf16 %v605
  %v638 = vunpack.c.l.bf16 %v606
  %v639 = vunpack.c.l.bf16 %v607
  %v640 = vunpack.c.l.bf16 %v608
  %v641 = vunpack.c.l.bf16 %v609
  %v642 = vunpack.c.l.bf16 %v610
  %v643 = vunpack.c.l.bf16 %v611
  %v644 = vunpack.c.l.bf16 %v612
  %v645 = vunpack.c.l.bf16 %v613
  %v646 = vunpack.c.l.bf16 %v614
  %v647 = vunpack.c.l.bf16 %v615
  %v648 = vunpack.c.l.bf16 %v616
  %v649 = vunpack.c.l.bf16 %v617
  %v650 = vunpack.c.l.bf16 %v618
  %v651 = vunpack.c.l.bf16 %v619
  %v652 = vunpack.c.l.bf16 %v620
  %v653 = vadd.f32 %v557, %v621
  %v654 = vadd.f32 %v558, %v622
  %v655 = vadd.f32 %v559, %v623
  %v656 = vadd.f32 %v560, %v624
  %v657 = vadd.f32 %v561, %v625
  %v658 = vadd.f32 %v562, %v626
  %v659 = vadd.f32 %v563, %v627
  %v660 = vadd.f32 %v564, %v628
  %v661 = vadd.f32 %v565, %v629
  %v662 = vadd.f32 %v566, %v630
  %v663 = vadd.f32 %v567, %v631
  %v664 = vadd.f32 %v568, %v632
  %v665 = vadd.f32 %v569, %v633
  %v666 = vadd.f32 %v570, %v634
  %v667 = vadd.f32 %v571, %v635
  %v668 = vadd.f32 %v572, %v636
  %v669 = vadd.f32 %v573, %v637
  %v670 = vadd.f32 %v574, %v638
  %v671 = vadd.f32 %v575, %v639
  %v672 = vadd.f32 %v576, %v640
  %v673 = vadd.f32 %v577, %v641
  %v674 = vadd.f32 %v578, %v642
  %v675 = vadd.f32 %v579, %v643
  %v676 = vadd.f32 %v580, %v644
  %v677 = vadd.f32 %v581, %v645
  %v678 = vadd.f32 %v582, %v646
  %v679 = vadd.f32 %v583, %v647
  %v680 = vadd.f32 %v584, %v648
  %v681 = vadd.f32 %v585, %v649
  %v682 = vadd.f32 %v586, %v650
  %v683 = vadd.f32 %v587, %v651
  %v684 = vadd.f32 %v588, %v652
  %v685 = vmax.f32 %v653, 0.0
  %v686 = vmax.f32 %v654, 0.0
  %v687 = vmax.f32 %v655, 0.0
  %v688 = vmax.f32 %v656, 0.0
  %v689 = vmax.f32 %v657, 0.0
  %v690 = vmax.f32 %v658, 0.0
  %v691 = vmax.f32 %v659, 0.0
  %v692 = vmax.f32 %v660, 0.0
  %v693 = vmax.f32 %v661, 0.0
  %v694 = vmax.f32 %v662, 0.0
  %v695 = vmax.f32 %v663, 0.0
  %v696 = vmax.f32 %v664, 0.0
  %v697 = vmax.f32 %v665, 0.0
  %v698 = vmax.f32 %v666, 0.0
  %v699 = vmax.f32 %v667, 0.0
  %v700 = vmax.f32 %v668, 0.0
  %v701 = vmax.f32 %v669, 0.0
  %v702 = vmax.f32 %v670, 0.0
  %v703 = vmax.f32 %v671, 0.0
  %v704 = vmax.f32 %v672, 0.0
  %v705 = vmax.f32 %v673, 0.0
  %v706 = vmax.f32 %v674, 0.0
  %v707 = vmax.f32 %v675, 0.0
  %v708 = vmax.f32 %v676, 0.0
  %v709 = vmax.f32 %v677, 0.0
  %v710 = vmax.f32 %v678, 0.0
  %v711 = vmax.f32 %v679, 0.0
  %v712 = vmax.f32 %v680, 0.0
  %v713 = vmax.f32 %v681, 0.0
  %v714 = vmax.f32 %v682, 0.0
  %v715 = vmax.f32 %v683, 0.0
  %v716 = vmax.f32 %v684, 0.0
  %v717 = vpack.c.bf16 %v686, %v685
  %v718 = vpack.c.bf16 %v688, %v687
  %v719 = vpack.c.bf16 %v690, %v689
  %v720 = vpack.c.bf16 %v692, %v691
  %v721 = vpack.c.bf16 %v694, %v693
  %v722 = vpack.c.bf16 %v696, %v695
  %v723 = vpack.c.bf16 %v698, %v697
  %v724 = vpack.c.bf16 %v700, %v699
  %v725 = vpack.c.bf16 %v702, %v701
  %v726 = vpack.c.bf16 %v704, %v703
  %v727 = vpack.c.bf16 %v706, %v705
  %v728 = vpack.c.bf16 %v708, %v707
  %v729 = vpack.c.bf16 %v710, %v709
  %v730 = vpack.c.bf16 %v712, %v711
  %v731 = vpack.c.bf16 %v714, %v713
  %v732 = vpack.c.bf16 %v716, %v715
  %v749 = vunpack.c.l.b16 %v717
  %v750 = vunpack.c.h.b16 %v717
  %v751 = vunpack.c.l.b16 %v718
  %v752 = vunpack.c.h.b16 %v718
  %v753 = vunpack.c.l.b16 %v719
  %v754 = vunpack.c.h.b16 %v719
  %v755 = vunpack.c.l.b16 %v720
  %v756 = vunpack.c.h.b16 %v720
  %v757 = vunpack.c.l.b16 %v721
  %v758 = vunpack.c.h.b16 %v721
  %v759 = vunpack.c.l.b16 %v722
  %v760 = vunpack.c.h.b16 %v722
  %v761 = vunpack.c.l.b16 %v723
  %v762 = vunpack.c.h.b16 %v723
  %v763 = vunpack.c.l.b16 %v724
  %v764 = vunpack.c.h.b16 %v724
  %v765 = vunpack.c.l.b16 %v725
  %v766 = vunpack.c.h.b16 %v725
  %v767 = vunpack.c.l.b16 %v726
  %v768 = vunpack.c.h.b16 %v726
  %v769 = vunpack.c.l.b16 %v727
  %v770 = vunpack.c.h.b16 %v727
  %v771 = vunpack.c.l.b16 %v728
  %v772 = vunpack.c.h.b16 %v728
  %v773 = vunpack.c.l.b16 %v729
  %v774 = vunpack.c.h.b16 %v729
  %v775 = vunpack.c.l.b16 %v730
  %v776 = vunpack.c.h.b16 %v730
  %v777 = vunpack.c.l.b16 %v731
  %v778 = vunpack.c.h.b16 %v731
  %v779 = vunpack.c.l.b16 %v732
  %v780 = vunpack.c.h.b16 %v732
  %v781 = vpack.c.b16 %v749, %v749
  %v782 = vpack.c.b16 %v750, %v750
  %v783 = vpack.c.b16 %v751, %v751
  %v784 = vpack.c.b16 %v752, %v752
  %v785 = vpack.c.b16 %v753, %v753
  %v786 = vpack.c.b16 %v754, %v754
  %v787 = vpack.c.b16 %v755, %v755
  %v788 = vpack.c.b16 %v756, %v756
  %v789 = vpack.c.b16 %v757, %v757
  %v790 = vpack.c.b16 %v758, %v758
  %v791 = vpack.c.b16 %v759, %v759
  %v792 = vpack.c.b16 %v760, %v760
  %v793 = vpack.c.b16 %v761, %v761
  %v794 = vpack.c.b16 %v762, %v762
  %v795 = vpack.c.b16 %v763, %v763
  %v796 = vpack.c.b16 %v764, %v764
  %v797 = vpack.c.b16 %v765, %v765
  %v798 = vpack.c.b16 %v766, %v766
  %v799 = vpack.c.b16 %v767, %v767
  %v800 = vpack.c.b16 %v768, %v768
  %v801 = vpack.c.b16 %v769, %v769
  %v802 = vpack.c.b16 %v770, %v770
  %v803 = vpack.c.b16 %v771, %v771
  %v804 = vpack.c.b16 %v772, %v772
  %v805 = vpack.c.b16 %v773, %v773
  %v806 = vpack.c.b16 %v774, %v774
  %v807 = vpack.c.b16 %v775, %v775
  %v808 = vpack.c.b16 %v776, %v776
  %v809 = vpack.c.b16 %v777, %v777
  %v810 = vpack.c.b16 %v778, %v778
  %v811 = vpack.c.b16 %v779, %v779
  %v812 = vpack.c.b16 %v780, %v780
  %vm845 = vcmask 125952
  %846 = vst.msk [vmem:[%s5] sm:$0xf] %vm845, %v781
  %847 = vst.msk [vmem:[%s5 + $0x4] sm:$0xf] %vm845, %v782
  %848 = vst.msk [vmem:[%s5 + $0x8] sm:$0xf] %vm845, %v783
  %849 = vst.msk [vmem:[%s5 + $0xc] sm:$0xf] %vm845, %v784
  %850 = vst.msk [vmem:[%s5 + $0x10] sm:$0xf] %vm845, %v785
  %851 = vst.msk [vmem:[%s5 + $0x14] sm:$0xf] %vm845, %v786
  %852 = vst.msk [vmem:[%s5 + $0x18] sm:$0xf] %vm845, %v787
  %853 = vst.msk [vmem:[%s5 + $0x1c] sm:$0xf] %vm845, %v788
  %854 = vst.msk [vmem:[%s5 + $0x20] sm:$0xf] %vm845, %v789
  %855 = vst.msk [vmem:[%s5 + $0x24] sm:$0xf] %vm845, %v790
  %856 = vst.msk [vmem:[%s5 + $0x28] sm:$0xf] %vm845, %v791
  %857 = vst.msk [vmem:[%s5 + $0x2c] sm:$0xf] %vm845, %v792
  %858 = vst.msk [vmem:[%s5 + $0x30] sm:$0xf] %vm845, %v793
  %859 = vst.msk [vmem:[%s5 + $0x34] sm:$0xf] %vm845, %v794
  %860 = vst.msk [vmem:[%s5 + $0x38] sm:$0xf] %vm845, %v795
  %861 = vst.msk [vmem:[%s5 + $0x3c] sm:$0xf] %vm845, %v796
  %862 = vst.msk [vmem:[%s5 + $0x40] sm:$0xf] %vm845, %v797
  %863 = vst.msk [vmem:[%s5 + $0x44] sm:$0xf] %vm845, %v798
  %864 = vst.msk [vmem:[%s5 + $0x48] sm:$0xf] %vm845, %v799
  %865 = vst.msk [vmem:[%s5 + $0x4c] sm:$0xf] %vm845, %v800
  %866 = vst.msk [vmem:[%s5 + $0x50] sm:$0xf] %vm845, %v801
  %867 = vst.msk [vmem:[%s5 + $0x54] sm:$0xf] %vm845, %v802
  %868 = vst.msk [vmem:[%s5 + $0x58] sm:$0xf] %vm845, %v803
  %869 = vst.msk [vmem:[%s5 + $0x5c] sm:$0xf] %vm845, %v804
  %870 = vst.msk [vmem:[%s5 + $0x60] sm:$0xf] %vm845, %v805
  %871 = vst.msk [vmem:[%s5 + $0x64] sm:$0xf] %vm845, %v806
  %872 = vst.msk [vmem:[%s5 + $0x68] sm:$0xf] %vm845, %v807
  %873 = vst.msk [vmem:[%s5 + $0x6c] sm:$0xf] %vm845, %v808
  %874 = vst.msk [vmem:[%s5 + $0x70] sm:$0xf] %vm845, %v809
  %875 = vst.msk [vmem:[%s5 + $0x74] sm:$0xf] %vm845, %v810
  %876 = vst.msk [vmem:[%s5 + $0x78] sm:$0xf] %vm845, %v811
  %877 = vst.msk [vmem:[%s5 + $0x7c] sm:$0xf] %vm845, %v812
  // Predicated region
  $region22: #{_lambda_.24} parent=0 // pred_check
    _
  $region23: #{_lambda_.24} parent=0 // pred_check_branch
    %879 = sbr.rel (0) target = $region25
  $region24: #{_lambda_.24} parent=0 // pred_region
    _
  $region25: #{_lambda_.24} parent=0 // pred_fallthru
    _
  // Predicated region
  $region26: #{_lambda_.24} parent=0 // pred_check
    _
  $region27: #{_lambda_.24} parent=0 // pred_check_branch
    %881 = sbr.rel (0) target = $region29
  $region28: #{_lambda_.24} parent=0 // pred_region
    _
  $region29: #{_lambda_.24} parent=0 // pred_fallthru
    _

// kernel: _lambda_.25
$region0: #{_lambda_.25}
  #allocation0 [shape = 'u32[]', space=smem, size = 0x4, offset = 0x4, fixed_abs, tag = 'smem constant byte address 0x4 - core index']
  #allocation1 [shape = 'u32[144,128]{1,0:T(1,128)}', space=vmem, size = 0x12000, scoped, tag = 'internal scratch']
  %s0 = inlined_call_operand.vmem [shape: bf16[256,144], index: 0, kind: input, shape index: {}]
  %s1 = inlined_call_operand.vmem [shape: bf16[144,16], index: 1, kind: input, shape index: {}]
  %s2 = inlined_call_operand.vmem [shape: f32[1,16], index: 2, kind: input, shape index: {}]
  %s3 = inlined_call_operand.vmem [shape: f32[1,16], index: 3, kind: input, shape index: {}]
  %s4 = inlined_call_operand.vmem [shape: bf16[256,16], index: 4, kind: output, shape index: {}]
  %s5 = sld [smem:[#allocation0]]
  $region26: #{_lambda_.25} parent=0
    _
  %s7 = ssub.s32 1, %s5
  %s8 = scalar_select 0, %s7, %s5
  // Predicated region
  $region2: #{_lambda_.25} parent=0 // pred_check
    _
  $region3: #{_lambda_.25} parent=0 // pred_check_branch
    %10 = sbr.rel (0) target = $region5
  $region4: #{_lambda_.25} parent=0 // pred_region
    _
  $region5: #{_lambda_.25} parent=0 // pred_fallthru
    _
  // Predicated region
  $region6: #{_lambda_.25} parent=0 // pred_check
    _
  $region7: #{_lambda_.25} parent=0 // pred_check_branch
    %12 = sbr.rel (0) target = $region9
  $region8: #{_lambda_.25} parent=0 // pred_region
    _
  $region9: #{_lambda_.25} parent=0 // pred_fallthru
    _
  // Predicated region
  $region10: #{_lambda_.25} parent=0 // pred_check
    _
  $region11: #{_lambda_.25} parent=0 // pred_check_branch
    %14 = sbr.rel (0) target = $region13
  $region12: #{_lambda_.25} parent=0 // pred_region
    _
  $region13: #{_lambda_.25} parent=0 // pred_fallthru
    _
  // Predicated region
  $region14: #{_lambda_.25} parent=0 // pred_check
    _
  $region15: #{_lambda_.25} parent=0 // pred_check_branch
    %16 = sbr.rel (0) target = $region17
  $region16: #{_lambda_.25} parent=0 // pred_region
    _
  $region17: #{_lambda_.25} parent=0 // pred_fallthru
    _
  %v18 = vld [vmem:[%s0] sm:$0xff]
  %v19 = vld [vmem:[%s0 + $0x8] sm:$0xff]
  %v20 = vld [vmem:[%s0 + $0x10] sm:$0xff]
  %v21 = vld [vmem:[%s0 + $0x18] sm:$0xff]
  %v22 = vld [vmem:[%s0 + $0x20] sm:$0xff]
  %v23 = vld [vmem:[%s0 + $0x28] sm:$0xff]
  %v24 = vld [vmem:[%s0 + $0x30] sm:$0xff]
  %v25 = vld [vmem:[%s0 + $0x38] sm:$0xff]
  %v26 = vld [vmem:[%s0 + $0x40] sm:$0xff]
  %v27 = vld [vmem:[%s0 + $0x48] sm:$0xff]
  %v28 = vld [vmem:[%s0 + $0x50] sm:$0xff]
  %v29 = vld [vmem:[%s0 + $0x58] sm:$0xff]
  %v30 = vld [vmem:[%s0 + $0x60] sm:$0xff]
  %v31 = vld [vmem:[%s0 + $0x68] sm:$0xff]
  %v32 = vld [vmem:[%s0 + $0x70] sm:$0xff]
  %v33 = vld [vmem:[%s0 + $0x78] sm:$0xff]
  %v34 = vld [vmem:[%s0 + $0x80] sm:$0xff]
  %v35 = vld [vmem:[%s0 + $0x88] sm:$0xff]
  %v36 = vld [vmem:[%s0 + $0x90] sm:$0xff]
  %v37 = vld [vmem:[%s0 + $0x98] sm:$0xff]
  %v38 = vld [vmem:[%s0 + $0xa0] sm:$0xff]
  %v39 = vld [vmem:[%s0 + $0xa8] sm:$0xff]
  %v40 = vld [vmem:[%s0 + $0xb0] sm:$0xff]
  %v41 = vld [vmem:[%s0 + $0xb8] sm:$0xff]
  %v42 = vld [vmem:[%s0 + $0xc0] sm:$0xff]
  %v43 = vld [vmem:[%s0 + $0xc8] sm:$0xff]
  %v44 = vld [vmem:[%s0 + $0xd0] sm:$0xff]
  %v45 = vld [vmem:[%s0 + $0xd8] sm:$0xff]
  %v46 = vld [vmem:[%s0 + $0xe0] sm:$0xff]
  %v47 = vld [vmem:[%s0 + $0xe8] sm:$0xff]
  %v48 = vld [vmem:[%s0 + $0xf0] sm:$0xff]
  %v49 = vld [vmem:[%s0 + $0xf8] sm:$0xff]
  %v50 = vld [vmem:[%s1] sm:$0xf]
  %v51 = vld [vmem:[%s1 + $0x4] sm:$0xf]
  %v52 = vld [vmem:[%s1 + $0x8] sm:$0xf]
  %v53 = vld [vmem:[%s1 + $0xc] sm:$0xf]
  %v54 = vld [vmem:[%s1 + $0x10] sm:$0xf]
  %v55 = vld [vmem:[%s1 + $0x14] sm:$0xf]
  %v56 = vld [vmem:[%s1 + $0x18] sm:$0xf]
  %v57 = vld [vmem:[%s1 + $0x1c] sm:$0xf]
  %v58 = vld [vmem:[%s1 + $0x20] sm:$0xf]
  %v59 = vld [vmem:[%s1 + $0x24] sm:$0xf]
  %v60 = vld [vmem:[%s1 + $0x28] sm:$0xf]
  %v61 = vld [vmem:[%s1 + $0x2c] sm:$0xf]
  %v62 = vld [vmem:[%s1 + $0x30] sm:$0xf]
  %v63 = vld [vmem:[%s1 + $0x34] sm:$0xf]
  %v64 = vld [vmem:[%s1 + $0x38] sm:$0xf]
  %v65 = vld [vmem:[%s1 + $0x3c] sm:$0xf]
  %v66 = vld [vmem:[%s1 + $0x40] sm:$0xf]
  %v67 = vld [vmem:[%s1 + $0x44] sm:$0xf]
  %v100 = vunpack.c.l.b16 %v18
  %v101 = vunpack.c.h.b16 %v18
  %v102 = vunpack.c.l.b16 %v19
  %v103 = vunpack.c.h.b16 %v19
  %v104 = vunpack.c.l.b16 %v20
  %v105 = vunpack.c.h.b16 %v20
  %v106 = vunpack.c.l.b16 %v21
  %v107 = vunpack.c.h.b16 %v21
  %v108 = vunpack.c.l.b16 %v22
  %v109 = vunpack.c.h.b16 %v22
  %v110 = vunpack.c.l.b16 %v23
  %v111 = vunpack.c.h.b16 %v23
  %v112 = vunpack.c.l.b16 %v24
  %v113 = vunpack.c.h.b16 %v24
  %v114 = vunpack.c.l.b16 %v25
  %v115 = vunpack.c.h.b16 %v25
  %v116 = vunpack.c.l.b16 %v26
  %v117 = vunpack.c.h.b16 %v26
  %v118 = vunpack.c.l.b16 %v27
  %v119 = vunpack.c.h.b16 %v27
  %v120 = vunpack.c.l.b16 %v28
  %v121 = vunpack.c.h.b16 %v28
  %v122 = vunpack.c.l.b16 %v29
  %v123 = vunpack.c.h.b16 %v29
  %v124 = vunpack.c.l.b16 %v30
  %v125 = vunpack.c.h.b16 %v30
  %v126 = vunpack.c.l.b16 %v31
  %v127 = vunpack.c.h.b16 %v31
  %v128 = vunpack.c.l.b16 %v32
  %v129 = vunpack.c.h.b16 %v32
  %v130 = vunpack.c.l.b16 %v33
  %v131 = vunpack.c.h.b16 %v33
  %v132 = vunpack.c.l.b16 %v34
  %v133 = vunpack.c.h.b16 %v34
  %v134 = vunpack.c.l.b16 %v35
  %v135 = vunpack.c.h.b16 %v35
  %v136 = vunpack.c.l.b16 %v36
  %v137 = vunpack.c.h.b16 %v36
  %v138 = vunpack.c.l.b16 %v37
  %v139 = vunpack.c.h.b16 %v37
  %v140 = vunpack.c.l.b16 %v38
  %v141 = vunpack.c.h.b16 %v38
  %v142 = vunpack.c.l.b16 %v39
  %v143 = vunpack.c.h.b16 %v39
  %v144 = vunpack.c.l.b16 %v40
  %v145 = vunpack.c.h.b16 %v40
  %v146 = vunpack.c.l.b16 %v41
  %v147 = vunpack.c.h.b16 %v41
  %v148 = vunpack.c.l.b16 %v42
  %v149 = vunpack.c.h.b16 %v42
  %v150 = vunpack.c.l.b16 %v43
  %v151 = vunpack.c.h.b16 %v43
  %v152 = vunpack.c.l.b16 %v44
  %v153 = vunpack.c.h.b16 %v44
  %v154 = vunpack.c.l.b16 %v45
  %v155 = vunpack.c.h.b16 %v45
  %v156 = vunpack.c.l.b16 %v46
  %v157 = vunpack.c.h.b16 %v46
  %v158 = vunpack.c.l.b16 %v47
  %v159 = vunpack.c.h.b16 %v47
  %v160 = vunpack.c.l.b16 %v48
  %v161 = vunpack.c.h.b16 %v48
  %v162 = vunpack.c.l.b16 %v49
  %v163 = vunpack.c.h.b16 %v49
  %v164 = vpack.c.b16 %v102, %v100
  %v165 = vpack.c.b16 %v103, %v101
  %v166 = vpack.c.b16 %v106, %v104
  %v167 = vpack.c.b16 %v107, %v105
  %v168 = vpack.c.b16 %v110, %v108
  %v169 = vpack.c.b16 %v111, %v109
  %v170 = vpack.c.b16 %v114, %v112
  %v171 = vpack.c.b16 %v115, %v113
  %v172 = vpack.c.b16 %v118, %v116
  %v173 = vpack.c.b16 %v119, %v117
  %v174 = vpack.c.b16 %v122, %v120
  %v175 = vpack.c.b16 %v123, %v121
  %v176 = vpack.c.b16 %v126, %v124
  %v177 = vpack.c.b16 %v127, %v125
  %v178 = vpack.c.b16 %v130, %v128
  %v179 = vpack.c.b16 %v131, %v129
  %v180 = vpack.c.b16 %v134, %v132
  %v181 = vpack.c.b16 %v135, %v133
  %v182 = vpack.c.b16 %v138, %v136
  %v183 = vpack.c.b16 %v139, %v137
  %v184 = vpack.c.b16 %v142, %v140
  %v185 = vpack.c.b16 %v143, %v141
  %v186 = vpack.c.b16 %v146, %v144
  %v187 = vpack.c.b16 %v147, %v145
  %v188 = vpack.c.b16 %v150, %v148
  %v189 = vpack.c.b16 %v151, %v149
  %v190 = vpack.c.b16 %v154, %v152
  %v191 = vpack.c.b16 %v155, %v153
  %v192 = vpack.c.b16 %v158, %v156
  %v193 = vpack.c.b16 %v159, %v157
  %v194 = vpack.c.b16 %v162, %v160
  %v195 = vpack.c.b16 %v163, %v161
  %v230 = vunpack.c.l.b16 %v50
  %v231 = vunpack.c.l.b16 %v51
  %v232 = vunpack.c.l.b16 %v52
  %v233 = vunpack.c.l.b16 %v53
  %v234 = vunpack.c.l.b16 %v54
  %v235 = vunpack.c.l.b16 %v55
  %v236 = vunpack.c.l.b16 %v56
  %v237 = vunpack.c.l.b16 %v57
  %v238 = vunpack.c.l.b16 %v58
  %v239 = vunpack.c.l.b16 %v59
  %v240 = vunpack.c.l.b16 %v60
  %v241 = vunpack.c.l.b16 %v61
  %v242 = vunpack.c.l.b16 %v62
  %v243 = vunpack.c.l.b16 %v63
  %v244 = vunpack.c.l.b16 %v64
  %v245 = vunpack.c.l.b16 %v65
  %v246 = vunpack.c.l.b16 %v66
  %v247 = vunpack.c.l.b16 %v67
  %v248 = vpack.c.b16 %v231, %v230
  %v249 = vpack.c.b16 %v233, %v232
  %v250 = vpack.c.b16 %v235, %v234
  %v251 = vpack.c.b16 %v237, %v236
  %v252 = vpack.c.b16 %v239, %v238
  %v253 = vpack.c.b16 %v241, %v240
  %v254 = vpack.c.b16 %v243, %v242
  %v255 = vpack.c.b16 %v245, %v244
  %v256 = vpack.c.b16 %v247, %v246
  %vm266 = vcmask 130048
  %v268 = vsel %vm266, %v165, 0
  %v271 = vsel %vm266, %v167, 0
  %v274 = vsel %vm266, %v169, 0
  %v277 = vsel %vm266, %v171, 0
  %v280 = vsel %vm266, %v173, 0
  %v283 = vsel %vm266, %v175, 0
  %v286 = vsel %vm266, %v177, 0
  %v289 = vsel %vm266, %v179, 0
  %v292 = vsel %vm266, %v181, 0
  %v295 = vsel %vm266, %v183, 0
  %v298 = vsel %vm266, %v185, 0
  %v301 = vsel %vm266, %v187, 0
  %v304 = vsel %vm266, %v189, 0
  %v307 = vsel %vm266, %v191, 0
  %v310 = vsel %vm266, %v193, 0
  %v313 = vsel %vm266, %v195, 0
  %315 = vmatprep.subr.bf16.mxu0 0
  %316 = vmatpush1.bf16.msra.mxu0 %v248
  %317 = vmatprep.subr.bf16.mxu0 0
  %318 = vmatpush1.bf16.msra.mxu0 %v249
  %319 = vmatprep.subr.bf16.mxu0 0
  %320 = vmatpush1.bf16.msra.mxu0 %v250
  %321 = vmatprep.subr.bf16.mxu0 0
  %322 = vmatpush1.bf16.msra.mxu0 %v251
  %323 = vmatprep.subr.bf16.mxu0 0
  %324 = vmatpush1.bf16.msra.mxu0 %v252
  %325 = vmatprep.subr.bf16.mxu0 0
  %326 = vmatpush1.bf16.msra.mxu0 %v253
  %327 = vmatprep.subr.bf16.mxu0 0
  %328 = vmatpush1.bf16.msra.mxu0 %v254
  %329 = vmatprep.subr.bf16.mxu0 0
  %330 = vmatpush1.bf16.msra.mxu0 %v255
  %331 = vmatprep.subr.bf16.mxu0 0
  %332 = vmatpush1.bf16.msra.mxu0 %v256
  %333 = vmatprep.subr.bf16.mxu0 0
  %334 = vmatpush1.bf16.msra.mxu0 0
  %335 = vmatprep.subr.bf16.mxu0 0
  %336 = vmatpush1.bf16.msra.mxu0 0
  %337 = vmatprep.subr.bf16.mxu0 0
  %338 = vmatpush1.bf16.msra.mxu0 0
  %339 = vmatprep.subr.bf16.mxu0 0
  %340 = vmatpush1.bf16.msra.mxu0 0
  %341 = vmatprep.subr.bf16.mxu0 0
  %342 = vmatpush1.bf16.msra.mxu0 0
  %343 = vmatprep.subr.bf16.mxu0 0
  %344 = vmatpush1.bf16.msra.mxu0 0
  %345 = vmatprep.subr.bf16.mxu0 0
  %346 = vmatpush1.bf16.msra.mxu0 0
  %347 = vmatprep.mubr.bf16.mxu0 %v268
  %348 = vmatmul.mubr.bf16.gmra.mrb[0].mxu0 %v164
  %v349 = vpop.f32.mrb[0].mxu0
  %v350 = vadd.f32 0.0, %v349
  %v351 = vpop.f32.mrb[0].mxu0
  %v352 = vpop.f32.mrb[0].mxu0
  %v353 = vadd.f32 0.0, %v352
  %v354 = vpop.f32.mrb[0].mxu0
  %355 = vmatprep.mubr.bf16.mxu0 %v271
  %356 = vmatmul.mubr.bf16.gmra.mrb[0].mxu0 %v166
  %v357 = vpop.f32.mrb[0].mxu0
  %v358 = vadd.f32 0.0, %v357
  %v359 = vpop.f32.mrb[0].mxu0
  %v360 = vpop.f32.mrb[0].mxu0
  %v361 = vadd.f32 0.0, %v360
  %v362 = vpop.f32.mrb[0].mxu0
  %363 = vmatprep.mubr.bf16.mxu0 %v274
  %364 = vmatmul.mubr.bf16.gmra.mrb[0].mxu0 %v168
  %v365 = vpop.f32.mrb[0].mxu0
  %v366 = vadd.f32 0.0, %v365
  %v367 = vpop.f32.mrb[0].mxu0
  %v368 = vpop.f32.mrb[0].mxu0
  %v369 = vadd.f32 0.0, %v368
  %v370 = vpop.f32.mrb[0].mxu0
  %371 = vmatprep.mubr.bf16.mxu0 %v277
  %372 = vmatmul.mubr.bf16.gmra.mrb[0].mxu0 %v170
  %v373 = vpop.f32.mrb[0].mxu0
  %v374 = vadd.f32 0.0, %v373
  %v375 = vpop.f32.mrb[0].mxu0
  %v376 = vpop.f32.mrb[0].mxu0
  %v377 = vadd.f32 0.0, %v376
  %v378 = vpop.f32.mrb[0].mxu0
  %379 = vmatprep.mubr.bf16.mxu0 %v280
  %380 = vmatmul.mubr.bf16.gmra.mrb[0].mxu0 %v172
  %v381 = vpop.f32.mrb[0].mxu0
  %v382 = vadd.f32 0.0, %v381
  %v383 = vpop.f32.mrb[0].mxu0
  %v384 = vpop.f32.mrb[0].mxu0
  %v385 = vadd.f32 0.0, %v384
  %v386 = vpop.f32.mrb[0].mxu0
  %387 = vmatprep.mubr.bf16.mxu0 %v283
  %388 = vmatmul.mubr.bf16.gmra.mrb[0].mxu0 %v174
  %v389 = vpop.f32.mrb[0].mxu0
  %v390 = vadd.f32 0.0, %v389
  %v391 = vpop.f32.mrb[0].mxu0
  %v392 = vpop.f32.mrb[0].mxu0
  %v393 = vadd.f32 0.0, %v392
  %v394 = vpop.f32.mrb[0].mxu0
  %395 = vmatprep.mubr.bf16.mxu0 %v286
  %396 = vmatmul.mubr.bf16.gmra.mrb[0].mxu0 %v176
  %v397 = vpop.f32.mrb[0].mxu0
  %v398 = vadd.f32 0.0, %v397
  %v399 = vpop.f32.mrb[0].mxu0
  %v400 = vpop.f32.mrb[0].mxu0
  %v401 = vadd.f32 0.0, %v400
  %v402 = vpop.f32.mrb[0].mxu0
  %403 = vmatprep.mubr.bf16.mxu0 %v289
  %404 = vmatmul.mubr.bf16.gmra.mrb[0].mxu0 %v178
  %v405 = vpop.f32.mrb[0].mxu0
  %v406 = vadd.f32 0.0, %v405
  %v407 = vpop.f32.mrb[0].mxu0
  %v408 = vpop.f32.mrb[0].mxu0
  %v409 = vadd.f32 0.0, %v408
  %v410 = vpop.f32.mrb[0].mxu0
  %411 = vmatprep.mubr.bf16.mxu0 %v292
  %412 = vmatmul.mubr.bf16.gmra.mrb[0].mxu0 %v180
  %v413 = vpop.f32.mrb[0].mxu0
  %v414 = vadd.f32 0.0, %v413
  %v415 = vpop.f32.mrb[0].mxu0
  %v416 = vpop.f32.mrb[0].mxu0
  %v417 = vadd.f32 0.0, %v416
  %v418 = vpop.f32.mrb[0].mxu0
  %419 = vmatprep.mubr.bf16.mxu0 %v295
  %420 = vmatmul.mubr.bf16.gmra.mrb[0].mxu0 %v182
  %v421 = vpop.f32.mrb[0].mxu0
  %v422 = vadd.f32 0.0, %v421
  %v423 = vpop.f32.mrb[0].mxu0
  %v424 = vpop.f32.mrb[0].mxu0
  %v425 = vadd.f32 0.0, %v424
  %v426 = vpop.f32.mrb[0].mxu0
  %427 = vmatprep.mubr.bf16.mxu0 %v298
  %428 = vmatmul.mubr.bf16.gmra.mrb[0].mxu0 %v184
  %v429 = vpop.f32.mrb[0].mxu0
  %v430 = vadd.f32 0.0, %v429
  %v431 = vpop.f32.mrb[0].mxu0
  %v432 = vpop.f32.mrb[0].mxu0
  %v433 = vadd.f32 0.0, %v432
  %v434 = vpop.f32.mrb[0].mxu0
  %435 = vmatprep.mubr.bf16.mxu0 %v301
  %436 = vmatmul.mubr.bf16.gmra.mrb[0].mxu0 %v186
  %v437 = vpop.f32.mrb[0].mxu0
  %v438 = vadd.f32 0.0, %v437
  %v439 = vpop.f32.mrb[0].mxu0
  %v440 = vpop.f32.mrb[0].mxu0
  %v441 = vadd.f32 0.0, %v440
  %v442 = vpop.f32.mrb[0].mxu0
  %443 = vmatprep.mubr.bf16.mxu0 %v304
  %444 = vmatmul.mubr.bf16.gmra.mrb[0].mxu0 %v188
  %v445 = vpop.f32.mrb[0].mxu0
  %v446 = vadd.f32 0.0, %v445
  %v447 = vpop.f32.mrb[0].mxu0
  %v448 = vpop.f32.mrb[0].mxu0
  %v449 = vadd.f32 0.0, %v448
  %v450 = vpop.f32.mrb[0].mxu0
  %451 = vmatprep.mubr.bf16.mxu0 %v307
  %452 = vmatmul.mubr.bf16.gmra.mrb[0].mxu0 %v190
  %v453 = vpop.f32.mrb[0].mxu0
  %v454 = vadd.f32 0.0, %v453
  %v455 = vpop.f32.mrb[0].mxu0
  %v456 = vpop.f32.mrb[0].mxu0
  %v457 = vadd.f32 0.0, %v456
  %v458 = vpop.f32.mrb[0].mxu0
  %459 = vmatprep.mubr.bf16.mxu0 %v310
  %460 = vmatmul.mubr.bf16.gmra.mrb[0].mxu0 %v192
  %v461 = vpop.f32.mrb[0].mxu0
  %v462 = vadd.f32 0.0, %v461
  %v463 = vpop.f32.mrb[0].mxu0
  %v464 = vpop.f32.mrb[0].mxu0
  %v465 = vadd.f32 0.0, %v464
  %v466 = vpop.f32.mrb[0].mxu0
  %467 = vmatprep.mubr.bf16.mxu0 %v313
  %468 = vmatmul.mubr.bf16.gmra.mrb[0].mxu0 %v194
  %v469 = vpop.f32.mrb[0].mxu0
  %v470 = vadd.f32 0.0, %v469
  %v471 = vpop.f32.mrb[0].mxu0
  %v472 = vpop.f32.mrb[0].mxu0
  %v473 = vadd.f32 0.0, %v472
  %v474 = vpop.f32.mrb[0].mxu0
  %475 = vdwg.mxu0
  %v476 = vld [vmem:[%s2] sm:$0x1]
  %v478 = vlaneseq
  %v479 = vshrl.u32 %v478, 7
  %v480 = vsub.s32 0, %v479
  %v481 = vrot.slane %v476, %v480
  %v483 = vmul.f32 %v350, %v481
  %v484 = vmul.f32 %v353, %v481
  %v485 = vmul.f32 %v358, %v481
  %v486 = vmul.f32 %v361, %v481
  %v487 = vmul.f32 %v366, %v481
  %v488 = vmul.f32 %v369, %v481
  %v489 = vmul.f32 %v374, %v481
  %v490 = vmul.f32 %v377, %v481
  %v491 = vmul.f32 %v382, %v481
  %v492 = vmul.f32 %v385, %v481
  %v493 = vmul.f32 %v390, %v481
  %v494 = vmul.f32 %v393, %v481
  %v495 = vmul.f32 %v398, %v481
  %v496 = vmul.f32 %v401, %v481
  %v497 = vmul.f32 %v406, %v481
  %v498 = vmul.f32 %v409, %v481
  %v499 = vmul.f32 %v414, %v481
  %v500 = vmul.f32 %v417, %v481
  %v501 = vmul.f32 %v422, %v481
  %v502 = vmul.f32 %v425, %v481
  %v503 = vmul.f32 %v430, %v481
  %v504 = vmul.f32 %v433, %v481
  %v505 = vmul.f32 %v438, %v481
  %v506 = vmul.f32 %v441, %v481
  %v507 = vmul.f32 %v446, %v481
  %v508 = vmul.f32 %v449, %v481
  %v509 = vmul.f32 %v454, %v481
  %v510 = vmul.f32 %v457, %v481
  %v511 = vmul.f32 %v462, %v481
  %v512 = vmul.f32 %v465, %v481
  %v513 = vmul.f32 %v470, %v481
  %v514 = vmul.f32 %v473, %v481
  %v515 = vld [vmem:[%s3] sm:$0x1]
  %v517 = vlaneseq
  %v518 = vshrl.u32 %v517, 7
  %v519 = vsub.s32 0, %v518
  %v520 = vrot.slane %v515, %v519
  %v522 = vadd.f32 %v483, %v520
  %v523 = vadd.f32 %v484, %v520
  %v524 = vadd.f32 %v485, %v520
  %v525 = vadd.f32 %v486, %v520
  %v526 = vadd.f32 %v487, %v520
  %v527 = vadd.f32 %v488, %v520
  %v528 = vadd.f32 %v489, %v520
  %v529 = vadd.f32 %v490, %v520
  %v530 = vadd.f32 %v491, %v520
  %v531 = vadd.f32 %v492, %v520
  %v532 = vadd.f32 %v493, %v520
  %v533 = vadd.f32 %v494, %v520
  %v534 = vadd.f32 %v495, %v520
  %v535 = vadd.f32 %v496, %v520
  %v536 = vadd.f32 %v497, %v520
  %v537 = vadd.f32 %v498, %v520
  %v538 = vadd.f32 %v499, %v520
  %v539 = vadd.f32 %v500, %v520
  %v540 = vadd.f32 %v501, %v520
  %v541 = vadd.f32 %v502, %v520
  %v542 = vadd.f32 %v503, %v520
  %v543 = vadd.f32 %v504, %v520
  %v544 = vadd.f32 %v505, %v520
  %v545 = vadd.f32 %v506, %v520
  %v546 = vadd.f32 %v507, %v520
  %v547 = vadd.f32 %v508, %v520
  %v548 = vadd.f32 %v509, %v520
  %v549 = vadd.f32 %v510, %v520
  %v550 = vadd.f32 %v511, %v520
  %v551 = vadd.f32 %v512, %v520
  %v552 = vadd.f32 %v513, %v520
  %v553 = vadd.f32 %v514, %v520
  %v554 = vmax.f32 %v522, 0.0
  %v555 = vmax.f32 %v523, 0.0
  %v556 = vmax.f32 %v524, 0.0
  %v557 = vmax.f32 %v525, 0.0
  %v558 = vmax.f32 %v526, 0.0
  %v559 = vmax.f32 %v527, 0.0
  %v560 = vmax.f32 %v528, 0.0
  %v561 = vmax.f32 %v529, 0.0
  %v562 = vmax.f32 %v530, 0.0
  %v563 = vmax.f32 %v531, 0.0
  %v564 = vmax.f32 %v532, 0.0
  %v565 = vmax.f32 %v533, 0.0
  %v566 = vmax.f32 %v534, 0.0
  %v567 = vmax.f32 %v535, 0.0
  %v568 = vmax.f32 %v536, 0.0
  %v569 = vmax.f32 %v537, 0.0
  %v570 = vmax.f32 %v538, 0.0
  %v571 = vmax.f32 %v539, 0.0
  %v572 = vmax.f32 %v540, 0.0
  %v573 = vmax.f32 %v541, 0.0
  %v574 = vmax.f32 %v542, 0.0
  %v575 = vmax.f32 %v543, 0.0
  %v576 = vmax.f32 %v544, 0.0
  %v577 = vmax.f32 %v545, 0.0
  %v578 = vmax.f32 %v546, 0.0
  %v579 = vmax.f32 %v547, 0.0
  %v580 = vmax.f32 %v548, 0.0
  %v581 = vmax.f32 %v549, 0.0
  %v582 = vmax.f32 %v550, 0.0
  %v583 = vmax.f32 %v551, 0.0
  %v584 = vmax.f32 %v552, 0.0
  %v585 = vmax.f32 %v553, 0.0
  %v586 = vpack.c.bf16 %v555, %v554
  %v587 = vpack.c.bf16 %v557, %v556
  %v588 = vpack.c.bf16 %v559, %v558
  %v589 = vpack.c.bf16 %v561, %v560
  %v590 = vpack.c.bf16 %v563, %v562
  %v591 = vpack.c.bf16 %v565, %v564
  %v592 = vpack.c.bf16 %v567, %v566
  %v593 = vpack.c.bf16 %v569, %v568
  %v594 = vpack.c.bf16 %v571, %v570
  %v595 = vpack.c.bf16 %v573, %v572
  %v596 = vpack.c.bf16 %v575, %v574
  %v597 = vpack.c.bf16 %v577, %v576
  %v598 = vpack.c.bf16 %v579, %v578
  %v599 = vpack.c.bf16 %v581, %v580
  %v600 = vpack.c.bf16 %v583, %v582
  %v601 = vpack.c.bf16 %v585, %v584
  %v618 = vunpack.c.l.b16 %v586
  %v619 = vunpack.c.h.b16 %v586
  %v620 = vunpack.c.l.b16 %v587
  %v621 = vunpack.c.h.b16 %v587
  %v622 = vunpack.c.l.b16 %v588
  %v623 = vunpack.c.h.b16 %v588
  %v624 = vunpack.c.l.b16 %v589
  %v625 = vunpack.c.h.b16 %v589
  %v626 = vunpack.c.l.b16 %v590
  %v627 = vunpack.c.h.b16 %v590
  %v628 = vunpack.c.l.b16 %v591
  %v629 = vunpack.c.h.b16 %v591
  %v630 = vunpack.c.l.b16 %v592
  %v631 = vunpack.c.h.b16 %v592
  %v632 = vunpack.c.l.b16 %v593
  %v633 = vunpack.c.h.b16 %v593
  %v634 = vunpack.c.l.b16 %v594
  %v635 = vunpack.c.h.b16 %v594
  %v636 = vunpack.c.l.b16 %v595
  %v637 = vunpack.c.h.b16 %v595
  %v638 = vunpack.c.l.b16 %v596
  %v639 = vunpack.c.h.b16 %v596
  %v640 = vunpack.c.l.b16 %v597
  %v641 = vunpack.c.h.b16 %v597
  %v642 = vunpack.c.l.b16 %v598
  %v643 = vunpack.c.h.b16 %v598
  %v644 = vunpack.c.l.b16 %v599
  %v645 = vunpack.c.h.b16 %v599
  %v646 = vunpack.c.l.b16 %v600
  %v647 = vunpack.c.h.b16 %v600
  %v648 = vunpack.c.l.b16 %v601
  %v649 = vunpack.c.h.b16 %v601
  %v650 = vpack.c.b16 %v618, %v618
  %v651 = vpack.c.b16 %v619, %v619
  %v652 = vpack.c.b16 %v620, %v620
  %v653 = vpack.c.b16 %v621, %v621
  %v654 = vpack.c.b16 %v622, %v622
  %v655 = vpack.c.b16 %v623, %v623
  %v656 = vpack.c.b16 %v624, %v624
  %v657 = vpack.c.b16 %v625, %v625
  %v658 = vpack.c.b16 %v626, %v626
  %v659 = vpack.c.b16 %v627, %v627
  %v660 = vpack.c.b16 %v628, %v628
  %v661 = vpack.c.b16 %v629, %v629
  %v662 = vpack.c.b16 %v630, %v630
  %v663 = vpack.c.b16 %v631, %v631
  %v664 = vpack.c.b16 %v632, %v632
  %v665 = vpack.c.b16 %v633, %v633
  %v666 = vpack.c.b16 %v634, %v634
  %v667 = vpack.c.b16 %v635, %v635
  %v668 = vpack.c.b16 %v636, %v636
  %v669 = vpack.c.b16 %v637, %v637
  %v670 = vpack.c.b16 %v638, %v638
  %v671 = vpack.c.b16 %v639, %v639
  %v672 = vpack.c.b16 %v640, %v640
  %v673 = vpack.c.b16 %v641, %v641
  %v674 = vpack.c.b16 %v642, %v642
  %v675 = vpack.c.b16 %v643, %v643
  %v676 = vpack.c.b16 %v644, %v644
  %v677 = vpack.c.b16 %v645, %v645
  %v678 = vpack.c.b16 %v646, %v646
  %v679 = vpack.c.b16 %v647, %v647
  %v680 = vpack.c.b16 %v648, %v648
  %v681 = vpack.c.b16 %v649, %v649
  %vm714 = vcmask 125952
  %715 = vst.msk [vmem:[%s4] sm:$0xf] %vm714, %v650
  %716 = vst.msk [vmem:[%s4 + $0x4] sm:$0xf] %vm714, %v651
  %717 = vst.msk [vmem:[%s4 + $0x8] sm:$0xf] %vm714, %v652
  %718 = vst.msk [vmem:[%s4 + $0xc] sm:$0xf] %vm714, %v653
  %719 = vst.msk [vmem:[%s4 + $0x10] sm:$0xf] %vm714, %v654
  %720 = vst.msk [vmem:[%s4 + $0x14] sm:$0xf] %vm714, %v655
  %721 = vst.msk [vmem:[%s4 + $0x18] sm:$0xf] %vm714, %v656
  %722 = vst.msk [vmem:[%s4 + $0x1c] sm:$0xf] %vm714, %v657
  %723 = vst.msk [vmem:[%s4 + $0x20] sm:$0xf] %vm714, %v658
  %724 = vst.msk [vmem:[%s4 + $0x24] sm:$0xf] %vm714, %v659
  %725 = vst.msk [vmem:[%s4 + $0x28] sm:$0xf] %vm714, %v660
  %726 = vst.msk [vmem:[%s4 + $0x2c] sm:$0xf] %vm714, %v661
  %727 = vst.msk [vmem:[%s4 + $0x30] sm:$0xf] %vm714, %v662
  %728 = vst.msk [vmem:[%s4 + $0x34] sm:$0xf] %vm714, %v663
  %729 = vst.msk [vmem:[%s4 + $0x38] sm:$0xf] %vm714, %v664
  %730 = vst.msk [vmem:[%s4 + $0x3c] sm:$0xf] %vm714, %v665
  %731 = vst.msk [vmem:[%s4 + $0x40] sm:$0xf] %vm714, %v666
  %732 = vst.msk [vmem:[%s4 + $0x44] sm:$0xf] %vm714, %v667
  %733 = vst.msk [vmem:[%s4 + $0x48] sm:$0xf] %vm714, %v668
  %734 = vst.msk [vmem:[%s4 + $0x4c] sm:$0xf] %vm714, %v669
  %735 = vst.msk [vmem:[%s4 + $0x50] sm:$0xf] %vm714, %v670
  %736 = vst.msk [vmem:[%s4 + $0x54] sm:$0xf] %vm714, %v671
  %737 = vst.msk [vmem:[%s4 + $0x58] sm:$0xf] %vm714, %v672
  %738 = vst.msk [vmem:[%s4 + $0x5c] sm:$0xf] %vm714, %v673
  %739 = vst.msk [vmem:[%s4 + $0x60] sm:$0xf] %vm714, %v674
  %740 = vst.msk [vmem:[%s4 + $0x64] sm:$0xf] %vm714, %v675
  %741 = vst.msk [vmem:[%s4 + $0x68] sm:$0xf] %vm714, %v676
  %742 = vst.msk [vmem:[%s4 + $0x6c] sm:$0xf] %vm714, %v677
  %743 = vst.msk [vmem:[%s4 + $0x70] sm:$0xf] %vm714, %v678
  %744 = vst.msk [vmem:[%s4 + $0x74] sm:$0xf] %vm714, %v679
  %745 = vst.msk [vmem:[%s4 + $0x78] sm:$0xf] %vm714, %v680
  %746 = vst.msk [vmem:[%s4 + $0x7c] sm:$0xf] %vm714, %v681
  // Predicated region
  $region18: #{_lambda_.25} parent=0 // pred_check
    _
  $region19: #{_lambda_.25} parent=0 // pred_check_branch
    %748 = sbr.rel (0) target = $region21
  $region20: #{_lambda_.25} parent=0 // pred_region
    _
  $region21: #{_lambda_.25} parent=0 // pred_fallthru
    _
  // Predicated region
  $region22: #{_lambda_.25} parent=0 // pred_check
    _
  $region23: #{_lambda_.25} parent=0 // pred_check_branch
    %750 = sbr.rel (0) target = $region25
  $region24: #{_lambda_.25} parent=0 // pred_region
    _
  $region25: #{_lambda_.25} parent=0 // pred_fallthru
    _

// kernel: _lambda_.28
$region0: #{_lambda_.28}
  #allocation0 [shape = 'u32[]', space=smem, size = 0x4, offset = 0x4, fixed_abs, tag = 'smem constant byte address 0x4 - core index']
  #allocation1 [shape = 'u32[144,128]{1,0:T(1,128)}', space=vmem, size = 0x12000, scoped, tag = 'internal scratch']
  %s0 = inlined_call_operand.vmem [shape: bf16[64,144], index: 0, kind: input, shape index: {}]
  %s1 = inlined_call_operand.vmem [shape: bf16[144,32], index: 1, kind: input, shape index: {}]
  %s2 = inlined_call_operand.vmem [shape: f32[1,32], index: 2, kind: input, shape index: {}]
  %s3 = inlined_call_operand.vmem [shape: f32[1,32], index: 3, kind: input, shape index: {}]
  %s4 = inlined_call_operand.vmem [shape: bf16[64,32], index: 4, kind: output, shape index: {}]
  %s5 = sld [smem:[#allocation0]]
  $region26: #{_lambda_.28} parent=0
    _
  %s7 = ssub.s32 1, %s5
  %s8 = scalar_select 0, %s7, %s5
  // Predicated region
  $region2: #{_lambda_.28} parent=0 // pred_check
    _
  $region3: #{_lambda_.28} parent=0 // pred_check_branch
    %10 = sbr.rel (0) target = $region5
  $region4: #{_lambda_.28} parent=0 // pred_region
    _
  $region5: #{_lambda_.28} parent=0 // pred_fallthru
    _
  // Predicated region
  $region6: #{_lambda_.28} parent=0 // pred_check
    _
  $region7: #{_lambda_.28} parent=0 // pred_check_branch
    %12 = sbr.rel (0) target = $region9
  $region8: #{_lambda_.28} parent=0 // pred_region
    _
  $region9: #{_lambda_.28} parent=0 // pred_fallthru
    _
  // Predicated region
  $region10: #{_lambda_.28} parent=0 // pred_check
    _
  $region11: #{_lambda_.28} parent=0 // pred_check_branch
    %14 = sbr.rel (0) target = $region13
  $region12: #{_lambda_.28} parent=0 // pred_region
    _
  $region13: #{_lambda_.28} parent=0 // pred_fallthru
    _
  // Predicated region
  $region14: #{_lambda_.28} parent=0 // pred_check
    _
  $region15: #{_lambda_.28} parent=0 // pred_check_branch
    %16 = sbr.rel (0) target = $region17
  $region16: #{_lambda_.28} parent=0 // pred_region
    _
  $region17: #{_lambda_.28} parent=0 // pred_fallthru
    _
  %v18 = vld [vmem:[%s0] sm:$0xff]
  %v19 = vld [vmem:[%s0 + $0x8] sm:$0xff]
  %v20 = vld [vmem:[%s0 + $0x10] sm:$0xff]
  %v21 = vld [vmem:[%s0 + $0x18] sm:$0xff]
  %v22 = vld [vmem:[%s0 + $0x20] sm:$0xff]
  %v23 = vld [vmem:[%s0 + $0x28] sm:$0xff]
  %v24 = vld [vmem:[%s0 + $0x30] sm:$0xff]
  %v25 = vld [vmem:[%s0 + $0x38] sm:$0xff]
  %v26 = vld [vmem:[%s1] sm:$0xf]
  %v27 = vld [vmem:[%s1 + $0x4] sm:$0xf]
  %v28 = vld [vmem:[%s1 + $0x8] sm:$0xf]
  %v29 = vld [vmem:[%s1 + $0xc] sm:$0xf]
  %v30 = vld [vmem:[%s1 + $0x10] sm:$0xf]
  %v31 = vld [vmem:[%s1 + $0x14] sm:$0xf]
  %v32 = vld [vmem:[%s1 + $0x18] sm:$0xf]
  %v33 = vld [vmem:[%s1 + $0x1c] sm:$0xf]
  %v34 = vld [vmem:[%s1 + $0x20] sm:$0xf]
  %v35 = vld [vmem:[%s1 + $0x24] sm:$0xf]
  %v36 = vld [vmem:[%s1 + $0x28] sm:$0xf]
  %v37 = vld [vmem:[%s1 + $0x2c] sm:$0xf]
  %v38 = vld [vmem:[%s1 + $0x30] sm:$0xf]
  %v39 = vld [vmem:[%s1 + $0x34] sm:$0xf]
  %v40 = vld [vmem:[%s1 + $0x38] sm:$0xf]
  %v41 = vld [vmem:[%s1 + $0x3c] sm:$0xf]
  %v42 = vld [vmem:[%s1 + $0x40] sm:$0xf]
  %v43 = vld [vmem:[%s1 + $0x44] sm:$0xf]
  %v52 = vunpack.c.l.b16 %v18
  %v53 = vunpack.c.h.b16 %v18
  %v54 = vunpack.c.l.b16 %v19
  %v55 = vunpack.c.h.b16 %v19
  %v56 = vunpack.c.l.b16 %v20
  %v57 = vunpack.c.h.b16 %v20
  %v58 = vunpack.c.l.b16 %v21
  %v59 = vunpack.c.h.b16 %v21
  %v60 = vunpack.c.l.b16 %v22
  %v61 = vunpack.c.h.b16 %v22
  %v62 = vunpack.c.l.b16 %v23
  %v63 = vunpack.c.h.b16 %v23
  %v64 = vunpack.c.l.b16 %v24
  %v65 = vunpack.c.h.b16 %v24
  %v66 = vunpack.c.l.b16 %v25
  %v67 = vunpack.c.h.b16 %v25
  %v68 = vpack.c.b16 %v54, %v52
  %v69 = vpack.c.b16 %v55, %v53
  %v70 = vpack.c.b16 %v58, %v56
  %v71 = vpack.c.b16 %v59, %v57
  %v72 = vpack.c.b16 %v62, %v60
  %v73 = vpack.c.b16 %v63, %v61
  %v74 = vpack.c.b16 %v66, %v64
  %v75 = vpack.c.b16 %v67, %v65
  %v98 = vunpack.c.l.b16 %v26
  %v99 = vunpack.c.l.b16 %v27
  %v100 = vunpack.c.l.b16 %v28
  %v101 = vunpack.c.l.b16 %v29
  %v102 = vunpack.c.l.b16 %v30
  %v103 = vunpack.c.l.b16 %v31
  %v104 = vunpack.c.l.b16 %v32
  %v105 = vunpack.c.l.b16 %v33
  %v106 = vunpack.c.l.b16 %v34
  %v107 = vunpack.c.l.b16 %v35
  %v108 = vunpack.c.l.b16 %v36
  %v109 = vunpack.c.l.b16 %v37
  %v110 = vunpack.c.l.b16 %v38
  %v111 = vunpack.c.l.b16 %v39
  %v112 = vunpack.c.l.b16 %v40
  %v113 = vunpack.c.l.b16 %v41
  %v114 = vunpack.c.l.b16 %v42
  %v115 = vunpack.c.l.b16 %v43
  %v116 = vpack.c.b16 %v99, %v98
  %v117 = vpack.c.b16 %v101, %v100
  %v118 = vpack.c.b16 %v103, %v102
  %v119 = vpack.c.b16 %v105, %v104
  %v120 = vpack.c.b16 %v107, %v106
  %v121 = vpack.c.b16 %v109, %v108
  %v122 = vpack.c.b16 %v111, %v110
  %v123 = vpack.c.b16 %v113, %v112
  %v124 = vpack.c.b16 %v115, %v114
  %vm134 = vcmask 130048
  %v136 = vsel %vm134, %v69, 0
  %v139 = vsel %vm134, %v71, 0
  %v142 = vsel %vm134, %v73, 0
  %v145 = vsel %vm134, %v75, 0
  %147 = vmatprep.subr.bf16.mxu0 0
  %148 = vmatpush1.bf16.msra.mxu0 %v116
  %149 = vmatprep.subr.bf16.mxu0 0
  %150 = vmatpush1.bf16.msra.mxu0 %v117
  %151 = vmatprep.subr.bf16.mxu0 0
  %152 = vmatpush1.bf16.msra.mxu0 %v118
  %153 = vmatprep.subr.bf16.mxu0 0
  %154 = vmatpush1.bf16.msra.mxu0 %v119
  %155 = vmatprep.subr.bf16.mxu0 0
  %156 = vmatpush1.bf16.msra.mxu0 %v120
  %157 = vmatprep.subr.bf16.mxu0 0
  %158 = vmatpush1.bf16.msra.mxu0 %v121
  %159 = vmatprep.subr.bf16.mxu0 0
  %160 = vmatpush1.bf16.msra.mxu0 %v122
  %161 = vmatprep.subr.bf16.mxu0 0
  %162 = vmatpush1.bf16.msra.mxu0 %v123
  %163 = vmatprep.subr.bf16.mxu0 0
  %164 = vmatpush1.bf16.msra.mxu0 %v124
  %165 = vmatprep.subr.bf16.mxu0 0
  %166 = vmatpush1.bf16.msra.mxu0 0
  %167 = vmatprep.subr.bf16.mxu0 0
  %168 = vmatpush1.bf16.msra.mxu0 0
  %169 = vmatprep.subr.bf16.mxu0 0
  %170 = vmatpush1.bf16.msra.mxu0 0
  %171 = vmatprep.subr.bf16.mxu0 0
  %172 = vmatpush1.bf16.msra.mxu0 0
  %173 = vmatprep.subr.bf16.mxu0 0
  %174 = vmatpush1.bf16.msra.mxu0 0
  %175 = vmatprep.subr.bf16.mxu0 0
  %176 = vmatpush1.bf16.msra.mxu0 0
  %177 = vmatprep.subr.bf16.mxu0 0
  %178 = vmatpush1.bf16.msra.mxu0 0
  %179 = vmatprep.mubr.bf16.mxu0 %v136
  %180 = vmatmul.mubr.bf16.gmra.mrb[0].mxu0 %v68
  %v181 = vpop.f32.mrb[0].mxu0
  %v182 = vadd.f32 0.0, %v181
  %v183 = vpop.f32.mrb[0].mxu0
  %v184 = vpop.f32.mrb[0].mxu0
  %v185 = vadd.f32 0.0, %v184
  %v186 = vpop.f32.mrb[0].mxu0
  %187 = vmatprep.mubr.bf16.mxu0 %v139
  %188 = vmatmul.mubr.bf16.gmra.mrb[0].mxu0 %v70
  %v189 = vpop.f32.mrb[0].mxu0
  %v190 = vadd.f32 0.0, %v189
  %v191 = vpop.f32.mrb[0].mxu0
  %v192 = vpop.f32.mrb[0].mxu0
  %v193 = vadd.f32 0.0, %v192
  %v194 = vpop.f32.mrb[0].mxu0
  %195 = vmatprep.mubr.bf16.mxu0 %v142
  %196 = vmatmul.mubr.bf16.gmra.mrb[0].mxu0 %v72
  %v197 = vpop.f32.mrb[0].mxu0
  %v198 = vadd.f32 0.0, %v197
  %v199 = vpop.f32.mrb[0].mxu0
  %v200 = vpop.f32.mrb[0].mxu0
  %v201 = vadd.f32 0.0, %v200
  %v202 = vpop.f32.mrb[0].mxu0
  %203 = vmatprep.mubr.bf16.mxu0 %v145
  %204 = vmatmul.mubr.bf16.gmra.mrb[0].mxu0 %v74
  %v205 = vpop.f32.mrb[0].mxu0
  %v206 = vadd.f32 0.0, %v205
  %v207 = vpop.f32.mrb[0].mxu0
  %v208 = vpop.f32.mrb[0].mxu0
  %v209 = vadd.f32 0.0, %v208
  %v210 = vpop.f32.mrb[0].mxu0
  %211 = vdwg.mxu0
  %v212 = vld [vmem:[%s2] sm:$0x1]
  %v214 = vlaneseq
  %v215 = vshrl.u32 %v214, 7
  %v216 = vsub.s32 0, %v215
  %v217 = vrot.slane %v212, %v216
  %v219 = vmul.f32 %v182, %v217
  %v220 = vmul.f32 %v185, %v217
  %v221 = vmul.f32 %v190, %v217
  %v222 = vmul.f32 %v193, %v217
  %v223 = vmul.f32 %v198, %v217
  %v224 = vmul.f32 %v201, %v217
  %v225 = vmul.f32 %v206, %v217
  %v226 = vmul.f32 %v209, %v217
  %v227 = vld [vmem:[%s3] sm:$0x1]
  %v229 = vlaneseq
  %v230 = vshrl.u32 %v229, 7
  %v231 = vsub.s32 0, %v230
  %v232 = vrot.slane %v227, %v231
  %v234 = vadd.f32 %v219, %v232
  %v235 = vadd.f32 %v220, %v232
  %v236 = vadd.f32 %v221, %v232
  %v237 = vadd.f32 %v222, %v232
  %v238 = vadd.f32 %v223, %v232
  %v239 = vadd.f32 %v224, %v232
  %v240 = vadd.f32 %v225, %v232
  %v241 = vadd.f32 %v226, %v232
  %v242 = vmax.f32 %v234, 0.0
  %v243 = vmax.f32 %v235, 0.0
  %v244 = vmax.f32 %v236, 0.0
  %v245 = vmax.f32 %v237, 0.0
  %v246 = vmax.f32 %v238, 0.0
  %v247 = vmax.f32 %v239, 0.0
  %v248 = vmax.f32 %v240, 0.0
  %v249 = vmax.f32 %v241, 0.0
  %v250 = vpack.c.bf16 %v243, %v242
  %v251 = vpack.c.bf16 %v245, %v244
  %v252 = vpack.c.bf16 %v247, %v246
  %v253 = vpack.c.bf16 %v249, %v248
  %v258 = vunpack.c.l.b16 %v250
  %v259 = vunpack.c.h.b16 %v250
  %v260 = vunpack.c.l.b16 %v251
  %v261 = vunpack.c.h.b16 %v251
  %v262 = vunpack.c.l.b16 %v252
  %v263 = vunpack.c.h.b16 %v252
  %v264 = vunpack.c.l.b16 %v253
  %v265 = vunpack.c.h.b16 %v253
  %v266 = vpack.c.b16 %v258, %v258
  %v267 = vpack.c.b16 %v259, %v259
  %v268 = vpack.c.b16 %v260, %v260
  %v269 = vpack.c.b16 %v261, %v261
  %v270 = vpack.c.b16 %v262, %v262
  %v271 = vpack.c.b16 %v263, %v263
  %v272 = vpack.c.b16 %v264, %v264
  %v273 = vpack.c.b16 %v265, %v265
  %vm282 = vcmask 257024
  %283 = vst.msk [vmem:[%s4] sm:$0xf] %vm282, %v266
  %284 = vst.msk [vmem:[%s4 + $0x4] sm:$0xf] %vm282, %v267
  %285 = vst.msk [vmem:[%s4 + $0x8] sm:$0xf] %vm282, %v268
  %286 = vst.msk [vmem:[%s4 + $0xc] sm:$0xf] %vm282, %v269
  %287 = vst.msk [vmem:[%s4 + $0x10] sm:$0xf] %vm282, %v270
  %288 = vst.msk [vmem:[%s4 + $0x14] sm:$0xf] %vm282, %v271
  %289 = vst.msk [vmem:[%s4 + $0x18] sm:$0xf] %vm282, %v272
  %290 = vst.msk [vmem:[%s4 + $0x1c] sm:$0xf] %vm282, %v273
  // Predicated region
  $region18: #{_lambda_.28} parent=0 // pred_check
    _
  $region19: #{_lambda_.28} parent=0 // pred_check_branch
    %292 = sbr.rel (0) target = $region21
  $region20: #{_lambda_.28} parent=0 // pred_region
    _
  $region21: #{_lambda_.28} parent=0 // pred_fallthru
    _
  // Predicated region
  $region22: #{_lambda_.28} parent=0 // pred_check
    _
  $region23: #{_lambda_.28} parent=0 // pred_check_branch
    %294 = sbr.rel (0) target = $region25
  $region24: #{_lambda_.28} parent=0 // pred_region
    _
  $region25: #{_lambda_.28} parent=0 // pred_fallthru
    _

// kernel: _lambda_.27
$region0: #{_lambda_.27}
  #allocation0 [shape = 'u32[]', space=smem, size = 0x4, offset = 0x4, fixed_abs, tag = 'smem constant byte address 0x4 - core index']
  #allocation1 [shape = 'u32[144,128]{1,0:T(1,128)}', space=vmem, size = 0x12000, scoped, tag = 'internal scratch']
  %s0 = inlined_call_operand.vmem [shape: bf16[64,16], index: 0, kind: input, shape index: {}]
  %s1 = inlined_call_operand.vmem [shape: bf16[16,32], index: 1, kind: input, shape index: {}]
  %s2 = inlined_call_operand.vmem [shape: f32[1,32], index: 2, kind: input, shape index: {}]
  %s3 = inlined_call_operand.vmem [shape: f32[1,32], index: 3, kind: input, shape index: {}]
  %s4 = inlined_call_operand.vmem [shape: bf16[64,32], index: 4, kind: output, shape index: {}]
  %s5 = sld [smem:[#allocation0]]
  $region26: #{_lambda_.27} parent=0
    _
  %s7 = ssub.s32 1, %s5
  %s8 = scalar_select 0, %s7, %s5
  // Predicated region
  $region2: #{_lambda_.27} parent=0 // pred_check
    _
  $region3: #{_lambda_.27} parent=0 // pred_check_branch
    %10 = sbr.rel (0) target = $region5
  $region4: #{_lambda_.27} parent=0 // pred_region
    _
  $region5: #{_lambda_.27} parent=0 // pred_fallthru
    _
  // Predicated region
  $region6: #{_lambda_.27} parent=0 // pred_check
    _
  $region7: #{_lambda_.27} parent=0 // pred_check_branch
    %12 = sbr.rel (0) target = $region9
  $region8: #{_lambda_.27} parent=0 // pred_region
    _
  $region9: #{_lambda_.27} parent=0 // pred_fallthru
    _
  // Predicated region
  $region10: #{_lambda_.27} parent=0 // pred_check
    _
  $region11: #{_lambda_.27} parent=0 // pred_check_branch
    %14 = sbr.rel (0) target = $region13
  $region12: #{_lambda_.27} parent=0 // pred_region
    _
  $region13: #{_lambda_.27} parent=0 // pred_fallthru
    _
  // Predicated region
  $region14: #{_lambda_.27} parent=0 // pred_check
    _
  $region15: #{_lambda_.27} parent=0 // pred_check_branch
    %16 = sbr.rel (0) target = $region17
  $region16: #{_lambda_.27} parent=0 // pred_region
    _
  $region17: #{_lambda_.27} parent=0 // pred_fallthru
    _
  %v18 = vld [vmem:[%s0] sm:$0xf]
  %v19 = vld [vmem:[%s0 + $0x4] sm:$0xf]
  %v20 = vld [vmem:[%s0 + $0x8] sm:$0xf]
  %v21 = vld [vmem:[%s0 + $0xc] sm:$0xf]
  %v22 = vld [vmem:[%s0 + $0x10] sm:$0xf]
  %v23 = vld [vmem:[%s0 + $0x14] sm:$0xf]
  %v24 = vld [vmem:[%s0 + $0x18] sm:$0xf]
  %v25 = vld [vmem:[%s0 + $0x1c] sm:$0xf]
  %v26 = vld [vmem:[%s1] sm:$0xf]
  %v27 = vld [vmem:[%s1 + $0x4] sm:$0xf]
  %v36 = vunpack.c.l.b16 %v18
  %v37 = vunpack.c.l.b16 %v19
  %v38 = vunpack.c.l.b16 %v20
  %v39 = vunpack.c.l.b16 %v21
  %v40 = vunpack.c.l.b16 %v22
  %v41 = vunpack.c.l.b16 %v23
  %v42 = vunpack.c.l.b16 %v24
  %v43 = vunpack.c.l.b16 %v25
  %v44 = vpack.c.b16 %v37, %v36
  %v45 = vpack.c.b16 %v39, %v38
  %v46 = vpack.c.b16 %v41, %v40
  %v47 = vpack.c.b16 %v43, %v42
  %v50 = vunpack.c.l.b16 %v26
  %v51 = vunpack.c.l.b16 %v27
  %v52 = vpack.c.b16 %v51, %v50
  %vm54 = vcmask 130048
  %v56 = vsel %vm54, %v44, 0
  %v59 = vsel %vm54, %v45, 0
  %v62 = vsel %vm54, %v46, 0
  %v65 = vsel %vm54, %v47, 0
  %67 = vmatprep.subr.bf16.mxu0 0
  %68 = vmatpush1.bf16.msra.mxu0 %v52
  %69 = vmatprep.subr.bf16.mxu0 0
  %70 = vmatpush1.bf16.msra.mxu0 0
  %71 = vmatprep.subr.bf16.mxu0 0
  %72 = vmatpush1.bf16.msra.mxu0 0
  %73 = vmatprep.subr.bf16.mxu0 0
  %74 = vmatpush1.bf16.msra.mxu0 0
  %75 = vmatprep.subr.bf16.mxu0 0
  %76 = vmatpush1.bf16.msra.mxu0 0
  %77 = vmatprep.subr.bf16.mxu0 0
  %78 = vmatpush1.bf16.msra.mxu0 0
  %79 = vmatprep.subr.bf16.mxu0 0
  %80 = vmatpush1.bf16.msra.mxu0 0
  %81 = vmatprep.subr.bf16.mxu0 0
  %82 = vmatpush1.bf16.msra.mxu0 0
  %83 = vmatprep.subr.bf16.mxu0 0
  %84 = vmatpush1.bf16.msra.mxu0 0
  %85 = vmatprep.subr.bf16.mxu0 0
  %86 = vmatpush1.bf16.msra.mxu0 0
  %87 = vmatprep.subr.bf16.mxu0 0
  %88 = vmatpush1.bf16.msra.mxu0 0
  %89 = vmatprep.subr.bf16.mxu0 0
  %90 = vmatpush1.bf16.msra.mxu0 0
  %91 = vmatprep.subr.bf16.mxu0 0
  %92 = vmatpush1.bf16.msra.mxu0 0
  %93 = vmatprep.subr.bf16.mxu0 0
  %94 = vmatpush1.bf16.msra.mxu0 0
  %95 = vmatprep.subr.bf16.mxu0 0
  %96 = vmatpush1.bf16.msra.mxu0 0
  %97 = vmatprep.subr.bf16.mxu0 0
  %98 = vmatpush1.bf16.msra.mxu0 0
  %99 = vmatprep.mubr.bf16.mxu0 0
  %100 = vmatmul.mubr.bf16.gmra.mrb[0].mxu0 %v56
  %v101 = vpop.f32.mrb[0].mxu0
  %v102 = vadd.f32 0.0, %v101
  %v103 = vpop.f32.mrb[0].mxu0
  %v104 = vpop.f32.mrb[0].mxu0
  %v105 = vadd.f32 0.0, %v104
  %v106 = vpop.f32.mrb[0].mxu0
  %107 = vmatprep.mubr.bf16.mxu0 0
  %108 = vmatmul.mubr.bf16.gmra.mrb[0].mxu0 %v59
  %v109 = vpop.f32.mrb[0].mxu0
  %v110 = vadd.f32 0.0, %v109
  %v111 = vpop.f32.mrb[0].mxu0
  %v112 = vpop.f32.mrb[0].mxu0
  %v113 = vadd.f32 0.0, %v112
  %v114 = vpop.f32.mrb[0].mxu0
  %115 = vmatprep.mubr.bf16.mxu0 0
  %116 = vmatmul.mubr.bf16.gmra.mrb[0].mxu0 %v62
  %v117 = vpop.f32.mrb[0].mxu0
  %v118 = vadd.f32 0.0, %v117
  %v119 = vpop.f32.mrb[0].mxu0
  %v120 = vpop.f32.mrb[0].mxu0
  %v121 = vadd.f32 0.0, %v120
  %v122 = vpop.f32.mrb[0].mxu0
  %123 = vmatprep.mubr.bf16.mxu0 0
  %124 = vmatmul.mubr.bf16.gmra.mrb[0].mxu0 %v65
  %v125 = vpop.f32.mrb[0].mxu0
  %v126 = vadd.f32 0.0, %v125
  %v127 = vpop.f32.mrb[0].mxu0
  %v128 = vpop.f32.mrb[0].mxu0
  %v129 = vadd.f32 0.0, %v128
  %v130 = vpop.f32.mrb[0].mxu0
  %131 = vdwg.mxu0
  %v132 = vld [vmem:[%s2] sm:$0x1]
  %v134 = vlaneseq
  %v135 = vshrl.u32 %v134, 7
  %v136 = vsub.s32 0, %v135
  %v137 = vrot.slane %v132, %v136
  %v139 = vmul.f32 %v102, %v137
  %v140 = vmul.f32 %v105, %v137
  %v141 = vmul.f32 %v110, %v137
  %v142 = vmul.f32 %v113, %v137
  %v143 = vmul.f32 %v118, %v137
  %v144 = vmul.f32 %v121, %v137
  %v145 = vmul.f32 %v126, %v137
  %v146 = vmul.f32 %v129, %v137
  %v147 = vld [vmem:[%s3] sm:$0x1]
  %v149 = vlaneseq
  %v150 = vshrl.u32 %v149, 7
  %v151 = vsub.s32 0, %v150
  %v152 = vrot.slane %v147, %v151
  %v154 = vadd.f32 %v139, %v152
  %v155 = vadd.f32 %v140, %v152
  %v156 = vadd.f32 %v141, %v152
  %v157 = vadd.f32 %v142, %v152
  %v158 = vadd.f32 %v143, %v152
  %v159 = vadd.f32 %v144, %v152
  %v160 = vadd.f32 %v145, %v152
  %v161 = vadd.f32 %v146, %v152
  %v162 = vpack.c.bf16 %v155, %v154
  %v163 = vpack.c.bf16 %v157, %v156
  %v164 = vpack.c.bf16 %v159, %v158
  %v165 = vpack.c.bf16 %v161, %v160
  %v170 = vunpack.c.l.b16 %v162
  %v171 = vunpack.c.h.b16 %v162
  %v172 = vunpack.c.l.b16 %v163
  %v173 = vunpack.c.h.b16 %v163
  %v174 = vunpack.c.l.b16 %v164
  %v175 = vunpack.c.h.b16 %v164
  %v176 = vunpack.c.l.b16 %v165
  %v177 = vunpack.c.h.b16 %v165
  %v178 = vpack.c.b16 %v170, %v170
  %v179 = vpack.c.b16 %v171, %v171
  %v180 = vpack.c.b16 %v172, %v172
  %v181 = vpack.c.b16 %v173, %v173
  %v182 = vpack.c.b16 %v174, %v174
  %v183 = vpack.c.b16 %v175, %v175
  %v184 = vpack.c.b16 %v176, %v176
  %v185 = vpack.c.b16 %v177, %v177
  %vm194 = vcmask 257024
  %195 = vst.msk [vmem:[%s4] sm:$0xf] %vm194, %v178
  %196 = vst.msk [vmem:[%s4 + $0x4] sm:$0xf] %vm194, %v179
  %197 = vst.msk [vmem:[%s4 + $0x8] sm:$0xf] %vm194, %v180
  %198 = vst.msk [vmem:[%s4 + $0xc] sm:$0xf] %vm194, %v181
  %199 = vst.msk [vmem:[%s4 + $0x10] sm:$0xf] %vm194, %v182
  %200 = vst.msk [vmem:[%s4 + $0x14] sm:$0xf] %vm194, %v183
  %201 = vst.msk [vmem:[%s4 + $0x18] sm:$0xf] %vm194, %v184
  %202 = vst.msk [vmem:[%s4 + $0x1c] sm:$0xf] %vm194, %v185
  // Predicated region
  $region18: #{_lambda_.27} parent=0 // pred_check
    _
  $region19: #{_lambda_.27} parent=0 // pred_check_branch
    %204 = sbr.rel (0) target = $region21
  $region20: #{_lambda_.27} parent=0 // pred_region
    _
  $region21: #{_lambda_.27} parent=0 // pred_fallthru
    _
  // Predicated region
  $region22: #{_lambda_.27} parent=0 // pred_check
    _
  $region23: #{_lambda_.27} parent=0 // pred_check_branch
    %206 = sbr.rel (0) target = $region25
  $region24: #{_lambda_.27} parent=0 // pred_region
    _
  $region25: #{_lambda_.27} parent=0 // pred_fallthru
    _

// kernel: _lambda_.29
$region0: #{_lambda_.29}
  #allocation0 [shape = 'u32[]', space=smem, size = 0x4, offset = 0x4, fixed_abs, tag = 'smem constant byte address 0x4 - core index']
  #allocation1 [shape = 'u32[144,128]{1,0:T(1,128)}', space=vmem, size = 0x12000, scoped, tag = 'internal scratch']
  %s0 = inlined_call_operand.vmem [shape: bf16[64,288], index: 0, kind: input, shape index: {}]
  %s1 = inlined_call_operand.vmem [shape: bf16[288,32], index: 1, kind: input, shape index: {}]
  %s2 = inlined_call_operand.vmem [shape: f32[1,32], index: 2, kind: input, shape index: {}]
  %s3 = inlined_call_operand.vmem [shape: f32[1,32], index: 3, kind: input, shape index: {}]
  %s4 = inlined_call_operand.vmem [shape: bf16[64,32], index: 4, kind: input, shape index: {}]
  %s5 = inlined_call_operand.vmem [shape: bf16[64,32], index: 5, kind: output, shape index: {}]
  %s6 = sld [smem:[#allocation0]]
  $region30: #{_lambda_.29} parent=0
    _
  %s8 = ssub.s32 1, %s6
  %s9 = scalar_select 0, %s8, %s6
  // Predicated region
  $region2: #{_lambda_.29} parent=0 // pred_check
    _
  $region3: #{_lambda_.29} parent=0 // pred_check_branch
    %11 = sbr.rel (0) target = $region5
  $region4: #{_lambda_.29} parent=0 // pred_region
    _
  $region5: #{_lambda_.29} parent=0 // pred_fallthru
    _
  // Predicated region
  $region6: #{_lambda_.29} parent=0 // pred_check
    _
  $region7: #{_lambda_.29} parent=0 // pred_check_branch
    %13 = sbr.rel (0) target = $region9
  $region8: #{_lambda_.29} parent=0 // pred_region
    _
  $region9: #{_lambda_.29} parent=0 // pred_fallthru
    _
  // Predicated region
  $region10: #{_lambda_.29} parent=0 // pred_check
    _
  $region11: #{_lambda_.29} parent=0 // pred_check_branch
    %15 = sbr.rel (0) target = $region13
  $region12: #{_lambda_.29} parent=0 // pred_region
    _
  $region13: #{_lambda_.29} parent=0 // pred_fallthru
    _
  // Predicated region
  $region14: #{_lambda_.29} parent=0 // pred_check
    _
  $region15: #{_lambda_.29} parent=0 // pred_check_branch
    %17 = sbr.rel (0) target = $region17
  $region16: #{_lambda_.29} parent=0 // pred_region
    _
  $region17: #{_lambda_.29} parent=0 // pred_fallthru
    _
  // Predicated region
  $region18: #{_lambda_.29} parent=0 // pred_check
    _
  $region19: #{_lambda_.29} parent=0 // pred_check_branch
    %19 = sbr.rel (0) target = $region21
  $region20: #{_lambda_.29} parent=0 // pred_region
    _
  $region21: #{_lambda_.29} parent=0 // pred_fallthru
    _
  %v21 = vld [vmem:[%s0] sm:$0xff]
  %v22 = vld [vmem:[%s0 + $0x8] sm:$0xf]
  %v23 = vld [vmem:[%s0 + $0xc] sm:$0xff]
  %v24 = vld [vmem:[%s0 + $0x14] sm:$0xf]
  %v25 = vld [vmem:[%s0 + $0x18] sm:$0xff]
  %v26 = vld [vmem:[%s0 + $0x20] sm:$0xf]
  %v27 = vld [vmem:[%s0 + $0x24] sm:$0xff]
  %v28 = vld [vmem:[%s0 + $0x2c] sm:$0xf]
  %v29 = vld [vmem:[%s0 + $0x30] sm:$0xff]
  %v30 = vld [vmem:[%s0 + $0x38] sm:$0xf]
  %v31 = vld [vmem:[%s0 + $0x3c] sm:$0xff]
  %v32 = vld [vmem:[%s0 + $0x44] sm:$0xf]
  %v33 = vld [vmem:[%s0 + $0x48] sm:$0xff]
  %v34 = vld [vmem:[%s0 + $0x50] sm:$0xf]
  %v35 = vld [vmem:[%s0 + $0x54] sm:$0xff]
  %v36 = vld [vmem:[%s0 + $0x5c] sm:$0xf]
  %v37 = vld [vmem:[%s1] sm:$0xf]
  %v38 = vld [vmem:[%s1 + $0x4] sm:$0xf]
  %v39 = vld [vmem:[%s1 + $0x8] sm:$0xf]
  %v40 = vld [vmem:[%s1 + $0xc] sm:$0xf]
  %v41 = vld [vmem:[%s1 + $0x10] sm:$0xf]
  %v42 = vld [vmem:[%s1 + $0x14] sm:$0xf]
  %v43 = vld [vmem:[%s1 + $0x18] sm:$0xf]
  %v44 = vld [vmem:[%s1 + $0x1c] sm:$0xf]
  %v45 = vld [vmem:[%s1 + $0x20] sm:$0xf]
  %v46 = vld [vmem:[%s1 + $0x24] sm:$0xf]
  %v47 = vld [vmem:[%s1 + $0x28] sm:$0xf]
  %v48 = vld [vmem:[%s1 + $0x2c] sm:$0xf]
  %v49 = vld [vmem:[%s1 + $0x30] sm:$0xf]
  %v50 = vld [vmem:[%s1 + $0x34] sm:$0xf]
  %v51 = vld [vmem:[%s1 + $0x38] sm:$0xf]
  %v52 = vld [vmem:[%s1 + $0x3c] sm:$0xf]
  %v53 = vld [vmem:[%s1 + $0x40] sm:$0xf]
  %v54 = vld [vmem:[%s1 + $0x44] sm:$0xf]
  %v55 = vld [vmem:[%s1 + $0x48] sm:$0xf]
  %v56 = vld [vmem:[%s1 + $0x4c] sm:$0xf]
  %v57 = vld [vmem:[%s1 + $0x50] sm:$0xf]
  %v58 = vld [vmem:[%s1 + $0x54] sm:$0xf]
  %v59 = vld [vmem:[%s1 + $0x58] sm:$0xf]
  %v60 = vld [vmem:[%s1 + $0x5c] sm:$0xf]
  %v61 = vld [vmem:[%s1 + $0x60] sm:$0xf]
  %v62 = vld [vmem:[%s1 + $0x64] sm:$0xf]
  %v63 = vld [vmem:[%s1 + $0x68] sm:$0xf]
  %v64 = vld [vmem:[%s1 + $0x6c] sm:$0xf]
  %v65 = vld [vmem:[%s1 + $0x70] sm:$0xf]
  %v66 = vld [vmem:[%s1 + $0x74] sm:$0xf]
  %v67 = vld [vmem:[%s1 + $0x78] sm:$0xf]
  %v68 = vld [vmem:[%s1 + $0x7c] sm:$0xf]
  %v69 = vld [vmem:[%s1 + $0x80] sm:$0xf]
  %v70 = vld [vmem:[%s1 + $0x84] sm:$0xf]
  %v71 = vld [vmem:[%s1 + $0x88] sm:$0xf]
  %v72 = vld [vmem:[%s1 + $0x8c] sm:$0xf]
  %v89 = vunpack.c.l.b16 %v21
  %v90 = vunpack.c.h.b16 %v21
  %v91 = vunpack.c.l.b16 %v22
  %v92 = vunpack.c.l.b16 %v23
  %v93 = vunpack.c.h.b16 %v23
  %v94 = vunpack.c.l.b16 %v24
  %v95 = vunpack.c.l.b16 %v25
  %v96 = vunpack.c.h.b16 %v25
  %v97 = vunpack.c.l.b16 %v26
  %v98 = vunpack.c.l.b16 %v27
  %v99 = vunpack.c.h.b16 %v27
  %v100 = vunpack.c.l.b16 %v28
  %v101 = vunpack.c.l.b16 %v29
  %v102 = vunpack.c.h.b16 %v29
  %v103 = vunpack.c.l.b16 %v30
  %v104 = vunpack.c.l.b16 %v31
  %v105 = vunpack.c.h.b16 %v31
  %v106 = vunpack.c.l.b16 %v32
  %v107 = vunpack.c.l.b16 %v33
  %v108 = vunpack.c.h.b16 %v33
  %v109 = vunpack.c.l.b16 %v34
  %v110 = vunpack.c.l.b16 %v35
  %v111 = vunpack.c.h.b16 %v35
  %v112 = vunpack.c.l.b16 %v36
  %v113 = vpack.c.b16 %v92, %v89
  %v114 = vpack.c.b16 %v93, %v90
  %v115 = vpack.c.b16 %v94, %v91
  %v116 = vpack.c.b16 %v98, %v95
  %v117 = vpack.c.b16 %v99, %v96
  %v118 = vpack.c.b16 %v100, %v97
  %v119 = vpack.c.b16 %v104, %v101
  %v120 = vpack.c.b16 %v105, %v102
  %v121 = vpack.c.b16 %v106, %v103
  %v122 = vpack.c.b16 %v110, %v107
  %v123 = vpack.c.b16 %v111, %v108
  %v124 = vpack.c.b16 %v112, %v109
  %v169 = vunpack.c.l.b16 %v37
  %v170 = vunpack.c.l.b16 %v38
  %v171 = vunpack.c.l.b16 %v39
  %v172 = vunpack.c.l.b16 %v40
  %v173 = vunpack.c.l.b16 %v41
  %v174 = vunpack.c.l.b16 %v42
  %v175 = vunpack.c.l.b16 %v43
  %v176 = vunpack.c.l.b16 %v44
  %v177 = vunpack.c.l.b16 %v45
  %v178 = vunpack.c.l.b16 %v46
  %v179 = vunpack.c.l.b16 %v47
  %v180 = vunpack.c.l.b16 %v48
  %v181 = vunpack.c.l.b16 %v49
  %v182 = vunpack.c.l.b16 %v50
  %v183 = vunpack.c.l.b16 %v51
  %v184 = vunpack.c.l.b16 %v52
  %v185 = vunpack.c.l.b16 %v53
  %v186 = vunpack.c.l.b16 %v54
  %v187 = vunpack.c.l.b16 %v55
  %v188 = vunpack.c.l.b16 %v56
  %v189 = vunpack.c.l.b16 %v57
  %v190 = vunpack.c.l.b16 %v58
  %v191 = vunpack.c.l.b16 %v59
  %v192 = vunpack.c.l.b16 %v60
  %v193 = vunpack.c.l.b16 %v61
  %v194 = vunpack.c.l.b16 %v62
  %v195 = vunpack.c.l.b16 %v63
  %v196 = vunpack.c.l.b16 %v64
  %v197 = vunpack.c.l.b16 %v65
  %v198 = vunpack.c.l.b16 %v66
  %v199 = vunpack.c.l.b16 %v67
  %v200 = vunpack.c.l.b16 %v68
  %v201 = vunpack.c.l.b16 %v69
  %v202 = vunpack.c.l.b16 %v70
  %v203 = vunpack.c.l.b16 %v71
  %v204 = vunpack.c.l.b16 %v72
  %v205 = vpack.c.b16 %v170, %v169
  %v206 = vpack.c.b16 %v172, %v171
  %v207 = vpack.c.b16 %v174, %v173
  %v208 = vpack.c.b16 %v176, %v175
  %v209 = vpack.c.b16 %v178, %v177
  %v210 = vpack.c.b16 %v180, %v179
  %v211 = vpack.c.b16 %v182, %v181
  %v212 = vpack.c.b16 %v184, %v183
  %v213 = vpack.c.b16 %v186, %v185
  %v214 = vpack.c.b16 %v188, %v187
  %v215 = vpack.c.b16 %v190, %v189
  %v216 = vpack.c.b16 %v192, %v191
  %v217 = vpack.c.b16 %v194, %v193
  %v218 = vpack.c.b16 %v196, %v195
  %v219 = vpack.c.b16 %v198, %v197
  %v220 = vpack.c.b16 %v200, %v199
  %v221 = vpack.c.b16 %v202, %v201
  %v222 = vpack.c.b16 %v204, %v203
  %vm241 = vcmask 261120
  %v243 = vsel %vm241, %v115, 0
  %v246 = vsel %vm241, %v118, 0
  %v249 = vsel %vm241, %v121, 0
  %v252 = vsel %vm241, %v124, 0
  %254 = vmatprep.subr.bf16.mxu0 0
  %255 = vmatpush1.bf16.msra.mxu0 %v205
  %256 = vmatprep.subr.bf16.mxu0 0
  %257 = vmatpush1.bf16.msra.mxu0 %v206
  %258 = vmatprep.subr.bf16.mxu0 0
  %259 = vmatpush1.bf16.msra.mxu0 %v207
  %260 = vmatprep.subr.bf16.mxu0 0
  %261 = vmatpush1.bf16.msra.mxu0 %v208
  %262 = vmatprep.subr.bf16.mxu0 0
  %263 = vmatpush1.bf16.msra.mxu0 %v209
  %264 = vmatprep.subr.bf16.mxu0 0
  %265 = vmatpush1.bf16.msra.mxu0 %v210
  %266 = vmatprep.subr.bf16.mxu0 0
  %267 = vmatpush1.bf16.msra.mxu0 %v211
  %268 = vmatprep.subr.bf16.mxu0 0
  %269 = vmatpush1.bf16.msra.mxu0 %v212
  %270 = vmatprep.subr.bf16.mxu0 0
  %271 = vmatpush1.bf16.msra.mxu0 %v213
  %272 = vmatprep.subr.bf16.mxu0 0
  %273 = vmatpush1.bf16.msra.mxu0 %v214
  %274 = vmatprep.subr.bf16.mxu0 0
  %275 = vmatpush1.bf16.msra.mxu0 %v215
  %276 = vmatprep.subr.bf16.mxu0 0
  %277 = vmatpush1.bf16.msra.mxu0 %v216
  %278 = vmatprep.subr.bf16.mxu0 0
  %279 = vmatpush1.bf16.msra.mxu0 %v217
  %280 = vmatprep.subr.bf16.mxu0 0
  %281 = vmatpush1.bf16.msra.mxu0 %v218
  %282 = vmatprep.subr.bf16.mxu0 0
  %283 = vmatpush1.bf16.msra.mxu0 %v219
  %284 = vmatprep.subr.bf16.mxu0 0
  %285 = vmatpush1.bf16.msra.mxu0 %v220
  %286 = vmatprep.mubr.bf16.mxu0 %v114
  %287 = vmatmul.mubr.bf16.gmra.mrb[0].mxu0 %v113
  %v288 = vpop.f32.mrb[0].mxu0
  %v289 = vadd.f32 0.0, %v288
  %v290 = vpop.f32.mrb[0].mxu0
  %v291 = vpop.f32.mrb[0].mxu0
  %v292 = vadd.f32 0.0, %v291
  %v293 = vpop.f32.mrb[0].mxu0
  %294 = vmatprep.mubr.bf16.mxu0 %v117
  %295 = vmatmul.mubr.bf16.gmra.mrb[0].mxu0 %v116
  %v296 = vpop.f32.mrb[0].mxu0
  %v297 = vadd.f32 0.0, %v296
  %v298 = vpop.f32.mrb[0].mxu0
  %v299 = vpop.f32.mrb[0].mxu0
  %v300 = vadd.f32 0.0, %v299
  %v301 = vpop.f32.mrb[0].mxu0
  %302 = vmatprep.mubr.bf16.mxu0 %v120
  %303 = vmatmul.mubr.bf16.gmra.mrb[0].mxu0 %v119
  %v304 = vpop.f32.mrb[0].mxu0
  %v305 = vadd.f32 0.0, %v304
  %v306 = vpop.f32.mrb[0].mxu0
  %v307 = vpop.f32.mrb[0].mxu0
  %v308 = vadd.f32 0.0, %v307
  %v309 = vpop.f32.mrb[0].mxu0
  %310 = vmatprep.mubr.bf16.mxu0 %v123
  %311 = vmatmul.mubr.bf16.gmra.mrb[0].mxu0 %v122
  %v312 = vpop.f32.mrb[0].mxu0
  %v313 = vadd.f32 0.0, %v312
  %v314 = vpop.f32.mrb[0].mxu0
  %v315 = vpop.f32.mrb[0].mxu0
  %v316 = vadd.f32 0.0, %v315
  %v317 = vpop.f32.mrb[0].mxu0
  %318 = vdwg.mxu0
  %319 = vmatprep.subr.bf16.mxu0 0
  %320 = vmatpush1.bf16.msra.mxu0 %v221
  %321 = vmatprep.subr.bf16.mxu0 0
  %322 = vmatpush1.bf16.msra.mxu0 %v222
  %323 = vmatprep.subr.bf16.mxu0 0
  %324 = vmatpush1.bf16.msra.mxu0 0
  %325 = vmatprep.subr.bf16.mxu0 0
  %326 = vmatpush1.bf16.msra.mxu0 0
  %327 = vmatprep.subr.bf16.mxu0 0
  %328 = vmatpush1.bf16.msra.mxu0 0
  %329 = vmatprep.subr.bf16.mxu0 0
  %330 = vmatpush1.bf16.msra.mxu0 0
  %331 = vmatprep.subr.bf16.mxu0 0
  %332 = vmatpush1.bf16.msra.mxu0 0
  %333 = vmatprep.subr.bf16.mxu0 0
  %334 = vmatpush1.bf16.msra.mxu0 0
  %335 = vmatprep.subr.bf16.mxu0 0
  %336 = vmatpush1.bf16.msra.mxu0 0
  %337 = vmatprep.subr.bf16.mxu0 0
  %338 = vmatpush1.bf16.msra.mxu0 0
  %339 = vmatprep.subr.bf16.mxu0 0
  %340 = vmatpush1.bf16.msra.mxu0 0
  %341 = vmatprep.subr.bf16.mxu0 0
  %342 = vmatpush1.bf16.msra.mxu0 0
  %343 = vmatprep.subr.bf16.mxu0 0
  %344 = vmatpush1.bf16.msra.mxu0 0
  %345 = vmatprep.subr.bf16.mxu0 0
  %346 = vmatpush1.bf16.msra.mxu0 0
  %347 = vmatprep.subr.bf16.mxu0 0
  %348 = vmatpush1.bf16.msra.mxu0 0
  %349 = vmatprep.subr.bf16.mxu0 0
  %350 = vmatpush1.bf16.msra.mxu0 0
  %351 = vmatprep.mubr.bf16.mxu0 0
  %352 = vmatmul.mubr.bf16.gmra.mrb[0].mxu0 %v243
  %v353 = vpop.f32.mrb[0].mxu0
  %v354 = vadd.f32 %v289, %v353
  %v355 = vpop.f32.mrb[0].mxu0
  %v356 = vpop.f32.mrb[0].mxu0
  %v357 = vadd.f32 %v292, %v356
  %v358 = vpop.f32.mrb[0].mxu0
  %359 = vmatprep.mubr.bf16.mxu0 0
  %360 = vmatmul.mubr.bf16.gmra.mrb[0].mxu0 %v246
  %v361 = vpop.f32.mrb[0].mxu0
  %v362 = vadd.f32 %v297, %v361
  %v363 = vpop.f32.mrb[0].mxu0
  %v364 = vpop.f32.mrb[0].mxu0
  %v365 = vadd.f32 %v300, %v364
  %v366 = vpop.f32.mrb[0].mxu0
  %367 = vmatprep.mubr.bf16.mxu0 0
  %368 = vmatmul.mubr.bf16.gmra.mrb[0].mxu0 %v249
  %v369 = vpop.f32.mrb[0].mxu0
  %v370 = vadd.f32 %v305, %v369
  %v371 = vpop.f32.mrb[0].mxu0
  %v372 = vpop.f32.mrb[0].mxu0
  %v373 = vadd.f32 %v308, %v372
  %v374 = vpop.f32.mrb[0].mxu0
  %375 = vmatprep.mubr.bf16.mxu0 0
  %376 = vmatmul.mubr.bf16.gmra.mrb[0].mxu0 %v252
  %v377 = vpop.f32.mrb[0].mxu0
  %v378 = vadd.f32 %v313, %v377
  %v379 = vpop.f32.mrb[0].mxu0
  %v380 = vpop.f32.mrb[0].mxu0
  %v381 = vadd.f32 %v316, %v380
  %v382 = vpop.f32.mrb[0].mxu0
  %383 = vdwg.mxu0
  %v384 = vld [vmem:[%s2] sm:$0x1]
  %v386 = vlaneseq
  %v387 = vshrl.u32 %v386, 7
  %v388 = vsub.s32 0, %v387
  %v389 = vrot.slane %v384, %v388
  %v391 = vmul.f32 %v354, %v389
  %v392 = vmul.f32 %v357, %v389
  %v393 = vmul.f32 %v362, %v389
  %v394 = vmul.f32 %v365, %v389
  %v395 = vmul.f32 %v370, %v389
  %v396 = vmul.f32 %v373, %v389
  %v397 = vmul.f32 %v378, %v389
  %v398 = vmul.f32 %v381, %v389
  %v399 = vld [vmem:[%s3] sm:$0x1]
  %v401 = vlaneseq
  %v402 = vshrl.u32 %v401, 7
  %v403 = vsub.s32 0, %v402
  %v404 = vrot.slane %v399, %v403
  %v406 = vadd.f32 %v391, %v404
  %v407 = vadd.f32 %v392, %v404
  %v408 = vadd.f32 %v393, %v404
  %v409 = vadd.f32 %v394, %v404
  %v410 = vadd.f32 %v395, %v404
  %v411 = vadd.f32 %v396, %v404
  %v412 = vadd.f32 %v397, %v404
  %v413 = vadd.f32 %v398, %v404
  %v414 = vmax.f32 %v406, 0.0
  %v415 = vmax.f32 %v407, 0.0
  %v416 = vmax.f32 %v408, 0.0
  %v417 = vmax.f32 %v409, 0.0
  %v418 = vmax.f32 %v410, 0.0
  %v419 = vmax.f32 %v411, 0.0
  %v420 = vmax.f32 %v412, 0.0
  %v421 = vmax.f32 %v413, 0.0
  %v422 = vld [vmem:[%s4] sm:$0xf]
  %v423 = vld [vmem:[%s4 + $0x4] sm:$0xf]
  %v424 = vld [vmem:[%s4 + $0x8] sm:$0xf]
  %v425 = vld [vmem:[%s4 + $0xc] sm:$0xf]
  %v426 = vld [vmem:[%s4 + $0x10] sm:$0xf]
  %v427 = vld [vmem:[%s4 + $0x14] sm:$0xf]
  %v428 = vld [vmem:[%s4 + $0x18] sm:$0xf]
  %v429 = vld [vmem:[%s4 + $0x1c] sm:$0xf]
  %v430 = vunpack.c.l.bf16 %v422
  %v431 = vunpack.c.l.bf16 %v423
  %v432 = vunpack.c.l.bf16 %v424
  %v433 = vunpack.c.l.bf16 %v425
  %v434 = vunpack.c.l.bf16 %v426
  %v435 = vunpack.c.l.bf16 %v427
  %v436 = vunpack.c.l.bf16 %v428
  %v437 = vunpack.c.l.bf16 %v429
  %v438 = vadd.f32 %v414, %v430
  %v439 = vadd.f32 %v415, %v431
  %v440 = vadd.f32 %v416, %v432
  %v441 = vadd.f32 %v417, %v433
  %v442 = vadd.f32 %v418, %v434
  %v443 = vadd.f32 %v419, %v435
  %v444 = vadd.f32 %v420, %v436
  %v445 = vadd.f32 %v421, %v437
  %v446 = vmax.f32 %v438, 0.0
  %v447 = vmax.f32 %v439, 0.0
  %v448 = vmax.f32 %v440, 0.0
  %v449 = vmax.f32 %v441, 0.0
  %v450 = vmax.f32 %v442, 0.0
  %v451 = vmax.f32 %v443, 0.0
  %v452 = vmax.f32 %v444, 0.0
  %v453 = vmax.f32 %v445, 0.0
  %v454 = vpack.c.bf16 %v447, %v446
  %v455 = vpack.c.bf16 %v449, %v448
  %v456 = vpack.c.bf16 %v451, %v450
  %v457 = vpack.c.bf16 %v453, %v452
  %v462 = vunpack.c.l.b16 %v454
  %v463 = vunpack.c.h.b16 %v454
  %v464 = vunpack.c.l.b16 %v455
  %v465 = vunpack.c.h.b16 %v455
  %v466 = vunpack.c.l.b16 %v456
  %v467 = vunpack.c.h.b16 %v456
  %v468 = vunpack.c.l.b16 %v457
  %v469 = vunpack.c.h.b16 %v457
  %v470 = vpack.c.b16 %v462, %v462
  %v471 = vpack.c.b16 %v463, %v463
  %v472 = vpack.c.b16 %v464, %v464
  %v473 = vpack.c.b16 %v465, %v465
  %v474 = vpack.c.b16 %v466, %v466
  %v475 = vpack.c.b16 %v467, %v467
  %v476 = vpack.c.b16 %v468, %v468
  %v477 = vpack.c.b16 %v469, %v469
  %vm486 = vcmask 257024
  %487 = vst.msk [vmem:[%s5] sm:$0xf] %vm486, %v470
  %488 = vst.msk [vmem:[%s5 + $0x4] sm:$0xf] %vm486, %v471
  %489 = vst.msk [vmem:[%s5 + $0x8] sm:$0xf] %vm486, %v472
  %490 = vst.msk [vmem:[%s5 + $0xc] sm:$0xf] %vm486, %v473
  %491 = vst.msk [vmem:[%s5 + $0x10] sm:$0xf] %vm486, %v474
  %492 = vst.msk [vmem:[%s5 + $0x14] sm:$0xf] %vm486, %v475
  %493 = vst.msk [vmem:[%s5 + $0x18] sm:$0xf] %vm486, %v476
  %494 = vst.msk [vmem:[%s5 + $0x1c] sm:$0xf] %vm486, %v477
  // Predicated region
  $region22: #{_lambda_.29} parent=0 // pred_check
    _
  $region23: #{_lambda_.29} parent=0 // pred_check_branch
    %496 = sbr.rel (0) target = $region25
  $region24: #{_lambda_.29} parent=0 // pred_region
    _
  $region25: #{_lambda_.29} parent=0 // pred_fallthru
    _
  // Predicated region
  $region26: #{_lambda_.29} parent=0 // pred_check
    _
  $region27: #{_lambda_.29} parent=0 // pred_check_branch
    %498 = sbr.rel (0) target = $region29
  $region28: #{_lambda_.29} parent=0 // pred_region
    _
  $region29: #{_lambda_.29} parent=0 // pred_fallthru
    _

// kernel: _lambda_.30
$region0: #{_lambda_.30}
  #allocation0 [shape = 'u32[]', space=smem, size = 0x4, offset = 0x4, fixed_abs, tag = 'smem constant byte address 0x4 - core index']
  #allocation1 [shape = 'u32[144,128]{1,0:T(1,128)}', space=vmem, size = 0x12000, scoped, tag = 'internal scratch']
  %s0 = inlined_call_operand.vmem [shape: bf16[64,288], index: 0, kind: input, shape index: {}]
  %s1 = inlined_call_operand.vmem [shape: bf16[288,32], index: 1, kind: input, shape index: {}]
  %s2 = inlined_call_operand.vmem [shape: f32[1,32], index: 2, kind: input, shape index: {}]
  %s3 = inlined_call_operand.vmem [shape: f32[1,32], index: 3, kind: input, shape index: {}]
  %s4 = inlined_call_operand.vmem [shape: bf16[64,32], index: 4, kind: output, shape index: {}]
  %s5 = sld [smem:[#allocation0]]
  $region26: #{_lambda_.30} parent=0
    _
  %s7 = ssub.s32 1, %s5
  %s8 = scalar_select 0, %s7, %s5
  // Predicated region
  $region2: #{_lambda_.30} parent=0 // pred_check
    _
  $region3: #{_lambda_.30} parent=0 // pred_check_branch
    %10 = sbr.rel (0) target = $region5
  $region4: #{_lambda_.30} parent=0 // pred_region
    _
  $region5: #{_lambda_.30} parent=0 // pred_fallthru
    _
  // Predicated region
  $region6: #{_lambda_.30} parent=0 // pred_check
    _
  $region7: #{_lambda_.30} parent=0 // pred_check_branch
    %12 = sbr.rel (0) target = $region9
  $region8: #{_lambda_.30} parent=0 // pred_region
    _
  $region9: #{_lambda_.30} parent=0 // pred_fallthru
    _
  // Predicated region
  $region10: #{_lambda_.30} parent=0 // pred_check
    _
  $region11: #{_lambda_.30} parent=0 // pred_check_branch
    %14 = sbr.rel (0) target = $region13
  $region12: #{_lambda_.30} parent=0 // pred_region
    _
  $region13: #{_lambda_.30} parent=0 // pred_fallthru
    _
  // Predicated region
  $region14: #{_lambda_.30} parent=0 // pred_check
    _
  $region15: #{_lambda_.30} parent=0 // pred_check_branch
    %16 = sbr.rel (0) target = $region17
  $region16: #{_lambda_.30} parent=0 // pred_region
    _
  $region17: #{_lambda_.30} parent=0 // pred_fallthru
    _
  %v18 = vld [vmem:[%s0] sm:$0xff]
  %v19 = vld [vmem:[%s0 + $0x8] sm:$0xf]
  %v20 = vld [vmem:[%s0 + $0xc] sm:$0xff]
  %v21 = vld [vmem:[%s0 + $0x14] sm:$0xf]
  %v22 = vld [vmem:[%s0 + $0x18] sm:$0xff]
  %v23 = vld [vmem:[%s0 + $0x20] sm:$0xf]
  %v24 = vld [vmem:[%s0 + $0x24] sm:$0xff]
  %v25 = vld [vmem:[%s0 + $0x2c] sm:$0xf]
  %v26 = vld [vmem:[%s0 + $0x30] sm:$0xff]
  %v27 = vld [vmem:[%s0 + $0x38] sm:$0xf]
  %v28 = vld [vmem:[%s0 + $0x3c] sm:$0xff]
  %v29 = vld [vmem:[%s0 + $0x44] sm:$0xf]
  %v30 = vld [vmem:[%s0 + $0x48] sm:$0xff]
  %v31 = vld [vmem:[%s0 + $0x50] sm:$0xf]
  %v32 = vld [vmem:[%s0 + $0x54] sm:$0xff]
  %v33 = vld [vmem:[%s0 + $0x5c] sm:$0xf]
  %v34 = vld [vmem:[%s1] sm:$0xf]
  %v35 = vld [vmem:[%s1 + $0x4] sm:$0xf]
  %v36 = vld [vmem:[%s1 + $0x8] sm:$0xf]
  %v37 = vld [vmem:[%s1 + $0xc] sm:$0xf]
  %v38 = vld [vmem:[%s1 + $0x10] sm:$0xf]
  %v39 = vld [vmem:[%s1 + $0x14] sm:$0xf]
  %v40 = vld [vmem:[%s1 + $0x18] sm:$0xf]
  %v41 = vld [vmem:[%s1 + $0x1c] sm:$0xf]
  %v42 = vld [vmem:[%s1 + $0x20] sm:$0xf]
  %v43 = vld [vmem:[%s1 + $0x24] sm:$0xf]
  %v44 = vld [vmem:[%s1 + $0x28] sm:$0xf]
  %v45 = vld [vmem:[%s1 + $0x2c] sm:$0xf]
  %v46 = vld [vmem:[%s1 + $0x30] sm:$0xf]
  %v47 = vld [vmem:[%s1 + $0x34] sm:$0xf]
  %v48 = vld [vmem:[%s1 + $0x38] sm:$0xf]
  %v49 = vld [vmem:[%s1 + $0x3c] sm:$0xf]
  %v50 = vld [vmem:[%s1 + $0x40] sm:$0xf]
  %v51 = vld [vmem:[%s1 + $0x44] sm:$0xf]
  %v52 = vld [vmem:[%s1 + $0x48] sm:$0xf]
  %v53 = vld [vmem:[%s1 + $0x4c] sm:$0xf]
  %v54 = vld [vmem:[%s1 + $0x50] sm:$0xf]
  %v55 = vld [vmem:[%s1 + $0x54] sm:$0xf]
  %v56 = vld [vmem:[%s1 + $0x58] sm:$0xf]
  %v57 = vld [vmem:[%s1 + $0x5c] sm:$0xf]
  %v58 = vld [vmem:[%s1 + $0x60] sm:$0xf]
  %v59 = vld [vmem:[%s1 + $0x64] sm:$0xf]
  %v60 = vld [vmem:[%s1 + $0x68] sm:$0xf]
  %v61 = vld [vmem:[%s1 + $0x6c] sm:$0xf]
  %v62 = vld [vmem:[%s1 + $0x70] sm:$0xf]
  %v63 = vld [vmem:[%s1 + $0x74] sm:$0xf]
  %v64 = vld [vmem:[%s1 + $0x78] sm:$0xf]
  %v65 = vld [vmem:[%s1 + $0x7c] sm:$0xf]
  %v66 = vld [vmem:[%s1 + $0x80] sm:$0xf]
  %v67 = vld [vmem:[%s1 + $0x84] sm:$0xf]
  %v68 = vld [vmem:[%s1 + $0x88] sm:$0xf]
  %v69 = vld [vmem:[%s1 + $0x8c] sm:$0xf]
  %v86 = vunpack.c.l.b16 %v18
  %v87 = vunpack.c.h.b16 %v18
  %v88 = vunpack.c.l.b16 %v19
  %v89 = vunpack.c.l.b16 %v20
  %v90 = vunpack.c.h.b16 %v20
  %v91 = vunpack.c.l.b16 %v21
  %v92 = vunpack.c.l.b16 %v22
  %v93 = vunpack.c.h.b16 %v22
  %v94 = vunpack.c.l.b16 %v23
  %v95 = vunpack.c.l.b16 %v24
  %v96 = vunpack.c.h.b16 %v24
  %v97 = vunpack.c.l.b16 %v25
  %v98 = vunpack.c.l.b16 %v26
  %v99 = vunpack.c.h.b16 %v26
  %v100 = vunpack.c.l.b16 %v27
  %v101 = vunpack.c.l.b16 %v28
  %v102 = vunpack.c.h.b16 %v28
  %v103 = vunpack.c.l.b16 %v29
  %v104 = vunpack.c.l.b16 %v30
  %v105 = vunpack.c.h.b16 %v30
  %v106 = vunpack.c.l.b16 %v31
  %v107 = vunpack.c.l.b16 %v32
  %v108 = vunpack.c.h.b16 %v32
  %v109 = vunpack.c.l.b16 %v33
  %v110 = vpack.c.b16 %v89, %v86
  %v111 = vpack.c.b16 %v90, %v87
  %v112 = vpack.c.b16 %v91, %v88
  %v113 = vpack.c.b16 %v95, %v92
  %v114 = vpack.c.b16 %v96, %v93
  %v115 = vpack.c.b16 %v97, %v94
  %v116 = vpack.c.b16 %v101, %v98
  %v117 = vpack.c.b16 %v102, %v99
  %v118 = vpack.c.b16 %v103, %v100
  %v119 = vpack.c.b16 %v107, %v104
  %v120 = vpack.c.b16 %v108, %v105
  %v121 = vpack.c.b16 %v109, %v106
  %v166 = vunpack.c.l.b16 %v34
  %v167 = vunpack.c.l.b16 %v35
  %v168 = vunpack.c.l.b16 %v36
  %v169 = vunpack.c.l.b16 %v37
  %v170 = vunpack.c.l.b16 %v38
  %v171 = vunpack.c.l.b16 %v39
  %v172 = vunpack.c.l.b16 %v40
  %v173 = vunpack.c.l.b16 %v41
  %v174 = vunpack.c.l.b16 %v42
  %v175 = vunpack.c.l.b16 %v43
  %v176 = vunpack.c.l.b16 %v44
  %v177 = vunpack.c.l.b16 %v45
  %v178 = vunpack.c.l.b16 %v46
  %v179 = vunpack.c.l.b16 %v47
  %v180 = vunpack.c.l.b16 %v48
  %v181 = vunpack.c.l.b16 %v49
  %v182 = vunpack.c.l.b16 %v50
  %v183 = vunpack.c.l.b16 %v51
  %v184 = vunpack.c.l.b16 %v52
  %v185 = vunpack.c.l.b16 %v53
  %v186 = vunpack.c.l.b16 %v54
  %v187 = vunpack.c.l.b16 %v55
  %v188 = vunpack.c.l.b16 %v56
  %v189 = vunpack.c.l.b16 %v57
  %v190 = vunpack.c.l.b16 %v58
  %v191 = vunpack.c.l.b16 %v59
  %v192 = vunpack.c.l.b16 %v60
  %v193 = vunpack.c.l.b16 %v61
  %v194 = vunpack.c.l.b16 %v62
  %v195 = vunpack.c.l.b16 %v63
  %v196 = vunpack.c.l.b16 %v64
  %v197 = vunpack.c.l.b16 %v65
  %v198 = vunpack.c.l.b16 %v66
  %v199 = vunpack.c.l.b16 %v67
  %v200 = vunpack.c.l.b16 %v68
  %v201 = vunpack.c.l.b16 %v69
  %v202 = vpack.c.b16 %v167, %v166
  %v203 = vpack.c.b16 %v169, %v168
  %v204 = vpack.c.b16 %v171, %v170
  %v205 = vpack.c.b16 %v173, %v172
  %v206 = vpack.c.b16 %v175, %v174
  %v207 = vpack.c.b16 %v177, %v176
  %v208 = vpack.c.b16 %v179, %v178
  %v209 = vpack.c.b16 %v181, %v180
  %v210 = vpack.c.b16 %v183, %v182
  %v211 = vpack.c.b16 %v185, %v184
  %v212 = vpack.c.b16 %v187, %v186
  %v213 = vpack.c.b16 %v189, %v188
  %v214 = vpack.c.b16 %v191, %v190
  %v215 = vpack.c.b16 %v193, %v192
  %v216 = vpack.c.b16 %v195, %v194
  %v217 = vpack.c.b16 %v197, %v196
  %v218 = vpack.c.b16 %v199, %v198
  %v219 = vpack.c.b16 %v201, %v200
  %vm238 = vcmask 261120
  %v240 = vsel %vm238, %v112, 0
  %v243 = vsel %vm238, %v115, 0
  %v246 = vsel %vm238, %v118, 0
  %v249 = vsel %vm238, %v121, 0
  %251 = vmatprep.subr.bf16.mxu0 0
  %252 = vmatpush1.bf16.msra.mxu0 %v202
  %253 = vmatprep.subr.bf16.mxu0 0
  %254 = vmatpush1.bf16.msra.mxu0 %v203
  %255 = vmatprep.subr.bf16.mxu0 0
  %256 = vmatpush1.bf16.msra.mxu0 %v204
  %257 = vmatprep.subr.bf16.mxu0 0
  %258 = vmatpush1.bf16.msra.mxu0 %v205
  %259 = vmatprep.subr.bf16.mxu0 0
  %260 = vmatpush1.bf16.msra.mxu0 %v206
  %261 = vmatprep.subr.bf16.mxu0 0
  %262 = vmatpush1.bf16.msra.mxu0 %v207
  %263 = vmatprep.subr.bf16.mxu0 0
  %264 = vmatpush1.bf16.msra.mxu0 %v208
  %265 = vmatprep.subr.bf16.mxu0 0
  %266 = vmatpush1.bf16.msra.mxu0 %v209
  %267 = vmatprep.subr.bf16.mxu0 0
  %268 = vmatpush1.bf16.msra.mxu0 %v210
  %269 = vmatprep.subr.bf16.mxu0 0
  %270 = vmatpush1.bf16.msra.mxu0 %v211
  %271 = vmatprep.subr.bf16.mxu0 0
  %272 = vmatpush1.bf16.msra.mxu0 %v212
  %273 = vmatprep.subr.bf16.mxu0 0
  %274 = vmatpush1.bf16.msra.mxu0 %v213
  %275 = vmatprep.subr.bf16.mxu0 0
  %276 = vmatpush1.bf16.msra.mxu0 %v214
  %277 = vmatprep.subr.bf16.mxu0 0
  %278 = vmatpush1.bf16.msra.mxu0 %v215
  %279 = vmatprep.subr.bf16.mxu0 0
  %280 = vmatpush1.bf16.msra.mxu0 %v216
  %281 = vmatprep.subr.bf16.mxu0 0
  %282 = vmatpush1.bf16.msra.mxu0 %v217
  %283 = vmatprep.mubr.bf16.mxu0 %v111
  %284 = vmatmul.mubr.bf16.gmra.mrb[0].mxu0 %v110
  %v285 = vpop.f32.mrb[0].mxu0
  %v286 = vadd.f32 0.0, %v285
  %v287 = vpop.f32.mrb[0].mxu0
  %v288 = vpop.f32.mrb[0].mxu0
  %v289 = vadd.f32 0.0, %v288
  %v290 = vpop.f32.mrb[0].mxu0
  %291 = vmatprep.mubr.bf16.mxu0 %v114
  %292 = vmatmul.mubr.bf16.gmra.mrb[0].mxu0 %v113
  %v293 = vpop.f32.mrb[0].mxu0
  %v294 = vadd.f32 0.0, %v293
  %v295 = vpop.f32.mrb[0].mxu0
  %v296 = vpop.f32.mrb[0].mxu0
  %v297 = vadd.f32 0.0, %v296
  %v298 = vpop.f32.mrb[0].mxu0
  %299 = vmatprep.mubr.bf16.mxu0 %v117
  %300 = vmatmul.mubr.bf16.gmra.mrb[0].mxu0 %v116
  %v301 = vpop.f32.mrb[0].mxu0
  %v302 = vadd.f32 0.0, %v301
  %v303 = vpop.f32.mrb[0].mxu0
  %v304 = vpop.f32.mrb[0].mxu0
  %v305 = vadd.f32 0.0, %v304
  %v306 = vpop.f32.mrb[0].mxu0
  %307 = vmatprep.mubr.bf16.mxu0 %v120
  %308 = vmatmul.mubr.bf16.gmra.mrb[0].mxu0 %v119
  %v309 = vpop.f32.mrb[0].mxu0
  %v310 = vadd.f32 0.0, %v309
  %v311 = vpop.f32.mrb[0].mxu0
  %v312 = vpop.f32.mrb[0].mxu0
  %v313 = vadd.f32 0.0, %v312
  %v314 = vpop.f32.mrb[0].mxu0
  %315 = vdwg.mxu0
  %316 = vmatprep.subr.bf16.mxu0 0
  %317 = vmatpush1.bf16.msra.mxu0 %v218
  %318 = vmatprep.subr.bf16.mxu0 0
  %319 = vmatpush1.bf16.msra.mxu0 %v219
  %320 = vmatprep.subr.bf16.mxu0 0
  %321 = vmatpush1.bf16.msra.mxu0 0
  %322 = vmatprep.subr.bf16.mxu0 0
  %323 = vmatpush1.bf16.msra.mxu0 0
  %324 = vmatprep.subr.bf16.mxu0 0
  %325 = vmatpush1.bf16.msra.mxu0 0
  %326 = vmatprep.subr.bf16.mxu0 0
  %327 = vmatpush1.bf16.msra.mxu0 0
  %328 = vmatprep.subr.bf16.mxu0 0
  %329 = vmatpush1.bf16.msra.mxu0 0
  %330 = vmatprep.subr.bf16.mxu0 0
  %331 = vmatpush1.bf16.msra.mxu0 0
  %332 = vmatprep.subr.bf16.mxu0 0
  %333 = vmatpush1.bf16.msra.mxu0 0
  %334 = vmatprep.subr.bf16.mxu0 0
  %335 = vmatpush1.bf16.msra.mxu0 0
  %336 = vmatprep.subr.bf16.mxu0 0
  %337 = vmatpush1.bf16.msra.mxu0 0
  %338 = vmatprep.subr.bf16.mxu0 0
  %339 = vmatpush1.bf16.msra.mxu0 0
  %340 = vmatprep.subr.bf16.mxu0 0
  %341 = vmatpush1.bf16.msra.mxu0 0
  %342 = vmatprep.subr.bf16.mxu0 0
  %343 = vmatpush1.bf16.msra.mxu0 0
  %344 = vmatprep.subr.bf16.mxu0 0
  %345 = vmatpush1.bf16.msra.mxu0 0
  %346 = vmatprep.subr.bf16.mxu0 0
  %347 = vmatpush1.bf16.msra.mxu0 0
  %348 = vmatprep.mubr.bf16.mxu0 0
  %349 = vmatmul.mubr.bf16.gmra.mrb[0].mxu0 %v240
  %v350 = vpop.f32.mrb[0].mxu0
  %v351 = vadd.f32 %v286, %v350
  %v352 = vpop.f32.mrb[0].mxu0
  %v353 = vpop.f32.mrb[0].mxu0
  %v354 = vadd.f32 %v289, %v353
  %v355 = vpop.f32.mrb[0].mxu0
  %356 = vmatprep.mubr.bf16.mxu0 0
  %357 = vmatmul.mubr.bf16.gmra.mrb[0].mxu0 %v243
  %v358 = vpop.f32.mrb[0].mxu0
  %v359 = vadd.f32 %v294, %v358
  %v360 = vpop.f32.mrb[0].mxu0
  %v361 = vpop.f32.mrb[0].mxu0
  %v362 = vadd.f32 %v297, %v361
  %v363 = vpop.f32.mrb[0].mxu0
  %364 = vmatprep.mubr.bf16.mxu0 0
  %365 = vmatmul.mubr.bf16.gmra.mrb[0].mxu0 %v246
  %v366 = vpop.f32.mrb[0].mxu0
  %v367 = vadd.f32 %v302, %v366
  %v368 = vpop.f32.mrb[0].mxu0
  %v369 = vpop.f32.mrb[0].mxu0
  %v370 = vadd.f32 %v305, %v369
  %v371 = vpop.f32.mrb[0].mxu0
  %372 = vmatprep.mubr.bf16.mxu0 0
  %373 = vmatmul.mubr.bf16.gmra.mrb[0].mxu0 %v249
  %v374 = vpop.f32.mrb[0].mxu0
  %v375 = vadd.f32 %v310, %v374
  %v376 = vpop.f32.mrb[0].mxu0
  %v377 = vpop.f32.mrb[0].mxu0
  %v378 = vadd.f32 %v313, %v377
  %v379 = vpop.f32.mrb[0].mxu0
  %380 = vdwg.mxu0
  %v381 = vld [vmem:[%s2] sm:$0x1]
  %v383 = vlaneseq
  %v384 = vshrl.u32 %v383, 7
  %v385 = vsub.s32 0, %v384
  %v386 = vrot.slane %v381, %v385
  %v388 = vmul.f32 %v351, %v386
  %v389 = vmul.f32 %v354, %v386
  %v390 = vmul.f32 %v359, %v386
  %v391 = vmul.f32 %v362, %v386
  %v392 = vmul.f32 %v367, %v386
  %v393 = vmul.f32 %v370, %v386
  %v394 = vmul.f32 %v375, %v386
  %v395 = vmul.f32 %v378, %v386
  %v396 = vld [vmem:[%s3] sm:$0x1]
  %v398 = vlaneseq
  %v399 = vshrl.u32 %v398, 7
  %v400 = vsub.s32 0, %v399
  %v401 = vrot.slane %v396, %v400
  %v403 = vadd.f32 %v388, %v401
  %v404 = vadd.f32 %v389, %v401
  %v405 = vadd.f32 %v390, %v401
  %v406 = vadd.f32 %v391, %v401
  %v407 = vadd.f32 %v392, %v401
  %v408 = vadd.f32 %v393, %v401
  %v409 = vadd.f32 %v394, %v401
  %v410 = vadd.f32 %v395, %v401
  %v411 = vmax.f32 %v403, 0.0
  %v412 = vmax.f32 %v404, 0.0
  %v413 = vmax.f32 %v405, 0.0
  %v414 = vmax.f32 %v406, 0.0
  %v415 = vmax.f32 %v407, 0.0
  %v416 = vmax.f32 %v408, 0.0
  %v417 = vmax.f32 %v409, 0.0
  %v418 = vmax.f32 %v410, 0.0
  %v419 = vpack.c.bf16 %v412, %v411
  %v420 = vpack.c.bf16 %v414, %v413
  %v421 = vpack.c.bf16 %v416, %v415
  %v422 = vpack.c.bf16 %v418, %v417
  %v427 = vunpack.c.l.b16 %v419
  %v428 = vunpack.c.h.b16 %v419
  %v429 = vunpack.c.l.b16 %v420
  %v430 = vunpack.c.h.b16 %v420
  %v431 = vunpack.c.l.b16 %v421
  %v432 = vunpack.c.h.b16 %v421
  %v433 = vunpack.c.l.b16 %v422
  %v434 = vunpack.c.h.b16 %v422
  %v435 = vpack.c.b16 %v427, %v427
  %v436 = vpack.c.b16 %v428, %v428
  %v437 = vpack.c.b16 %v429, %v429
  %v438 = vpack.c.b16 %v430, %v430
  %v439 = vpack.c.b16 %v431, %v431
  %v440 = vpack.c.b16 %v432, %v432
  %v441 = vpack.c.b16 %v433, %v433
  %v442 = vpack.c.b16 %v434, %v434
  %vm451 = vcmask 257024
  %452 = vst.msk [vmem:[%s4] sm:$0xf] %vm451, %v435
  %453 = vst.msk [vmem:[%s4 + $0x4] sm:$0xf] %vm451, %v436
  %454 = vst.msk [vmem:[%s4 + $0x8] sm:$0xf] %vm451, %v437
  %455 = vst.msk [vmem:[%s4 + $0xc] sm:$0xf] %vm451, %v438
  %456 = vst.msk [vmem:[%s4 + $0x10] sm:$0xf] %vm451, %v439
  %457 = vst.msk [vmem:[%s4 + $0x14] sm:$0xf] %vm451, %v440
  %458 = vst.msk [vmem:[%s4 + $0x18] sm:$0xf] %vm451, %v441
  %459 = vst.msk [vmem:[%s4 + $0x1c] sm:$0xf] %vm451, %v442
  // Predicated region
  $region18: #{_lambda_.30} parent=0 // pred_check
    _
  $region19: #{_lambda_.30} parent=0 // pred_check_branch
    %461 = sbr.rel (0) target = $region21
  $region20: #{_lambda_.30} parent=0 // pred_region
    _
  $region21: #{_lambda_.30} parent=0 // pred_fallthru
    _
  // Predicated region
  $region22: #{_lambda_.30} parent=0 // pred_check
    _
  $region23: #{_lambda_.30} parent=0 // pred_check_branch
    %463 = sbr.rel (0) target = $region25
  $region24: #{_lambda_.30} parent=0 // pred_region
    _
  $region25: #{_lambda_.30} parent=0 // pred_fallthru
    _

// kernel: _lambda_.33
$region0: #{_lambda_.33}
  #allocation0 [shape = 'u32[]', space=smem, size = 0x4, offset = 0x4, fixed_abs, tag = 'smem constant byte address 0x4 - core index']
  #allocation1 [shape = 'u32[144,128]{1,0:T(1,128)}', space=vmem, size = 0x12000, scoped, tag = 'internal scratch']
  %s0 = inlined_call_operand.vmem [shape: bf16[16,288], index: 0, kind: input, shape index: {}]
  %s1 = inlined_call_operand.vmem [shape: bf16[288,48], index: 1, kind: input, shape index: {}]
  %s2 = inlined_call_operand.vmem [shape: f32[1,48], index: 2, kind: input, shape index: {}]
  %s3 = inlined_call_operand.vmem [shape: f32[1,48], index: 3, kind: input, shape index: {}]
  %s4 = inlined_call_operand.vmem [shape: bf16[16,48], index: 4, kind: output, shape index: {}]
  %s5 = sld [smem:[#allocation0]]
  $region26: #{_lambda_.33} parent=0
    _
  %s7 = ssub.s32 1, %s5
  %s8 = scalar_select 0, %s7, %s5
  // Predicated region
  $region2: #{_lambda_.33} parent=0 // pred_check
    _
  $region3: #{_lambda_.33} parent=0 // pred_check_branch
    %10 = sbr.rel (0) target = $region5
  $region4: #{_lambda_.33} parent=0 // pred_region
    _
  $region5: #{_lambda_.33} parent=0 // pred_fallthru
    _
  // Predicated region
  $region6: #{_lambda_.33} parent=0 // pred_check
    _
  $region7: #{_lambda_.33} parent=0 // pred_check_branch
    %12 = sbr.rel (0) target = $region9
  $region8: #{_lambda_.33} parent=0 // pred_region
    _
  $region9: #{_lambda_.33} parent=0 // pred_fallthru
    _
  // Predicated region
  $region10: #{_lambda_.33} parent=0 // pred_check
    _
  $region11: #{_lambda_.33} parent=0 // pred_check_branch
    %14 = sbr.rel (0) target = $region13
  $region12: #{_lambda_.33} parent=0 // pred_region
    _
  $region13: #{_lambda_.33} parent=0 // pred_fallthru
    _
  // Predicated region
  $region14: #{_lambda_.33} parent=0 // pred_check
    _
  $region15: #{_lambda_.33} parent=0 // pred_check_branch
    %16 = sbr.rel (0) target = $region17
  $region16: #{_lambda_.33} parent=0 // pred_region
    _
  $region17: #{_lambda_.33} parent=0 // pred_fallthru
    _
  %v18 = vld [vmem:[%s0] sm:$0xff]
  %v19 = vld [vmem:[%s0 + $0x8] sm:$0xf]
  %v20 = vld [vmem:[%s0 + $0xc] sm:$0xff]
  %v21 = vld [vmem:[%s0 + $0x14] sm:$0xf]
  %v22 = vld [vmem:[%s1] sm:$0xf]
  %v23 = vld [vmem:[%s1 + $0x4] sm:$0xf]
  %v24 = vld [vmem:[%s1 + $0x8] sm:$0xf]
  %v25 = vld [vmem:[%s1 + $0xc] sm:$0xf]
  %v26 = vld [vmem:[%s1 + $0x10] sm:$0xf]
  %v27 = vld [vmem:[%s1 + $0x14] sm:$0xf]
  %v28 = vld [vmem:[%s1 + $0x18] sm:$0xf]
  %v29 = vld [vmem:[%s1 + $0x1c] sm:$0xf]
  %v30 = vld [vmem:[%s1 + $0x20] sm:$0xf]
  %v31 = vld [vmem:[%s1 + $0x24] sm:$0xf]
  %v32 = vld [vmem:[%s1 + $0x28] sm:$0xf]
  %v33 = vld [vmem:[%s1 + $0x2c] sm:$0xf]
  %v34 = vld [vmem:[%s1 + $0x30] sm:$0xf]
  %v35 = vld [vmem:[%s1 + $0x34] sm:$0xf]
  %v36 = vld [vmem:[%s1 + $0x38] sm:$0xf]
  %v37 = vld [vmem:[%s1 + $0x3c] sm:$0xf]
  %v38 = vld [vmem:[%s1 + $0x40] sm:$0xf]
  %v39 = vld [vmem:[%s1 + $0x44] sm:$0xf]
  %v40 = vld [vmem:[%s1 + $0x48] sm:$0xf]
  %v41 = vld [vmem:[%s1 + $0x4c] sm:$0xf]
  %v42 = vld [vmem:[%s1 + $0x50] sm:$0xf]
  %v43 = vld [vmem:[%s1 + $0x54] sm:$0xf]
  %v44 = vld [vmem:[%s1 + $0x58] sm:$0xf]
  %v45 = vld [vmem:[%s1 + $0x5c] sm:$0xf]
  %v46 = vld [vmem:[%s1 + $0x60] sm:$0xf]
  %v47 = vld [vmem:[%s1 + $0x64] sm:$0xf]
  %v48 = vld [vmem:[%s1 + $0x68] sm:$0xf]
  %v49 = vld [vmem:[%s1 + $0x6c] sm:$0xf]
  %v50 = vld [vmem:[%s1 + $0x70] sm:$0xf]
  %v51 = vld [vmem:[%s1 + $0x74] sm:$0xf]
  %v52 = vld [vmem:[%s1 + $0x78] sm:$0xf]
  %v53 = vld [vmem:[%s1 + $0x7c] sm:$0xf]
  %v54 = vld [vmem:[%s1 + $0x80] sm:$0xf]
  %v55 = vld [vmem:[%s1 + $0x84] sm:$0xf]
  %v56 = vld [vmem:[%s1 + $0x88] sm:$0xf]
  %v57 = vld [vmem:[%s1 + $0x8c] sm:$0xf]
  %v62 = vunpack.c.l.b16 %v18
  %v63 = vunpack.c.h.b16 %v18
  %v64 = vunpack.c.l.b16 %v19
  %v65 = vunpack.c.l.b16 %v20
  %v66 = vunpack.c.h.b16 %v20
  %v67 = vunpack.c.l.b16 %v21
  %v68 = vpack.c.b16 %v65, %v62
  %v69 = vpack.c.b16 %v66, %v63
  %v70 = vpack.c.b16 %v67, %v64
  %v109 = vunpack.c.l.b16 %v22
  %v110 = vunpack.c.l.b16 %v23
  %v111 = vunpack.c.l.b16 %v24
  %v112 = vunpack.c.l.b16 %v25
  %v113 = vunpack.c.l.b16 %v26
  %v114 = vunpack.c.l.b16 %v27
  %v115 = vunpack.c.l.b16 %v28
  %v116 = vunpack.c.l.b16 %v29
  %v117 = vunpack.c.l.b16 %v30
  %v118 = vunpack.c.l.b16 %v31
  %v119 = vunpack.c.l.b16 %v32
  %v120 = vunpack.c.l.b16 %v33
  %v121 = vunpack.c.l.b16 %v34
  %v122 = vunpack.c.l.b16 %v35
  %v123 = vunpack.c.l.b16 %v36
  %v124 = vunpack.c.l.b16 %v37
  %v125 = vunpack.c.l.b16 %v38
  %v126 = vunpack.c.l.b16 %v39
  %v127 = vunpack.c.l.b16 %v40
  %v128 = vunpack.c.l.b16 %v41
  %v129 = vunpack.c.l.b16 %v42
  %v130 = vunpack.c.l.b16 %v43
  %v131 = vunpack.c.l.b16 %v44
  %v132 = vunpack.c.l.b16 %v45
  %v133 = vunpack.c.l.b16 %v46
  %v134 = vunpack.c.l.b16 %v47
  %v135 = vunpack.c.l.b16 %v48
  %v136 = vunpack.c.l.b16 %v49
  %v137 = vunpack.c.l.b16 %v50
  %v138 = vunpack.c.l.b16 %v51
  %v139 = vunpack.c.l.b16 %v52
  %v140 = vunpack.c.l.b16 %v53
  %v141 = vunpack.c.l.b16 %v54
  %v142 = vunpack.c.l.b16 %v55
  %v143 = vunpack.c.l.b16 %v56
  %v144 = vunpack.c.l.b16 %v57
  %v145 = vpack.c.b16 %v110, %v109
  %v146 = vpack.c.b16 %v112, %v111
  %v147 = vpack.c.b16 %v114, %v113
  %v148 = vpack.c.b16 %v116, %v115
  %v149 = vpack.c.b16 %v118, %v117
  %v150 = vpack.c.b16 %v120, %v119
  %v151 = vpack.c.b16 %v122, %v121
  %v152 = vpack.c.b16 %v124, %v123
  %v153 = vpack.c.b16 %v126, %v125
  %v154 = vpack.c.b16 %v128, %v127
  %v155 = vpack.c.b16 %v130, %v129
  %v156 = vpack.c.b16 %v132, %v131
  %v157 = vpack.c.b16 %v134, %v133
  %v158 = vpack.c.b16 %v136, %v135
  %v159 = vpack.c.b16 %v138, %v137
  %v160 = vpack.c.b16 %v140, %v139
  %v161 = vpack.c.b16 %v142, %v141
  %v162 = vpack.c.b16 %v144, %v143
  %vm181 = vcmask 261120
  %v183 = vsel %vm181, %v70, 0
  %185 = vmatprep.subr.bf16.mxu0 0
  %186 = vmatpush1.bf16.msra.mxu0 %v145
  %187 = vmatprep.subr.bf16.mxu0 0
  %188 = vmatpush1.bf16.msra.mxu0 %v146
  %189 = vmatprep.subr.bf16.mxu0 0
  %190 = vmatpush1.bf16.msra.mxu0 %v147
  %191 = vmatprep.subr.bf16.mxu0 0
  %192 = vmatpush1.bf16.msra.mxu0 %v148
  %193 = vmatprep.subr.bf16.mxu0 0
  %194 = vmatpush1.bf16.msra.mxu0 %v149
  %195 = vmatprep.subr.bf16.mxu0 0
  %196 = vmatpush1.bf16.msra.mxu0 %v150
  %197 = vmatprep.subr.bf16.mxu0 0
  %198 = vmatpush1.bf16.msra.mxu0 %v151
  %199 = vmatprep.subr.bf16.mxu0 0
  %200 = vmatpush1.bf16.msra.mxu0 %v152
  %201 = vmatprep.subr.bf16.mxu0 0
  %202 = vmatpush1.bf16.msra.mxu0 %v153
  %203 = vmatprep.subr.bf16.mxu0 0
  %204 = vmatpush1.bf16.msra.mxu0 %v154
  %205 = vmatprep.subr.bf16.mxu0 0
  %206 = vmatpush1.bf16.msra.mxu0 %v155
  %207 = vmatprep.subr.bf16.mxu0 0
  %208 = vmatpush1.bf16.msra.mxu0 %v156
  %209 = vmatprep.subr.bf16.mxu0 0
  %210 = vmatpush1.bf16.msra.mxu0 %v157
  %211 = vmatprep.subr.bf16.mxu0 0
  %212 = vmatpush1.bf16.msra.mxu0 %v158
  %213 = vmatprep.subr.bf16.mxu0 0
  %214 = vmatpush1.bf16.msra.mxu0 %v159
  %215 = vmatprep.subr.bf16.mxu0 0
  %216 = vmatpush1.bf16.msra.mxu0 %v160
  %217 = vmatprep.mubr.bf16.mxu0 %v69
  %218 = vmatmul.mubr.bf16.gmra.mrb[0].mxu0 %v68
  %v219 = vpop.f32.mrb[0].mxu0
  %v220 = vadd.f32 0.0, %v219
  %v221 = vpop.f32.mrb[0].mxu0
  %v222 = vpop.f32.mrb[0].mxu0
  %v223 = vadd.f32 0.0, %v222
  %v224 = vpop.f32.mrb[0].mxu0
  %225 = vdwg.mxu0
  %226 = vmatprep.subr.bf16.mxu0 0
  %227 = vmatpush1.bf16.msra.mxu0 %v161
  %228 = vmatprep.subr.bf16.mxu0 0
  %229 = vmatpush1.bf16.msra.mxu0 %v162
  %230 = vmatprep.subr.bf16.mxu0 0
  %231 = vmatpush1.bf16.msra.mxu0 0
  %232 = vmatprep.subr.bf16.mxu0 0
  %233 = vmatpush1.bf16.msra.mxu0 0
  %234 = vmatprep.subr.bf16.mxu0 0
  %235 = vmatpush1.bf16.msra.mxu0 0
  %236 = vmatprep.subr.bf16.mxu0 0
  %237 = vmatpush1.bf16.msra.mxu0 0
  %238 = vmatprep.subr.bf16.mxu0 0
  %239 = vmatpush1.bf16.msra.mxu0 0
  %240 = vmatprep.subr.bf16.mxu0 0
  %241 = vmatpush1.bf16.msra.mxu0 0
  %242 = vmatprep.subr.bf16.mxu0 0
  %243 = vmatpush1.bf16.msra.mxu0 0
  %244 = vmatprep.subr.bf16.mxu0 0
  %245 = vmatpush1.bf16.msra.mxu0 0
  %246 = vmatprep.subr.bf16.mxu0 0
  %247 = vmatpush1.bf16.msra.mxu0 0
  %248 = vmatprep.subr.bf16.mxu0 0
  %249 = vmatpush1.bf16.msra.mxu0 0
  %250 = vmatprep.subr.bf16.mxu0 0
  %251 = vmatpush1.bf16.msra.mxu0 0
  %252 = vmatprep.subr.bf16.mxu0 0
  %253 = vmatpush1.bf16.msra.mxu0 0
  %254 = vmatprep.subr.bf16.mxu0 0
  %255 = vmatpush1.bf16.msra.mxu0 0
  %256 = vmatprep.subr.bf16.mxu0 0
  %257 = vmatpush1.bf16.msra.mxu0 0
  %258 = vmatprep.mubr.bf16.mxu0 0
  %259 = vmatmul.mubr.bf16.gmra.mrb[0].mxu0 %v183
  %v260 = vpop.f32.mrb[0].mxu0
  %v261 = vadd.f32 %v220, %v260
  %v262 = vpop.f32.mrb[0].mxu0
  %v263 = vpop.f32.mrb[0].mxu0
  %v264 = vadd.f32 %v223, %v263
  %v265 = vpop.f32.mrb[0].mxu0
  %266 = vdwg.mxu0
  %v267 = vld [vmem:[%s2] sm:$0x1]
  %v269 = vlaneseq
  %v270 = vshrl.u32 %v269, 7
  %v271 = vsub.s32 0, %v270
  %v272 = vrot.slane %v267, %v271
  %v274 = vmul.f32 %v261, %v272
  %v275 = vmul.f32 %v264, %v272
  %v276 = vld [vmem:[%s3] sm:$0x1]
  %v278 = vlaneseq
  %v279 = vshrl.u32 %v278, 7
  %v280 = vsub.s32 0, %v279
  %v281 = vrot.slane %v276, %v280
  %v283 = vadd.f32 %v274, %v281
  %v284 = vadd.f32 %v275, %v281
  %v285 = vmax.f32 %v283, 0.0
  %v286 = vmax.f32 %v284, 0.0
  %v287 = vpack.c.bf16 %v286, %v285
  %v289 = vunpack.c.l.b16 %v287
  %v290 = vunpack.c.h.b16 %v287
  %v291 = vpack.c.b16 %v289, %v289
  %v292 = vpack.c.b16 %v290, %v290
  %vm295 = vcmask 388096
  %296 = vst.msk [vmem:[%s4] sm:$0xf] %vm295, %v291
  %297 = vst.msk [vmem:[%s4 + $0x4] sm:$0xf] %vm295, %v292
  // Predicated region
  $region18: #{_lambda_.33} parent=0 // pred_check
    _
  $region19: #{_lambda_.33} parent=0 // pred_check_branch
    %299 = sbr.rel (0) target = $region21
  $region20: #{_lambda_.33} parent=0 // pred_region
    _
  $region21: #{_lambda_.33} parent=0 // pred_fallthru
    _
  // Predicated region
  $region22: #{_lambda_.33} parent=0 // pred_check
    _
  $region23: #{_lambda_.33} parent=0 // pred_check_branch
    %301 = sbr.rel (0) target = $region25
  $region24: #{_lambda_.33} parent=0 // pred_region
    _
  $region25: #{_lambda_.33} parent=0 // pred_fallthru
    _

// kernel: _lambda_.32
$region0: #{_lambda_.32}
  #allocation0 [shape = 'u32[]', space=smem, size = 0x4, offset = 0x4, fixed_abs, tag = 'smem constant byte address 0x4 - core index']
  #allocation1 [shape = 'u32[144,128]{1,0:T(1,128)}', space=vmem, size = 0x12000, scoped, tag = 'internal scratch']
  %s0 = inlined_call_operand.vmem [shape: bf16[16,32], index: 0, kind: input, shape index: {}]
  %s1 = inlined_call_operand.vmem [shape: bf16[32,48], index: 1, kind: input, shape index: {}]
  %s2 = inlined_call_operand.vmem [shape: f32[1,48], index: 2, kind: input, shape index: {}]
  %s3 = inlined_call_operand.vmem [shape: f32[1,48], index: 3, kind: input, shape index: {}]
  %s4 = inlined_call_operand.vmem [shape: bf16[16,48], index: 4, kind: output, shape index: {}]
  %s5 = sld [smem:[#allocation0]]
  $region26: #{_lambda_.32} parent=0
    _
  %s7 = ssub.s32 1, %s5
  %s8 = scalar_select 0, %s7, %s5
  // Predicated region
  $region2: #{_lambda_.32} parent=0 // pred_check
    _
  $region3: #{_lambda_.32} parent=0 // pred_check_branch
    %10 = sbr.rel (0) target = $region5
  $region4: #{_lambda_.32} parent=0 // pred_region
    _
  $region5: #{_lambda_.32} parent=0 // pred_fallthru
    _
  // Predicated region
  $region6: #{_lambda_.32} parent=0 // pred_check
    _
  $region7: #{_lambda_.32} parent=0 // pred_check_branch
    %12 = sbr.rel (0) target = $region9
  $region8: #{_lambda_.32} parent=0 // pred_region
    _
  $region9: #{_lambda_.32} parent=0 // pred_fallthru
    _
  // Predicated region
  $region10: #{_lambda_.32} parent=0 // pred_check
    _
  $region11: #{_lambda_.32} parent=0 // pred_check_branch
    %14 = sbr.rel (0) target = $region13
  $region12: #{_lambda_.32} parent=0 // pred_region
    _
  $region13: #{_lambda_.32} parent=0 // pred_fallthru
    _
  // Predicated region
  $region14: #{_lambda_.32} parent=0 // pred_check
    _
  $region15: #{_lambda_.32} parent=0 // pred_check_branch
    %16 = sbr.rel (0) target = $region17
  $region16: #{_lambda_.32} parent=0 // pred_region
    _
  $region17: #{_lambda_.32} parent=0 // pred_fallthru
    _
  %v18 = vld [vmem:[%s0] sm:$0xf]
  %v19 = vld [vmem:[%s0 + $0x4] sm:$0xf]
  %v20 = vld [vmem:[%s1] sm:$0xf]
  %v21 = vld [vmem:[%s1 + $0x4] sm:$0xf]
  %v22 = vld [vmem:[%s1 + $0x8] sm:$0xf]
  %v23 = vld [vmem:[%s1 + $0xc] sm:$0xf]
  %v26 = vunpack.c.l.b16 %v18
  %v27 = vunpack.c.l.b16 %v19
  %v28 = vpack.c.b16 %v27, %v26
  %v33 = vunpack.c.l.b16 %v20
  %v34 = vunpack.c.l.b16 %v21
  %v35 = vunpack.c.l.b16 %v22
  %v36 = vunpack.c.l.b16 %v23
  %v37 = vpack.c.b16 %v34, %v33
  %v38 = vpack.c.b16 %v36, %v35
  %vm41 = vcmask 261120
  %v43 = vsel %vm41, %v28, 0
  %45 = vmatprep.subr.bf16.mxu0 0
  %46 = vmatpush1.bf16.msra.mxu0 %v37
  %47 = vmatprep.subr.bf16.mxu0 0
  %48 = vmatpush1.bf16.msra.mxu0 %v38
  %49 = vmatprep.subr.bf16.mxu0 0
  %50 = vmatpush1.bf16.msra.mxu0 0
  %51 = vmatprep.subr.bf16.mxu0 0
  %52 = vmatpush1.bf16.msra.mxu0 0
  %53 = vmatprep.subr.bf16.mxu0 0
  %54 = vmatpush1.bf16.msra.mxu0 0
  %55 = vmatprep.subr.bf16.mxu0 0
  %56 = vmatpush1.bf16.msra.mxu0 0
  %57 = vmatprep.subr.bf16.mxu0 0
  %58 = vmatpush1.bf16.msra.mxu0 0
  %59 = vmatprep.subr.bf16.mxu0 0
  %60 = vmatpush1.bf16.msra.mxu0 0
  %61 = vmatprep.subr.bf16.mxu0 0
  %62 = vmatpush1.bf16.msra.mxu0 0
  %63 = vmatprep.subr.bf16.mxu0 0
  %64 = vmatpush1.bf16.msra.mxu0 0
  %65 = vmatprep.subr.bf16.mxu0 0
  %66 = vmatpush1.bf16.msra.mxu0 0
  %67 = vmatprep.subr.bf16.mxu0 0
  %68 = vmatpush1.bf16.msra.mxu0 0
  %69 = vmatprep.subr.bf16.mxu0 0
  %70 = vmatpush1.bf16.msra.mxu0 0
  %71 = vmatprep.subr.bf16.mxu0 0
  %72 = vmatpush1.bf16.msra.mxu0 0
  %73 = vmatprep.subr.bf16.mxu0 0
  %74 = vmatpush1.bf16.msra.mxu0 0
  %75 = vmatprep.subr.bf16.mxu0 0
  %76 = vmatpush1.bf16.msra.mxu0 0
  %77 = vmatprep.mubr.bf16.mxu0 0
  %78 = vmatmul.mubr.bf16.gmra.mrb[0].mxu0 %v43
  %v79 = vpop.f32.mrb[0].mxu0
  %v80 = vadd.f32 0.0, %v79
  %v81 = vpop.f32.mrb[0].mxu0
  %v82 = vpop.f32.mrb[0].mxu0
  %v83 = vadd.f32 0.0, %v82
  %v84 = vpop.f32.mrb[0].mxu0
  %85 = vdwg.mxu0
  %v86 = vld [vmem:[%s2] sm:$0x1]
  %v88 = vlaneseq
  %v89 = vshrl.u32 %v88, 7
  %v90 = vsub.s32 0, %v89
  %v91 = vrot.slane %v86, %v90
  %v93 = vmul.f32 %v80, %v91
  %v94 = vmul.f32 %v83, %v91
  %v95 = vld [vmem:[%s3] sm:$0x1]
  %v97 = vlaneseq
  %v98 = vshrl.u32 %v97, 7
  %v99 = vsub.s32 0, %v98
  %v100 = vrot.slane %v95, %v99
  %v102 = vadd.f32 %v93, %v100
  %v103 = vadd.f32 %v94, %v100
  %v104 = vpack.c.bf16 %v103, %v102
  %v106 = vunpack.c.l.b16 %v104
  %v107 = vunpack.c.h.b16 %v104
  %v108 = vpack.c.b16 %v106, %v106
  %v109 = vpack.c.b16 %v107, %v107
  %vm112 = vcmask 388096
  %113 = vst.msk [vmem:[%s4] sm:$0xf] %vm112, %v108
  %114 = vst.msk [vmem:[%s4 + $0x4] sm:$0xf] %vm112, %v109
  // Predicated region
  $region18: #{_lambda_.32} parent=0 // pred_check
    _
  $region19: #{_lambda_.32} parent=0 // pred_check_branch
    %116 = sbr.rel (0) target = $region21
  $region20: #{_lambda_.32} parent=0 // pred_region
    _
  $region21: #{_lambda_.32} parent=0 // pred_fallthru
    _
  // Predicated region
  $region22: #{_lambda_.32} parent=0 // pred_check
    _
  $region23: #{_lambda_.32} parent=0 // pred_check_branch
    %118 = sbr.rel (0) target = $region25
  $region24: #{_lambda_.32} parent=0 // pred_region
    _
  $region25: #{_lambda_.32} parent=0 // pred_fallthru
    _

// kernel: _lambda_.35
$region0: #{_lambda_.35}
  #allocation0 [shape = 'u32[]', space=smem, size = 0x4, offset = 0x4, fixed_abs, tag = 'smem constant byte address 0x4 - core index']
  #allocation1 [shape = 'u32[144,128]{1,0:T(1,128)}', space=vmem, size = 0x12000, scoped, tag = 'internal scratch']
  %s0 = inlined_call_operand.vmem [shape: bf16[16,432], index: 0, kind: input, shape index: {}]
  %s1 = inlined_call_operand.vmem [shape: bf16[432,48], index: 1, kind: input, shape index: {}]
  %s2 = inlined_call_operand.vmem [shape: f32[1,48], index: 2, kind: input, shape index: {}]
  %s3 = inlined_call_operand.vmem [shape: f32[1,48], index: 3, kind: input, shape index: {}]
  %s4 = inlined_call_operand.vmem [shape: bf16[16,48], index: 4, kind: output, shape index: {}]
  %s5 = sld [smem:[#allocation0]]
  $region26: #{_lambda_.35} parent=0
    _
  %s7 = ssub.s32 1, %s5
  %s8 = scalar_select 0, %s7, %s5
  // Predicated region
  $region2: #{_lambda_.35} parent=0 // pred_check
    _
  $region3: #{_lambda_.35} parent=0 // pred_check_branch
    %10 = sbr.rel (0) target = $region5
  $region4: #{_lambda_.35} parent=0 // pred_region
    _
  $region5: #{_lambda_.35} parent=0 // pred_fallthru
    _
  // Predicated region
  $region6: #{_lambda_.35} parent=0 // pred_check
    _
  $region7: #{_lambda_.35} parent=0 // pred_check_branch
    %12 = sbr.rel (0) target = $region9
  $region8: #{_lambda_.35} parent=0 // pred_region
    _
  $region9: #{_lambda_.35} parent=0 // pred_fallthru
    _
  // Predicated region
  $region10: #{_lambda_.35} parent=0 // pred_check
    _
  $region11: #{_lambda_.35} parent=0 // pred_check_branch
    %14 = sbr.rel (0) target = $region13
  $region12: #{_lambda_.35} parent=0 // pred_region
    _
  $region13: #{_lambda_.35} parent=0 // pred_fallthru
    _
  // Predicated region
  $region14: #{_lambda_.35} parent=0 // pred_check
    _
  $region15: #{_lambda_.35} parent=0 // pred_check_branch
    %16 = sbr.rel (0) target = $region17
  $region16: #{_lambda_.35} parent=0 // pred_region
    _
  $region17: #{_lambda_.35} parent=0 // pred_fallthru
    _
  %v18 = vld [vmem:[%s0] sm:$0xff]
  %v19 = vld [vmem:[%s0 + $0x8] sm:$0xff]
  %v20 = vld [vmem:[%s0 + $0x10] sm:$0xff]
  %v21 = vld [vmem:[%s0 + $0x18] sm:$0xff]
  %v22 = vld [vmem:[%s1] sm:$0xf]
  %v23 = vld [vmem:[%s1 + $0x4] sm:$0xf]
  %v24 = vld [vmem:[%s1 + $0x8] sm:$0xf]
  %v25 = vld [vmem:[%s1 + $0xc] sm:$0xf]
  %v26 = vld [vmem:[%s1 + $0x10] sm:$0xf]
  %v27 = vld [vmem:[%s1 + $0x14] sm:$0xf]
  %v28 = vld [vmem:[%s1 + $0x18] sm:$0xf]
  %v29 = vld [vmem:[%s1 + $0x1c] sm:$0xf]
  %v30 = vld [vmem:[%s1 + $0x20] sm:$0xf]
  %v31 = vld [vmem:[%s1 + $0x24] sm:$0xf]
  %v32 = vld [vmem:[%s1 + $0x28] sm:$0xf]
  %v33 = vld [vmem:[%s1 + $0x2c] sm:$0xf]
  %v34 = vld [vmem:[%s1 + $0x30] sm:$0xf]
  %v35 = vld [vmem:[%s1 + $0x34] sm:$0xf]
  %v36 = vld [vmem:[%s1 + $0x38] sm:$0xf]
  %v37 = vld [vmem:[%s1 + $0x3c] sm:$0xf]
  %v38 = vld [vmem:[%s1 + $0x40] sm:$0xf]
  %v39 = vld [vmem:[%s1 + $0x44] sm:$0xf]
  %v40 = vld [vmem:[%s1 + $0x48] sm:$0xf]
  %v41 = vld [vmem:[%s1 + $0x4c] sm:$0xf]
  %v42 = vld [vmem:[%s1 + $0x50] sm:$0xf]
  %v43 = vld [vmem:[%s1 + $0x54] sm:$0xf]
  %v44 = vld [vmem:[%s1 + $0x58] sm:$0xf]
  %v45 = vld [vmem:[%s1 + $0x5c] sm:$0xf]
  %v46 = vld [vmem:[%s1 + $0x60] sm:$0xf]
  %v47 = vld [vmem:[%s1 + $0x64] sm:$0xf]
  %v48 = vld [vmem:[%s1 + $0x68] sm:$0xf]
  %v49 = vld [vmem:[%s1 + $0x6c] sm:$0xf]
  %v50 = vld [vmem:[%s1 + $0x70] sm:$0xf]
  %v51 = vld [vmem:[%s1 + $0x74] sm:$0xf]
  %v52 = vld [vmem:[%s1 + $0x78] sm:$0xf]
  %v53 = vld [vmem:[%s1 + $0x7c] sm:$0xf]
  %v54 = vld [vmem:[%s1 + $0x80] sm:$0xf]
  %v55 = vld [vmem:[%s1 + $0x84] sm:$0xf]
  %v56 = vld [vmem:[%s1 + $0x88] sm:$0xf]
  %v57 = vld [vmem:[%s1 + $0x8c] sm:$0xf]
  %v58 = vld [vmem:[%s1 + $0x90] sm:$0xf]
  %v59 = vld [vmem:[%s1 + $0x94] sm:$0xf]
  %v60 = vld [vmem:[%s1 + $0x98] sm:$0xf]
  %v61 = vld [vmem:[%s1 + $0x9c] sm:$0xf]
  %v62 = vld [vmem:[%s1 + $0xa0] sm:$0xf]
  %v63 = vld [vmem:[%s1 + $0xa4] sm:$0xf]
  %v64 = vld [vmem:[%s1 + $0xa8] sm:$0xf]
  %v65 = vld [vmem:[%s1 + $0xac] sm:$0xf]
  %v66 = vld [vmem:[%s1 + $0xb0] sm:$0xf]
  %v67 = vld [vmem:[%s1 + $0xb4] sm:$0xf]
  %v68 = vld [vmem:[%s1 + $0xb8] sm:$0xf]
  %v69 = vld [vmem:[%s1 + $0xbc] sm:$0xf]
  %v70 = vld [vmem:[%s1 + $0xc0] sm:$0xf]
  %v71 = vld [vmem:[%s1 + $0xc4] sm:$0xf]
  %v72 = vld [vmem:[%s1 + $0xc8] sm:$0xf]
  %v73 = vld [vmem:[%s1 + $0xcc] sm:$0xf]
  %v74 = vld [vmem:[%s1 + $0xd0] sm:$0xf]
  %v75 = vld [vmem:[%s1 + $0xd4] sm:$0xf]
  %v80 = vunpack.c.l.b16 %v18
  %v81 = vunpack.c.h.b16 %v18
  %v82 = vunpack.c.l.b16 %v19
  %v83 = vunpack.c.h.b16 %v19
  %v84 = vunpack.c.l.b16 %v20
  %v85 = vunpack.c.h.b16 %v20
  %v86 = vunpack.c.l.b16 %v21
  %v87 = vunpack.c.h.b16 %v21
  %v88 = vpack.c.b16 %v84, %v80
  %v89 = vpack.c.b16 %v85, %v81
  %v90 = vpack.c.b16 %v86, %v82
  %v91 = vpack.c.b16 %v87, %v83
  %v149 = vunpack.c.l.b16 %v22
  %v150 = vunpack.c.l.b16 %v23
  %v151 = vunpack.c.l.b16 %v24
  %v152 = vunpack.c.l.b16 %v25
  %v153 = vunpack.c.l.b16 %v26
  %v154 = vunpack.c.l.b16 %v27
  %v155 = vunpack.c.l.b16 %v28
  %v156 = vunpack.c.l.b16 %v29
  %v157 = vunpack.c.l.b16 %v30
  %v158 = vunpack.c.l.b16 %v31
  %v159 = vunpack.c.l.b16 %v32
  %v160 = vunpack.c.l.b16 %v33
  %v161 = vunpack.c.l.b16 %v34
  %v162 = vunpack.c.l.b16 %v35
  %v163 = vunpack.c.l.b16 %v36
  %v164 = vunpack.c.l.b16 %v37
  %v165 = vunpack.c.l.b16 %v38
  %v166 = vunpack.c.l.b16 %v39
  %v167 = vunpack.c.l.b16 %v40
  %v168 = vunpack.c.l.b16 %v41
  %v169 = vunpack.c.l.b16 %v42
  %v170 = vunpack.c.l.b16 %v43
  %v171 = vunpack.c.l.b16 %v44
  %v172 = vunpack.c.l.b16 %v45
  %v173 = vunpack.c.l.b16 %v46
  %v174 = vunpack.c.l.b16 %v47
  %v175 = vunpack.c.l.b16 %v48
  %v176 = vunpack.c.l.b16 %v49
  %v177 = vunpack.c.l.b16 %v50
  %v178 = vunpack.c.l.b16 %v51
  %v179 = vunpack.c.l.b16 %v52
  %v180 = vunpack.c.l.b16 %v53
  %v181 = vunpack.c.l.b16 %v54
  %v182 = vunpack.c.l.b16 %v55
  %v183 = vunpack.c.l.b16 %v56
  %v184 = vunpack.c.l.b16 %v57
  %v185 = vunpack.c.l.b16 %v58
  %v186 = vunpack.c.l.b16 %v59
  %v187 = vunpack.c.l.b16 %v60
  %v188 = vunpack.c.l.b16 %v61
  %v189 = vunpack.c.l.b16 %v62
  %v190 = vunpack.c.l.b16 %v63
  %v191 = vunpack.c.l.b16 %v64
  %v192 = vunpack.c.l.b16 %v65
  %v193 = vunpack.c.l.b16 %v66
  %v194 = vunpack.c.l.b16 %v67
  %v195 = vunpack.c.l.b16 %v68
  %v196 = vunpack.c.l.b16 %v69
  %v197 = vunpack.c.l.b16 %v70
  %v198 = vunpack.c.l.b16 %v71
  %v199 = vunpack.c.l.b16 %v72
  %v200 = vunpack.c.l.b16 %v73
  %v201 = vunpack.c.l.b16 %v74
  %v202 = vunpack.c.l.b16 %v75
  %v203 = vpack.c.b16 %v150, %v149
  %v204 = vpack.c.b16 %v152, %v151
  %v205 = vpack.c.b16 %v154, %v153
  %v206 = vpack.c.b16 %v156, %v155
  %v207 = vpack.c.b16 %v158, %v157
  %v208 = vpack.c.b16 %v160, %v159
  %v209 = vpack.c.b16 %v162, %v161
  %v210 = vpack.c.b16 %v164, %v163
  %v211 = vpack.c.b16 %v166, %v165
  %v212 = vpack.c.b16 %v168, %v167
  %v213 = vpack.c.b16 %v170, %v169
  %v214 = vpack.c.b16 %v172, %v171
  %v215 = vpack.c.b16 %v174, %v173
  %v216 = vpack.c.b16 %v176, %v175
  %v217 = vpack.c.b16 %v178, %v177
  %v218 = vpack.c.b16 %v180, %v179
  %v219 = vpack.c.b16 %v182, %v181
  %v220 = vpack.c.b16 %v184, %v183
  %v221 = vpack.c.b16 %v186, %v185
  %v222 = vpack.c.b16 %v188, %v187
  %v223 = vpack.c.b16 %v190, %v189
  %v224 = vpack.c.b16 %v192, %v191
  %v225 = vpack.c.b16 %v194, %v193
  %v226 = vpack.c.b16 %v196, %v195
  %v227 = vpack.c.b16 %v198, %v197
  %v228 = vpack.c.b16 %v200, %v199
  %v229 = vpack.c.b16 %v202, %v201
  %vm257 = vcmask 392192
  %v259 = vsel %vm257, %v91, 0
  %261 = vmatprep.subr.bf16.mxu0 0
  %262 = vmatpush1.bf16.msra.mxu0 %v203
  %263 = vmatprep.subr.bf16.mxu0 0
  %264 = vmatpush1.bf16.msra.mxu0 %v204
  %265 = vmatprep.subr.bf16.mxu0 0
  %266 = vmatpush1.bf16.msra.mxu0 %v205
  %267 = vmatprep.subr.bf16.mxu0 0
  %268 = vmatpush1.bf16.msra.mxu0 %v206
  %269 = vmatprep.subr.bf16.mxu0 0
  %270 = vmatpush1.bf16.msra.mxu0 %v207
  %271 = vmatprep.subr.bf16.mxu0 0
  %272 = vmatpush1.bf16.msra.mxu0 %v208
  %273 = vmatprep.subr.bf16.mxu0 0
  %274 = vmatpush1.bf16.msra.mxu0 %v209
  %275 = vmatprep.subr.bf16.mxu0 0
  %276 = vmatpush1.bf16.msra.mxu0 %v210
  %277 = vmatprep.subr.bf16.mxu0 0
  %278 = vmatpush1.bf16.msra.mxu0 %v211
  %279 = vmatprep.subr.bf16.mxu0 0
  %280 = vmatpush1.bf16.msra.mxu0 %v212
  %281 = vmatprep.subr.bf16.mxu0 0
  %282 = vmatpush1.bf16.msra.mxu0 %v213
  %283 = vmatprep.subr.bf16.mxu0 0
  %284 = vmatpush1.bf16.msra.mxu0 %v214
  %285 = vmatprep.subr.bf16.mxu0 0
  %286 = vmatpush1.bf16.msra.mxu0 %v215
  %287 = vmatprep.subr.bf16.mxu0 0
  %288 = vmatpush1.bf16.msra.mxu0 %v216
  %289 = vmatprep.subr.bf16.mxu0 0
  %290 = vmatpush1.bf16.msra.mxu0 %v217
  %291 = vmatprep.subr.bf16.mxu0 0
  %292 = vmatpush1.bf16.msra.mxu0 %v218
  %293 = vmatprep.mubr.bf16.mxu0 %v89
  %294 = vmatmul.mubr.bf16.gmra.mrb[0].mxu0 %v88
  %v295 = vpop.f32.mrb[0].mxu0
  %v296 = vadd.f32 0.0, %v295
  %v297 = vpop.f32.mrb[0].mxu0
  %v298 = vpop.f32.mrb[0].mxu0
  %v299 = vadd.f32 0.0, %v298
  %v300 = vpop.f32.mrb[0].mxu0
  %301 = vdwg.mxu0
  %302 = vmatprep.subr.bf16.mxu0 0
  %303 = vmatpush1.bf16.msra.mxu0 %v219
  %304 = vmatprep.subr.bf16.mxu0 0
  %305 = vmatpush1.bf16.msra.mxu0 %v220
  %306 = vmatprep.subr.bf16.mxu0 0
  %307 = vmatpush1.bf16.msra.mxu0 %v221
  %308 = vmatprep.subr.bf16.mxu0 0
  %309 = vmatpush1.bf16.msra.mxu0 %v222
  %310 = vmatprep.subr.bf16.mxu0 0
  %311 = vmatpush1.bf16.msra.mxu0 %v223
  %312 = vmatprep.subr.bf16.mxu0 0
  %313 = vmatpush1.bf16.msra.mxu0 %v224
  %314 = vmatprep.subr.bf16.mxu0 0
  %315 = vmatpush1.bf16.msra.mxu0 %v225
  %316 = vmatprep.subr.bf16.mxu0 0
  %317 = vmatpush1.bf16.msra.mxu0 %v226
  %318 = vmatprep.subr.bf16.mxu0 0
  %319 = vmatpush1.bf16.msra.mxu0 %v227
  %320 = vmatprep.subr.bf16.mxu0 0
  %321 = vmatpush1.bf16.msra.mxu0 %v228
  %322 = vmatprep.subr.bf16.mxu0 0
  %323 = vmatpush1.bf16.msra.mxu0 %v229
  %324 = vmatprep.subr.bf16.mxu0 0
  %325 = vmatpush1.bf16.msra.mxu0 0
  %326 = vmatprep.subr.bf16.mxu0 0
  %327 = vmatpush1.bf16.msra.mxu0 0
  %328 = vmatprep.subr.bf16.mxu0 0
  %329 = vmatpush1.bf16.msra.mxu0 0
  %330 = vmatprep.subr.bf16.mxu0 0
  %331 = vmatpush1.bf16.msra.mxu0 0
  %332 = vmatprep.subr.bf16.mxu0 0
  %333 = vmatpush1.bf16.msra.mxu0 0
  %334 = vmatprep.mubr.bf16.mxu0 %v259
  %335 = vmatmul.mubr.bf16.gmra.mrb[0].mxu0 %v90
  %v336 = vpop.f32.mrb[0].mxu0
  %v337 = vadd.f32 %v296, %v336
  %v338 = vpop.f32.mrb[0].mxu0
  %v339 = vpop.f32.mrb[0].mxu0
  %v340 = vadd.f32 %v299, %v339
  %v341 = vpop.f32.mrb[0].mxu0
  %342 = vdwg.mxu0
  %v343 = vld [vmem:[%s2] sm:$0x1]
  %v345 = vlaneseq
  %v346 = vshrl.u32 %v345, 7
  %v347 = vsub.s32 0, %v346
  %v348 = vrot.slane %v343, %v347
  %v350 = vmul.f32 %v337, %v348
  %v351 = vmul.f32 %v340, %v348
  %v352 = vld [vmem:[%s3] sm:$0x1]
  %v354 = vlaneseq
  %v355 = vshrl.u32 %v354, 7
  %v356 = vsub.s32 0, %v355
  %v357 = vrot.slane %v352, %v356
  %v359 = vadd.f32 %v350, %v357
  %v360 = vadd.f32 %v351, %v357
  %v361 = vmax.f32 %v359, 0.0
  %v362 = vmax.f32 %v360, 0.0
  %v363 = vpack.c.bf16 %v362, %v361
  %v365 = vunpack.c.l.b16 %v363
  %v366 = vunpack.c.h.b16 %v363
  %v367 = vpack.c.b16 %v365, %v365
  %v368 = vpack.c.b16 %v366, %v366
  %vm371 = vcmask 388096
  %372 = vst.msk [vmem:[%s4] sm:$0xf] %vm371, %v367
  %373 = vst.msk [vmem:[%s4 + $0x4] sm:$0xf] %vm371, %v368
  // Predicated region
  $region18: #{_lambda_.35} parent=0 // pred_check
    _
  $region19: #{_lambda_.35} parent=0 // pred_check_branch
    %375 = sbr.rel (0) target = $region21
  $region20: #{_lambda_.35} parent=0 // pred_region
    _
  $region21: #{_lambda_.35} parent=0 // pred_fallthru
    _
  // Predicated region
  $region22: #{_lambda_.35} parent=0 // pred_check
    _
  $region23: #{_lambda_.35} parent=0 // pred_check_branch
    %377 = sbr.rel (0) target = $region25
  $region24: #{_lambda_.35} parent=0 // pred_region
    _
  $region25: #{_lambda_.35} parent=0 // pred_fallthru
    _

// kernel: _lambda_.34
$region0: #{_lambda_.34}
  #allocation0 [shape = 'u32[]', space=smem, size = 0x4, offset = 0x4, fixed_abs, tag = 'smem constant byte address 0x4 - core index']
  #allocation1 [shape = 'u32[144,128]{1,0:T(1,128)}', space=vmem, size = 0x12000, scoped, tag = 'internal scratch']
  %s0 = inlined_call_operand.vmem [shape: bf16[16,432], index: 0, kind: input, shape index: {}]
  %s1 = inlined_call_operand.vmem [shape: bf16[432,48], index: 1, kind: input, shape index: {}]
  %s2 = inlined_call_operand.vmem [shape: f32[1,48], index: 2, kind: input, shape index: {}]
  %s3 = inlined_call_operand.vmem [shape: f32[1,48], index: 3, kind: input, shape index: {}]
  %s4 = inlined_call_operand.vmem [shape: bf16[16,48], index: 4, kind: input, shape index: {}]
  %s5 = inlined_call_operand.vmem [shape: bf16[16,48], index: 5, kind: output, shape index: {}]
  %s6 = sld [smem:[#allocation0]]
  $region30: #{_lambda_.34} parent=0
    _
  %s8 = ssub.s32 1, %s6
  %s9 = scalar_select 0, %s8, %s6
  // Predicated region
  $region2: #{_lambda_.34} parent=0 // pred_check
    _
  $region3: #{_lambda_.34} parent=0 // pred_check_branch
    %11 = sbr.rel (0) target = $region5
  $region4: #{_lambda_.34} parent=0 // pred_region
    _
  $region5: #{_lambda_.34} parent=0 // pred_fallthru
    _
  // Predicated region
  $region6: #{_lambda_.34} parent=0 // pred_check
    _
  $region7: #{_lambda_.34} parent=0 // pred_check_branch
    %13 = sbr.rel (0) target = $region9
  $region8: #{_lambda_.34} parent=0 // pred_region
    _
  $region9: #{_lambda_.34} parent=0 // pred_fallthru
    _
  // Predicated region
  $region10: #{_lambda_.34} parent=0 // pred_check
    _
  $region11: #{_lambda_.34} parent=0 // pred_check_branch
    %15 = sbr.rel (0) target = $region13
  $region12: #{_lambda_.34} parent=0 // pred_region
    _
  $region13: #{_lambda_.34} parent=0 // pred_fallthru
    _
  // Predicated region
  $region14: #{_lambda_.34} parent=0 // pred_check
    _
  $region15: #{_lambda_.34} parent=0 // pred_check_branch
    %17 = sbr.rel (0) target = $region17
  $region16: #{_lambda_.34} parent=0 // pred_region
    _
  $region17: #{_lambda_.34} parent=0 // pred_fallthru
    _
  // Predicated region
  $region18: #{_lambda_.34} parent=0 // pred_check
    _
  $region19: #{_lambda_.34} parent=0 // pred_check_branch
    %19 = sbr.rel (0) target = $region21
  $region20: #{_lambda_.34} parent=0 // pred_region
    _
  $region21: #{_lambda_.34} parent=0 // pred_fallthru
    _
  %v21 = vld [vmem:[%s0] sm:$0xff]
  %v22 = vld [vmem:[%s0 + $0x8] sm:$0xff]
  %v23 = vld [vmem:[%s0 + $0x10] sm:$0xff]
  %v24 = vld [vmem:[%s0 + $0x18] sm:$0xff]
  %v25 = vld [vmem:[%s1] sm:$0xf]
  %v26 = vld [vmem:[%s1 + $0x4] sm:$0xf]
  %v27 = vld [vmem:[%s1 + $0x8] sm:$0xf]
  %v28 = vld [vmem:[%s1 + $0xc] sm:$0xf]
  %v29 = vld [vmem:[%s1 + $0x10] sm:$0xf]
  %v30 = vld [vmem:[%s1 + $0x14] sm:$0xf]
  %v31 = vld [vmem:[%s1 + $0x18] sm:$0xf]
  %v32 = vld [vmem:[%s1 + $0x1c] sm:$0xf]
  %v33 = vld [vmem:[%s1 + $0x20] sm:$0xf]
  %v34 = vld [vmem:[%s1 + $0x24] sm:$0xf]
  %v35 = vld [vmem:[%s1 + $0x28] sm:$0xf]
  %v36 = vld [vmem:[%s1 + $0x2c] sm:$0xf]
  %v37 = vld [vmem:[%s1 + $0x30] sm:$0xf]
  %v38 = vld [vmem:[%s1 + $0x34] sm:$0xf]
  %v39 = vld [vmem:[%s1 + $0x38] sm:$0xf]
  %v40 = vld [vmem:[%s1 + $0x3c] sm:$0xf]
  %v41 = vld [vmem:[%s1 + $0x40] sm:$0xf]
  %v42 = vld [vmem:[%s1 + $0x44] sm:$0xf]
  %v43 = vld [vmem:[%s1 + $0x48] sm:$0xf]
  %v44 = vld [vmem:[%s1 + $0x4c] sm:$0xf]
  %v45 = vld [vmem:[%s1 + $0x50] sm:$0xf]
  %v46 = vld [vmem:[%s1 + $0x54] sm:$0xf]
  %v47 = vld [vmem:[%s1 + $0x58] sm:$0xf]
  %v48 = vld [vmem:[%s1 + $0x5c] sm:$0xf]
  %v49 = vld [vmem:[%s1 + $0x60] sm:$0xf]
  %v50 = vld [vmem:[%s1 + $0x64] sm:$0xf]
  %v51 = vld [vmem:[%s1 + $0x68] sm:$0xf]
  %v52 = vld [vmem:[%s1 + $0x6c] sm:$0xf]
  %v53 = vld [vmem:[%s1 + $0x70] sm:$0xf]
  %v54 = vld [vmem:[%s1 + $0x74] sm:$0xf]
  %v55 = vld [vmem:[%s1 + $0x78] sm:$0xf]
  %v56 = vld [vmem:[%s1 + $0x7c] sm:$0xf]
  %v57 = vld [vmem:[%s1 + $0x80] sm:$0xf]
  %v58 = vld [vmem:[%s1 + $0x84] sm:$0xf]
  %v59 = vld [vmem:[%s1 + $0x88] sm:$0xf]
  %v60 = vld [vmem:[%s1 + $0x8c] sm:$0xf]
  %v61 = vld [vmem:[%s1 + $0x90] sm:$0xf]
  %v62 = vld [vmem:[%s1 + $0x94] sm:$0xf]
  %v63 = vld [vmem:[%s1 + $0x98] sm:$0xf]
  %v64 = vld [vmem:[%s1 + $0x9c] sm:$0xf]
  %v65 = vld [vmem:[%s1 + $0xa0] sm:$0xf]
  %v66 = vld [vmem:[%s1 + $0xa4] sm:$0xf]
  %v67 = vld [vmem:[%s1 + $0xa8] sm:$0xf]
  %v68 = vld [vmem:[%s1 + $0xac] sm:$0xf]
  %v69 = vld [vmem:[%s1 + $0xb0] sm:$0xf]
  %v70 = vld [vmem:[%s1 + $0xb4] sm:$0xf]
  %v71 = vld [vmem:[%s1 + $0xb8] sm:$0xf]
  %v72 = vld [vmem:[%s1 + $0xbc] sm:$0xf]
  %v73 = vld [vmem:[%s1 + $0xc0] sm:$0xf]
  %v74 = vld [vmem:[%s1 + $0xc4] sm:$0xf]
  %v75 = vld [vmem:[%s1 + $0xc8] sm:$0xf]
  %v76 = vld [vmem:[%s1 + $0xcc] sm:$0xf]
  %v77 = vld [vmem:[%s1 + $0xd0] sm:$0xf]
  %v78 = vld [vmem:[%s1 + $0xd4] sm:$0xf]
  %v83 = vunpack.c.l.b16 %v21
  %v84 = vunpack.c.h.b16 %v21
  %v85 = vunpack.c.l.b16 %v22
  %v86 = vunpack.c.h.b16 %v22
  %v87 = vunpack.c.l.b16 %v23
  %v88 = vunpack.c.h.b16 %v23
  %v89 = vunpack.c.l.b16 %v24
  %v90 = vunpack.c.h.b16 %v24
  %v91 = vpack.c.b16 %v87, %v83
  %v92 = vpack.c.b16 %v88, %v84
  %v93 = vpack.c.b16 %v89, %v85
  %v94 = vpack.c.b16 %v90, %v86
  %v152 = vunpack.c.l.b16 %v25
  %v153 = vunpack.c.l.b16 %v26
  %v154 = vunpack.c.l.b16 %v27
  %v155 = vunpack.c.l.b16 %v28
  %v156 = vunpack.c.l.b16 %v29
  %v157 = vunpack.c.l.b16 %v30
  %v158 = vunpack.c.l.b16 %v31
  %v159 = vunpack.c.l.b16 %v32
  %v160 = vunpack.c.l.b16 %v33
  %v161 = vunpack.c.l.b16 %v34
  %v162 = vunpack.c.l.b16 %v35
  %v163 = vunpack.c.l.b16 %v36
  %v164 = vunpack.c.l.b16 %v37
  %v165 = vunpack.c.l.b16 %v38
  %v166 = vunpack.c.l.b16 %v39
  %v167 = vunpack.c.l.b16 %v40
  %v168 = vunpack.c.l.b16 %v41
  %v169 = vunpack.c.l.b16 %v42
  %v170 = vunpack.c.l.b16 %v43
  %v171 = vunpack.c.l.b16 %v44
  %v172 = vunpack.c.l.b16 %v45
  %v173 = vunpack.c.l.b16 %v46
  %v174 = vunpack.c.l.b16 %v47
  %v175 = vunpack.c.l.b16 %v48
  %v176 = vunpack.c.l.b16 %v49
  %v177 = vunpack.c.l.b16 %v50
  %v178 = vunpack.c.l.b16 %v51
  %v179 = vunpack.c.l.b16 %v52
  %v180 = vunpack.c.l.b16 %v53
  %v181 = vunpack.c.l.b16 %v54
  %v182 = vunpack.c.l.b16 %v55
  %v183 = vunpack.c.l.b16 %v56
  %v184 = vunpack.c.l.b16 %v57
  %v185 = vunpack.c.l.b16 %v58
  %v186 = vunpack.c.l.b16 %v59
  %v187 = vunpack.c.l.b16 %v60
  %v188 = vunpack.c.l.b16 %v61
  %v189 = vunpack.c.l.b16 %v62
  %v190 = vunpack.c.l.b16 %v63
  %v191 = vunpack.c.l.b16 %v64
  %v192 = vunpack.c.l.b16 %v65
  %v193 = vunpack.c.l.b16 %v66
  %v194 = vunpack.c.l.b16 %v67
  %v195 = vunpack.c.l.b16 %v68
  %v196 = vunpack.c.l.b16 %v69
  %v197 = vunpack.c.l.b16 %v70
  %v198 = vunpack.c.l.b16 %v71
  %v199 = vunpack.c.l.b16 %v72
  %v200 = vunpack.c.l.b16 %v73
  %v201 = vunpack.c.l.b16 %v74
  %v202 = vunpack.c.l.b16 %v75
  %v203 = vunpack.c.l.b16 %v76
  %v204 = vunpack.c.l.b16 %v77
  %v205 = vunpack.c.l.b16 %v78
  %v206 = vpack.c.b16 %v153, %v152
  %v207 = vpack.c.b16 %v155, %v154
  %v208 = vpack.c.b16 %v157, %v156
  %v209 = vpack.c.b16 %v159, %v158
  %v210 = vpack.c.b16 %v161, %v160
  %v211 = vpack.c.b16 %v163, %v162
  %v212 = vpack.c.b16 %v165, %v164
  %v213 = vpack.c.b16 %v167, %v166
  %v214 = vpack.c.b16 %v169, %v168
  %v215 = vpack.c.b16 %v171, %v170
  %v216 = vpack.c.b16 %v173, %v172
  %v217 = vpack.c.b16 %v175, %v174
  %v218 = vpack.c.b16 %v177, %v176
  %v219 = vpack.c.b16 %v179, %v178
  %v220 = vpack.c.b16 %v181, %v180
  %v221 = vpack.c.b16 %v183, %v182
  %v222 = vpack.c.b16 %v185, %v184
  %v223 = vpack.c.b16 %v187, %v186
  %v224 = vpack.c.b16 %v189, %v188
  %v225 = vpack.c.b16 %v191, %v190
  %v226 = vpack.c.b16 %v193, %v192
  %v227 = vpack.c.b16 %v195, %v194
  %v228 = vpack.c.b16 %v197, %v196
  %v229 = vpack.c.b16 %v199, %v198
  %v230 = vpack.c.b16 %v201, %v200
  %v231 = vpack.c.b16 %v203, %v202
  %v232 = vpack.c.b16 %v205, %v204
  %vm260 = vcmask 392192
  %v262 = vsel %vm260, %v94, 0
  %264 = vmatprep.subr.bf16.mxu0 0
  %265 = vmatpush1.bf16.msra.mxu0 %v206
  %266 = vmatprep.subr.bf16.mxu0 0
  %267 = vmatpush1.bf16.msra.mxu0 %v207
  %268 = vmatprep.subr.bf16.mxu0 0
  %269 = vmatpush1.bf16.msra.mxu0 %v208
  %270 = vmatprep.subr.bf16.mxu0 0
  %271 = vmatpush1.bf16.msra.mxu0 %v209
  %272 = vmatprep.subr.bf16.mxu0 0
  %273 = vmatpush1.bf16.msra.mxu0 %v210
  %274 = vmatprep.subr.bf16.mxu0 0
  %275 = vmatpush1.bf16.msra.mxu0 %v211
  %276 = vmatprep.subr.bf16.mxu0 0
  %277 = vmatpush1.bf16.msra.mxu0 %v212
  %278 = vmatprep.subr.bf16.mxu0 0
  %279 = vmatpush1.bf16.msra.mxu0 %v213
  %280 = vmatprep.subr.bf16.mxu0 0
  %281 = vmatpush1.bf16.msra.mxu0 %v214
  %282 = vmatprep.subr.bf16.mxu0 0
  %283 = vmatpush1.bf16.msra.mxu0 %v215
  %284 = vmatprep.subr.bf16.mxu0 0
  %285 = vmatpush1.bf16.msra.mxu0 %v216
  %286 = vmatprep.subr.bf16.mxu0 0
  %287 = vmatpush1.bf16.msra.mxu0 %v217
  %288 = vmatprep.subr.bf16.mxu0 0
  %289 = vmatpush1.bf16.msra.mxu0 %v218
  %290 = vmatprep.subr.bf16.mxu0 0
  %291 = vmatpush1.bf16.msra.mxu0 %v219
  %292 = vmatprep.subr.bf16.mxu0 0
  %293 = vmatpush1.bf16.msra.mxu0 %v220
  %294 = vmatprep.subr.bf16.mxu0 0
  %295 = vmatpush1.bf16.msra.mxu0 %v221
  %296 = vmatprep.mubr.bf16.mxu0 %v92
  %297 = vmatmul.mubr.bf16.gmra.mrb[0].mxu0 %v91
  %v298 = vpop.f32.mrb[0].mxu0
  %v299 = vadd.f32 0.0, %v298
  %v300 = vpop.f32.mrb[0].mxu0
  %v301 = vpop.f32.mrb[0].mxu0
  %v302 = vadd.f32 0.0, %v301
  %v303 = vpop.f32.mrb[0].mxu0
  %304 = vdwg.mxu0
  %305 = vmatprep.subr.bf16.mxu0 0
  %306 = vmatpush1.bf16.msra.mxu0 %v222
  %307 = vmatprep.subr.bf16.mxu0 0
  %308 = vmatpush1.bf16.msra.mxu0 %v223
  %309 = vmatprep.subr.bf16.mxu0 0
  %310 = vmatpush1.bf16.msra.mxu0 %v224
  %311 = vmatprep.subr.bf16.mxu0 0
  %312 = vmatpush1.bf16.msra.mxu0 %v225
  %313 = vmatprep.subr.bf16.mxu0 0
  %314 = vmatpush1.bf16.msra.mxu0 %v226
  %315 = vmatprep.subr.bf16.mxu0 0
  %316 = vmatpush1.bf16.msra.mxu0 %v227
  %317 = vmatprep.subr.bf16.mxu0 0
  %318 = vmatpush1.bf16.msra.mxu0 %v228
  %319 = vmatprep.subr.bf16.mxu0 0
  %320 = vmatpush1.bf16.msra.mxu0 %v229
  %321 = vmatprep.subr.bf16.mxu0 0
  %322 = vmatpush1.bf16.msra.mxu0 %v230
  %323 = vmatprep.subr.bf16.mxu0 0
  %324 = vmatpush1.bf16.msra.mxu0 %v231
  %325 = vmatprep.subr.bf16.mxu0 0
  %326 = vmatpush1.bf16.msra.mxu0 %v232
  %327 = vmatprep.subr.bf16.mxu0 0
  %328 = vmatpush1.bf16.msra.mxu0 0
  %329 = vmatprep.subr.bf16.mxu0 0
  %330 = vmatpush1.bf16.msra.mxu0 0
  %331 = vmatprep.subr.bf16.mxu0 0
  %332 = vmatpush1.bf16.msra.mxu0 0
  %333 = vmatprep.subr.bf16.mxu0 0
  %334 = vmatpush1.bf16.msra.mxu0 0
  %335 = vmatprep.subr.bf16.mxu0 0
  %336 = vmatpush1.bf16.msra.mxu0 0
  %337 = vmatprep.mubr.bf16.mxu0 %v262
  %338 = vmatmul.mubr.bf16.gmra.mrb[0].mxu0 %v93
  %v339 = vpop.f32.mrb[0].mxu0
  %v340 = vadd.f32 %v299, %v339
  %v341 = vpop.f32.mrb[0].mxu0
  %v342 = vpop.f32.mrb[0].mxu0
  %v343 = vadd.f32 %v302, %v342
  %v344 = vpop.f32.mrb[0].mxu0
  %345 = vdwg.mxu0
  %v346 = vld [vmem:[%s2] sm:$0x1]
  %v348 = vlaneseq
  %v349 = vshrl.u32 %v348, 7
  %v350 = vsub.s32 0, %v349
  %v351 = vrot.slane %v346, %v350
  %v353 = vmul.f32 %v340, %v351
  %v354 = vmul.f32 %v343, %v351
  %v355 = vld [vmem:[%s3] sm:$0x1]
  %v357 = vlaneseq
  %v358 = vshrl.u32 %v357, 7
  %v359 = vsub.s32 0, %v358
  %v360 = vrot.slane %v355, %v359
  %v362 = vadd.f32 %v353, %v360
  %v363 = vadd.f32 %v354, %v360
  %v364 = vmax.f32 %v362, 0.0
  %v365 = vmax.f32 %v363, 0.0
  %v366 = vld [vmem:[%s4] sm:$0xf]
  %v367 = vld [vmem:[%s4 + $0x4] sm:$0xf]
  %v368 = vunpack.c.l.bf16 %v366
  %v369 = vunpack.c.l.bf16 %v367
  %v370 = vadd.f32 %v364, %v368
  %v371 = vadd.f32 %v365, %v369
  %v372 = vmax.f32 %v370, 0.0
  %v373 = vmax.f32 %v371, 0.0
  %v374 = vpack.c.bf16 %v373, %v372
  %v376 = vunpack.c.l.b16 %v374
  %v377 = vunpack.c.h.b16 %v374
  %v378 = vpack.c.b16 %v376, %v376
  %v379 = vpack.c.b16 %v377, %v377
  %vm382 = vcmask 388096
  %383 = vst.msk [vmem:[%s5] sm:$0xf] %vm382, %v378
  %384 = vst.msk [vmem:[%s5 + $0x4] sm:$0xf] %vm382, %v379
  // Predicated region
  $region22: #{_lambda_.34} parent=0 // pred_check
    _
  $region23: #{_lambda_.34} parent=0 // pred_check_branch
    %386 = sbr.rel (0) target = $region25
  $region24: #{_lambda_.34} parent=0 // pred_region
    _
  $region25: #{_lambda_.34} parent=0 // pred_fallthru
    _
  // Predicated region
  $region26: #{_lambda_.34} parent=0 // pred_check
    _
  $region27: #{_lambda_.34} parent=0 // pred_check_branch
    %388 = sbr.rel (0) target = $region29
  $region28: #{_lambda_.34} parent=0 // pred_region
    _
  $region29: #{_lambda_.34} parent=0 // pred_fallthru
    _

// kernel: _lambda_.37
$region0: #{_lambda_.37}
  #allocation0 [shape = 'u32[]', space=smem, size = 0x4, offset = 0x4, fixed_abs, tag = 'smem constant byte address 0x4 - core index']
  #allocation1 [shape = 'u32[144,128]{1,0:T(1,128)}', space=vmem, size = 0x12000, scoped, tag = 'internal scratch']
  %s0 = inlined_call_operand.vmem [shape: bf16[16,432], index: 0, kind: input, shape index: {}]
  %s1 = inlined_call_operand.vmem [shape: bf16[432,48], index: 1, kind: input, shape index: {}]
  %s2 = inlined_call_operand.vmem [shape: f32[1,48], index: 2, kind: input, shape index: {}]
  %s3 = inlined_call_operand.vmem [shape: f32[1,48], index: 3, kind: input, shape index: {}]
  %s4 = inlined_call_operand.vmem [shape: f32[16,48], index: 4, kind: output, shape index: {}]
  %s5 = sld [smem:[#allocation0]]
  $region26: #{_lambda_.37} parent=0
    _
  %s7 = ssub.s32 1, %s5
  %s8 = scalar_select 0, %s7, %s5
  // Predicated region
  $region2: #{_lambda_.37} parent=0 // pred_check
    _
  $region3: #{_lambda_.37} parent=0 // pred_check_branch
    %10 = sbr.rel (0) target = $region5
  $region4: #{_lambda_.37} parent=0 // pred_region
    _
  $region5: #{_lambda_.37} parent=0 // pred_fallthru
    _
  // Predicated region
  $region6: #{_lambda_.37} parent=0 // pred_check
    _
  $region7: #{_lambda_.37} parent=0 // pred_check_branch
    %12 = sbr.rel (0) target = $region9
  $region8: #{_lambda_.37} parent=0 // pred_region
    _
  $region9: #{_lambda_.37} parent=0 // pred_fallthru
    _
  // Predicated region
  $region10: #{_lambda_.37} parent=0 // pred_check
    _
  $region11: #{_lambda_.37} parent=0 // pred_check_branch
    %14 = sbr.rel (0) target = $region13
  $region12: #{_lambda_.37} parent=0 // pred_region
    _
  $region13: #{_lambda_.37} parent=0 // pred_fallthru
    _
  // Predicated region
  $region14: #{_lambda_.37} parent=0 // pred_check
    _
  $region15: #{_lambda_.37} parent=0 // pred_check_branch
    %16 = sbr.rel (0) target = $region17
  $region16: #{_lambda_.37} parent=0 // pred_region
    _
  $region17: #{_lambda_.37} parent=0 // pred_fallthru
    _
  %v18 = vld [vmem:[%s0] sm:$0xff]
  %v19 = vld [vmem:[%s0 + $0x8] sm:$0xff]
  %v20 = vld [vmem:[%s0 + $0x10] sm:$0xff]
  %v21 = vld [vmem:[%s0 + $0x18] sm:$0xff]
  %v22 = vld [vmem:[%s1] sm:$0xf]
  %v23 = vld [vmem:[%s1 + $0x4] sm:$0xf]
  %v24 = vld [vmem:[%s1 + $0x8] sm:$0xf]
  %v25 = vld [vmem:[%s1 + $0xc] sm:$0xf]
  %v26 = vld [vmem:[%s1 + $0x10] sm:$0xf]
  %v27 = vld [vmem:[%s1 + $0x14] sm:$0xf]
  %v28 = vld [vmem:[%s1 + $0x18] sm:$0xf]
  %v29 = vld [vmem:[%s1 + $0x1c] sm:$0xf]
  %v30 = vld [vmem:[%s1 + $0x20] sm:$0xf]
  %v31 = vld [vmem:[%s1 + $0x24] sm:$0xf]
  %v32 = vld [vmem:[%s1 + $0x28] sm:$0xf]
  %v33 = vld [vmem:[%s1 + $0x2c] sm:$0xf]
  %v34 = vld [vmem:[%s1 + $0x30] sm:$0xf]
  %v35 = vld [vmem:[%s1 + $0x34] sm:$0xf]
  %v36 = vld [vmem:[%s1 + $0x38] sm:$0xf]
  %v37 = vld [vmem:[%s1 + $0x3c] sm:$0xf]
  %v38 = vld [vmem:[%s1 + $0x40] sm:$0xf]
  %v39 = vld [vmem:[%s1 + $0x44] sm:$0xf]
  %v40 = vld [vmem:[%s1 + $0x48] sm:$0xf]
  %v41 = vld [vmem:[%s1 + $0x4c] sm:$0xf]
  %v42 = vld [vmem:[%s1 + $0x50] sm:$0xf]
  %v43 = vld [vmem:[%s1 + $0x54] sm:$0xf]
  %v44 = vld [vmem:[%s1 + $0x58] sm:$0xf]
  %v45 = vld [vmem:[%s1 + $0x5c] sm:$0xf]
  %v46 = vld [vmem:[%s1 + $0x60] sm:$0xf]
  %v47 = vld [vmem:[%s1 + $0x64] sm:$0xf]
  %v48 = vld [vmem:[%s1 + $0x68] sm:$0xf]
  %v49 = vld [vmem:[%s1 + $0x6c] sm:$0xf]
  %v50 = vld [vmem:[%s1 + $0x70] sm:$0xf]
  %v51 = vld [vmem:[%s1 + $0x74] sm:$0xf]
  %v52 = vld [vmem:[%s1 + $0x78] sm:$0xf]
  %v53 = vld [vmem:[%s1 + $0x7c] sm:$0xf]
  %v54 = vld [vmem:[%s1 + $0x80] sm:$0xf]
  %v55 = vld [vmem:[%s1 + $0x84] sm:$0xf]
  %v56 = vld [vmem:[%s1 + $0x88] sm:$0xf]
  %v57 = vld [vmem:[%s1 + $0x8c] sm:$0xf]
  %v58 = vld [vmem:[%s1 + $0x90] sm:$0xf]
  %v59 = vld [vmem:[%s1 + $0x94] sm:$0xf]
  %v60 = vld [vmem:[%s1 + $0x98] sm:$0xf]
  %v61 = vld [vmem:[%s1 + $0x9c] sm:$0xf]
  %v62 = vld [vmem:[%s1 + $0xa0] sm:$0xf]
  %v63 = vld [vmem:[%s1 + $0xa4] sm:$0xf]
  %v64 = vld [vmem:[%s1 + $0xa8] sm:$0xf]
  %v65 = vld [vmem:[%s1 + $0xac] sm:$0xf]
  %v66 = vld [vmem:[%s1 + $0xb0] sm:$0xf]
  %v67 = vld [vmem:[%s1 + $0xb4] sm:$0xf]
  %v68 = vld [vmem:[%s1 + $0xb8] sm:$0xf]
  %v69 = vld [vmem:[%s1 + $0xbc] sm:$0xf]
  %v70 = vld [vmem:[%s1 + $0xc0] sm:$0xf]
  %v71 = vld [vmem:[%s1 + $0xc4] sm:$0xf]
  %v72 = vld [vmem:[%s1 + $0xc8] sm:$0xf]
  %v73 = vld [vmem:[%s1 + $0xcc] sm:$0xf]
  %v74 = vld [vmem:[%s1 + $0xd0] sm:$0xf]
  %v75 = vld [vmem:[%s1 + $0xd4] sm:$0xf]
  %v80 = vunpack.c.l.b16 %v18
  %v81 = vunpack.c.h.b16 %v18
  %v82 = vunpack.c.l.b16 %v19
  %v83 = vunpack.c.h.b16 %v19
  %v84 = vunpack.c.l.b16 %v20
  %v85 = vunpack.c.h.b16 %v20
  %v86 = vunpack.c.l.b16 %v21
  %v87 = vunpack.c.h.b16 %v21
  %v88 = vpack.c.b16 %v84, %v80
  %v89 = vpack.c.b16 %v85, %v81
  %v90 = vpack.c.b16 %v86, %v82
  %v91 = vpack.c.b16 %v87, %v83
  %v149 = vunpack.c.l.b16 %v22
  %v150 = vunpack.c.l.b16 %v23
  %v151 = vunpack.c.l.b16 %v24
  %v152 = vunpack.c.l.b16 %v25
  %v153 = vunpack.c.l.b16 %v26
  %v154 = vunpack.c.l.b16 %v27
  %v155 = vunpack.c.l.b16 %v28
  %v156 = vunpack.c.l.b16 %v29
  %v157 = vunpack.c.l.b16 %v30
  %v158 = vunpack.c.l.b16 %v31
  %v159 = vunpack.c.l.b16 %v32
  %v160 = vunpack.c.l.b16 %v33
  %v161 = vunpack.c.l.b16 %v34
  %v162 = vunpack.c.l.b16 %v35
  %v163 = vunpack.c.l.b16 %v36
  %v164 = vunpack.c.l.b16 %v37
  %v165 = vunpack.c.l.b16 %v38
  %v166 = vunpack.c.l.b16 %v39
  %v167 = vunpack.c.l.b16 %v40
  %v168 = vunpack.c.l.b16 %v41
  %v169 = vunpack.c.l.b16 %v42
  %v170 = vunpack.c.l.b16 %v43
  %v171 = vunpack.c.l.b16 %v44
  %v172 = vunpack.c.l.b16 %v45
  %v173 = vunpack.c.l.b16 %v46
  %v174 = vunpack.c.l.b16 %v47
  %v175 = vunpack.c.l.b16 %v48
  %v176 = vunpack.c.l.b16 %v49
  %v177 = vunpack.c.l.b16 %v50
  %v178 = vunpack.c.l.b16 %v51
  %v179 = vunpack.c.l.b16 %v52
  %v180 = vunpack.c.l.b16 %v53
  %v181 = vunpack.c.l.b16 %v54
  %v182 = vunpack.c.l.b16 %v55
  %v183 = vunpack.c.l.b16 %v56
  %v184 = vunpack.c.l.b16 %v57
  %v185 = vunpack.c.l.b16 %v58
  %v186 = vunpack.c.l.b16 %v59
  %v187 = vunpack.c.l.b16 %v60
  %v188 = vunpack.c.l.b16 %v61
  %v189 = vunpack.c.l.b16 %v62
  %v190 = vunpack.c.l.b16 %v63
  %v191 = vunpack.c.l.b16 %v64
  %v192 = vunpack.c.l.b16 %v65
  %v193 = vunpack.c.l.b16 %v66
  %v194 = vunpack.c.l.b16 %v67
  %v195 = vunpack.c.l.b16 %v68
  %v196 = vunpack.c.l.b16 %v69
  %v197 = vunpack.c.l.b16 %v70
  %v198 = vunpack.c.l.b16 %v71
  %v199 = vunpack.c.l.b16 %v72
  %v200 = vunpack.c.l.b16 %v73
  %v201 = vunpack.c.l.b16 %v74
  %v202 = vunpack.c.l.b16 %v75
  %v203 = vpack.c.b16 %v150, %v149
  %v204 = vpack.c.b16 %v152, %v151
  %v205 = vpack.c.b16 %v154, %v153
  %v206 = vpack.c.b16 %v156, %v155
  %v207 = vpack.c.b16 %v158, %v157
  %v208 = vpack.c.b16 %v160, %v159
  %v209 = vpack.c.b16 %v162, %v161
  %v210 = vpack.c.b16 %v164, %v163
  %v211 = vpack.c.b16 %v166, %v165
  %v212 = vpack.c.b16 %v168, %v167
  %v213 = vpack.c.b16 %v170, %v169
  %v214 = vpack.c.b16 %v172, %v171
  %v215 = vpack.c.b16 %v174, %v173
  %v216 = vpack.c.b16 %v176, %v175
  %v217 = vpack.c.b16 %v178, %v177
  %v218 = vpack.c.b16 %v180, %v179
  %v219 = vpack.c.b16 %v182, %v181
  %v220 = vpack.c.b16 %v184, %v183
  %v221 = vpack.c.b16 %v186, %v185
  %v222 = vpack.c.b16 %v188, %v187
  %v223 = vpack.c.b16 %v190, %v189
  %v224 = vpack.c.b16 %v192, %v191
  %v225 = vpack.c.b16 %v194, %v193
  %v226 = vpack.c.b16 %v196, %v195
  %v227 = vpack.c.b16 %v198, %v197
  %v228 = vpack.c.b16 %v200, %v199
  %v229 = vpack.c.b16 %v202, %v201
  %vm257 = vcmask 392192
  %v259 = vsel %vm257, %v91, 0
  %261 = vmatprep.subr.bf16.mxu0 0
  %262 = vmatpush1.bf16.msra.mxu0 %v203
  %263 = vmatprep.subr.bf16.mxu0 0
  %264 = vmatpush1.bf16.msra.mxu0 %v204
  %265 = vmatprep.subr.bf16.mxu0 0
  %266 = vmatpush1.bf16.msra.mxu0 %v205
  %267 = vmatprep.subr.bf16.mxu0 0
  %268 = vmatpush1.bf16.msra.mxu0 %v206
  %269 = vmatprep.subr.bf16.mxu0 0
  %270 = vmatpush1.bf16.msra.mxu0 %v207
  %271 = vmatprep.subr.bf16.mxu0 0
  %272 = vmatpush1.bf16.msra.mxu0 %v208
  %273 = vmatprep.subr.bf16.mxu0 0
  %274 = vmatpush1.bf16.msra.mxu0 %v209
  %275 = vmatprep.subr.bf16.mxu0 0
  %276 = vmatpush1.bf16.msra.mxu0 %v210
  %277 = vmatprep.subr.bf16.mxu0 0
  %278 = vmatpush1.bf16.msra.mxu0 %v211
  %279 = vmatprep.subr.bf16.mxu0 0
  %280 = vmatpush1.bf16.msra.mxu0 %v212
  %281 = vmatprep.subr.bf16.mxu0 0
  %282 = vmatpush1.bf16.msra.mxu0 %v213
  %283 = vmatprep.subr.bf16.mxu0 0
  %284 = vmatpush1.bf16.msra.mxu0 %v214
  %285 = vmatprep.subr.bf16.mxu0 0
  %286 = vmatpush1.bf16.msra.mxu0 %v215
  %287 = vmatprep.subr.bf16.mxu0 0
  %288 = vmatpush1.bf16.msra.mxu0 %v216
  %289 = vmatprep.subr.bf16.mxu0 0
  %290 = vmatpush1.bf16.msra.mxu0 %v217
  %291 = vmatprep.subr.bf16.mxu0 0
  %292 = vmatpush1.bf16.msra.mxu0 %v218
  %293 = vmatprep.mubr.bf16.mxu0 %v89
  %294 = vmatmul.mubr.bf16.gmra.mrb[0].mxu0 %v88
  %v295 = vpop.f32.mrb[0].mxu0
  %v296 = vadd.f32 0.0, %v295
  %v297 = vpop.f32.mrb[0].mxu0
  %v298 = vpop.f32.mrb[0].mxu0
  %v299 = vadd.f32 0.0, %v298
  %v300 = vpop.f32.mrb[0].mxu0
  %301 = vdwg.mxu0
  %302 = vmatprep.subr.bf16.mxu0 0
  %303 = vmatpush1.bf16.msra.mxu0 %v219
  %304 = vmatprep.subr.bf16.mxu0 0
  %305 = vmatpush1.bf16.msra.mxu0 %v220
  %306 = vmatprep.subr.bf16.mxu0 0
  %307 = vmatpush1.bf16.msra.mxu0 %v221
  %308 = vmatprep.subr.bf16.mxu0 0
  %309 = vmatpush1.bf16.msra.mxu0 %v222
  %310 = vmatprep.subr.bf16.mxu0 0
  %311 = vmatpush1.bf16.msra.mxu0 %v223
  %312 = vmatprep.subr.bf16.mxu0 0
  %313 = vmatpush1.bf16.msra.mxu0 %v224
  %314 = vmatprep.subr.bf16.mxu0 0
  %315 = vmatpush1.bf16.msra.mxu0 %v225
  %316 = vmatprep.subr.bf16.mxu0 0
  %317 = vmatpush1.bf16.msra.mxu0 %v226
  %318 = vmatprep.subr.bf16.mxu0 0
  %319 = vmatpush1.bf16.msra.mxu0 %v227
  %320 = vmatprep.subr.bf16.mxu0 0
  %321 = vmatpush1.bf16.msra.mxu0 %v228
  %322 = vmatprep.subr.bf16.mxu0 0
  %323 = vmatpush1.bf16.msra.mxu0 %v229
  %324 = vmatprep.subr.bf16.mxu0 0
  %325 = vmatpush1.bf16.msra.mxu0 0
  %326 = vmatprep.subr.bf16.mxu0 0
  %327 = vmatpush1.bf16.msra.mxu0 0
  %328 = vmatprep.subr.bf16.mxu0 0
  %329 = vmatpush1.bf16.msra.mxu0 0
  %330 = vmatprep.subr.bf16.mxu0 0
  %331 = vmatpush1.bf16.msra.mxu0 0
  %332 = vmatprep.subr.bf16.mxu0 0
  %333 = vmatpush1.bf16.msra.mxu0 0
  %334 = vmatprep.mubr.bf16.mxu0 %v259
  %335 = vmatmul.mubr.bf16.gmra.mrb[0].mxu0 %v90
  %v336 = vpop.f32.mrb[0].mxu0
  %v337 = vadd.f32 %v296, %v336
  %v338 = vpop.f32.mrb[0].mxu0
  %v339 = vpop.f32.mrb[0].mxu0
  %v340 = vadd.f32 %v299, %v339
  %v341 = vpop.f32.mrb[0].mxu0
  %342 = vdwg.mxu0
  %v343 = vld [vmem:[%s2] sm:$0x1]
  %v345 = vlaneseq
  %v346 = vshrl.u32 %v345, 7
  %v347 = vsub.s32 0, %v346
  %v348 = vrot.slane %v343, %v347
  %v350 = vmul.f32 %v337, %v348
  %v351 = vmul.f32 %v340, %v348
  %v352 = vld [vmem:[%s3] sm:$0x1]
  %v354 = vlaneseq
  %v355 = vshrl.u32 %v354, 7
  %v356 = vsub.s32 0, %v355
  %v357 = vrot.slane %v352, %v356
  %v359 = vadd.f32 %v350, %v357
  %v360 = vadd.f32 %v351, %v357
  %361 = vst.msk [vmem:[%s4] sm:$0xff] %vm257, %v359
  %362 = vst.msk [vmem:[%s4 + $0x8] sm:$0xff] %vm257, %v360
  // Predicated region
  $region18: #{_lambda_.37} parent=0 // pred_check
    _
  $region19: #{_lambda_.37} parent=0 // pred_check_branch
    %364 = sbr.rel (0) target = $region21
  $region20: #{_lambda_.37} parent=0 // pred_region
    _
  $region21: #{_lambda_.37} parent=0 // pred_fallthru
    _
  // Predicated region
  $region22: #{_lambda_.37} parent=0 // pred_check
    _
  $region23: #{_lambda_.37} parent=0 // pred_check_branch
    %366 = sbr.rel (0) target = $region25
  $region24: #{_lambda_.37} parent=0 // pred_region
    _
  $region25: #{_lambda_.37} parent=0 // pred_fallthru
    _

// kernel: _lambda_.38
$region0: #{_lambda_.38}
  #allocation0 [shape = 'u32[]', space=smem, size = 0x4, offset = 0x4, fixed_abs, tag = 'smem constant byte address 0x4 - core index']
  #allocation1 [shape = 'u32[144,128]{1,0:T(1,128)}', space=vmem, size = 0x12000, scoped, tag = 'internal scratch']
  %s0 = inlined_call_operand.vmem [shape: bf16[64,32], index: 0, kind: input, shape index: {}]
  %s1 = inlined_call_operand.vmem [shape: bf16[32,48], index: 1, kind: input, shape index: {}]
  %s2 = inlined_call_operand.vmem [shape: f32[1,48], index: 2, kind: input, shape index: {}]
  %s3 = inlined_call_operand.vmem [shape: f32[1,48], index: 3, kind: input, shape index: {}]
  %s4 = inlined_call_operand.vmem [shape: bf16[64,48], index: 4, kind: input, shape index: {}]
  %s5 = inlined_call_operand.vmem [shape: bf16[64,48], index: 5, kind: output, shape index: {}]
  %s6 = sld [smem:[#allocation0]]
  $region30: #{_lambda_.38} parent=0
    _
  %s8 = ssub.s32 1, %s6
  %s9 = scalar_select 0, %s8, %s6
  // Predicated region
  $region2: #{_lambda_.38} parent=0 // pred_check
    _
  $region3: #{_lambda_.38} parent=0 // pred_check_branch
    %11 = sbr.rel (0) target = $region5
  $region4: #{_lambda_.38} parent=0 // pred_region
    _
  $region5: #{_lambda_.38} parent=0 // pred_fallthru
    _
  // Predicated region
  $region6: #{_lambda_.38} parent=0 // pred_check
    _
  $region7: #{_lambda_.38} parent=0 // pred_check_branch
    %13 = sbr.rel (0) target = $region9
  $region8: #{_lambda_.38} parent=0 // pred_region
    _
  $region9: #{_lambda_.38} parent=0 // pred_fallthru
    _
  // Predicated region
  $region10: #{_lambda_.38} parent=0 // pred_check
    _
  $region11: #{_lambda_.38} parent=0 // pred_check_branch
    %15 = sbr.rel (0) target = $region13
  $region12: #{_lambda_.38} parent=0 // pred_region
    _
  $region13: #{_lambda_.38} parent=0 // pred_fallthru
    _
  // Predicated region
  $region14: #{_lambda_.38} parent=0 // pred_check
    _
  $region15: #{_lambda_.38} parent=0 // pred_check_branch
    %17 = sbr.rel (0) target = $region17
  $region16: #{_lambda_.38} parent=0 // pred_region
    _
  $region17: #{_lambda_.38} parent=0 // pred_fallthru
    _
  // Predicated region
  $region18: #{_lambda_.38} parent=0 // pred_check
    _
  $region19: #{_lambda_.38} parent=0 // pred_check_branch
    %19 = sbr.rel (0) target = $region21
  $region20: #{_lambda_.38} parent=0 // pred_region
    _
  $region21: #{_lambda_.38} parent=0 // pred_fallthru
    _
  %v21 = vld [vmem:[%s0] sm:$0xf]
  %v22 = vld [vmem:[%s0 + $0x4] sm:$0xf]
  %v23 = vld [vmem:[%s0 + $0x8] sm:$0xf]
  %v24 = vld [vmem:[%s0 + $0xc] sm:$0xf]
  %v25 = vld [vmem:[%s0 + $0x10] sm:$0xf]
  %v26 = vld [vmem:[%s0 + $0x14] sm:$0xf]
  %v27 = vld [vmem:[%s0 + $0x18] sm:$0xf]
  %v28 = vld [vmem:[%s0 + $0x1c] sm:$0xf]
  %v29 = vld [vmem:[%s1] sm:$0xf]
  %v30 = vld [vmem:[%s1 + $0x4] sm:$0xf]
  %v31 = vld [vmem:[%s1 + $0x8] sm:$0xf]
  %v32 = vld [vmem:[%s1 + $0xc] sm:$0xf]
  %v41 = vunpack.c.l.b16 %v21
  %v42 = vunpack.c.l.b16 %v22
  %v43 = vunpack.c.l.b16 %v23
  %v44 = vunpack.c.l.b16 %v24
  %v45 = vunpack.c.l.b16 %v25
  %v46 = vunpack.c.l.b16 %v26
  %v47 = vunpack.c.l.b16 %v27
  %v48 = vunpack.c.l.b16 %v28
  %v49 = vpack.c.b16 %v42, %v41
  %v50 = vpack.c.b16 %v44, %v43
  %v51 = vpack.c.b16 %v46, %v45
  %v52 = vpack.c.b16 %v48, %v47
  %v57 = vunpack.c.l.b16 %v29
  %v58 = vunpack.c.l.b16 %v30
  %v59 = vunpack.c.l.b16 %v31
  %v60 = vunpack.c.l.b16 %v32
  %v61 = vpack.c.b16 %v58, %v57
  %v62 = vpack.c.b16 %v60, %v59
  %vm65 = vcmask 261120
  %v67 = vsel %vm65, %v49, 0
  %v70 = vsel %vm65, %v50, 0
  %v73 = vsel %vm65, %v51, 0
  %v76 = vsel %vm65, %v52, 0
  %78 = vmatprep.subr.bf16.mxu0 0
  %79 = vmatpush1.bf16.msra.mxu0 %v61
  %80 = vmatprep.subr.bf16.mxu0 0
  %81 = vmatpush1.bf16.msra.mxu0 %v62
  %82 = vmatprep.subr.bf16.mxu0 0
  %83 = vmatpush1.bf16.msra.mxu0 0
  %84 = vmatprep.subr.bf16.mxu0 0
  %85 = vmatpush1.bf16.msra.mxu0 0
  %86 = vmatprep.subr.bf16.mxu0 0
  %87 = vmatpush1.bf16.msra.mxu0 0
  %88 = vmatprep.subr.bf16.mxu0 0
  %89 = vmatpush1.bf16.msra.mxu0 0
  %90 = vmatprep.subr.bf16.mxu0 0
  %91 = vmatpush1.bf16.msra.mxu0 0
  %92 = vmatprep.subr.bf16.mxu0 0
  %93 = vmatpush1.bf16.msra.mxu0 0
  %94 = vmatprep.subr.bf16.mxu0 0
  %95 = vmatpush1.bf16.msra.mxu0 0
  %96 = vmatprep.subr.bf16.mxu0 0
  %97 = vmatpush1.bf16.msra.mxu0 0
  %98 = vmatprep.subr.bf16.mxu0 0
  %99 = vmatpush1.bf16.msra.mxu0 0
  %100 = vmatprep.subr.bf16.mxu0 0
  %101 = vmatpush1.bf16.msra.mxu0 0
  %102 = vmatprep.subr.bf16.mxu0 0
  %103 = vmatpush1.bf16.msra.mxu0 0
  %104 = vmatprep.subr.bf16.mxu0 0
  %105 = vmatpush1.bf16.msra.mxu0 0
  %106 = vmatprep.subr.bf16.mxu0 0
  %107 = vmatpush1.bf16.msra.mxu0 0
  %108 = vmatprep.subr.bf16.mxu0 0
  %109 = vmatpush1.bf16.msra.mxu0 0
  %110 = vmatprep.mubr.bf16.mxu0 0
  %111 = vmatmul.mubr.bf16.gmra.mrb[0].mxu0 %v67
  %v112 = vpop.f32.mrb[0].mxu0
  %v113 = vadd.f32 0.0, %v112
  %v114 = vpop.f32.mrb[0].mxu0
  %v115 = vpop.f32.mrb[0].mxu0
  %v116 = vadd.f32 0.0, %v115
  %v117 = vpop.f32.mrb[0].mxu0
  %118 = vmatprep.mubr.bf16.mxu0 0
  %119 = vmatmul.mubr.bf16.gmra.mrb[0].mxu0 %v70
  %v120 = vpop.f32.mrb[0].mxu0
  %v121 = vadd.f32 0.0, %v120
  %v122 = vpop.f32.mrb[0].mxu0
  %v123 = vpop.f32.mrb[0].mxu0
  %v124 = vadd.f32 0.0, %v123
  %v125 = vpop.f32.mrb[0].mxu0
  %126 = vmatprep.mubr.bf16.mxu0 0
  %127 = vmatmul.mubr.bf16.gmra.mrb[0].mxu0 %v73
  %v128 = vpop.f32.mrb[0].mxu0
  %v129 = vadd.f32 0.0, %v128
  %v130 = vpop.f32.mrb[0].mxu0
  %v131 = vpop.f32.mrb[0].mxu0
  %v132 = vadd.f32 0.0, %v131
  %v133 = vpop.f32.mrb[0].mxu0
  %134 = vmatprep.mubr.bf16.mxu0 0
  %135 = vmatmul.mubr.bf16.gmra.mrb[0].mxu0 %v76
  %v136 = vpop.f32.mrb[0].mxu0
  %v137 = vadd.f32 0.0, %v136
  %v138 = vpop.f32.mrb[0].mxu0
  %v139 = vpop.f32.mrb[0].mxu0
  %v140 = vadd.f32 0.0, %v139
  %v141 = vpop.f32.mrb[0].mxu0
  %142 = vdwg.mxu0
  %v143 = vld [vmem:[%s2] sm:$0x1]
  %v145 = vlaneseq
  %v146 = vshrl.u32 %v145, 7
  %v147 = vsub.s32 0, %v146
  %v148 = vrot.slane %v143, %v147
  %v150 = vmul.f32 %v113, %v148
  %v151 = vmul.f32 %v116, %v148
  %v152 = vmul.f32 %v121, %v148
  %v153 = vmul.f32 %v124, %v148
  %v154 = vmul.f32 %v129, %v148
  %v155 = vmul.f32 %v132, %v148
  %v156 = vmul.f32 %v137, %v148
  %v157 = vmul.f32 %v140, %v148
  %v158 = vld [vmem:[%s3] sm:$0x1]
  %v160 = vlaneseq
  %v161 = vshrl.u32 %v160, 7
  %v162 = vsub.s32 0, %v161
  %v163 = vrot.slane %v158, %v162
  %v165 = vadd.f32 %v150, %v163
  %v166 = vadd.f32 %v151, %v163
  %v167 = vadd.f32 %v152, %v163
  %v168 = vadd.f32 %v153, %v163
  %v169 = vadd.f32 %v154, %v163
  %v170 = vadd.f32 %v155, %v163
  %v171 = vadd.f32 %v156, %v163
  %v172 = vadd.f32 %v157, %v163
  %v173 = vld [vmem:[%s4] sm:$0xf]
  %v174 = vld [vmem:[%s4 + $0x4] sm:$0xf]
  %v175 = vld [vmem:[%s4 + $0x8] sm:$0xf]
  %v176 = vld [vmem:[%s4 + $0xc] sm:$0xf]
  %v177 = vld [vmem:[%s4 + $0x10] sm:$0xf]
  %v178 = vld [vmem:[%s4 + $0x14] sm:$0xf]
  %v179 = vld [vmem:[%s4 + $0x18] sm:$0xf]
  %v180 = vld [vmem:[%s4 + $0x1c] sm:$0xf]
  %v181 = vunpack.c.l.bf16 %v173
  %v182 = vunpack.c.l.bf16 %v174
  %v183 = vunpack.c.l.bf16 %v175
  %v184 = vunpack.c.l.bf16 %v176
  %v185 = vunpack.c.l.bf16 %v177
  %v186 = vunpack.c.l.bf16 %v178
  %v187 = vunpack.c.l.bf16 %v179
  %v188 = vunpack.c.l.bf16 %v180
  %v189 = vadd.f32 %v165, %v181
  %v190 = vadd.f32 %v166, %v182
  %v191 = vadd.f32 %v167, %v183
  %v192 = vadd.f32 %v168, %v184
  %v193 = vadd.f32 %v169, %v185
  %v194 = vadd.f32 %v170, %v186
  %v195 = vadd.f32 %v171, %v187
  %v196 = vadd.f32 %v172, %v188
  %v197 = vpack.c.bf16 %v190, %v189
  %v198 = vpack.c.bf16 %v192, %v191
  %v199 = vpack.c.bf16 %v194, %v193
  %v200 = vpack.c.bf16 %v196, %v195
  %v205 = vunpack.c.l.b16 %v197
  %v206 = vunpack.c.h.b16 %v197
  %v207 = vunpack.c.l.b16 %v198
  %v208 = vunpack.c.h.b16 %v198
  %v209 = vunpack.c.l.b16 %v199
  %v210 = vunpack.c.h.b16 %v199
  %v211 = vunpack.c.l.b16 %v200
  %v212 = vunpack.c.h.b16 %v200
  %v213 = vpack.c.b16 %v205, %v205
  %v214 = vpack.c.b16 %v206, %v206
  %v215 = vpack.c.b16 %v207, %v207
  %v216 = vpack.c.b16 %v208, %v208
  %v217 = vpack.c.b16 %v209, %v209
  %v218 = vpack.c.b16 %v210, %v210
  %v219 = vpack.c.b16 %v211, %v211
  %v220 = vpack.c.b16 %v212, %v212
  %vm229 = vcmask 388096
  %230 = vst.msk [vmem:[%s5] sm:$0xf] %vm229, %v213
  %231 = vst.msk [vmem:[%s5 + $0x4] sm:$0xf] %vm229, %v214
  %232 = vst.msk [vmem:[%s5 + $0x8] sm:$0xf] %vm229, %v215
  %233 = vst.msk [vmem:[%s5 + $0xc] sm:$0xf] %vm229, %v216
  %234 = vst.msk [vmem:[%s5 + $0x10] sm:$0xf] %vm229, %v217
  %235 = vst.msk [vmem:[%s5 + $0x14] sm:$0xf] %vm229, %v218
  %236 = vst.msk [vmem:[%s5 + $0x18] sm:$0xf] %vm229, %v219
  %237 = vst.msk [vmem:[%s5 + $0x1c] sm:$0xf] %vm229, %v220
  // Predicated region
  $region22: #{_lambda_.38} parent=0 // pred_check
    _
  $region23: #{_lambda_.38} parent=0 // pred_check_branch
    %239 = sbr.rel (0) target = $region25
  $region24: #{_lambda_.38} parent=0 // pred_region
    _
  $region25: #{_lambda_.38} parent=0 // pred_fallthru
    _
  // Predicated region
  $region26: #{_lambda_.38} parent=0 // pred_check
    _
  $region27: #{_lambda_.38} parent=0 // pred_check_branch
    %241 = sbr.rel (0) target = $region29
  $region28: #{_lambda_.38} parent=0 // pred_region
    _
  $region29: #{_lambda_.38} parent=0 // pred_fallthru
    _

// kernel: _lambda_.39
$region0: #{_lambda_.39}
  #allocation0 [shape = 'u32[]', space=smem, size = 0x4, offset = 0x4, fixed_abs, tag = 'smem constant byte address 0x4 - core index']
  #allocation1 [shape = 'u32[144,128]{1,0:T(1,128)}', space=vmem, size = 0x12000, scoped, tag = 'internal scratch']
  %s0 = inlined_call_operand.vmem [shape: bf16[64,432], index: 0, kind: input, shape index: {}]
  %s1 = inlined_call_operand.vmem [shape: bf16[432,32], index: 1, kind: input, shape index: {}]
  %s2 = inlined_call_operand.vmem [shape: f32[1,32], index: 2, kind: input, shape index: {}]
  %s3 = inlined_call_operand.vmem [shape: f32[1,32], index: 3, kind: input, shape index: {}]
  %s4 = inlined_call_operand.vmem [shape: f32[64,32], index: 4, kind: output, shape index: {}]
  %s5 = sld [smem:[#allocation0]]
  $region26: #{_lambda_.39} parent=0
    _
  %s7 = ssub.s32 1, %s5
  %s8 = scalar_select 0, %s7, %s5
  // Predicated region
  $region2: #{_lambda_.39} parent=0 // pred_check
    _
  $region3: #{_lambda_.39} parent=0 // pred_check_branch
    %10 = sbr.rel (0) target = $region5
  $region4: #{_lambda_.39} parent=0 // pred_region
    _
  $region5: #{_lambda_.39} parent=0 // pred_fallthru
    _
  // Predicated region
  $region6: #{_lambda_.39} parent=0 // pred_check
    _
  $region7: #{_lambda_.39} parent=0 // pred_check_branch
    %12 = sbr.rel (0) target = $region9
  $region8: #{_lambda_.39} parent=0 // pred_region
    _
  $region9: #{_lambda_.39} parent=0 // pred_fallthru
    _
  // Predicated region
  $region10: #{_lambda_.39} parent=0 // pred_check
    _
  $region11: #{_lambda_.39} parent=0 // pred_check_branch
    %14 = sbr.rel (0) target = $region13
  $region12: #{_lambda_.39} parent=0 // pred_region
    _
  $region13: #{_lambda_.39} parent=0 // pred_fallthru
    _
  // Predicated region
  $region14: #{_lambda_.39} parent=0 // pred_check
    _
  $region15: #{_lambda_.39} parent=0 // pred_check_branch
    %16 = sbr.rel (0) target = $region17
  $region16: #{_lambda_.39} parent=0 // pred_region
    _
  $region17: #{_lambda_.39} parent=0 // pred_fallthru
    _
  %v18 = vld [vmem:[%s0] sm:$0xff]
  %v19 = vld [vmem:[%s0 + $0x8] sm:$0xff]
  %v20 = vld [vmem:[%s0 + $0x10] sm:$0xff]
  %v21 = vld [vmem:[%s0 + $0x18] sm:$0xff]
  %v22 = vld [vmem:[%s0 + $0x20] sm:$0xff]
  %v23 = vld [vmem:[%s0 + $0x28] sm:$0xff]
  %v24 = vld [vmem:[%s0 + $0x30] sm:$0xff]
  %v25 = vld [vmem:[%s0 + $0x38] sm:$0xff]
  %v26 = vld [vmem:[%s0 + $0x40] sm:$0xff]
  %v27 = vld [vmem:[%s0 + $0x48] sm:$0xff]
  %v28 = vld [vmem:[%s0 + $0x50] sm:$0xff]
  %v29 = vld [vmem:[%s0 + $0x58] sm:$0xff]
  %v30 = vld [vmem:[%s0 + $0x60] sm:$0xff]
  %v31 = vld [vmem:[%s0 + $0x68] sm:$0xff]
  %v32 = vld [vmem:[%s0 + $0x70] sm:$0xff]
  %v33 = vld [vmem:[%s0 + $0x78] sm:$0xff]
  %v34 = vld [vmem:[%s1] sm:$0xf]
  %v35 = vld [vmem:[%s1 + $0x4] sm:$0xf]
  %v36 = vld [vmem:[%s1 + $0x8] sm:$0xf]
  %v37 = vld [vmem:[%s1 + $0xc] sm:$0xf]
  %v38 = vld [vmem:[%s1 + $0x10] sm:$0xf]
  %v39 = vld [vmem:[%s1 + $0x14] sm:$0xf]
  %v40 = vld [vmem:[%s1 + $0x18] sm:$0xf]
  %v41 = vld [vmem:[%s1 + $0x1c] sm:$0xf]
  %v42 = vld [vmem:[%s1 + $0x20] sm:$0xf]
  %v43 = vld [vmem:[%s1 + $0x24] sm:$0xf]
  %v44 = vld [vmem:[%s1 + $0x28] sm:$0xf]
  %v45 = vld [vmem:[%s1 + $0x2c] sm:$0xf]
  %v46 = vld [vmem:[%s1 + $0x30] sm:$0xf]
  %v47 = vld [vmem:[%s1 + $0x34] sm:$0xf]
  %v48 = vld [vmem:[%s1 + $0x38] sm:$0xf]
  %v49 = vld [vmem:[%s1 + $0x3c] sm:$0xf]
  %v50 = vld [vmem:[%s1 + $0x40] sm:$0xf]
  %v51 = vld [vmem:[%s1 + $0x44] sm:$0xf]
  %v52 = vld [vmem:[%s1 + $0x48] sm:$0xf]
  %v53 = vld [vmem:[%s1 + $0x4c] sm:$0xf]
  %v54 = vld [vmem:[%s1 + $0x50] sm:$0xf]
  %v55 = vld [vmem:[%s1 + $0x54] sm:$0xf]
  %v56 = vld [vmem:[%s1 + $0x58] sm:$0xf]
  %v57 = vld [vmem:[%s1 + $0x5c] sm:$0xf]
  %v58 = vld [vmem:[%s1 + $0x60] sm:$0xf]
  %v59 = vld [vmem:[%s1 + $0x64] sm:$0xf]
  %v60 = vld [vmem:[%s1 + $0x68] sm:$0xf]
  %v61 = vld [vmem:[%s1 + $0x6c] sm:$0xf]
  %v62 = vld [vmem:[%s1 + $0x70] sm:$0xf]
  %v63 = vld [vmem:[%s1 + $0x74] sm:$0xf]
  %v64 = vld [vmem:[%s1 + $0x78] sm:$0xf]
  %v65 = vld [vmem:[%s1 + $0x7c] sm:$0xf]
  %v66 = vld [vmem:[%s1 + $0x80] sm:$0xf]
  %v67 = vld [vmem:[%s1 + $0x84] sm:$0xf]
  %v68 = vld [vmem:[%s1 + $0x88] sm:$0xf]
  %v69 = vld [vmem:[%s1 + $0x8c] sm:$0xf]
  %v70 = vld [vmem:[%s1 + $0x90] sm:$0xf]
  %v71 = vld [vmem:[%s1 + $0x94] sm:$0xf]
  %v72 = vld [vmem:[%s1 + $0x98] sm:$0xf]
  %v73 = vld [vmem:[%s1 + $0x9c] sm:$0xf]
  %v74 = vld [vmem:[%s1 + $0xa0] sm:$0xf]
  %v75 = vld [vmem:[%s1 + $0xa4] sm:$0xf]
  %v76 = vld [vmem:[%s1 + $0xa8] sm:$0xf]
  %v77 = vld [vmem:[%s1 + $0xac] sm:$0xf]
  %v78 = vld [vmem:[%s1 + $0xb0] sm:$0xf]
  %v79 = vld [vmem:[%s1 + $0xb4] sm:$0xf]
  %v80 = vld [vmem:[%s1 + $0xb8] sm:$0xf]
  %v81 = vld [vmem:[%s1 + $0xbc] sm:$0xf]
  %v82 = vld [vmem:[%s1 + $0xc0] sm:$0xf]
  %v83 = vld [vmem:[%s1 + $0xc4] sm:$0xf]
  %v84 = vld [vmem:[%s1 + $0xc8] sm:$0xf]
  %v85 = vld [vmem:[%s1 + $0xcc] sm:$0xf]
  %v86 = vld [vmem:[%s1 + $0xd0] sm:$0xf]
  %v87 = vld [vmem:[%s1 + $0xd4] sm:$0xf]
  %v104 = vunpack.c.l.b16 %v18
  %v105 = vunpack.c.h.b16 %v18
  %v106 = vunpack.c.l.b16 %v19
  %v107 = vunpack.c.h.b16 %v19
  %v108 = vunpack.c.l.b16 %v20
  %v109 = vunpack.c.h.b16 %v20
  %v110 = vunpack.c.l.b16 %v21
  %v111 = vunpack.c.h.b16 %v21
  %v112 = vunpack.c.l.b16 %v22
  %v113 = vunpack.c.h.b16 %v22
  %v114 = vunpack.c.l.b16 %v23
  %v115 = vunpack.c.h.b16 %v23
  %v116 = vunpack.c.l.b16 %v24
  %v117 = vunpack.c.h.b16 %v24
  %v118 = vunpack.c.l.b16 %v25
  %v119 = vunpack.c.h.b16 %v25
  %v120 = vunpack.c.l.b16 %v26
  %v121 = vunpack.c.h.b16 %v26
  %v122 = vunpack.c.l.b16 %v27
  %v123 = vunpack.c.h.b16 %v27
  %v124 = vunpack.c.l.b16 %v28
  %v125 = vunpack.c.h.b16 %v28
  %v126 = vunpack.c.l.b16 %v29
  %v127 = vunpack.c.h.b16 %v29
  %v128 = vunpack.c.l.b16 %v30
  %v129 = vunpack.c.h.b16 %v30
  %v130 = vunpack.c.l.b16 %v31
  %v131 = vunpack.c.h.b16 %v31
  %v132 = vunpack.c.l.b16 %v32
  %v133 = vunpack.c.h.b16 %v32
  %v134 = vunpack.c.l.b16 %v33
  %v135 = vunpack.c.h.b16 %v33
  %v136 = vpack.c.b16 %v108, %v104
  %v137 = vpack.c.b16 %v109, %v105
  %v138 = vpack.c.b16 %v110, %v106
  %v139 = vpack.c.b16 %v111, %v107
  %v140 = vpack.c.b16 %v116, %v112
  %v141 = vpack.c.b16 %v117, %v113
  %v142 = vpack.c.b16 %v118, %v114
  %v143 = vpack.c.b16 %v119, %v115
  %v144 = vpack.c.b16 %v124, %v120
  %v145 = vpack.c.b16 %v125, %v121
  %v146 = vpack.c.b16 %v126, %v122
  %v147 = vpack.c.b16 %v127, %v123
  %v148 = vpack.c.b16 %v132, %v128
  %v149 = vpack.c.b16 %v133, %v129
  %v150 = vpack.c.b16 %v134, %v130
  %v151 = vpack.c.b16 %v135, %v131
  %v218 = vunpack.c.l.b16 %v34
  %v219 = vunpack.c.l.b16 %v35
  %v220 = vunpack.c.l.b16 %v36
  %v221 = vunpack.c.l.b16 %v37
  %v222 = vunpack.c.l.b16 %v38
  %v223 = vunpack.c.l.b16 %v39
  %v224 = vunpack.c.l.b16 %v40
  %v225 = vunpack.c.l.b16 %v41
  %v226 = vunpack.c.l.b16 %v42
  %v227 = vunpack.c.l.b16 %v43
  %v228 = vunpack.c.l.b16 %v44
  %v229 = vunpack.c.l.b16 %v45
  %v230 = vunpack.c.l.b16 %v46
  %v231 = vunpack.c.l.b16 %v47
  %v232 = vunpack.c.l.b16 %v48
  %v233 = vunpack.c.l.b16 %v49
  %v234 = vunpack.c.l.b16 %v50
  %v235 = vunpack.c.l.b16 %v51
  %v236 = vunpack.c.l.b16 %v52
  %v237 = vunpack.c.l.b16 %v53
  %v238 = vunpack.c.l.b16 %v54
  %v239 = vunpack.c.l.b16 %v55
  %v240 = vunpack.c.l.b16 %v56
  %v241 = vunpack.c.l.b16 %v57
  %v242 = vunpack.c.l.b16 %v58
  %v243 = vunpack.c.l.b16 %v59
  %v244 = vunpack.c.l.b16 %v60
  %v245 = vunpack.c.l.b16 %v61
  %v246 = vunpack.c.l.b16 %v62
  %v247 = vunpack.c.l.b16 %v63
  %v248 = vunpack.c.l.b16 %v64
  %v249 = vunpack.c.l.b16 %v65
  %v250 = vunpack.c.l.b16 %v66
  %v251 = vunpack.c.l.b16 %v67
  %v252 = vunpack.c.l.b16 %v68
  %v253 = vunpack.c.l.b16 %v69
  %v254 = vunpack.c.l.b16 %v70
  %v255 = vunpack.c.l.b16 %v71
  %v256 = vunpack.c.l.b16 %v72
  %v257 = vunpack.c.l.b16 %v73
  %v258 = vunpack.c.l.b16 %v74
  %v259 = vunpack.c.l.b16 %v75
  %v260 = vunpack.c.l.b16 %v76
  %v261 = vunpack.c.l.b16 %v77
  %v262 = vunpack.c.l.b16 %v78
  %v263 = vunpack.c.l.b16 %v79
  %v264 = vunpack.c.l.b16 %v80
  %v265 = vunpack.c.l.b16 %v81
  %v266 = vunpack.c.l.b16 %v82
  %v267 = vunpack.c.l.b16 %v83
  %v268 = vunpack.c.l.b16 %v84
  %v269 = vunpack.c.l.b16 %v85
  %v270 = vunpack.c.l.b16 %v86
  %v271 = vunpack.c.l.b16 %v87
  %v272 = vpack.c.b16 %v219, %v218
  %v273 = vpack.c.b16 %v221, %v220
  %v274 = vpack.c.b16 %v223, %v222
  %v275 = vpack.c.b16 %v225, %v224
  %v276 = vpack.c.b16 %v227, %v226
  %v277 = vpack.c.b16 %v229, %v228
  %v278 = vpack.c.b16 %v231, %v230
  %v279 = vpack.c.b16 %v233, %v232
  %v280 = vpack.c.b16 %v235, %v234
  %v281 = vpack.c.b16 %v237, %v236
  %v282 = vpack.c.b16 %v239, %v238
  %v283 = vpack.c.b16 %v241, %v240
  %v284 = vpack.c.b16 %v243, %v242
  %v285 = vpack.c.b16 %v245, %v244
  %v286 = vpack.c.b16 %v247, %v246
  %v287 = vpack.c.b16 %v249, %v248
  %v288 = vpack.c.b16 %v251, %v250
  %v289 = vpack.c.b16 %v253, %v252
  %v290 = vpack.c.b16 %v255, %v254
  %v291 = vpack.c.b16 %v257, %v256
  %v292 = vpack.c.b16 %v259, %v258
  %v293 = vpack.c.b16 %v261, %v260
  %v294 = vpack.c.b16 %v263, %v262
  %v295 = vpack.c.b16 %v265, %v264
  %v296 = vpack.c.b16 %v267, %v266
  %v297 = vpack.c.b16 %v269, %v268
  %v298 = vpack.c.b16 %v271, %v270
  %vm326 = vcmask 392192
  %v328 = vsel %vm326, %v139, 0
  %v331 = vsel %vm326, %v143, 0
  %v334 = vsel %vm326, %v147, 0
  %v337 = vsel %vm326, %v151, 0
  %339 = vmatprep.subr.bf16.mxu0 0
  %340 = vmatpush1.bf16.msra.mxu0 %v272
  %341 = vmatprep.subr.bf16.mxu0 0
  %342 = vmatpush1.bf16.msra.mxu0 %v273
  %343 = vmatprep.subr.bf16.mxu0 0
  %344 = vmatpush1.bf16.msra.mxu0 %v274
  %345 = vmatprep.subr.bf16.mxu0 0
  %346 = vmatpush1.bf16.msra.mxu0 %v275
  %347 = vmatprep.subr.bf16.mxu0 0
  %348 = vmatpush1.bf16.msra.mxu0 %v276
  %349 = vmatprep.subr.bf16.mxu0 0
  %350 = vmatpush1.bf16.msra.mxu0 %v277
  %351 = vmatprep.subr.bf16.mxu0 0
  %352 = vmatpush1.bf16.msra.mxu0 %v278
  %353 = vmatprep.subr.bf16.mxu0 0
  %354 = vmatpush1.bf16.msra.mxu0 %v279
  %355 = vmatprep.subr.bf16.mxu0 0
  %356 = vmatpush1.bf16.msra.mxu0 %v280
  %357 = vmatprep.subr.bf16.mxu0 0
  %358 = vmatpush1.bf16.msra.mxu0 %v281
  %359 = vmatprep.subr.bf16.mxu0 0
  %360 = vmatpush1.bf16.msra.mxu0 %v282
  %361 = vmatprep.subr.bf16.mxu0 0
  %362 = vmatpush1.bf16.msra.mxu0 %v283
  %363 = vmatprep.subr.bf16.mxu0 0
  %364 = vmatpush1.bf16.msra.mxu0 %v284
  %365 = vmatprep.subr.bf16.mxu0 0
  %366 = vmatpush1.bf16.msra.mxu0 %v285
  %367 = vmatprep.subr.bf16.mxu0 0
  %368 = vmatpush1.bf16.msra.mxu0 %v286
  %369 = vmatprep.subr.bf16.mxu0 0
  %370 = vmatpush1.bf16.msra.mxu0 %v287
  %371 = vmatprep.mubr.bf16.mxu0 %v137
  %372 = vmatmul.mubr.bf16.gmra.mrb[0].mxu0 %v136
  %v373 = vpop.f32.mrb[0].mxu0
  %v374 = vadd.f32 0.0, %v373
  %v375 = vpop.f32.mrb[0].mxu0
  %v376 = vpop.f32.mrb[0].mxu0
  %v377 = vadd.f32 0.0, %v376
  %v378 = vpop.f32.mrb[0].mxu0
  %379 = vmatprep.mubr.bf16.mxu0 %v141
  %380 = vmatmul.mubr.bf16.gmra.mrb[0].mxu0 %v140
  %v381 = vpop.f32.mrb[0].mxu0
  %v382 = vadd.f32 0.0, %v381
  %v383 = vpop.f32.mrb[0].mxu0
  %v384 = vpop.f32.mrb[0].mxu0
  %v385 = vadd.f32 0.0, %v384
  %v386 = vpop.f32.mrb[0].mxu0
  %387 = vmatprep.mubr.bf16.mxu0 %v145
  %388 = vmatmul.mubr.bf16.gmra.mrb[0].mxu0 %v144
  %v389 = vpop.f32.mrb[0].mxu0
  %v390 = vadd.f32 0.0, %v389
  %v391 = vpop.f32.mrb[0].mxu0
  %v392 = vpop.f32.mrb[0].mxu0
  %v393 = vadd.f32 0.0, %v392
  %v394 = vpop.f32.mrb[0].mxu0
  %395 = vmatprep.mubr.bf16.mxu0 %v149
  %396 = vmatmul.mubr.bf16.gmra.mrb[0].mxu0 %v148
  %v397 = vpop.f32.mrb[0].mxu0
  %v398 = vadd.f32 0.0, %v397
  %v399 = vpop.f32.mrb[0].mxu0
  %v400 = vpop.f32.mrb[0].mxu0
  %v401 = vadd.f32 0.0, %v400
  %v402 = vpop.f32.mrb[0].mxu0
  %403 = vdwg.mxu0
  %404 = vmatprep.subr.bf16.mxu0 0
  %405 = vmatpush1.bf16.msra.mxu0 %v288
  %406 = vmatprep.subr.bf16.mxu0 0
  %407 = vmatpush1.bf16.msra.mxu0 %v289
  %408 = vmatprep.subr.bf16.mxu0 0
  %409 = vmatpush1.bf16.msra.mxu0 %v290
  %410 = vmatprep.subr.bf16.mxu0 0
  %411 = vmatpush1.bf16.msra.mxu0 %v291
  %412 = vmatprep.subr.bf16.mxu0 0
  %413 = vmatpush1.bf16.msra.mxu0 %v292
  %414 = vmatprep.subr.bf16.mxu0 0
  %415 = vmatpush1.bf16.msra.mxu0 %v293
  %416 = vmatprep.subr.bf16.mxu0 0
  %417 = vmatpush1.bf16.msra.mxu0 %v294
  %418 = vmatprep.subr.bf16.mxu0 0
  %419 = vmatpush1.bf16.msra.mxu0 %v295
  %420 = vmatprep.subr.bf16.mxu0 0
  %421 = vmatpush1.bf16.msra.mxu0 %v296
  %422 = vmatprep.subr.bf16.mxu0 0
  %423 = vmatpush1.bf16.msra.mxu0 %v297
  %424 = vmatprep.subr.bf16.mxu0 0
  %425 = vmatpush1.bf16.msra.mxu0 %v298
  %426 = vmatprep.subr.bf16.mxu0 0
  %427 = vmatpush1.bf16.msra.mxu0 0
  %428 = vmatprep.subr.bf16.mxu0 0
  %429 = vmatpush1.bf16.msra.mxu0 0
  %430 = vmatprep.subr.bf16.mxu0 0
  %431 = vmatpush1.bf16.msra.mxu0 0
  %432 = vmatprep.subr.bf16.mxu0 0
  %433 = vmatpush1.bf16.msra.mxu0 0
  %434 = vmatprep.subr.bf16.mxu0 0
  %435 = vmatpush1.bf16.msra.mxu0 0
  %436 = vmatprep.mubr.bf16.mxu0 %v328
  %437 = vmatmul.mubr.bf16.gmra.mrb[0].mxu0 %v138
  %v438 = vpop.f32.mrb[0].mxu0
  %v439 = vadd.f32 %v374, %v438
  %v440 = vpop.f32.mrb[0].mxu0
  %v441 = vpop.f32.mrb[0].mxu0
  %v442 = vadd.f32 %v377, %v441
  %v443 = vpop.f32.mrb[0].mxu0
  %444 = vmatprep.mubr.bf16.mxu0 %v331
  %445 = vmatmul.mubr.bf16.gmra.mrb[0].mxu0 %v142
  %v446 = vpop.f32.mrb[0].mxu0
  %v447 = vadd.f32 %v382, %v446
  %v448 = vpop.f32.mrb[0].mxu0
  %v449 = vpop.f32.mrb[0].mxu0
  %v450 = vadd.f32 %v385, %v449
  %v451 = vpop.f32.mrb[0].mxu0
  %452 = vmatprep.mubr.bf16.mxu0 %v334
  %453 = vmatmul.mubr.bf16.gmra.mrb[0].mxu0 %v146
  %v454 = vpop.f32.mrb[0].mxu0
  %v455 = vadd.f32 %v390, %v454
  %v456 = vpop.f32.mrb[0].mxu0
  %v457 = vpop.f32.mrb[0].mxu0
  %v458 = vadd.f32 %v393, %v457
  %v459 = vpop.f32.mrb[0].mxu0
  %460 = vmatprep.mubr.bf16.mxu0 %v337
  %461 = vmatmul.mubr.bf16.gmra.mrb[0].mxu0 %v150
  %v462 = vpop.f32.mrb[0].mxu0
  %v463 = vadd.f32 %v398, %v462
  %v464 = vpop.f32.mrb[0].mxu0
  %v465 = vpop.f32.mrb[0].mxu0
  %v466 = vadd.f32 %v401, %v465
  %v467 = vpop.f32.mrb[0].mxu0
  %468 = vdwg.mxu0
  %v469 = vld [vmem:[%s2] sm:$0x1]
  %v471 = vlaneseq
  %v472 = vshrl.u32 %v471, 7
  %v473 = vsub.s32 0, %v472
  %v474 = vrot.slane %v469, %v473
  %v476 = vmul.f32 %v439, %v474
  %v477 = vmul.f32 %v442, %v474
  %v478 = vmul.f32 %v447, %v474
  %v479 = vmul.f32 %v450, %v474
  %v480 = vmul.f32 %v455, %v474
  %v481 = vmul.f32 %v458, %v474
  %v482 = vmul.f32 %v463, %v474
  %v483 = vmul.f32 %v466, %v474
  %v484 = vld [vmem:[%s3] sm:$0x1]
  %v486 = vlaneseq
  %v487 = vshrl.u32 %v486, 7
  %v488 = vsub.s32 0, %v487
  %v489 = vrot.slane %v484, %v488
  %v491 = vadd.f32 %v476, %v489
  %v492 = vadd.f32 %v477, %v489
  %v493 = vadd.f32 %v478, %v489
  %v494 = vadd.f32 %v479, %v489
  %v495 = vadd.f32 %v480, %v489
  %v496 = vadd.f32 %v481, %v489
  %v497 = vadd.f32 %v482, %v489
  %v498 = vadd.f32 %v483, %v489
  %vm499 = vcmask 261120
  %500 = vst.msk [vmem:[%s4] sm:$0xff] %vm499, %v491
  %501 = vst.msk [vmem:[%s4 + $0x8] sm:$0xff] %vm499, %v492
  %502 = vst.msk [vmem:[%s4 + $0x10] sm:$0xff] %vm499, %v493
  %503 = vst.msk [vmem:[%s4 + $0x18] sm:$0xff] %vm499, %v494
  %504 = vst.msk [vmem:[%s4 + $0x20] sm:$0xff] %vm499, %v495
  %505 = vst.msk [vmem:[%s4 + $0x28] sm:$0xff] %vm499, %v496
  %506 = vst.msk [vmem:[%s4 + $0x30] sm:$0xff] %vm499, %v497
  %507 = vst.msk [vmem:[%s4 + $0x38] sm:$0xff] %vm499, %v498
  // Predicated region
  $region18: #{_lambda_.39} parent=0 // pred_check
    _
  $region19: #{_lambda_.39} parent=0 // pred_check_branch
    %509 = sbr.rel (0) target = $region21
  $region20: #{_lambda_.39} parent=0 // pred_region
    _
  $region21: #{_lambda_.39} parent=0 // pred_fallthru
    _
  // Predicated region
  $region22: #{_lambda_.39} parent=0 // pred_check
    _
  $region23: #{_lambda_.39} parent=0 // pred_check_branch
    %511 = sbr.rel (0) target = $region25
  $region24: #{_lambda_.39} parent=0 // pred_region
    _
  $region25: #{_lambda_.39} parent=0 // pred_fallthru
    _

// kernel: _lambda_.40
$region0: #{_lambda_.40}
  #allocation0 [shape = 'u32[]', space=smem, size = 0x4, offset = 0x4, fixed_abs, tag = 'smem constant byte address 0x4 - core index']
  #allocation1 [shape = 'u32[144,128]{1,0:T(1,128)}', space=vmem, size = 0x12000, scoped, tag = 'internal scratch']
  %s0 = inlined_call_operand.vmem [shape: bf16[256,16], index: 0, kind: input, shape index: {}]
  %s1 = inlined_call_operand.vmem [shape: bf16[16,48], index: 1, kind: input, shape index: {}]
  %s2 = inlined_call_operand.vmem [shape: f32[1,48], index: 2, kind: input, shape index: {}]
  %s3 = inlined_call_operand.vmem [shape: f32[1,48], index: 3, kind: input, shape index: {}]
  %s4 = inlined_call_operand.vmem [shape: bf16[256,48], index: 4, kind: input, shape index: {}]
  %s5 = inlined_call_operand.vmem [shape: bf16[256,48], index: 5, kind: output, shape index: {}]
  %s6 = sld [smem:[#allocation0]]
  $region30: #{_lambda_.40} parent=0
    _
  %s8 = ssub.s32 1, %s6
  %s9 = scalar_select 0, %s8, %s6
  // Predicated region
  $region2: #{_lambda_.40} parent=0 // pred_check
    _
  $region3: #{_lambda_.40} parent=0 // pred_check_branch
    %11 = sbr.rel (0) target = $region5
  $region4: #{_lambda_.40} parent=0 // pred_region
    _
  $region5: #{_lambda_.40} parent=0 // pred_fallthru
    _
  // Predicated region
  $region6: #{_lambda_.40} parent=0 // pred_check
    _
  $region7: #{_lambda_.40} parent=0 // pred_check_branch
    %13 = sbr.rel (0) target = $region9
  $region8: #{_lambda_.40} parent=0 // pred_region
    _
  $region9: #{_lambda_.40} parent=0 // pred_fallthru
    _
  // Predicated region
  $region10: #{_lambda_.40} parent=0 // pred_check
    _
  $region11: #{_lambda_.40} parent=0 // pred_check_branch
    %15 = sbr.rel (0) target = $region13
  $region12: #{_lambda_.40} parent=0 // pred_region
    _
  $region13: #{_lambda_.40} parent=0 // pred_fallthru
    _
  // Predicated region
  $region14: #{_lambda_.40} parent=0 // pred_check
    _
  $region15: #{_lambda_.40} parent=0 // pred_check_branch
    %17 = sbr.rel (0) target = $region17
  $region16: #{_lambda_.40} parent=0 // pred_region
    _
  $region17: #{_lambda_.40} parent=0 // pred_fallthru
    _
  // Predicated region
  $region18: #{_lambda_.40} parent=0 // pred_check
    _
  $region19: #{_lambda_.40} parent=0 // pred_check_branch
    %19 = sbr.rel (0) target = $region21
  $region20: #{_lambda_.40} parent=0 // pred_region
    _
  $region21: #{_lambda_.40} parent=0 // pred_fallthru
    _
  %v21 = vld [vmem:[%s0] sm:$0xf]
  %v22 = vld [vmem:[%s0 + $0x4] sm:$0xf]
  %v23 = vld [vmem:[%s0 + $0x8] sm:$0xf]
  %v24 = vld [vmem:[%s0 + $0xc] sm:$0xf]
  %v25 = vld [vmem:[%s0 + $0x10] sm:$0xf]
  %v26 = vld [vmem:[%s0 + $0x14] sm:$0xf]
  %v27 = vld [vmem:[%s0 + $0x18] sm:$0xf]
  %v28 = vld [vmem:[%s0 + $0x1c] sm:$0xf]
  %v29 = vld [vmem:[%s0 + $0x20] sm:$0xf]
  %v30 = vld [vmem:[%s0 + $0x24] sm:$0xf]
  %v31 = vld [vmem:[%s0 + $0x28] sm:$0xf]
  %v32 = vld [vmem:[%s0 + $0x2c] sm:$0xf]
  %v33 = vld [vmem:[%s0 + $0x30] sm:$0xf]
  %v34 = vld [vmem:[%s0 + $0x34] sm:$0xf]
  %v35 = vld [vmem:[%s0 + $0x38] sm:$0xf]
  %v36 = vld [vmem:[%s0 + $0x3c] sm:$0xf]
  %v37 = vld [vmem:[%s0 + $0x40] sm:$0xf]
  %v38 = vld [vmem:[%s0 + $0x44] sm:$0xf]
  %v39 = vld [vmem:[%s0 + $0x48] sm:$0xf]
  %v40 = vld [vmem:[%s0 + $0x4c] sm:$0xf]
  %v41 = vld [vmem:[%s0 + $0x50] sm:$0xf]
  %v42 = vld [vmem:[%s0 + $0x54] sm:$0xf]
  %v43 = vld [vmem:[%s0 + $0x58] sm:$0xf]
  %v44 = vld [vmem:[%s0 + $0x5c] sm:$0xf]
  %v45 = vld [vmem:[%s0 + $0x60] sm:$0xf]
  %v46 = vld [vmem:[%s0 + $0x64] sm:$0xf]
  %v47 = vld [vmem:[%s0 + $0x68] sm:$0xf]
  %v48 = vld [vmem:[%s0 + $0x6c] sm:$0xf]
  %v49 = vld [vmem:[%s0 + $0x70] sm:$0xf]
  %v50 = vld [vmem:[%s0 + $0x74] sm:$0xf]
  %v51 = vld [vmem:[%s0 + $0x78] sm:$0xf]
  %v52 = vld [vmem:[%s0 + $0x7c] sm:$0xf]
  %v53 = vld [vmem:[%s1] sm:$0xf]
  %v54 = vld [vmem:[%s1 + $0x4] sm:$0xf]
  %v87 = vunpack.c.l.b16 %v21
  %v88 = vunpack.c.l.b16 %v22
  %v89 = vunpack.c.l.b16 %v23
  %v90 = vunpack.c.l.b16 %v24
  %v91 = vunpack.c.l.b16 %v25
  %v92 = vunpack.c.l.b16 %v26
  %v93 = vunpack.c.l.b16 %v27
  %v94 = vunpack.c.l.b16 %v28
  %v95 = vunpack.c.l.b16 %v29
  %v96 = vunpack.c.l.b16 %v30
  %v97 = vunpack.c.l.b16 %v31
  %v98 = vunpack.c.l.b16 %v32
  %v99 = vunpack.c.l.b16 %v33
  %v100 = vunpack.c.l.b16 %v34
  %v101 = vunpack.c.l.b16 %v35
  %v102 = vunpack.c.l.b16 %v36
  %v103 = vunpack.c.l.b16 %v37
  %v104 = vunpack.c.l.b16 %v38
  %v105 = vunpack.c.l.b16 %v39
  %v106 = vunpack.c.l.b16 %v40
  %v107 = vunpack.c.l.b16 %v41
  %v108 = vunpack.c.l.b16 %v42
  %v109 = vunpack.c.l.b16 %v43
  %v110 = vunpack.c.l.b16 %v44
  %v111 = vunpack.c.l.b16 %v45
  %v112 = vunpack.c.l.b16 %v46
  %v113 = vunpack.c.l.b16 %v47
  %v114 = vunpack.c.l.b16 %v48
  %v115 = vunpack.c.l.b16 %v49
  %v116 = vunpack.c.l.b16 %v50
  %v117 = vunpack.c.l.b16 %v51
  %v118 = vunpack.c.l.b16 %v52
  %v119 = vpack.c.b16 %v88, %v87
  %v120 = vpack.c.b16 %v90, %v89
  %v121 = vpack.c.b16 %v92, %v91
  %v122 = vpack.c.b16 %v94, %v93
  %v123 = vpack.c.b16 %v96, %v95
  %v124 = vpack.c.b16 %v98, %v97
  %v125 = vpack.c.b16 %v100, %v99
  %v126 = vpack.c.b16 %v102, %v101
  %v127 = vpack.c.b16 %v104, %v103
  %v128 = vpack.c.b16 %v106, %v105
  %v129 = vpack.c.b16 %v108, %v107
  %v130 = vpack.c.b16 %v110, %v109
  %v131 = vpack.c.b16 %v112, %v111
  %v132 = vpack.c.b16 %v114, %v113
  %v133 = vpack.c.b16 %v116, %v115
  %v134 = vpack.c.b16 %v118, %v117
  %v137 = vunpack.c.l.b16 %v53
  %v138 = vunpack.c.l.b16 %v54
  %v139 = vpack.c.b16 %v138, %v137
  %vm141 = vcmask 130048
  %v143 = vsel %vm141, %v119, 0
  %v146 = vsel %vm141, %v120, 0
  %v149 = vsel %vm141, %v121, 0
  %v152 = vsel %vm141, %v122, 0
  %v155 = vsel %vm141, %v123, 0
  %v158 = vsel %vm141, %v124, 0
  %v161 = vsel %vm141, %v125, 0
  %v164 = vsel %vm141, %v126, 0
  %v167 = vsel %vm141, %v127, 0
  %v170 = vsel %vm141, %v128, 0
  %v173 = vsel %vm141, %v129, 0
  %v176 = vsel %vm141, %v130, 0
  %v179 = vsel %vm141, %v131, 0
  %v182 = vsel %vm141, %v132, 0
  %v185 = vsel %vm141, %v133, 0
  %v188 = vsel %vm141, %v134, 0
  %190 = vmatprep.subr.bf16.mxu0 0
  %191 = vmatpush1.bf16.msra.mxu0 %v139
  %192 = vmatprep.subr.bf16.mxu0 0
  %193 = vmatpush1.bf16.msra.mxu0 0
  %194 = vmatprep.subr.bf16.mxu0 0
  %195 = vmatpush1.bf16.msra.mxu0 0
  %196 = vmatprep.subr.bf16.mxu0 0
  %197 = vmatpush1.bf16.msra.mxu0 0
  %198 = vmatprep.subr.bf16.mxu0 0
  %199 = vmatpush1.bf16.msra.mxu0 0
  %200 = vmatprep.subr.bf16.mxu0 0
  %201 = vmatpush1.bf16.msra.mxu0 0
  %202 = vmatprep.subr.bf16.mxu0 0
  %203 = vmatpush1.bf16.msra.mxu0 0
  %204 = vmatprep.subr.bf16.mxu0 0
  %205 = vmatpush1.bf16.msra.mxu0 0
  %206 = vmatprep.subr.bf16.mxu0 0
  %207 = vmatpush1.bf16.msra.mxu0 0
  %208 = vmatprep.subr.bf16.mxu0 0
  %209 = vmatpush1.bf16.msra.mxu0 0
  %210 = vmatprep.subr.bf16.mxu0 0
  %211 = vmatpush1.bf16.msra.mxu0 0
  %212 = vmatprep.subr.bf16.mxu0 0
  %213 = vmatpush1.bf16.msra.mxu0 0
  %214 = vmatprep.subr.bf16.mxu0 0
  %215 = vmatpush1.bf16.msra.mxu0 0
  %216 = vmatprep.subr.bf16.mxu0 0
  %217 = vmatpush1.bf16.msra.mxu0 0
  %218 = vmatprep.subr.bf16.mxu0 0
  %219 = vmatpush1.bf16.msra.mxu0 0
  %220 = vmatprep.subr.bf16.mxu0 0
  %221 = vmatpush1.bf16.msra.mxu0 0
  %222 = vmatprep.mubr.bf16.mxu0 0
  %223 = vmatmul.mubr.bf16.gmra.mrb[0].mxu0 %v143
  %v224 = vpop.f32.mrb[0].mxu0
  %v225 = vadd.f32 0.0, %v224
  %v226 = vpop.f32.mrb[0].mxu0
  %v227 = vpop.f32.mrb[0].mxu0
  %v228 = vadd.f32 0.0, %v227
  %v229 = vpop.f32.mrb[0].mxu0
  %230 = vmatprep.mubr.bf16.mxu0 0
  %231 = vmatmul.mubr.bf16.gmra.mrb[0].mxu0 %v146
  %v232 = vpop.f32.mrb[0].mxu0
  %v233 = vadd.f32 0.0, %v232
  %v234 = vpop.f32.mrb[0].mxu0
  %v235 = vpop.f32.mrb[0].mxu0
  %v236 = vadd.f32 0.0, %v235
  %v237 = vpop.f32.mrb[0].mxu0
  %238 = vmatprep.mubr.bf16.mxu0 0
  %239 = vmatmul.mubr.bf16.gmra.mrb[0].mxu0 %v149
  %v240 = vpop.f32.mrb[0].mxu0
  %v241 = vadd.f32 0.0, %v240
  %v242 = vpop.f32.mrb[0].mxu0
  %v243 = vpop.f32.mrb[0].mxu0
  %v244 = vadd.f32 0.0, %v243
  %v245 = vpop.f32.mrb[0].mxu0
  %246 = vmatprep.mubr.bf16.mxu0 0
  %247 = vmatmul.mubr.bf16.gmra.mrb[0].mxu0 %v152
  %v248 = vpop.f32.mrb[0].mxu0
  %v249 = vadd.f32 0.0, %v248
  %v250 = vpop.f32.mrb[0].mxu0
  %v251 = vpop.f32.mrb[0].mxu0
  %v252 = vadd.f32 0.0, %v251
  %v253 = vpop.f32.mrb[0].mxu0
  %254 = vmatprep.mubr.bf16.mxu0 0
  %255 = vmatmul.mubr.bf16.gmra.mrb[0].mxu0 %v155
  %v256 = vpop.f32.mrb[0].mxu0
  %v257 = vadd.f32 0.0, %v256
  %v258 = vpop.f32.mrb[0].mxu0
  %v259 = vpop.f32.mrb[0].mxu0
  %v260 = vadd.f32 0.0, %v259
  %v261 = vpop.f32.mrb[0].mxu0
  %262 = vmatprep.mubr.bf16.mxu0 0
  %263 = vmatmul.mubr.bf16.gmra.mrb[0].mxu0 %v158
  %v264 = vpop.f32.mrb[0].mxu0
  %v265 = vadd.f32 0.0, %v264
  %v266 = vpop.f32.mrb[0].mxu0
  %v267 = vpop.f32.mrb[0].mxu0
  %v268 = vadd.f32 0.0, %v267
  %v269 = vpop.f32.mrb[0].mxu0
  %270 = vmatprep.mubr.bf16.mxu0 0
  %271 = vmatmul.mubr.bf16.gmra.mrb[0].mxu0 %v161
  %v272 = vpop.f32.mrb[0].mxu0
  %v273 = vadd.f32 0.0, %v272
  %v274 = vpop.f32.mrb[0].mxu0
  %v275 = vpop.f32.mrb[0].mxu0
  %v276 = vadd.f32 0.0, %v275
  %v277 = vpop.f32.mrb[0].mxu0
  %278 = vmatprep.mubr.bf16.mxu0 0
  %279 = vmatmul.mubr.bf16.gmra.mrb[0].mxu0 %v164
  %v280 = vpop.f32.mrb[0].mxu0
  %v281 = vadd.f32 0.0, %v280
  %v282 = vpop.f32.mrb[0].mxu0
  %v283 = vpop.f32.mrb[0].mxu0
  %v284 = vadd.f32 0.0, %v283
  %v285 = vpop.f32.mrb[0].mxu0
  %286 = vmatprep.mubr.bf16.mxu0 0
  %287 = vmatmul.mubr.bf16.gmra.mrb[0].mxu0 %v167
  %v288 = vpop.f32.mrb[0].mxu0
  %v289 = vadd.f32 0.0, %v288
  %v290 = vpop.f32.mrb[0].mxu0
  %v291 = vpop.f32.mrb[0].mxu0
  %v292 = vadd.f32 0.0, %v291
  %v293 = vpop.f32.mrb[0].mxu0
  %294 = vmatprep.mubr.bf16.mxu0 0
  %295 = vmatmul.mubr.bf16.gmra.mrb[0].mxu0 %v170
  %v296 = vpop.f32.mrb[0].mxu0
  %v297 = vadd.f32 0.0, %v296
  %v298 = vpop.f32.mrb[0].mxu0
  %v299 = vpop.f32.mrb[0].mxu0
  %v300 = vadd.f32 0.0, %v299
  %v301 = vpop.f32.mrb[0].mxu0
  %302 = vmatprep.mubr.bf16.mxu0 0
  %303 = vmatmul.mubr.bf16.gmra.mrb[0].mxu0 %v173
  %v304 = vpop.f32.mrb[0].mxu0
  %v305 = vadd.f32 0.0, %v304
  %v306 = vpop.f32.mrb[0].mxu0
  %v307 = vpop.f32.mrb[0].mxu0
  %v308 = vadd.f32 0.0, %v307
  %v309 = vpop.f32.mrb[0].mxu0
  %310 = vmatprep.mubr.bf16.mxu0 0
  %311 = vmatmul.mubr.bf16.gmra.mrb[0].mxu0 %v176
  %v312 = vpop.f32.mrb[0].mxu0
  %v313 = vadd.f32 0.0, %v312
  %v314 = vpop.f32.mrb[0].mxu0
  %v315 = vpop.f32.mrb[0].mxu0
  %v316 = vadd.f32 0.0, %v315
  %v317 = vpop.f32.mrb[0].mxu0
  %318 = vmatprep.mubr.bf16.mxu0 0
  %319 = vmatmul.mubr.bf16.gmra.mrb[0].mxu0 %v179
  %v320 = vpop.f32.mrb[0].mxu0
  %v321 = vadd.f32 0.0, %v320
  %v322 = vpop.f32.mrb[0].mxu0
  %v323 = vpop.f32.mrb[0].mxu0
  %v324 = vadd.f32 0.0, %v323
  %v325 = vpop.f32.mrb[0].mxu0
  %326 = vmatprep.mubr.bf16.mxu0 0
  %327 = vmatmul.mubr.bf16.gmra.mrb[0].mxu0 %v182
  %v328 = vpop.f32.mrb[0].mxu0
  %v329 = vadd.f32 0.0, %v328
  %v330 = vpop.f32.mrb[0].mxu0
  %v331 = vpop.f32.mrb[0].mxu0
  %v332 = vadd.f32 0.0, %v331
  %v333 = vpop.f32.mrb[0].mxu0
  %334 = vmatprep.mubr.bf16.mxu0 0
  %335 = vmatmul.mubr.bf16.gmra.mrb[0].mxu0 %v185
  %v336 = vpop.f32.mrb[0].mxu0
  %v337 = vadd.f32 0.0, %v336
  %v338 = vpop.f32.mrb[0].mxu0
  %v339 = vpop.f32.mrb[0].mxu0
  %v340 = vadd.f32 0.0, %v339
  %v341 = vpop.f32.mrb[0].mxu0
  %342 = vmatprep.mubr.bf16.mxu0 0
  %343 = vmatmul.mubr.bf16.gmra.mrb[0].mxu0 %v188
  %v344 = vpop.f32.mrb[0].mxu0
  %v345 = vadd.f32 0.0, %v344
  %v346 = vpop.f32.mrb[0].mxu0
  %v347 = vpop.f32.mrb[0].mxu0
  %v348 = vadd.f32 0.0, %v347
  %v349 = vpop.f32.mrb[0].mxu0
  %350 = vdwg.mxu0
  %v351 = vld [vmem:[%s2] sm:$0x1]
  %v353 = vlaneseq
  %v354 = vshrl.u32 %v353, 7
  %v355 = vsub.s32 0, %v354
  %v356 = vrot.slane %v351, %v355
  %v358 = vmul.f32 %v225, %v356
  %v359 = vmul.f32 %v228, %v356
  %v360 = vmul.f32 %v233, %v356
  %v361 = vmul.f32 %v236, %v356
  %v362 = vmul.f32 %v241, %v356
  %v363 = vmul.f32 %v244, %v356
  %v364 = vmul.f32 %v249, %v356
  %v365 = vmul.f32 %v252, %v356
  %v366 = vmul.f32 %v257, %v356
  %v367 = vmul.f32 %v260, %v356
  %v368 = vmul.f32 %v265, %v356
  %v369 = vmul.f32 %v268, %v356
  %v370 = vmul.f32 %v273, %v356
  %v371 = vmul.f32 %v276, %v356
  %v372 = vmul.f32 %v281, %v356
  %v373 = vmul.f32 %v284, %v356
  %v374 = vmul.f32 %v289, %v356
  %v375 = vmul.f32 %v292, %v356
  %v376 = vmul.f32 %v297, %v356
  %v377 = vmul.f32 %v300, %v356
  %v378 = vmul.f32 %v305, %v356
  %v379 = vmul.f32 %v308, %v356
  %v380 = vmul.f32 %v313, %v356
  %v381 = vmul.f32 %v316, %v356
  %v382 = vmul.f32 %v321, %v356
  %v383 = vmul.f32 %v324, %v356
  %v384 = vmul.f32 %v329, %v356
  %v385 = vmul.f32 %v332, %v356
  %v386 = vmul.f32 %v337, %v356
  %v387 = vmul.f32 %v340, %v356
  %v388 = vmul.f32 %v345, %v356
  %v389 = vmul.f32 %v348, %v356
  %v390 = vld [vmem:[%s3] sm:$0x1]
  %v392 = vlaneseq
  %v393 = vshrl.u32 %v392, 7
  %v394 = vsub.s32 0, %v393
  %v395 = vrot.slane %v390, %v394
  %v397 = vadd.f32 %v358, %v395
  %v398 = vadd.f32 %v359, %v395
  %v399 = vadd.f32 %v360, %v395
  %v400 = vadd.f32 %v361, %v395
  %v401 = vadd.f32 %v362, %v395
  %v402 = vadd.f32 %v363, %v395
  %v403 = vadd.f32 %v364, %v395
  %v404 = vadd.f32 %v365, %v395
  %v405 = vadd.f32 %v366, %v395
  %v406 = vadd.f32 %v367, %v395
  %v407 = vadd.f32 %v368, %v395
  %v408 = vadd.f32 %v369, %v395
  %v409 = vadd.f32 %v370, %v395
  %v410 = vadd.f32 %v371, %v395
  %v411 = vadd.f32 %v372, %v395
  %v412 = vadd.f32 %v373, %v395
  %v413 = vadd.f32 %v374, %v395
  %v414 = vadd.f32 %v375, %v395
  %v415 = vadd.f32 %v376, %v395
  %v416 = vadd.f32 %v377, %v395
  %v417 = vadd.f32 %v378, %v395
  %v418 = vadd.f32 %v379, %v395
  %v419 = vadd.f32 %v380, %v395
  %v420 = vadd.f32 %v381, %v395
  %v421 = vadd.f32 %v382, %v395
  %v422 = vadd.f32 %v383, %v395
  %v423 = vadd.f32 %v384, %v395
  %v424 = vadd.f32 %v385, %v395
  %v425 = vadd.f32 %v386, %v395
  %v426 = vadd.f32 %v387, %v395
  %v427 = vadd.f32 %v388, %v395
  %v428 = vadd.f32 %v389, %v395
  %v429 = vld [vmem:[%s4] sm:$0xf]
  %v430 = vld [vmem:[%s4 + $0x4] sm:$0xf]
  %v431 = vld [vmem:[%s4 + $0x8] sm:$0xf]
  %v432 = vld [vmem:[%s4 + $0xc] sm:$0xf]
  %v433 = vld [vmem:[%s4 + $0x10] sm:$0xf]
  %v434 = vld [vmem:[%s4 + $0x14] sm:$0xf]
  %v435 = vld [vmem:[%s4 + $0x18] sm:$0xf]
  %v436 = vld [vmem:[%s4 + $0x1c] sm:$0xf]
  %v437 = vld [vmem:[%s4 + $0x20] sm:$0xf]
  %v438 = vld [vmem:[%s4 + $0x24] sm:$0xf]
  %v439 = vld [vmem:[%s4 + $0x28] sm:$0xf]
  %v440 = vld [vmem:[%s4 + $0x2c] sm:$0xf]
  %v441 = vld [vmem:[%s4 + $0x30] sm:$0xf]
  %v442 = vld [vmem:[%s4 + $0x34] sm:$0xf]
  %v443 = vld [vmem:[%s4 + $0x38] sm:$0xf]
  %v444 = vld [vmem:[%s4 + $0x3c] sm:$0xf]
  %v445 = vld [vmem:[%s4 + $0x40] sm:$0xf]
  %v446 = vld [vmem:[%s4 + $0x44] sm:$0xf]
  %v447 = vld [vmem:[%s4 + $0x48] sm:$0xf]
  %v448 = vld [vmem:[%s4 + $0x4c] sm:$0xf]
  %v449 = vld [vmem:[%s4 + $0x50] sm:$0xf]
  %v450 = vld [vmem:[%s4 + $0x54] sm:$0xf]
  %v451 = vld [vmem:[%s4 + $0x58] sm:$0xf]
  %v452 = vld [vmem:[%s4 + $0x5c] sm:$0xf]
  %v453 = vld [vmem:[%s4 + $0x60] sm:$0xf]
  %v454 = vld [vmem:[%s4 + $0x64] sm:$0xf]
  %v455 = vld [vmem:[%s4 + $0x68] sm:$0xf]
  %v456 = vld [vmem:[%s4 + $0x6c] sm:$0xf]
  %v457 = vld [vmem:[%s4 + $0x70] sm:$0xf]
  %v458 = vld [vmem:[%s4 + $0x74] sm:$0xf]
  %v459 = vld [vmem:[%s4 + $0x78] sm:$0xf]
  %v460 = vld [vmem:[%s4 + $0x7c] sm:$0xf]
  %v461 = vunpack.c.l.bf16 %v429
  %v462 = vunpack.c.l.bf16 %v430
  %v463 = vunpack.c.l.bf16 %v431
  %v464 = vunpack.c.l.bf16 %v432
  %v465 = vunpack.c.l.bf16 %v433
  %v466 = vunpack.c.l.bf16 %v434
  %v467 = vunpack.c.l.bf16 %v435
  %v468 = vunpack.c.l.bf16 %v436
  %v469 = vunpack.c.l.bf16 %v437
  %v470 = vunpack.c.l.bf16 %v438
  %v471 = vunpack.c.l.bf16 %v439
  %v472 = vunpack.c.l.bf16 %v440
  %v473 = vunpack.c.l.bf16 %v441
  %v474 = vunpack.c.l.bf16 %v442
  %v475 = vunpack.c.l.bf16 %v443
  %v476 = vunpack.c.l.bf16 %v444
  %v477 = vunpack.c.l.bf16 %v445
  %v478 = vunpack.c.l.bf16 %v446
  %v479 = vunpack.c.l.bf16 %v447
  %v480 = vunpack.c.l.bf16 %v448
  %v481 = vunpack.c.l.bf16 %v449
  %v482 = vunpack.c.l.bf16 %v450
  %v483 = vunpack.c.l.bf16 %v451
  %v484 = vunpack.c.l.bf16 %v452
  %v485 = vunpack.c.l.bf16 %v453
  %v486 = vunpack.c.l.bf16 %v454
  %v487 = vunpack.c.l.bf16 %v455
  %v488 = vunpack.c.l.bf16 %v456
  %v489 = vunpack.c.l.bf16 %v457
  %v490 = vunpack.c.l.bf16 %v458
  %v491 = vunpack.c.l.bf16 %v459
  %v492 = vunpack.c.l.bf16 %v460
  %v493 = vadd.f32 %v397, %v461
  %v494 = vadd.f32 %v398, %v462
  %v495 = vadd.f32 %v399, %v463
  %v496 = vadd.f32 %v400, %v464
  %v497 = vadd.f32 %v401, %v465
  %v498 = vadd.f32 %v402, %v466
  %v499 = vadd.f32 %v403, %v467
  %v500 = vadd.f32 %v404, %v468
  %v501 = vadd.f32 %v405, %v469
  %v502 = vadd.f32 %v406, %v470
  %v503 = vadd.f32 %v407, %v471
  %v504 = vadd.f32 %v408, %v472
  %v505 = vadd.f32 %v409, %v473
  %v506 = vadd.f32 %v410, %v474
  %v507 = vadd.f32 %v411, %v475
  %v508 = vadd.f32 %v412, %v476
  %v509 = vadd.f32 %v413, %v477
  %v510 = vadd.f32 %v414, %v478
  %v511 = vadd.f32 %v415, %v479
  %v512 = vadd.f32 %v416, %v480
  %v513 = vadd.f32 %v417, %v481
  %v514 = vadd.f32 %v418, %v482
  %v515 = vadd.f32 %v419, %v483
  %v516 = vadd.f32 %v420, %v484
  %v517 = vadd.f32 %v421, %v485
  %v518 = vadd.f32 %v422, %v486
  %v519 = vadd.f32 %v423, %v487
  %v520 = vadd.f32 %v424, %v488
  %v521 = vadd.f32 %v425, %v489
  %v522 = vadd.f32 %v426, %v490
  %v523 = vadd.f32 %v427, %v491
  %v524 = vadd.f32 %v428, %v492
  %v525 = vpack.c.bf16 %v494, %v493
  %v526 = vpack.c.bf16 %v496, %v495
  %v527 = vpack.c.bf16 %v498, %v497
  %v528 = vpack.c.bf16 %v500, %v499
  %v529 = vpack.c.bf16 %v502, %v501
  %v530 = vpack.c.bf16 %v504, %v503
  %v531 = vpack.c.bf16 %v506, %v505
  %v532 = vpack.c.bf16 %v508, %v507
  %v533 = vpack.c.bf16 %v510, %v509
  %v534 = vpack.c.bf16 %v512, %v511
  %v535 = vpack.c.bf16 %v514, %v513
  %v536 = vpack.c.bf16 %v516, %v515
  %v537 = vpack.c.bf16 %v518, %v517
  %v538 = vpack.c.bf16 %v520, %v519
  %v539 = vpack.c.bf16 %v522, %v521
  %v540 = vpack.c.bf16 %v524, %v523
  %v557 = vunpack.c.l.b16 %v525
  %v558 = vunpack.c.h.b16 %v525
  %v559 = vunpack.c.l.b16 %v526
  %v560 = vunpack.c.h.b16 %v526
  %v561 = vunpack.c.l.b16 %v527
  %v562 = vunpack.c.h.b16 %v527
  %v563 = vunpack.c.l.b16 %v528
  %v564 = vunpack.c.h.b16 %v528
  %v565 = vunpack.c.l.b16 %v529
  %v566 = vunpack.c.h.b16 %v529
  %v567 = vunpack.c.l.b16 %v530
  %v568 = vunpack.c.h.b16 %v530
  %v569 = vunpack.c.l.b16 %v531
  %v570 = vunpack.c.h.b16 %v531
  %v571 = vunpack.c.l.b16 %v532
  %v572 = vunpack.c.h.b16 %v532
  %v573 = vunpack.c.l.b16 %v533
  %v574 = vunpack.c.h.b16 %v533
  %v575 = vunpack.c.l.b16 %v534
  %v576 = vunpack.c.h.b16 %v534
  %v577 = vunpack.c.l.b16 %v535
  %v578 = vunpack.c.h.b16 %v535
  %v579 = vunpack.c.l.b16 %v536
  %v580 = vunpack.c.h.b16 %v536
  %v581 = vunpack.c.l.b16 %v537
  %v582 = vunpack.c.h.b16 %v537
  %v583 = vunpack.c.l.b16 %v538
  %v584 = vunpack.c.h.b16 %v538
  %v585 = vunpack.c.l.b16 %v539
  %v586 = vunpack.c.h.b16 %v539
  %v587 = vunpack.c.l.b16 %v540
  %v588 = vunpack.c.h.b16 %v540
  %v589 = vpack.c.b16 %v557, %v557
  %v590 = vpack.c.b16 %v558, %v558
  %v591 = vpack.c.b16 %v559, %v559
  %v592 = vpack.c.b16 %v560, %v560
  %v593 = vpack.c.b16 %v561, %v561
  %v594 = vpack.c.b16 %v562, %v562
  %v595 = vpack.c.b16 %v563, %v563
  %v596 = vpack.c.b16 %v564, %v564
  %v597 = vpack.c.b16 %v565, %v565
  %v598 = vpack.c.b16 %v566, %v566
  %v599 = vpack.c.b16 %v567, %v567
  %v600 = vpack.c.b16 %v568, %v568
  %v601 = vpack.c.b16 %v569, %v569
  %v602 = vpack.c.b16 %v570, %v570
  %v603 = vpack.c.b16 %v571, %v571
  %v604 = vpack.c.b16 %v572, %v572
  %v605 = vpack.c.b16 %v573, %v573
  %v606 = vpack.c.b16 %v574, %v574
  %v607 = vpack.c.b16 %v575, %v575
  %v608 = vpack.c.b16 %v576, %v576
  %v609 = vpack.c.b16 %v577, %v577
  %v610 = vpack.c.b16 %v578, %v578
  %v611 = vpack.c.b16 %v579, %v579
  %v612 = vpack.c.b16 %v580, %v580
  %v613 = vpack.c.b16 %v581, %v581
  %v614 = vpack.c.b16 %v582, %v582
  %v615 = vpack.c.b16 %v583, %v583
  %v616 = vpack.c.b16 %v584, %v584
  %v617 = vpack.c.b16 %v585, %v585
  %v618 = vpack.c.b16 %v586, %v586
  %v619 = vpack.c.b16 %v587, %v587
  %v620 = vpack.c.b16 %v588, %v588
  %vm653 = vcmask 388096
  %654 = vst.msk [vmem:[%s5] sm:$0xf] %vm653, %v589
  %655 = vst.msk [vmem:[%s5 + $0x4] sm:$0xf] %vm653, %v590
  %656 = vst.msk [vmem:[%s5 + $0x8] sm:$0xf] %vm653, %v591
  %657 = vst.msk [vmem:[%s5 + $0xc] sm:$0xf] %vm653, %v592
  %658 = vst.msk [vmem:[%s5 + $0x10] sm:$0xf] %vm653, %v593
  %659 = vst.msk [vmem:[%s5 + $0x14] sm:$0xf] %vm653, %v594
  %660 = vst.msk [vmem:[%s5 + $0x18] sm:$0xf] %vm653, %v595
  %661 = vst.msk [vmem:[%s5 + $0x1c] sm:$0xf] %vm653, %v596
  %662 = vst.msk [vmem:[%s5 + $0x20] sm:$0xf] %vm653, %v597
  %663 = vst.msk [vmem:[%s5 + $0x24] sm:$0xf] %vm653, %v598
  %664 = vst.msk [vmem:[%s5 + $0x28] sm:$0xf] %vm653, %v599
  %665 = vst.msk [vmem:[%s5 + $0x2c] sm:$0xf] %vm653, %v600
  %666 = vst.msk [vmem:[%s5 + $0x30] sm:$0xf] %vm653, %v601
  %667 = vst.msk [vmem:[%s5 + $0x34] sm:$0xf] %vm653, %v602
  %668 = vst.msk [vmem:[%s5 + $0x38] sm:$0xf] %vm653, %v603
  %669 = vst.msk [vmem:[%s5 + $0x3c] sm:$0xf] %vm653, %v604
  %670 = vst.msk [vmem:[%s5 + $0x40] sm:$0xf] %vm653, %v605
  %671 = vst.msk [vmem:[%s5 + $0x44] sm:$0xf] %vm653, %v606
  %672 = vst.msk [vmem:[%s5 + $0x48] sm:$0xf] %vm653, %v607
  %673 = vst.msk [vmem:[%s5 + $0x4c] sm:$0xf] %vm653, %v608
  %674 = vst.msk [vmem:[%s5 + $0x50] sm:$0xf] %vm653, %v609
  %675 = vst.msk [vmem:[%s5 + $0x54] sm:$0xf] %vm653, %v610
  %676 = vst.msk [vmem:[%s5 + $0x58] sm:$0xf] %vm653, %v611
  %677 = vst.msk [vmem:[%s5 + $0x5c] sm:$0xf] %vm653, %v612
  %678 = vst.msk [vmem:[%s5 + $0x60] sm:$0xf] %vm653, %v613
  %679 = vst.msk [vmem:[%s5 + $0x64] sm:$0xf] %vm653, %v614
  %680 = vst.msk [vmem:[%s5 + $0x68] sm:$0xf] %vm653, %v615
  %681 = vst.msk [vmem:[%s5 + $0x6c] sm:$0xf] %vm653, %v616
  %682 = vst.msk [vmem:[%s5 + $0x70] sm:$0xf] %vm653, %v617
  %683 = vst.msk [vmem:[%s5 + $0x74] sm:$0xf] %vm653, %v618
  %684 = vst.msk [vmem:[%s5 + $0x78] sm:$0xf] %vm653, %v619
  %685 = vst.msk [vmem:[%s5 + $0x7c] sm:$0xf] %vm653, %v620
  // Predicated region
  $region22: #{_lambda_.40} parent=0 // pred_check
    _
  $region23: #{_lambda_.40} parent=0 // pred_check_branch
    %687 = sbr.rel (0) target = $region25
  $region24: #{_lambda_.40} parent=0 // pred_region
    _
  $region25: #{_lambda_.40} parent=0 // pred_fallthru
    _
  // Predicated region
  $region26: #{_lambda_.40} parent=0 // pred_check
    _
  $region27: #{_lambda_.40} parent=0 // pred_check_branch
    %689 = sbr.rel (0) target = $region29
  $region28: #{_lambda_.40} parent=0 // pred_region
    _
  $region29: #{_lambda_.40} parent=0 // pred_fallthru
    _

// kernel: _lambda_.41
$region0: #{_lambda_.41}
  #allocation0 [shape = 'u32[]', space=smem, size = 0x4, offset = 0x4, fixed_abs, tag = 'smem constant byte address 0x4 - core index']
  #allocation1 [shape = 'u32[144,128]{1,0:T(1,128)}', space=vmem, size = 0x12000, scoped, tag = 'internal scratch']
  %s0 = inlined_call_operand.vmem [shape: bf16[256,432], index: 0, kind: input, shape index: {}]
  %s1 = inlined_call_operand.vmem [shape: bf16[432,16], index: 1, kind: input, shape index: {}]
  %s2 = inlined_call_operand.vmem [shape: f32[1,16], index: 2, kind: input, shape index: {}]
  %s3 = inlined_call_operand.vmem [shape: f32[1,16], index: 3, kind: input, shape index: {}]
  %s4 = inlined_call_operand.vmem [shape: f32[256,16], index: 4, kind: output, shape index: {}]
  %s5 = sld [smem:[#allocation0]]
  $region26: #{_lambda_.41} parent=0
    _
  %s7 = ssub.s32 1, %s5
  %s8 = scalar_select 0, %s7, %s5
  // Predicated region
  $region2: #{_lambda_.41} parent=0 // pred_check
    _
  $region3: #{_lambda_.41} parent=0 // pred_check_branch
    %10 = sbr.rel (0) target = $region5
  $region4: #{_lambda_.41} parent=0 // pred_region
    _
  $region5: #{_lambda_.41} parent=0 // pred_fallthru
    _
  // Predicated region
  $region6: #{_lambda_.41} parent=0 // pred_check
    _
  $region7: #{_lambda_.41} parent=0 // pred_check_branch
    %12 = sbr.rel (0) target = $region9
  $region8: #{_lambda_.41} parent=0 // pred_region
    _
  $region9: #{_lambda_.41} parent=0 // pred_fallthru
    _
  // Predicated region
  $region10: #{_lambda_.41} parent=0 // pred_check
    _
  $region11: #{_lambda_.41} parent=0 // pred_check_branch
    %14 = sbr.rel (0) target = $region13
  $region12: #{_lambda_.41} parent=0 // pred_region
    _
  $region13: #{_lambda_.41} parent=0 // pred_fallthru
    _
  // Predicated region
  $region14: #{_lambda_.41} parent=0 // pred_check
    _
  $region15: #{_lambda_.41} parent=0 // pred_check_branch
    %16 = sbr.rel (0) target = $region17
  $region16: #{_lambda_.41} parent=0 // pred_region
    _
  $region17: #{_lambda_.41} parent=0 // pred_fallthru
    _
  %v18 = vld [vmem:[%s0] sm:$0xff]
  %v19 = vld [vmem:[%s0 + $0x8] sm:$0xff]
  %v20 = vld [vmem:[%s0 + $0x10] sm:$0xff]
  %v21 = vld [vmem:[%s0 + $0x18] sm:$0xff]
  %v22 = vld [vmem:[%s0 + $0x20] sm:$0xff]
  %v23 = vld [vmem:[%s0 + $0x28] sm:$0xff]
  %v24 = vld [vmem:[%s0 + $0x30] sm:$0xff]
  %v25 = vld [vmem:[%s0 + $0x38] sm:$0xff]
  %v26 = vld [vmem:[%s0 + $0x40] sm:$0xff]
  %v27 = vld [vmem:[%s0 + $0x48] sm:$0xff]
  %v28 = vld [vmem:[%s0 + $0x50] sm:$0xff]
  %v29 = vld [vmem:[%s0 + $0x58] sm:$0xff]
  %v30 = vld [vmem:[%s0 + $0x60] sm:$0xff]
  %v31 = vld [vmem:[%s0 + $0x68] sm:$0xff]
  %v32 = vld [vmem:[%s0 + $0x70] sm:$0xff]
  %v33 = vld [vmem:[%s0 + $0x78] sm:$0xff]
  %v34 = vld [vmem:[%s0 + $0x80] sm:$0xff]
  %v35 = vld [vmem:[%s0 + $0x88] sm:$0xff]
  %v36 = vld [vmem:[%s0 + $0x90] sm:$0xff]
  %v37 = vld [vmem:[%s0 + $0x98] sm:$0xff]
  %v38 = vld [vmem:[%s0 + $0xa0] sm:$0xff]
  %v39 = vld [vmem:[%s0 + $0xa8] sm:$0xff]
  %v40 = vld [vmem:[%s0 + $0xb0] sm:$0xff]
  %v41 = vld [vmem:[%s0 + $0xb8] sm:$0xff]
  %v42 = vld [vmem:[%s0 + $0xc0] sm:$0xff]
  %v43 = vld [vmem:[%s0 + $0xc8] sm:$0xff]
  %v44 = vld [vmem:[%s0 + $0xd0] sm:$0xff]
  %v45 = vld [vmem:[%s0 + $0xd8] sm:$0xff]
  %v46 = vld [vmem:[%s0 + $0xe0] sm:$0xff]
  %v47 = vld [vmem:[%s0 + $0xe8] sm:$0xff]
  %v48 = vld [vmem:[%s0 + $0xf0] sm:$0xff]
  %v49 = vld [vmem:[%s0 + $0xf8] sm:$0xff]
  %v50 = vld [vmem:[%s0 + $0x100] sm:$0xff]
  %v51 = vld [vmem:[%s0 + $0x108] sm:$0xff]
  %v52 = vld [vmem:[%s0 + $0x110] sm:$0xff]
  %v53 = vld [vmem:[%s0 + $0x118] sm:$0xff]
  %v54 = vld [vmem:[%s0 + $0x120] sm:$0xff]
  %v55 = vld [vmem:[%s0 + $0x128] sm:$0xff]
  %v56 = vld [vmem:[%s0 + $0x130] sm:$0xff]
  %v57 = vld [vmem:[%s0 + $0x138] sm:$0xff]
  %v58 = vld [vmem:[%s0 + $0x140] sm:$0xff]
  %v59 = vld [vmem:[%s0 + $0x148] sm:$0xff]
  %v60 = vld [vmem:[%s0 + $0x150] sm:$0xff]
  %v61 = vld [vmem:[%s0 + $0x158] sm:$0xff]
  %v62 = vld [vmem:[%s0 + $0x160] sm:$0xff]
  %v63 = vld [vmem:[%s0 + $0x168] sm:$0xff]
  %v64 = vld [vmem:[%s0 + $0x170] sm:$0xff]
  %v65 = vld [vmem:[%s0 + $0x178] sm:$0xff]
  %v66 = vld [vmem:[%s0 + $0x180] sm:$0xff]
  %v67 = vld [vmem:[%s0 + $0x188] sm:$0xff]
  %v68 = vld [vmem:[%s0 + $0x190] sm:$0xff]
  %v69 = vld [vmem:[%s0 + $0x198] sm:$0xff]
  %v70 = vld [vmem:[%s0 + $0x1a0] sm:$0xff]
  %v71 = vld [vmem:[%s0 + $0x1a8] sm:$0xff]
  %v72 = vld [vmem:[%s0 + $0x1b0] sm:$0xff]
  %v73 = vld [vmem:[%s0 + $0x1b8] sm:$0xff]
  %v74 = vld [vmem:[%s0 + $0x1c0] sm:$0xff]
  %v75 = vld [vmem:[%s0 + $0x1c8] sm:$0xff]
  %v76 = vld [vmem:[%s0 + $0x1d0] sm:$0xff]
  %v77 = vld [vmem:[%s0 + $0x1d8] sm:$0xff]
  %v78 = vld [vmem:[%s0 + $0x1e0] sm:$0xff]
  %v79 = vld [vmem:[%s0 + $0x1e8] sm:$0xff]
  %v80 = vld [vmem:[%s0 + $0x1f0] sm:$0xff]
  %v81 = vld [vmem:[%s0 + $0x1f8] sm:$0xff]
  %v82 = vld [vmem:[%s1] sm:$0xf]
  %v83 = vld [vmem:[%s1 + $0x4] sm:$0xf]
  %v84 = vld [vmem:[%s1 + $0x8] sm:$0xf]
  %v85 = vld [vmem:[%s1 + $0xc] sm:$0xf]
  %v86 = vld [vmem:[%s1 + $0x10] sm:$0xf]
  %v87 = vld [vmem:[%s1 + $0x14] sm:$0xf]
  %v88 = vld [vmem:[%s1 + $0x18] sm:$0xf]
  %v89 = vld [vmem:[%s1 + $0x1c] sm:$0xf]
  %v90 = vld [vmem:[%s1 + $0x20] sm:$0xf]
  %v91 = vld [vmem:[%s1 + $0x24] sm:$0xf]
  %v92 = vld [vmem:[%s1 + $0x28] sm:$0xf]
  %v93 = vld [vmem:[%s1 + $0x2c] sm:$0xf]
  %v94 = vld [vmem:[%s1 + $0x30] sm:$0xf]
  %v95 = vld [vmem:[%s1 + $0x34] sm:$0xf]
  %v96 = vld [vmem:[%s1 + $0x38] sm:$0xf]
  %v97 = vld [vmem:[%s1 + $0x3c] sm:$0xf]
  %v98 = vld [vmem:[%s1 + $0x40] sm:$0xf]
  %v99 = vld [vmem:[%s1 + $0x44] sm:$0xf]
  %v100 = vld [vmem:[%s1 + $0x48] sm:$0xf]
  %v101 = vld [vmem:[%s1 + $0x4c] sm:$0xf]
  %v102 = vld [vmem:[%s1 + $0x50] sm:$0xf]
  %v103 = vld [vmem:[%s1 + $0x54] sm:$0xf]
  %v104 = vld [vmem:[%s1 + $0x58] sm:$0xf]
  %v105 = vld [vmem:[%s1 + $0x5c] sm:$0xf]
  %v106 = vld [vmem:[%s1 + $0x60] sm:$0xf]
  %v107 = vld [vmem:[%s1 + $0x64] sm:$0xf]
  %v108 = vld [vmem:[%s1 + $0x68] sm:$0xf]
  %v109 = vld [vmem:[%s1 + $0x6c] sm:$0xf]
  %v110 = vld [vmem:[%s1 + $0x70] sm:$0xf]
  %v111 = vld [vmem:[%s1 + $0x74] sm:$0xf]
  %v112 = vld [vmem:[%s1 + $0x78] sm:$0xf]
  %v113 = vld [vmem:[%s1 + $0x7c] sm:$0xf]
  %v114 = vld [vmem:[%s1 + $0x80] sm:$0xf]
  %v115 = vld [vmem:[%s1 + $0x84] sm:$0xf]
  %v116 = vld [vmem:[%s1 + $0x88] sm:$0xf]
  %v117 = vld [vmem:[%s1 + $0x8c] sm:$0xf]
  %v118 = vld [vmem:[%s1 + $0x90] sm:$0xf]
  %v119 = vld [vmem:[%s1 + $0x94] sm:$0xf]
  %v120 = vld [vmem:[%s1 + $0x98] sm:$0xf]
  %v121 = vld [vmem:[%s1 + $0x9c] sm:$0xf]
  %v122 = vld [vmem:[%s1 + $0xa0] sm:$0xf]
  %v123 = vld [vmem:[%s1 + $0xa4] sm:$0xf]
  %v124 = vld [vmem:[%s1 + $0xa8] sm:$0xf]
  %v125 = vld [vmem:[%s1 + $0xac] sm:$0xf]
  %v126 = vld [vmem:[%s1 + $0xb0] sm:$0xf]
  %v127 = vld [vmem:[%s1 + $0xb4] sm:$0xf]
  %v128 = vld [vmem:[%s1 + $0xb8] sm:$0xf]
  %v129 = vld [vmem:[%s1 + $0xbc] sm:$0xf]
  %v130 = vld [vmem:[%s1 + $0xc0] sm:$0xf]
  %v131 = vld [vmem:[%s1 + $0xc4] sm:$0xf]
  %v132 = vld [vmem:[%s1 + $0xc8] sm:$0xf]
  %v133 = vld [vmem:[%s1 + $0xcc] sm:$0xf]
  %v134 = vld [vmem:[%s1 + $0xd0] sm:$0xf]
  %v135 = vld [vmem:[%s1 + $0xd4] sm:$0xf]
  %v200 = vunpack.c.l.b16 %v18
  %v201 = vunpack.c.h.b16 %v18
  %v202 = vunpack.c.l.b16 %v19
  %v203 = vunpack.c.h.b16 %v19
  %v204 = vunpack.c.l.b16 %v20
  %v205 = vunpack.c.h.b16 %v20
  %v206 = vunpack.c.l.b16 %v21
  %v207 = vunpack.c.h.b16 %v21
  %v208 = vunpack.c.l.b16 %v22
  %v209 = vunpack.c.h.b16 %v22
  %v210 = vunpack.c.l.b16 %v23
  %v211 = vunpack.c.h.b16 %v23
  %v212 = vunpack.c.l.b16 %v24
  %v213 = vunpack.c.h.b16 %v24
  %v214 = vunpack.c.l.b16 %v25
  %v215 = vunpack.c.h.b16 %v25
  %v216 = vunpack.c.l.b16 %v26
  %v217 = vunpack.c.h.b16 %v26
  %v218 = vunpack.c.l.b16 %v27
  %v219 = vunpack.c.h.b16 %v27
  %v220 = vunpack.c.l.b16 %v28
  %v221 = vunpack.c.h.b16 %v28
  %v222 = vunpack.c.l.b16 %v29
  %v223 = vunpack.c.h.b16 %v29
  %v224 = vunpack.c.l.b16 %v30
  %v225 = vunpack.c.h.b16 %v30
  %v226 = vunpack.c.l.b16 %v31
  %v227 = vunpack.c.h.b16 %v31
  %v228 = vunpack.c.l.b16 %v32
  %v229 = vunpack.c.h.b16 %v32
  %v230 = vunpack.c.l.b16 %v33
  %v231 = vunpack.c.h.b16 %v33
  %v232 = vunpack.c.l.b16 %v34
  %v233 = vunpack.c.h.b16 %v34
  %v234 = vunpack.c.l.b16 %v35
  %v235 = vunpack.c.h.b16 %v35
  %v236 = vunpack.c.l.b16 %v36
  %v237 = vunpack.c.h.b16 %v36
  %v238 = vunpack.c.l.b16 %v37
  %v239 = vunpack.c.h.b16 %v37
  %v240 = vunpack.c.l.b16 %v38
  %v241 = vunpack.c.h.b16 %v38
  %v242 = vunpack.c.l.b16 %v39
  %v243 = vunpack.c.h.b16 %v39
  %v244 = vunpack.c.l.b16 %v40
  %v245 = vunpack.c.h.b16 %v40
  %v246 = vunpack.c.l.b16 %v41
  %v247 = vunpack.c.h.b16 %v41
  %v248 = vunpack.c.l.b16 %v42
  %v249 = vunpack.c.h.b16 %v42
  %v250 = vunpack.c.l.b16 %v43
  %v251 = vunpack.c.h.b16 %v43
  %v252 = vunpack.c.l.b16 %v44
  %v253 = vunpack.c.h.b16 %v44
  %v254 = vunpack.c.l.b16 %v45
  %v255 = vunpack.c.h.b16 %v45
  %v256 = vunpack.c.l.b16 %v46
  %v257 = vunpack.c.h.b16 %v46
  %v258 = vunpack.c.l.b16 %v47
  %v259 = vunpack.c.h.b16 %v47
  %v260 = vunpack.c.l.b16 %v48
  %v261 = vunpack.c.h.b16 %v48
  %v262 = vunpack.c.l.b16 %v49
  %v263 = vunpack.c.h.b16 %v49
  %v264 = vunpack.c.l.b16 %v50
  %v265 = vunpack.c.h.b16 %v50
  %v266 = vunpack.c.l.b16 %v51
  %v267 = vunpack.c.h.b16 %v51
  %v268 = vunpack.c.l.b16 %v52
  %v269 = vunpack.c.h.b16 %v52
  %v270 = vunpack.c.l.b16 %v53
  %v271 = vunpack.c.h.b16 %v53
  %v272 = vunpack.c.l.b16 %v54
  %v273 = vunpack.c.h.b16 %v54
  %v274 = vunpack.c.l.b16 %v55
  %v275 = vunpack.c.h.b16 %v55
  %v276 = vunpack.c.l.b16 %v56
  %v277 = vunpack.c.h.b16 %v56
  %v278 = vunpack.c.l.b16 %v57
  %v279 = vunpack.c.h.b16 %v57
  %v280 = vunpack.c.l.b16 %v58
  %v281 = vunpack.c.h.b16 %v58
  %v282 = vunpack.c.l.b16 %v59
  %v283 = vunpack.c.h.b16 %v59
  %v284 = vunpack.c.l.b16 %v60
  %v285 = vunpack.c.h.b16 %v60
  %v286 = vunpack.c.l.b16 %v61
  %v287 = vunpack.c.h.b16 %v61
  %v288 = vunpack.c.l.b16 %v62
  %v289 = vunpack.c.h.b16 %v62
  %v290 = vunpack.c.l.b16 %v63
  %v291 = vunpack.c.h.b16 %v63
  %v292 = vunpack.c.l.b16 %v64
  %v293 = vunpack.c.h.b16 %v64
  %v294 = vunpack.c.l.b16 %v65
  %v295 = vunpack.c.h.b16 %v65
  %v296 = vunpack.c.l.b16 %v66
  %v297 = vunpack.c.h.b16 %v66
  %v298 = vunpack.c.l.b16 %v67
  %v299 = vunpack.c.h.b16 %v67
  %v300 = vunpack.c.l.b16 %v68
  %v301 = vunpack.c.h.b16 %v68
  %v302 = vunpack.c.l.b16 %v69
  %v303 = vunpack.c.h.b16 %v69
  %v304 = vunpack.c.l.b16 %v70
  %v305 = vunpack.c.h.b16 %v70
  %v306 = vunpack.c.l.b16 %v71
  %v307 = vunpack.c.h.b16 %v71
  %v308 = vunpack.c.l.b16 %v72
  %v309 = vunpack.c.h.b16 %v72
  %v310 = vunpack.c.l.b16 %v73
  %v311 = vunpack.c.h.b16 %v73
  %v312 = vunpack.c.l.b16 %v74
  %v313 = vunpack.c.h.b16 %v74
  %v314 = vunpack.c.l.b16 %v75
  %v315 = vunpack.c.h.b16 %v75
  %v316 = vunpack.c.l.b16 %v76
  %v317 = vunpack.c.h.b16 %v76
  %v318 = vunpack.c.l.b16 %v77
  %v319 = vunpack.c.h.b16 %v77
  %v320 = vunpack.c.l.b16 %v78
  %v321 = vunpack.c.h.b16 %v78
  %v322 = vunpack.c.l.b16 %v79
  %v323 = vunpack.c.h.b16 %v79
  %v324 = vunpack.c.l.b16 %v80
  %v325 = vunpack.c.h.b16 %v80
  %v326 = vunpack.c.l.b16 %v81
  %v327 = vunpack.c.h.b16 %v81
  %v328 = vpack.c.b16 %v204, %v200
  %v329 = vpack.c.b16 %v205, %v201
  %v330 = vpack.c.b16 %v206, %v202
  %v331 = vpack.c.b16 %v207, %v203
  %v332 = vpack.c.b16 %v212, %v208
  %v333 = vpack.c.b16 %v213, %v209
  %v334 = vpack.c.b16 %v214, %v210
  %v335 = vpack.c.b16 %v215, %v211
  %v336 = vpack.c.b16 %v220, %v216
  %v337 = vpack.c.b16 %v221, %v217
  %v338 = vpack.c.b16 %v222, %v218
  %v339 = vpack.c.b16 %v223, %v219
  %v340 = vpack.c.b16 %v228, %v224
  %v341 = vpack.c.b16 %v229, %v225
  %v342 = vpack.c.b16 %v230, %v226
  %v343 = vpack.c.b16 %v231, %v227
  %v344 = vpack.c.b16 %v236, %v232
  %v345 = vpack.c.b16 %v237, %v233
  %v346 = vpack.c.b16 %v238, %v234
  %v347 = vpack.c.b16 %v239, %v235
  %v348 = vpack.c.b16 %v244, %v240
  %v349 = vpack.c.b16 %v245, %v241
  %v350 = vpack.c.b16 %v246, %v242
  %v351 = vpack.c.b16 %v247, %v243
  %v352 = vpack.c.b16 %v252, %v248
  %v353 = vpack.c.b16 %v253, %v249
  %v354 = vpack.c.b16 %v254, %v250
  %v355 = vpack.c.b16 %v255, %v251
  %v356 = vpack.c.b16 %v260, %v256
  %v357 = vpack.c.b16 %v261, %v257
  %v358 = vpack.c.b16 %v262, %v258
  %v359 = vpack.c.b16 %v263, %v259
  %v360 = vpack.c.b16 %v268, %v264
  %v361 = vpack.c.b16 %v269, %v265
  %v362 = vpack.c.b16 %v270, %v266
  %v363 = vpack.c.b16 %v271, %v267
  %v364 = vpack.c.b16 %v276, %v272
  %v365 = vpack.c.b16 %v277, %v273
  %v366 = vpack.c.b16 %v278, %v274
  %v367 = vpack.c.b16 %v279, %v275
  %v368 = vpack.c.b16 %v284, %v280
  %v369 = vpack.c.b16 %v285, %v281
  %v370 = vpack.c.b16 %v286, %v282
  %v371 = vpack.c.b16 %v287, %v283
  %v372 = vpack.c.b16 %v292, %v288
  %v373 = vpack.c.b16 %v293, %v289
  %v374 = vpack.c.b16 %v294, %v290
  %v375 = vpack.c.b16 %v295, %v291
  %v376 = vpack.c.b16 %v300, %v296
  %v377 = vpack.c.b16 %v301, %v297
  %v378 = vpack.c.b16 %v302, %v298
  %v379 = vpack.c.b16 %v303, %v299
  %v380 = vpack.c.b16 %v308, %v304
  %v381 = vpack.c.b16 %v309, %v305
  %v382 = vpack.c.b16 %v310, %v306
  %v383 = vpack.c.b16 %v311, %v307
  %v384 = vpack.c.b16 %v316, %v312
  %v385 = vpack.c.b16 %v317, %v313
  %v386 = vpack.c.b16 %v318, %v314
  %v387 = vpack.c.b16 %v319, %v315
  %v388 = vpack.c.b16 %v324, %v320
  %v389 = vpack.c.b16 %v325, %v321
  %v390 = vpack.c.b16 %v326, %v322
  %v391 = vpack.c.b16 %v327, %v323
  %v494 = vunpack.c.l.b16 %v82
  %v495 = vunpack.c.l.b16 %v83
  %v496 = vunpack.c.l.b16 %v84
  %v497 = vunpack.c.l.b16 %v85
  %v498 = vunpack.c.l.b16 %v86
  %v499 = vunpack.c.l.b16 %v87
  %v500 = vunpack.c.l.b16 %v88
  %v501 = vunpack.c.l.b16 %v89
  %v502 = vunpack.c.l.b16 %v90
  %v503 = vunpack.c.l.b16 %v91
  %v504 = vunpack.c.l.b16 %v92
  %v505 = vunpack.c.l.b16 %v93
  %v506 = vunpack.c.l.b16 %v94
  %v507 = vunpack.c.l.b16 %v95
  %v508 = vunpack.c.l.b16 %v96
  %v509 = vunpack.c.l.b16 %v97
  %v510 = vunpack.c.l.b16 %v98
  %v511 = vunpack.c.l.b16 %v99
  %v512 = vunpack.c.l.b16 %v100
  %v513 = vunpack.c.l.b16 %v101
  %v514 = vunpack.c.l.b16 %v102
  %v515 = vunpack.c.l.b16 %v103
  %v516 = vunpack.c.l.b16 %v104
  %v517 = vunpack.c.l.b16 %v105
  %v518 = vunpack.c.l.b16 %v106
  %v519 = vunpack.c.l.b16 %v107
  %v520 = vunpack.c.l.b16 %v108
  %v521 = vunpack.c.l.b16 %v109
  %v522 = vunpack.c.l.b16 %v110
  %v523 = vunpack.c.l.b16 %v111
  %v524 = vunpack.c.l.b16 %v112
  %v525 = vunpack.c.l.b16 %v113
  %v526 = vunpack.c.l.b16 %v114
  %v527 = vunpack.c.l.b16 %v115
  %v528 = vunpack.c.l.b16 %v116
  %v529 = vunpack.c.l.b16 %v117
  %v530 = vunpack.c.l.b16 %v118
  %v531 = vunpack.c.l.b16 %v119
  %v532 = vunpack.c.l.b16 %v120
  %v533 = vunpack.c.l.b16 %v121
  %v534 = vunpack.c.l.b16 %v122
  %v535 = vunpack.c.l.b16 %v123
  %v536 = vunpack.c.l.b16 %v124
  %v537 = vunpack.c.l.b16 %v125
  %v538 = vunpack.c.l.b16 %v126
  %v539 = vunpack.c.l.b16 %v127
  %v540 = vunpack.c.l.b16 %v128
  %v541 = vunpack.c.l.b16 %v129
  %v542 = vunpack.c.l.b16 %v130
  %v543 = vunpack.c.l.b16 %v131
  %v544 = vunpack.c.l.b16 %v132
  %v545 = vunpack.c.l.b16 %v133
  %v546 = vunpack.c.l.b16 %v134
  %v547 = vunpack.c.l.b16 %v135
  %v548 = vpack.c.b16 %v495, %v494
  %v549 = vpack.c.b16 %v497, %v496
  %v550 = vpack.c.b16 %v499, %v498
  %v551 = vpack.c.b16 %v501, %v500
  %v552 = vpack.c.b16 %v503, %v502
  %v553 = vpack.c.b16 %v505, %v504
  %v554 = vpack.c.b16 %v507, %v506
  %v555 = vpack.c.b16 %v509, %v508
  %v556 = vpack.c.b16 %v511, %v510
  %v557 = vpack.c.b16 %v513, %v512
  %v558 = vpack.c.b16 %v515, %v514
  %v559 = vpack.c.b16 %v517, %v516
  %v560 = vpack.c.b16 %v519, %v518
  %v561 = vpack.c.b16 %v521, %v520
  %v562 = vpack.c.b16 %v523, %v522
  %v563 = vpack.c.b16 %v525, %v524
  %v564 = vpack.c.b16 %v527, %v526
  %v565 = vpack.c.b16 %v529, %v528
  %v566 = vpack.c.b16 %v531, %v530
  %v567 = vpack.c.b16 %v533, %v532
  %v568 = vpack.c.b16 %v535, %v534
  %v569 = vpack.c.b16 %v537, %v536
  %v570 = vpack.c.b16 %v539, %v538
  %v571 = vpack.c.b16 %v541, %v540
  %v572 = vpack.c.b16 %v543, %v542
  %v573 = vpack.c.b16 %v545, %v544
  %v574 = vpack.c.b16 %v547, %v546
  %vm602 = vcmask 392192
  %v604 = vsel %vm602, %v331, 0
  %v607 = vsel %vm602, %v335, 0
  %v610 = vsel %vm602, %v339, 0
  %v613 = vsel %vm602, %v343, 0
  %v616 = vsel %vm602, %v347, 0
  %v619 = vsel %vm602, %v351, 0
  %v622 = vsel %vm602, %v355, 0
  %v625 = vsel %vm602, %v359, 0
  %v628 = vsel %vm602, %v363, 0
  %v631 = vsel %vm602, %v367, 0
  %v634 = vsel %vm602, %v371, 0
  %v637 = vsel %vm602, %v375, 0
  %v640 = vsel %vm602, %v379, 0
  %v643 = vsel %vm602, %v383, 0
  %v646 = vsel %vm602, %v387, 0
  %v649 = vsel %vm602, %v391, 0
  %651 = vmatprep.subr.bf16.mxu0 0
  %652 = vmatpush1.bf16.msra.mxu0 %v548
  %653 = vmatprep.subr.bf16.mxu0 0
  %654 = vmatpush1.bf16.msra.mxu0 %v549
  %655 = vmatprep.subr.bf16.mxu0 0
  %656 = vmatpush1.bf16.msra.mxu0 %v550
  %657 = vmatprep.subr.bf16.mxu0 0
  %658 = vmatpush1.bf16.msra.mxu0 %v551
  %659 = vmatprep.subr.bf16.mxu0 0
  %660 = vmatpush1.bf16.msra.mxu0 %v552
  %661 = vmatprep.subr.bf16.mxu0 0
  %662 = vmatpush1.bf16.msra.mxu0 %v553
  %663 = vmatprep.subr.bf16.mxu0 0
  %664 = vmatpush1.bf16.msra.mxu0 %v554
  %665 = vmatprep.subr.bf16.mxu0 0
  %666 = vmatpush1.bf16.msra.mxu0 %v555
  %667 = vmatprep.subr.bf16.mxu0 0
  %668 = vmatpush1.bf16.msra.mxu0 %v556
  %669 = vmatprep.subr.bf16.mxu0 0
  %670 = vmatpush1.bf16.msra.mxu0 %v557
  %671 = vmatprep.subr.bf16.mxu0 0
  %672 = vmatpush1.bf16.msra.mxu0 %v558
  %673 = vmatprep.subr.bf16.mxu0 0
  %674 = vmatpush1.bf16.msra.mxu0 %v559
  %675 = vmatprep.subr.bf16.mxu0 0
  %676 = vmatpush1.bf16.msra.mxu0 %v560
  %677 = vmatprep.subr.bf16.mxu0 0
  %678 = vmatpush1.bf16.msra.mxu0 %v561
  %679 = vmatprep.subr.bf16.mxu0 0
  %680 = vmatpush1.bf16.msra.mxu0 %v562
  %681 = vmatprep.subr.bf16.mxu0 0
  %682 = vmatpush1.bf16.msra.mxu0 %v563
  %683 = vmatprep.mubr.bf16.mxu0 %v329
  %684 = vmatmul.mubr.bf16.gmra.mrb[0].mxu0 %v328
  %v685 = vpop.f32.mrb[0].mxu0
  %v686 = vadd.f32 0.0, %v685
  %v687 = vpop.f32.mrb[0].mxu0
  %v688 = vpop.f32.mrb[0].mxu0
  %v689 = vadd.f32 0.0, %v688
  %v690 = vpop.f32.mrb[0].mxu0
  %691 = vmatprep.mubr.bf16.mxu0 %v333
  %692 = vmatmul.mubr.bf16.gmra.mrb[0].mxu0 %v332
  %v693 = vpop.f32.mrb[0].mxu0
  %v694 = vadd.f32 0.0, %v693
  %v695 = vpop.f32.mrb[0].mxu0
  %v696 = vpop.f32.mrb[0].mxu0
  %v697 = vadd.f32 0.0, %v696
  %v698 = vpop.f32.mrb[0].mxu0
  %699 = vmatprep.mubr.bf16.mxu0 %v337
  %700 = vmatmul.mubr.bf16.gmra.mrb[0].mxu0 %v336
  %v701 = vpop.f32.mrb[0].mxu0
  %v702 = vadd.f32 0.0, %v701
  %v703 = vpop.f32.mrb[0].mxu0
  %v704 = vpop.f32.mrb[0].mxu0
  %v705 = vadd.f32 0.0, %v704
  %v706 = vpop.f32.mrb[0].mxu0
  %707 = vmatprep.mubr.bf16.mxu0 %v341
  %708 = vmatmul.mubr.bf16.gmra.mrb[0].mxu0 %v340
  %v709 = vpop.f32.mrb[0].mxu0
  %v710 = vadd.f32 0.0, %v709
  %v711 = vpop.f32.mrb[0].mxu0
  %v712 = vpop.f32.mrb[0].mxu0
  %v713 = vadd.f32 0.0, %v712
  %v714 = vpop.f32.mrb[0].mxu0
  %715 = vmatprep.mubr.bf16.mxu0 %v345
  %716 = vmatmul.mubr.bf16.gmra.mrb[0].mxu0 %v344
  %v717 = vpop.f32.mrb[0].mxu0
  %v718 = vadd.f32 0.0, %v717
  %v719 = vpop.f32.mrb[0].mxu0
  %v720 = vpop.f32.mrb[0].mxu0
  %v721 = vadd.f32 0.0, %v720
  %v722 = vpop.f32.mrb[0].mxu0
  %723 = vmatprep.mubr.bf16.mxu0 %v349
  %724 = vmatmul.mubr.bf16.gmra.mrb[0].mxu0 %v348
  %v725 = vpop.f32.mrb[0].mxu0
  %v726 = vadd.f32 0.0, %v725
  %v727 = vpop.f32.mrb[0].mxu0
  %v728 = vpop.f32.mrb[0].mxu0
  %v729 = vadd.f32 0.0, %v728
  %v730 = vpop.f32.mrb[0].mxu0
  %731 = vmatprep.mubr.bf16.mxu0 %v353
  %732 = vmatmul.mubr.bf16.gmra.mrb[0].mxu0 %v352
  %v733 = vpop.f32.mrb[0].mxu0
  %v734 = vadd.f32 0.0, %v733
  %v735 = vpop.f32.mrb[0].mxu0
  %v736 = vpop.f32.mrb[0].mxu0
  %v737 = vadd.f32 0.0, %v736
  %v738 = vpop.f32.mrb[0].mxu0
  %739 = vmatprep.mubr.bf16.mxu0 %v357
  %740 = vmatmul.mubr.bf16.gmra.mrb[0].mxu0 %v356
  %v741 = vpop.f32.mrb[0].mxu0
  %v742 = vadd.f32 0.0, %v741
  %v743 = vpop.f32.mrb[0].mxu0
  %v744 = vpop.f32.mrb[0].mxu0
  %v745 = vadd.f32 0.0, %v744
  %v746 = vpop.f32.mrb[0].mxu0
  %747 = vmatprep.mubr.bf16.mxu0 %v361
  %748 = vmatmul.mubr.bf16.gmra.mrb[0].mxu0 %v360
  %v749 = vpop.f32.mrb[0].mxu0
  %v750 = vadd.f32 0.0, %v749
  %v751 = vpop.f32.mrb[0].mxu0
  %v752 = vpop.f32.mrb[0].mxu0
  %v753 = vadd.f32 0.0, %v752
  %v754 = vpop.f32.mrb[0].mxu0
  %755 = vmatprep.mubr.bf16.mxu0 %v365
  %756 = vmatmul.mubr.bf16.gmra.mrb[0].mxu0 %v364
  %v757 = vpop.f32.mrb[0].mxu0
  %v758 = vadd.f32 0.0, %v757
  %v759 = vpop.f32.mrb[0].mxu0
  %v760 = vpop.f32.mrb[0].mxu0
  %v761 = vadd.f32 0.0, %v760
  %v762 = vpop.f32.mrb[0].mxu0
  %763 = vmatprep.mubr.bf16.mxu0 %v369
  %764 = vmatmul.mubr.bf16.gmra.mrb[0].mxu0 %v368
  %v765 = vpop.f32.mrb[0].mxu0
  %v766 = vadd.f32 0.0, %v765
  %v767 = vpop.f32.mrb[0].mxu0
  %v768 = vpop.f32.mrb[0].mxu0
  %v769 = vadd.f32 0.0, %v768
  %v770 = vpop.f32.mrb[0].mxu0
  %771 = vmatprep.mubr.bf16.mxu0 %v373
  %772 = vmatmul.mubr.bf16.gmra.mrb[0].mxu0 %v372
  %v773 = vpop.f32.mrb[0].mxu0
  %v774 = vadd.f32 0.0, %v773
  %v775 = vpop.f32.mrb[0].mxu0
  %v776 = vpop.f32.mrb[0].mxu0
  %v777 = vadd.f32 0.0, %v776
  %v778 = vpop.f32.mrb[0].mxu0
  %779 = vmatprep.mubr.bf16.mxu0 %v377
  %780 = vmatmul.mubr.bf16.gmra.mrb[0].mxu0 %v376
  %v781 = vpop.f32.mrb[0].mxu0
  %v782 = vadd.f32 0.0, %v781
  %v783 = vpop.f32.mrb[0].mxu0
  %v784 = vpop.f32.mrb[0].mxu0
  %v785 = vadd.f32 0.0, %v784
  %v786 = vpop.f32.mrb[0].mxu0
  %787 = vmatprep.mubr.bf16.mxu0 %v381
  %788 = vmatmul.mubr.bf16.gmra.mrb[0].mxu0 %v380
  %v789 = vpop.f32.mrb[0].mxu0
  %v790 = vadd.f32 0.0, %v789
  %v791 = vpop.f32.mrb[0].mxu0
  %v792 = vpop.f32.mrb[0].mxu0
  %v793 = vadd.f32 0.0, %v792
  %v794 = vpop.f32.mrb[0].mxu0
  %795 = vmatprep.mubr.bf16.mxu0 %v385
  %796 = vmatmul.mubr.bf16.gmra.mrb[0].mxu0 %v384
  %v797 = vpop.f32.mrb[0].mxu0
  %v798 = vadd.f32 0.0, %v797
  %v799 = vpop.f32.mrb[0].mxu0
  %v800 = vpop.f32.mrb[0].mxu0
  %v801 = vadd.f32 0.0, %v800
  %v802 = vpop.f32.mrb[0].mxu0
  %803 = vmatprep.mubr.bf16.mxu0 %v389
  %804 = vmatmul.mubr.bf16.gmra.mrb[0].mxu0 %v388
  %v805 = vpop.f32.mrb[0].mxu0
  %v806 = vadd.f32 0.0, %v805
  %v807 = vpop.f32.mrb[0].mxu0
  %v808 = vpop.f32.mrb[0].mxu0
  %v809 = vadd.f32 0.0, %v808
  %v810 = vpop.f32.mrb[0].mxu0
  %811 = vdwg.mxu0
  %812 = vmatprep.subr.bf16.mxu0 0
  %813 = vmatpush1.bf16.msra.mxu0 %v564
  %814 = vmatprep.subr.bf16.mxu0 0
  %815 = vmatpush1.bf16.msra.mxu0 %v565
  %816 = vmatprep.subr.bf16.mxu0 0
  %817 = vmatpush1.bf16.msra.mxu0 %v566
  %818 = vmatprep.subr.bf16.mxu0 0
  %819 = vmatpush1.bf16.msra.mxu0 %v567
  %820 = vmatprep.subr.bf16.mxu0 0
  %821 = vmatpush1.bf16.msra.mxu0 %v568
  %822 = vmatprep.subr.bf16.mxu0 0
  %823 = vmatpush1.bf16.msra.mxu0 %v569
  %824 = vmatprep.subr.bf16.mxu0 0
  %825 = vmatpush1.bf16.msra.mxu0 %v570
  %826 = vmatprep.subr.bf16.mxu0 0
  %827 = vmatpush1.bf16.msra.mxu0 %v571
  %828 = vmatprep.subr.bf16.mxu0 0
  %829 = vmatpush1.bf16.msra.mxu0 %v572
  %830 = vmatprep.subr.bf16.mxu0 0
  %831 = vmatpush1.bf16.msra.mxu0 %v573
  %832 = vmatprep.subr.bf16.mxu0 0
  %833 = vmatpush1.bf16.msra.mxu0 %v574
  %834 = vmatprep.subr.bf16.mxu0 0
  %835 = vmatpush1.bf16.msra.mxu0 0
  %836 = vmatprep.subr.bf16.mxu0 0
  %837 = vmatpush1.bf16.msra.mxu0 0
  %838 = vmatprep.subr.bf16.mxu0 0
  %839 = vmatpush1.bf16.msra.mxu0 0
  %840 = vmatprep.subr.bf16.mxu0 0
  %841 = vmatpush1.bf16.msra.mxu0 0
  %842 = vmatprep.subr.bf16.mxu0 0
  %843 = vmatpush1.bf16.msra.mxu0 0
  %844 = vmatprep.mubr.bf16.mxu0 %v604
  %845 = vmatmul.mubr.bf16.gmra.mrb[0].mxu0 %v330
  %v846 = vpop.f32.mrb[0].mxu0
  %v847 = vadd.f32 %v686, %v846
  %v848 = vpop.f32.mrb[0].mxu0
  %v849 = vpop.f32.mrb[0].mxu0
  %v850 = vadd.f32 %v689, %v849
  %v851 = vpop.f32.mrb[0].mxu0
  %852 = vmatprep.mubr.bf16.mxu0 %v607
  %853 = vmatmul.mubr.bf16.gmra.mrb[0].mxu0 %v334
  %v854 = vpop.f32.mrb[0].mxu0
  %v855 = vadd.f32 %v694, %v854
  %v856 = vpop.f32.mrb[0].mxu0
  %v857 = vpop.f32.mrb[0].mxu0
  %v858 = vadd.f32 %v697, %v857
  %v859 = vpop.f32.mrb[0].mxu0
  %860 = vmatprep.mubr.bf16.mxu0 %v610
  %861 = vmatmul.mubr.bf16.gmra.mrb[0].mxu0 %v338
  %v862 = vpop.f32.mrb[0].mxu0
  %v863 = vadd.f32 %v702, %v862
  %v864 = vpop.f32.mrb[0].mxu0
  %v865 = vpop.f32.mrb[0].mxu0
  %v866 = vadd.f32 %v705, %v865
  %v867 = vpop.f32.mrb[0].mxu0
  %868 = vmatprep.mubr.bf16.mxu0 %v613
  %869 = vmatmul.mubr.bf16.gmra.mrb[0].mxu0 %v342
  %v870 = vpop.f32.mrb[0].mxu0
  %v871 = vadd.f32 %v710, %v870
  %v872 = vpop.f32.mrb[0].mxu0
  %v873 = vpop.f32.mrb[0].mxu0
  %v874 = vadd.f32 %v713, %v873
  %v875 = vpop.f32.mrb[0].mxu0
  %876 = vmatprep.mubr.bf16.mxu0 %v616
  %877 = vmatmul.mubr.bf16.gmra.mrb[0].mxu0 %v346
  %v878 = vpop.f32.mrb[0].mxu0
  %v879 = vadd.f32 %v718, %v878
  %v880 = vpop.f32.mrb[0].mxu0
  %v881 = vpop.f32.mrb[0].mxu0
  %v882 = vadd.f32 %v721, %v881
  %v883 = vpop.f32.mrb[0].mxu0
  %884 = vmatprep.mubr.bf16.mxu0 %v619
  %885 = vmatmul.mubr.bf16.gmra.mrb[0].mxu0 %v350
  %v886 = vpop.f32.mrb[0].mxu0
  %v887 = vadd.f32 %v726, %v886
  %v888 = vpop.f32.mrb[0].mxu0
  %v889 = vpop.f32.mrb[0].mxu0
  %v890 = vadd.f32 %v729, %v889
  %v891 = vpop.f32.mrb[0].mxu0
  %892 = vmatprep.mubr.bf16.mxu0 %v622
  %893 = vmatmul.mubr.bf16.gmra.mrb[0].mxu0 %v354
  %v894 = vpop.f32.mrb[0].mxu0
  %v895 = vadd.f32 %v734, %v894
  %v896 = vpop.f32.mrb[0].mxu0
  %v897 = vpop.f32.mrb[0].mxu0
  %v898 = vadd.f32 %v737, %v897
  %v899 = vpop.f32.mrb[0].mxu0
  %900 = vmatprep.mubr.bf16.mxu0 %v625
  %901 = vmatmul.mubr.bf16.gmra.mrb[0].mxu0 %v358
  %v902 = vpop.f32.mrb[0].mxu0
  %v903 = vadd.f32 %v742, %v902
  %v904 = vpop.f32.mrb[0].mxu0
  %v905 = vpop.f32.mrb[0].mxu0
  %v906 = vadd.f32 %v745, %v905
  %v907 = vpop.f32.mrb[0].mxu0
  %908 = vmatprep.mubr.bf16.mxu0 %v628
  %909 = vmatmul.mubr.bf16.gmra.mrb[0].mxu0 %v362
  %v910 = vpop.f32.mrb[0].mxu0
  %v911 = vadd.f32 %v750, %v910
  %v912 = vpop.f32.mrb[0].mxu0
  %v913 = vpop.f32.mrb[0].mxu0
  %v914 = vadd.f32 %v753, %v913
  %v915 = vpop.f32.mrb[0].mxu0
  %916 = vmatprep.mubr.bf16.mxu0 %v631
  %917 = vmatmul.mubr.bf16.gmra.mrb[0].mxu0 %v366
  %v918 = vpop.f32.mrb[0].mxu0
  %v919 = vadd.f32 %v758, %v918
  %v920 = vpop.f32.mrb[0].mxu0
  %v921 = vpop.f32.mrb[0].mxu0
  %v922 = vadd.f32 %v761, %v921
  %v923 = vpop.f32.mrb[0].mxu0
  %924 = vmatprep.mubr.bf16.mxu0 %v634
  %925 = vmatmul.mubr.bf16.gmra.mrb[0].mxu0 %v370
  %v926 = vpop.f32.mrb[0].mxu0
  %v927 = vadd.f32 %v766, %v926
  %v928 = vpop.f32.mrb[0].mxu0
  %v929 = vpop.f32.mrb[0].mxu0
  %v930 = vadd.f32 %v769, %v929
  %v931 = vpop.f32.mrb[0].mxu0
  %932 = vmatprep.mubr.bf16.mxu0 %v637
  %933 = vmatmul.mubr.bf16.gmra.mrb[0].mxu0 %v374
  %v934 = vpop.f32.mrb[0].mxu0
  %v935 = vadd.f32 %v774, %v934
  %v936 = vpop.f32.mrb[0].mxu0
  %v937 = vpop.f32.mrb[0].mxu0
  %v938 = vadd.f32 %v777, %v937
  %v939 = vpop.f32.mrb[0].mxu0
  %940 = vmatprep.mubr.bf16.mxu0 %v640
  %941 = vmatmul.mubr.bf16.gmra.mrb[0].mxu0 %v378
  %v942 = vpop.f32.mrb[0].mxu0
  %v943 = vadd.f32 %v782, %v942
  %v944 = vpop.f32.mrb[0].mxu0
  %v945 = vpop.f32.mrb[0].mxu0
  %v946 = vadd.f32 %v785, %v945
  %v947 = vpop.f32.mrb[0].mxu0
  %948 = vmatprep.mubr.bf16.mxu0 %v643
  %949 = vmatmul.mubr.bf16.gmra.mrb[0].mxu0 %v382
  %v950 = vpop.f32.mrb[0].mxu0
  %v951 = vadd.f32 %v790, %v950
  %v952 = vpop.f32.mrb[0].mxu0
  %v953 = vpop.f32.mrb[0].mxu0
  %v954 = vadd.f32 %v793, %v953
  %v955 = vpop.f32.mrb[0].mxu0
  %956 = vmatprep.mubr.bf16.mxu0 %v646
  %957 = vmatmul.mubr.bf16.gmra.mrb[0].mxu0 %v386
  %v958 = vpop.f32.mrb[0].mxu0
  %v959 = vadd.f32 %v798, %v958
  %v960 = vpop.f32.mrb[0].mxu0
  %v961 = vpop.f32.mrb[0].mxu0
  %v962 = vadd.f32 %v801, %v961
  %v963 = vpop.f32.mrb[0].mxu0
  %964 = vmatprep.mubr.bf16.mxu0 %v649
  %965 = vmatmul.mubr.bf16.gmra.mrb[0].mxu0 %v390
  %v966 = vpop.f32.mrb[0].mxu0
  %v967 = vadd.f32 %v806, %v966
  %v968 = vpop.f32.mrb[0].mxu0
  %v969 = vpop.f32.mrb[0].mxu0
  %v970 = vadd.f32 %v809, %v969
  %v971 = vpop.f32.mrb[0].mxu0
  %972 = vdwg.mxu0
  %v973 = vld [vmem:[%s2] sm:$0x1]
  %v975 = vlaneseq
  %v976 = vshrl.u32 %v975, 7
  %v977 = vsub.s32 0, %v976
  %v978 = vrot.slane %v973, %v977
  %v980 = vmul.f32 %v847, %v978
  %v981 = vmul.f32 %v850, %v978
  %v982 = vmul.f32 %v855, %v978
  %v983 = vmul.f32 %v858, %v978
  %v984 = vmul.f32 %v863, %v978
  %v985 = vmul.f32 %v866, %v978
  %v986 = vmul.f32 %v871, %v978
  %v987 = vmul.f32 %v874, %v978
  %v988 = vmul.f32 %v879, %v978
  %v989 = vmul.f32 %v882, %v978
  %v990 = vmul.f32 %v887, %v978
  %v991 = vmul.f32 %v890, %v978
  %v992 = vmul.f32 %v895, %v978
  %v993 = vmul.f32 %v898, %v978
  %v994 = vmul.f32 %v903, %v978
  %v995 = vmul.f32 %v906, %v978
  %v996 = vmul.f32 %v911, %v978
  %v997 = vmul.f32 %v914, %v978
  %v998 = vmul.f32 %v919, %v978
  %v999 = vmul.f32 %v922, %v978
  %v1000 = vmul.f32 %v927, %v978
  %v1001 = vmul.f32 %v930, %v978
  %v1002 = vmul.f32 %v935, %v978
  %v1003 = vmul.f32 %v938, %v978
  %v1004 = vmul.f32 %v943, %v978
  %v1005 = vmul.f32 %v946, %v978
  %v1006 = vmul.f32 %v951, %v978
  %v1007 = vmul.f32 %v954, %v978
  %v1008 = vmul.f32 %v959, %v978
  %v1009 = vmul.f32 %v962, %v978
  %v1010 = vmul.f32 %v967, %v978
  %v1011 = vmul.f32 %v970, %v978
  %v1012 = vld [vmem:[%s3] sm:$0x1]
  %v1014 = vlaneseq
  %v1015 = vshrl.u32 %v1014, 7
  %v1016 = vsub.s32 0, %v1015
  %v1017 = vrot.slane %v1012, %v1016
  %v1019 = vadd.f32 %v980, %v1017
  %v1020 = vadd.f32 %v981, %v1017
  %v1021 = vadd.f32 %v982, %v1017
  %v1022 = vadd.f32 %v983, %v1017
  %v1023 = vadd.f32 %v984, %v1017
  %v1024 = vadd.f32 %v985, %v1017
  %v1025 = vadd.f32 %v986, %v1017
  %v1026 = vadd.f32 %v987, %v1017
  %v1027 = vadd.f32 %v988, %v1017
  %v1028 = vadd.f32 %v989, %v1017
  %v1029 = vadd.f32 %v990, %v1017
  %v1030 = vadd.f32 %v991, %v1017
  %v1031 = vadd.f32 %v992, %v1017
  %v1032 = vadd.f32 %v993, %v1017
  %v1033 = vadd.f32 %v994, %v1017
  %v1034 = vadd.f32 %v995, %v1017
  %v1035 = vadd.f32 %v996, %v1017
  %v1036 = vadd.f32 %v997, %v1017
  %v1037 = vadd.f32 %v998, %v1017
  %v1038 = vadd.f32 %v999, %v1017
  %v1039 = vadd.f32 %v1000, %v1017
  %v1040 = vadd.f32 %v1001, %v1017
  %v1041 = vadd.f32 %v1002, %v1017
  %v1042 = vadd.f32 %v1003, %v1017
  %v1043 = vadd.f32 %v1004, %v1017
  %v1044 = vadd.f32 %v1005, %v1017
  %v1045 = vadd.f32 %v1006, %v1017
  %v1046 = vadd.f32 %v1007, %v1017
  %v1047 = vadd.f32 %v1008, %v1017
  %v1048 = vadd.f32 %v1009, %v1017
  %v1049 = vadd.f32 %v1010, %v1017
  %v1050 = vadd.f32 %v1011, %v1017
  %vm1051 = vcmask 130048
  %1052 = vst.msk [vmem:[%s4] sm:$0xff] %vm1051, %v1019
  %1053 = vst.msk [vmem:[%s4 + $0x8] sm:$0xff] %vm1051, %v1020
  %1054 = vst.msk [vmem:[%s4 + $0x10] sm:$0xff] %vm1051, %v1021
  %1055 = vst.msk [vmem:[%s4 + $0x18] sm:$0xff] %vm1051, %v1022
  %1056 = vst.msk [vmem:[%s4 + $0x20] sm:$0xff] %vm1051, %v1023
  %1057 = vst.msk [vmem:[%s4 + $0x28] sm:$0xff] %vm1051, %v1024
  %1058 = vst.msk [vmem:[%s4 + $0x30] sm:$0xff] %vm1051, %v1025
  %1059 = vst.msk [vmem:[%s4 + $0x38] sm:$0xff] %vm1051, %v1026
  %1060 = vst.msk [vmem:[%s4 + $0x40] sm:$0xff] %vm1051, %v1027
  %1061 = vst.msk [vmem:[%s4 + $0x48] sm:$0xff] %vm1051, %v1028
  %1062 = vst.msk [vmem:[%s4 + $0x50] sm:$0xff] %vm1051, %v1029
  %1063 = vst.msk [vmem:[%s4 + $0x58] sm:$0xff] %vm1051, %v1030
  %1064 = vst.msk [vmem:[%s4 + $0x60] sm:$0xff] %vm1051, %v1031
  %1065 = vst.msk [vmem:[%s4 + $0x68] sm:$0xff] %vm1051, %v1032
  %1066 = vst.msk [vmem:[%s4 + $0x70] sm:$0xff] %vm1051, %v1033
  %1067 = vst.msk [vmem:[%s4 + $0x78] sm:$0xff] %vm1051, %v1034
  %1068 = vst.msk [vmem:[%s4 + $0x80] sm:$0xff] %vm1051, %v1035
  %1069 = vst.msk [vmem:[%s4 + $0x88] sm:$0xff] %vm1051, %v1036
  %1070 = vst.msk [vmem:[%s4 + $0x90] sm:$0xff] %vm1051, %v1037
  %1071 = vst.msk [vmem:[%s4 + $0x98] sm:$0xff] %vm1051, %v1038
  %1072 = vst.msk [vmem:[%s4 + $0xa0] sm:$0xff] %vm1051, %v1039
  %1073 = vst.msk [vmem:[%s4 + $0xa8] sm:$0xff] %vm1051, %v1040
  %1074 = vst.msk [vmem:[%s4 + $0xb0] sm:$0xff] %vm1051, %v1041
  %1075 = vst.msk [vmem:[%s4 + $0xb8] sm:$0xff] %vm1051, %v1042
  %1076 = vst.msk [vmem:[%s4 + $0xc0] sm:$0xff] %vm1051, %v1043
  %1077 = vst.msk [vmem:[%s4 + $0xc8] sm:$0xff] %vm1051, %v1044
  %1078 = vst.msk [vmem:[%s4 + $0xd0] sm:$0xff] %vm1051, %v1045
  %1079 = vst.msk [vmem:[%s4 + $0xd8] sm:$0xff] %vm1051, %v1046
  %1080 = vst.msk [vmem:[%s4 + $0xe0] sm:$0xff] %vm1051, %v1047
  %1081 = vst.msk [vmem:[%s4 + $0xe8] sm:$0xff] %vm1051, %v1048
  %1082 = vst.msk [vmem:[%s4 + $0xf0] sm:$0xff] %vm1051, %v1049
  %1083 = vst.msk [vmem:[%s4 + $0xf8] sm:$0xff] %vm1051, %v1050
  // Predicated region
  $region18: #{_lambda_.41} parent=0 // pred_check
    _
  $region19: #{_lambda_.41} parent=0 // pred_check_branch
    %1085 = sbr.rel (0) target = $region21
  $region20: #{_lambda_.41} parent=0 // pred_region
    _
  $region21: #{_lambda_.41} parent=0 // pred_fallthru
    _
  // Predicated region
  $region22: #{_lambda_.41} parent=0 // pred_check
    _
  $region23: #{_lambda_.41} parent=0 // pred_check_branch
    %1087 = sbr.rel (0) target = $region25
  $region24: #{_lambda_.41} parent=0 // pred_region
    _
  $region25: #{_lambda_.41} parent=0 // pred_fallthru
    _

</llo_original>
